<compile_context>
chip_gen: v5e
topology: v5e:2x2
jax: 0.10.0
libtpu: 0.0.40
codegen_flags: <defaults>
</compile_context>

<pallas_src>
import functools

import jax
import jax.numpy as jnp
from jax.experimental import pallas as pl
from jax.experimental.pallas import tpu as pltpu


def _round_up(x, m):
    return (x + m - 1) // m * m


# ----------------------------------------------------------------------------
# Runtime configuration (generation-aware VMEM budget, Buffered(1) support).
# ----------------------------------------------------------------------------
def _compute_vmem_limit():
    phys = 0
    try:
        info = pltpu.get_tpu_info()
        phys = int(getattr(info, "vmem_capacity_bytes", 0) or 0)
    except Exception:
        phys = 0
    if phys >= 128 * 1024 * 1024:          # v5e / v6e: 128 MiB physical
        return 96 * 1024 * 1024
    if phys > 0:                           # v7x: 64 MiB physical per core
        return min(phys * 3 // 4, 96 * 1024 * 1024)
    return 48 * 1024 * 1024                # unknown: safe everywhere


_VMEM_LIMIT = _compute_vmem_limit()


def _probe_kernel(x_ref, o_ref):
    o_ref[...] = x_ref[...] * 2.0


def _probe_buffered():
    """Check that pipeline_mode=pl.Buffered(1) is accepted end-to-end."""
    try:
        if not hasattr(pl, "Buffered"):
            return False
        spec = pl.BlockSpec((8, 128), lambda i: (0, 0),
                            pipeline_mode=pl.Buffered(1))
        out = pl.pallas_call(
            _probe_kernel,
            out_shape=jax.ShapeDtypeStruct((8, 128), jnp.float32),
            grid=(1,),
            in_specs=[spec],
            out_specs=pl.BlockSpec((8, 128), lambda i: (0, 0)),
        )(jnp.ones((8, 128), jnp.float32))
        jax.block_until_ready(out)
        return True
    except Exception:
        return False


_BUFFERED_OK = _probe_buffered()


def _const_spec(block_shape, index_map):
    """BlockSpec for (near-)constant-index inputs: single-buffer when possible
    (whh alone is Hp*4Hp*2 B -- double-buffering it is pure VMEM waste)."""
    if _BUFFERED_OK:
        return pl.BlockSpec(block_shape, index_map,
                            pipeline_mode=pl.Buffered(1))
    return pl.BlockSpec(block_shape, index_map)


# ----------------------------------------------------------------------------
# Tiled matmul + bias kernel (decoder):  out = x @ w + b
# x: (M, K) bf16, w: (K, N) bf16, b: (1, N) f32.  N is a multiple of 128.
# ----------------------------------------------------------------------------
def _matmul_bias_kernel(x_ref, w_ref, b_ref, o_ref):
    o_ref[...] = (jnp.dot(x_ref[...], w_ref[...],
                          preferred_element_type=jnp.float32)
                  + b_ref[...]).astype(o_ref.dtype)


def matmul_bias(x, w, b):
    M, K = x.shape
    Kw, N = w.shape
    assert K == Kw and N % 128 == 0, (x.shape, w.shape)
    xb = jnp.dtype(x.dtype).itemsize
    wb = jnp.dtype(w.dtype).itemsize

    # Lane tile: 256 suits the 256-wide MXU of v6e/v7x; 128 otherwise.
    tn = 256 if N % 256 == 0 else 128

    # Row tile: as large as the VMEM budget allows (fewer re-streams of the
    # (K, N) weight; 512+-row tiles get ~85% of the HBM roofline vs ~29% @128).
    budget = int(_VMEM_LIMIT * 0.6)
    fixed = 2 * (K * tn * wb + tn * 4)
    per_row = 2 * (K * xb + tn * 4)
    tm_cap = max(8, (budget - fixed) // max(per_row, 1))
    tm_cap = max(8, (tm_cap // 8) * 8)
    tm_cap = min(tm_cap, 2048, _round_up(M, 8))
    nbm = -(-M // tm_cap)
    tm = _round_up(-(-M // nbm), 8)
    Mp = tm * nbm
    if Mp != M:
        x = jnp.pad(x, ((0, Mp - M), (0, 0)))

    out = pl.pallas_call(
        _matmul_bias_kernel,
        out_shape=jax.ShapeDtypeStruct((Mp, N), jnp.float32),
        grid=(Mp // tm, N // tn),
        in_specs=[
            pl.BlockSpec((tm, K), lambda i, j: (i, 0)),
            pl.BlockSpec((K, tn), lambda i, j: (0, j)),
            pl.BlockSpec((1, tn), lambda i, j: (0, j)),
        ],
        out_specs=pl.BlockSpec((tm, tn), lambda i, j: (i, j)),
        compiler_params=pltpu.CompilerParams(
            dimension_semantics=("parallel", "parallel"),
            vmem_limit_bytes=_VMEM_LIMIT,
        ),
    )(x, w, b)
    return out[:M] if Mp != M else out


# ----------------------------------------------------------------------------
# Fused LSTM layer kernel: per time chunk, compute the input projection with
# one MXU matmul into VMEM scratch, then run the recurrence off that scratch.
# Grid = (batch_blocks, time_chunks); h/c live in VMEM scratch across chunks.
# All activation blocks are flat 2-D (rows, features) slabs => lane-dense,
# no in-kernel relayout.
# ----------------------------------------------------------------------------
def _lstm_layer_kernel(x_ref, wih_ref, whh_ref, bias_ref, h0_ref, c0_ref,
                       y_ref, hT_ref, cT_ref,
                       gx_sc, y_sc, h_sc, c_sc,
                       *, t_chunk, t_true, hp, bb, unroll, needs_guard):
    tb = pl.program_id(1)

    @pl.when(tb == 0)
    def _init():
        h_sc[...] = h0_ref[...]
        c_sc[...] = c0_ref[...]

    # Fused input projection for the whole chunk: (tc*bb, In_p) @ (In_p, 4Hp)
    # plus combined bias, straight into VMEM (gates_x never touches HBM).
    gx_sc[...] = (jnp.dot(x_ref[...], wih_ref[...],
                          preferred_element_type=jnp.float32)
                  + bias_ref[...])

    t0 = tb * t_chunk

    def _step_body(t):
        row = pl.multiple_of(t * bb, 8)
        h_b = h_sc[...].astype(jnp.bfloat16)

        # Per-gate recurrent matmuls against lane-aligned column slices of
        # W_hh: keeps few gate-sized f32 tensors live and overlaps EUP
        # sigmoid/tanh of gate g with the MXU push of gate g+1.
        # TODO(synk): hold W_hh in MXU weight registers across steps via
        # pltpu.matmul_push_rhs/matmul_acc_lhs for the tiny-batch regime.
        def gate(g):
            return (gx_sc[pl.ds(row, bb), pl.ds(g * hp, hp)]
                    + jnp.dot(h_b, whh_ref[:, pl.ds(g * hp, hp)],
                              preferred_element_type=jnp.float32))

        i_g = jax.nn.sigmoid(gate(0))
        f_g = jax.nn.sigmoid(gate(1))
        g_g = jnp.tanh(gate(2))
        o_g = jax.nn.sigmoid(gate(3))

        c_new = f_g * c_sc[...] + i_g * g_g
        h_new = o_g * jnp.tanh(c_new)
        c_sc[...] = c_new
        h_sc[...] = h_new
        y_sc[pl.ds(row, bb), :] = h_new       # f32 scratch: aligned (8,128)

    def step(t, carry):
        if needs_guard:
            @pl.when(t0 + t < t_true)
            def _():
                _step_body(t)
        else:
            _step_body(t)
        return carry

    jax.lax.fori_loop(0, t_chunk, step, 0, unroll=unroll)

    # One lane-dense full-block store of the chunk's outputs (avoids dynamic
    # sublane-offset stores on the packed bf16 output).
    y_ref[...] = y_sc[...].astype(y_ref.dtype)

    @pl.when(tb == pl.num_programs(1) - 1)
    def _final():
        hT_ref[...] = h_sc[...]
        cT_ref[...] = c_sc[...]


def lstm_layer(x, wih_t, whh_t, bias, h0, c0):
    """x: (T, Bp, In_p) bf16;  wih_t: (In_p, 4Hp) bf16;  whh_t: (Hp, 4Hp) bf16;
    bias: (1, 4Hp) f32;  h0, c0: (Bp, Hp) f32.
    Returns y: (T, Bp, Hp) bf16, hT, cT: (Bp, Hp) f32."""
    T, Bp, In_p = x.shape
    Hp = whh_t.shape[0]

    # Dual-TensorCore (v7x) batch split: independent halves on a leading
    # "parallel" grid axis (no-op when Bp < 16 / on 1-TC chips).
    nb = 2 if (Bp >= 16 and Bp % 16 == 0) else 1
    bb = Bp // nb

    w_bufs = 1 if _BUFFERED_OK else 2

    def footprint(tcand):
        rows = tcand * bb
        return (2 * rows * In_p * 2                    # x blocks (bf16 x2)
                + 2 * rows * Hp * 2                    # y blocks (bf16 x2)
                + rows * 4 * Hp * 4                    # gx scratch (f32)
                + rows * Hp * 4                        # y scratch (f32)
                + w_bufs * ((In_p + Hp) * 4 * Hp * 2 + 4 * Hp * 4)  # weights
                + (2 + 2 * w_bufs) * bb * Hp * 4)      # h/c scratch + h0/c0

    # Time chunk: as large as the VMEM budget allows; pad T to a multiple so
    # odd/prime T never degrades to a per-step grid.
    tc_max = 32
    while tc_max > 8 and footprint(tc_max) > int(_VMEM_LIMIT * 0.8):
        tc_max //= 2
    tc_max = min(tc_max, T)
    n_chunks = -(-T // tc_max)
    tc = -(-T // n_chunks)
    t_pad = tc * n_chunks
    needs_guard = t_pad != T
    unroll = tc if tc <= 8 else 8

    if t_pad != T:
        x = jnp.pad(x, ((0, t_pad - T), (0, 0), (0, 0)))

    # Present every kernel block as a flat 2-D (rows, features) slab.
    if nb == 1:
        x_k = x.reshape(1, t_pad * Bp, In_p)
    else:
        x_k = (x.reshape(t_pad, nb, bb, In_p)
                .transpose(1, 0, 2, 3)
                .reshape(nb, t_pad * bb, In_p))
    h0_k = h0.reshape(nb, bb, Hp)
    c0_k = c0.reshape(nb, bb, Hp)

    kernel = functools.partial(
        _lstm_layer_kernel, t_chunk=tc, t_true=T, hp=Hp, bb=bb,
        unroll=unroll, needs_guard=needs_guard)

    y_k, hT_k, cT_k = pl.pallas_call(
        kernel,
        out_shape=(
            jax.ShapeDtypeStruct((nb, t_pad * bb, Hp), jnp.bfloat16),
            jax.ShapeDtypeStruct((nb, bb, Hp), jnp.float32),
            jax.ShapeDtypeStruct((nb, bb, Hp), jnp.float32),
        ),
        grid=(nb, t_pad // tc),
        in_specs=[
            pl.BlockSpec((None, tc * bb, In_p), lambda b, t: (b, t, 0)),
            _const_spec((In_p, 4 * Hp), lambda b, t: (0, 0)),
            _const_spec((Hp, 4 * Hp), lambda b, t: (0, 0)),
            _const_spec((1, 4 * Hp), lambda b, t: (0, 0)),
            _const_spec((None, bb, Hp), lambda b, t: (b, 0, 0)),
            _const_spec((None, bb, Hp), lambda b, t: (b, 0, 0)),
        ],
        out_specs=[
            pl.BlockSpec((None, tc * bb, Hp), lambda b, t: (b, t, 0)),
            pl.BlockSpec((None, bb, Hp), lambda b, t: (b, 0, 0)),
            pl.BlockSpec((None, bb, Hp), lambda b, t: (b, 0, 0)),
        ],
        scratch_shapes=[
            pltpu.VMEM((tc * bb, 4 * Hp), jnp.float32),   # gates_x
            pltpu.VMEM((tc * bb, Hp), jnp.float32),       # chunk outputs
            pltpu.VMEM((bb, Hp), jnp.float32),            # h
            pltpu.VMEM((bb, Hp), jnp.float32),            # c
        ],
        compiler_params=pltpu.CompilerParams(
            dimension_semantics=("parallel", "arbitrary"),
            vmem_limit_bytes=_VMEM_LIMIT,
        ),
    )(x_k, wih_t, whh_t, bias, h0_k, c0_k)

    if nb == 1:
        y = y_k.reshape(t_pad, Bp, Hp)
    else:
        y = (y_k.reshape(nb, t_pad, bb, Hp)
               .transpose(1, 0, 2, 3)
               .reshape(t_pad, Bp, Hp))
    hT = hT_k.reshape(Bp, Hp)
    cT = cT_k.reshape(Bp, Hp)
    return (y[:T] if t_pad != T else y), hT, cT


# ----------------------------------------------------------------------------
# Parameters: logical (PyTorch-layout, f32) params + packing into padded,
# pre-transposed bf16 kernel layout.
# ----------------------------------------------------------------------------
def init_params(key, ntoken, ninp, nhid, nlayers, nhidlast):
    initrange = 0.05
    keys = jax.random.split(key, 2 + 4 * nlayers)
    params = {}
    params["encoder"] = jax.random.uniform(
        keys[0], (ntoken, ninp), jnp.float32, -initrange, initrange)
    params["decoder_w"] = jax.random.uniform(
        keys[1], (ntoken, nhidlast), jnp.float32, -initrange, initrange)
    params["decoder_b"] = jnp.zeros((ntoken,), jnp.float32)

    layers = []
    for l in range(nlayers):
        in_size = ninp if l == 0 else nhid
        h_size = nhid if l != nlayers - 1 else nhidlast
        std = 1.0 / float(h_size) ** 0.5
        k = keys[2 + 4 * l: 2 + 4 * (l + 1)]
        layers.append({
            "w_ih": jax.random.uniform(k[0], (4 * h_size, in_size),
                                       jnp.float32, -std, std),
            "w_hh": jax.random.uniform(k[1], (4 * h_size, h_size),
                                       jnp.float32, -std, std),
            "b_ih": jax.random.uniform(k[2], (4 * h_size,),
                                       jnp.float32, -std, std),
            "b_hh": jax.random.uniform(k[3], (4 * h_size,),
                                       jnp.float32, -std, std),
        })
    params["layers"] = layers
    return params


def pack_params(params, ninp, nhid, nhidlast):
    """Pre-transpose, zero-pad (lane-aligned) and cast weights to bf16."""
    ntoken = params["encoder"].shape[0]
    ninp_p = _round_up(ninp, 128)

    packed = {
        "encoder": jnp.pad(params["encoder"],
                           ((0, 0), (0, ninp_p - ninp))).astype(jnp.bfloat16),
    }

    layers = []
    for l, layer in enumerate(params["layers"]):
        w_ih, w_hh = layer["w_ih"], layer["w_hh"]
        b = layer["b_ih"] + layer["b_hh"]
        H = w_hh.shape[1]
        In = w_ih.shape[1]
        Hp = _round_up(H, 128)
        In_p = ninp_p if l == 0 else _round_up(In, 128)

        wih_t = jnp.zeros((In_p, 4 * Hp), jnp.float32)
        whh_t = jnp.zeros((Hp, 4 * Hp), jnp.float32)
        bias = jnp.zeros((1, 4 * Hp), jnp.float32)
        for g in range(4):  # per-gate pad so each gate slice is lane-aligned
            wih_t = wih_t.at[:In, g * Hp:g * Hp + H].set(
                w_ih[g * H:(g + 1) * H, :].T)
            whh_t = whh_t.at[:H, g * Hp:g * Hp + H].set(
                w_hh[g * H:(g + 1) * H, :].T)
            bias = bias.at[0, g * Hp:g * Hp + H].set(b[g * H:(g + 1) * H])
        layers.append({"wih_t": wih_t.astype(jnp.bfloat16),
                       "whh_t": whh_t.astype(jnp.bfloat16),
                       "bias": bias})
    packed["layers"] = layers

    Hl = nhidlast
    Hl_p = _round_up(Hl, 128)
    ntoken_p = _round_up(ntoken, 128)
    dwt = jnp.zeros((Hl_p, ntoken_p), jnp.float32)
    dwt = dwt.at[:Hl, :ntoken].set(params["decoder_w"].T)
    db = jnp.zeros((1, ntoken_p), jnp.float32)
    db = db.at[0, :ntoken].set(params["decoder_b"])
    packed["decoder_wt"] = dwt.astype(jnp.bfloat16)
    packed["decoder_b"] = db
    return packed


def init_hidden(bsz, nhid, nlayers, nhidlast):
    hidden = []
    for l in range(nlayers):
        h_size = nhid if l != nlayers - 1 else nhidlast
        hidden.append((jnp.zeros((bsz, h_size), jnp.float32),
                       jnp.zeros((bsz, h_size), jnp.float32)))
    return hidden


# ----------------------------------------------------------------------------
# Full RNNModel forward (eval mode: dropout is identity).
# ----------------------------------------------------------------------------
@functools.partial(jax.jit, static_argnames=("ntoken",))
def rnn_model_forward(packed, tokens, hidden, *, ntoken):
    """tokens: (T, B) int32; hidden: list of unpadded (h0, c0) per layer.
    Returns (decoded (T*B, ntoken) f32, new_hidden)."""
    T, B = tokens.shape
    Bp = _round_up(B, 8)
    tokens_p = jnp.pad(tokens, ((0, 0), (0, Bp - B)))

    # Embedding lookup (XLA glue; a data-dependent gather, left out of Pallas).
    x = jnp.take(packed["encoder"], tokens_p, axis=0)   # (T, Bp, ninp_p) bf16

    new_hidden = []
    for l, layer in enumerate(packed["layers"]):
        h0, c0 = hidden[l]
        H = h0.shape[1]
        Hp = layer["whh_t"].shape[0]

        h0_p = jnp.pad(h0.astype(jnp.float32), ((0, Bp - B), (0, Hp - H)))
        c0_p = jnp.pad(c0.astype(jnp.float32), ((0, Bp - B), (0, Hp - H)))

        x, hT, cT = lstm_layer(x, layer["wih_t"], layer["whh_t"],
                               layer["bias"], h0_p, c0_p)
        new_hidden.append((hT[:B, :H], cT[:B, :H]))

    # Decoder: drop padded batch rows; padded H lanes are exactly zero and the
    # decoder-weight pad rows are zero, so they contribute nothing.
    Hl_p = x.shape[2]
    flat = x[:, :B, :].reshape(T * B, Hl_p)
    decoded_p = matmul_bias(flat, packed["decoder_wt"], packed["decoder_b"])
    decoded = decoded_p[:, :ntoken]
    return decoded, new_hidden


# ----------------------------------------------------------------------------
# Pure-JAX f32 reference (unpadded, PyTorch LSTM semantics) for numerics check.
# ----------------------------------------------------------------------------
def rnn_model_forward_ref(params, tokens, hidden):
    emb = jnp.take(params["encoder"], tokens, axis=0)
    raw = emb
    new_hidden = []
    for l, layer in enumerate(params["layers"]):
        h, c = hidden[l]
        w_ih, w_hh = layer["w_ih"], layer["w_hh"]
        b = layer["b_ih"] + layer["b_hh"]
        H = w_hh.shape[1]
        ys = []
        for t in range(raw.shape[0]):
            gates = raw[t] @ w_ih.T + h @ w_hh.T + b
            i_g = jax.nn.sigmoid(gates[:, 0 * H:1 * H])
            f_g = jax.nn.sigmoid(gates[:, 1 * H:2 * H])
            g_g = jnp.tanh(gates[:, 2 * H:3 * H])
            o_g = jax.nn.sigmoid(gates[:, 3 * H:4 * H])
            c = f_g * c + i_g * g_g
            h = o_g * jnp.tanh(c)
            ys.append(h)
        raw = jnp.stack(ys, axis=0)
        new_hidden.append((h, c))
    flat = raw.reshape(-1, raw.shape[-1])
    decoded = flat @ params["decoder_w"].T + params["decoder_b"]
    return decoded, new_hidden


if __name__ == "__main__":
    # Small shapes consistent with the module's forward.
    ntoken, ninp, nhid, nlayers, nhidlast = 64, 32, 32, 2, 48
    T, B = 8, 4

    key = jax.random.PRNGKey(0)
    pkey, tkey = jax.random.split(key)
    params = init_params(pkey, ntoken, ninp, nhid, nlayers, nhidlast)
    packed = pack_params(params, ninp, nhid, nhidlast)
    tokens = jax.random.randint(tkey, (T, B), 0, ntoken, dtype=jnp.int32)
    hidden = init_hidden(B, nhid, nlayers, nhidlast)

    decoded, new_hidden = rnn_model_forward(packed, tokens, hidden,
                                            ntoken=ntoken)
    decoded = jax.block_until_ready(decoded)
    for h, c in new_hidden:
        jax.block_until_ready(h)
        jax.block_until_ready(c)

    assert decoded.shape == (T * B, ntoken), decoded.shape
    assert new_hidden[0][0].shape == (B, nhid)
    assert new_hidden[-1][0].shape == (B, nhidlast)

    # Numerics check against the pure-JAX f32 reference (bf16 weights =>
    # looser tolerance; f32 accumulation keeps the error small).
    decoded_ref, hidden_ref = rnn_model_forward_ref(params, tokens, hidden)
    assert jnp.allclose(decoded, decoded_ref, rtol=2e-2, atol=2e-2), (
        float(jnp.max(jnp.abs(decoded - decoded_ref))))
    for (h, c), (hr, cr) in zip(new_hidden, hidden_ref):
        assert jnp.allclose(h, hr, rtol=2e-2, atol=2e-2)
        assert jnp.allclose(c, cr, rtol=2e-2, atol=2e-2)

    print("KERNEL_OK")
</pallas_src>

<mosaic_0001>
module attributes {stable_mosaic.version = 11 : i64} {
  func.func @_probe_kernel(%arg0: i32, %arg1: memref<8x128xf32, #tpu.memory_space<vmem>>, %arg2: memref<8x128xf32, #tpu.memory_space<vmem>>) attributes {dimension_semantics = [#tpu.dimension_semantics<arbitrary>], iteration_bounds = array<i64: 1>, scalar_prefetch = 0 : i64, scratch_operands = 0 : i64, tpu.core_type = #tpu.core_type<tc>, window_params = [{pipeline_mode = #tpu.pipeline_mode<synchronous>, transform_indices = @transform_0, window_bounds = array<i64: 8, 128>}, {pipeline_mode = #tpu.pipeline_mode<synchronous>, transform_indices = @transform_1, window_bounds = array<i64: 8, 128>}]} {
    %c0 = arith.constant 0 : index
    %c0_0 = arith.constant 0 : index
    %0 = vector.load %arg1[%c0, %c0_0] : memref<8x128xf32, #tpu.memory_space<vmem>>, vector<8x128xf32>
    %cst = arith.constant 2.000000e+00 : f32
    %1 = vector.broadcast %cst : f32 to vector<8x128xf32>
    %2 = arith.mulf %0, %1 : vector<8x128xf32>
    %c0_1 = arith.constant 0 : index
    %c0_2 = arith.constant 0 : index
    %3 = vector.load %arg2[%c0_1, %c0_2] : memref<8x128xf32, #tpu.memory_space<vmem>>, vector<8x128xf32>
    tpu.vector_store %arg2[%c0_1, %c0_2], %2 {strides = array<i32>} : memref<8x128xf32, #tpu.memory_space<vmem>>, vector<8x128xf32>,
    return
  }
  func.func @transform_0(%arg0: i32) -> (i32, i32) {
    %c0_i32 = arith.constant 0 : i32
    %c0_i32_0 = arith.constant 0 : i32
    %c0_i32_1 = arith.constant 0 : i32
    return %c0_i32, %c0_i32_0 : i32, i32
  }
  func.func @transform_1(%arg0: i32) -> (i32, i32) {
    %c0_i32 = arith.constant 0 : i32
    %c0_i32_0 = arith.constant 0 : i32
    %c0_i32_1 = arith.constant 0 : i32
    return %c0_i32, %c0_i32_0 : i32, i32
  }
}

module attributes {stable_mosaic.version = 11 : i64} {
  func.func @_lstm_layer_kernel(%arg0: i32, %arg1: i32, %arg2: memref<1x64x128xbf16, #tpu.memory_space<vmem>>, %arg3: memref<128x512xbf16, #tpu.memory_space<vmem>>, %arg4: memref<128x512xbf16, #tpu.memory_space<vmem>>, %arg5: memref<1x512xf32, #tpu.memory_space<vmem>>, %arg6: memref<1x8x128xf32, #tpu.memory_space<vmem>>, %arg7: memref<1x8x128xf32, #tpu.memory_space<vmem>>, %arg8: memref<1x64x128xbf16, #tpu.memory_space<vmem>>, %arg9: memref<1x8x128xf32, #tpu.memory_space<vmem>>, %arg10: memref<1x8x128xf32, #tpu.memory_space<vmem>>, %arg11: memref<64x512xf32, #tpu.memory_space<vmem>>, %arg12: memref<64x128xf32, #tpu.memory_space<vmem>>, %arg13: memref<8x128xf32, #tpu.memory_space<vmem>>, %arg14: memref<8x128xf32, #tpu.memory_space<vmem>>) attributes {dimension_semantics = [#tpu.dimension_semantics<parallel>, #tpu.dimension_semantics<arbitrary>], iteration_bounds = array<i64: 1, 1>, scalar_prefetch = 0 : i64, scratch_operands = 4 : i64, tpu.core_type = #tpu.core_type<tc>, window_params = [{transform_indices = @transform_0, window_bounds = array<i64: 1, 64, 128>}, {pipeline_mode = #tpu.pipeline_mode<synchronous>, transform_indices = @transform_1, window_bounds = array<i64: 128, 512>}, {pipeline_mode = #tpu.pipeline_mode<synchronous>, transform_indices = @transform_2, window_bounds = array<i64: 128, 512>}, {pipeline_mode = #tpu.pipeline_mode<synchronous>, transform_indices = @transform_3, window_bounds = array<i64: 1, 512>}, {transform_indices = @transform_4, window_bounds = array<i64: 1, 8, 128>}, {transform_indices = @transform_5, window_bounds = array<i64: 1, 8, 128>}, {transform_indices = @transform_6, window_bounds = array<i64: 1, 64, 128>}, {transform_indices = @transform_7, window_bounds = array<i64: 1, 8, 128>}, {transform_indices = @transform_8, window_bounds = array<i64: 1, 8, 128>}]} {
    %c0_i32 = arith.constant 0 : i32
    %0 = arith.cmpi eq, %arg1, %c0_i32 : i32
    %1 = arith.extui %0 : i1 to i32
    %c0_i32_0 = arith.constant 0 : i32
    %2 = arith.cmpi ne, %1, %c0_i32_0 : i32
    scf.if %2 {
      %c0_246 = arith.constant 0 : index
      %c0_247 = arith.constant 0 : index
      %c0_248 = arith.constant 0 : index
      %419 = vector.load %arg6[%c0_246, %c0_247, %c0_248] : memref<1x8x128xf32, #tpu.memory_space<vmem>>, vector<1x8x128xf32>
      %420 = vector.shape_cast %419 : vector<1x8x128xf32> to vector<8x128xf32>
      %c0_249 = arith.constant 0 : index
      %c0_250 = arith.constant 0 : index
      %421 = vector.load %arg13[%c0_249, %c0_250] : memref<8x128xf32, #tpu.memory_space<vmem>>, vector<8x128xf32>
      tpu.vector_store %arg13[%c0_249, %c0_250], %420 {strides = array<i32>} : memref<8x128xf32, #tpu.memory_space<vmem>>, vector<8x128xf32>,
      %c0_251 = arith.constant 0 : index
      %c0_252 = arith.constant 0 : index
      %c0_253 = arith.constant 0 : index
      %422 = vector.load %arg7[%c0_251, %c0_252, %c0_253] : memref<1x8x128xf32, #tpu.memory_space<vmem>>, vector<1x8x128xf32>
      %423 = vector.shape_cast %422 : vector<1x8x128xf32> to vector<8x128xf32>
      %c0_254 = arith.constant 0 : index
      %c0_255 = arith.constant 0 : index
      %424 = vector.load %arg14[%c0_254, %c0_255] : memref<8x128xf32, #tpu.memory_space<vmem>>, vector<8x128xf32>
      tpu.vector_store %arg14[%c0_254, %c0_255], %423 {strides = array<i32>} : memref<8x128xf32, #tpu.memory_space<vmem>>, vector<8x128xf32>,
    } else {
    }
    %c0 = arith.constant 0 : index
    %c0_1 = arith.constant 0 : index
    %c0_2 = arith.constant 0 : index
    %3 = vector.load %arg2[%c0, %c0_1, %c0_2] : memref<1x64x128xbf16, #tpu.memory_space<vmem>>, vector<1x64x128xbf16>
    %4 = vector.shape_cast %3 : vector<1x64x128xbf16> to vector<64x128xbf16>
    %c0_3 = arith.constant 0 : index
    %c0_4 = arith.constant 0 : index
    %5 = vector.load %arg3[%c0_3, %c0_4] : memref<128x512xbf16, #tpu.memory_space<vmem>>, vector<128x512xbf16>
    %cst = arith.constant dense<0.000000e+00> : vector<64x512xf32>
    %6 = tpu.matmul %4, %5, %cst {dimension_numbers = #tpu.dot_dimension_numbers<[1], [0], [0], [1], [0, 0, 1, 1], [], []>} : vector<64x128xbf16>, vector<128x512xbf16>, vector<64x512xf32> -> vector<64x512xf32>
    %c0_5 = arith.constant 0 : index
    %c0_6 = arith.constant 0 : index
    %7 = vector.load %arg5[%c0_5, %c0_6] : memref<1x512xf32, #tpu.memory_space<vmem>>, vector<1x512xf32>
    %8 = vector.broadcast %7 : vector<1x512xf32> to vector<64x512xf32>
    %9 = arith.addf %6, %8 : vector<64x512xf32>
    %c0_7 = arith.constant 0 : index
    %c0_8 = arith.constant 0 : index
    %10 = vector.load %arg11[%c0_7, %c0_8] : memref<64x512xf32, #tpu.memory_space<vmem>>, vector<64x512xf32>
    tpu.vector_store %arg11[%c0_7, %c0_8], %9 {strides = array<i32>} : memref<64x512xf32, #tpu.memory_space<vmem>>, vector<64x512xf32>,
    %c0_i32_9 = arith.constant 0 : i32
    %c8_i32 = arith.constant 8 : i32
    %11 = arith.muli %c0_i32_9, %c8_i32 : i32
    %12 = tpu.assume_multiple %11, 8 : i32
    %c0_10 = arith.constant 0 : index
    %c0_11 = arith.constant 0 : index
    %13 = vector.load %arg13[%c0_10, %c0_11] : memref<8x128xf32, #tpu.memory_space<vmem>>, vector<8x128xf32>
    %14 = arith.truncf %13 : vector<8x128xf32> to vector<8x128xbf16>
    %15 = arith.index_cast %12 : i32 to index
    %c0_12 = arith.constant 0 : index
    %16 = vector.load %arg11[%15, %c0_12] : memref<64x512xf32, #tpu.memory_space<vmem>>, vector<8x128xf32>
    %c0_13 = arith.constant 0 : index
    %c0_14 = arith.constant 0 : index
    %17 = vector.load %arg4[%c0_13, %c0_14] : memref<128x512xbf16, #tpu.memory_space<vmem>>, vector<128x128xbf16>
    %cst_15 = arith.constant dense<0.000000e+00> : vector<8x128xf32>
    %18 = tpu.matmul %14, %17, %cst_15 {dimension_numbers = #tpu.dot_dimension_numbers<[1], [0], [0], [1], [0, 0, 1, 1], [], []>} : vector<8x128xbf16>, vector<128x128xbf16>, vector<8x128xf32> -> vector<8x128xf32>
    %19 = arith.addf %16, %18 : vector<8x128xf32>
    %20 = arith.negf %19 : vector<8x128xf32>
    %21 = math.exp %20 : vector<8x128xf32>
    %cst_16 = arith.constant 1.000000e+00 : f32
    %22 = vector.broadcast %cst_16 : f32 to vector<8x128xf32>
    %23 = arith.addf %22, %21 : vector<8x128xf32>
    %24 = arith.divf %22, %23 : vector<8x128xf32>
    %25 = arith.index_cast %12 : i32 to index
    %c128 = arith.constant 128 : index
    %26 = vector.load %arg11[%25, %c128] : memref<64x512xf32, #tpu.memory_space<vmem>>, vector<8x128xf32>
    %c0_17 = arith.constant 0 : index
    %c128_18 = arith.constant 128 : index
    %27 = vector.load %arg4[%c0_17, %c128_18] : memref<128x512xbf16, #tpu.memory_space<vmem>>, vector<128x128xbf16>
    %cst_19 = arith.constant dense<0.000000e+00> : vector<8x128xf32>
    %28 = tpu.matmul %14, %27, %cst_19 {dimension_numbers = #tpu.dot_dimension_numbers<[1], [0], [0], [1], [0, 0, 1, 1], [], []>} : vector<8x128xbf16>, vector<128x128xbf16>, vector<8x128xf32> -> vector<8x128xf32>
    %29 = arith.addf %26, %28 : vector<8x128xf32>
    %30 = arith.negf %29 : vector<8x128xf32>
    %31 = math.exp %30 : vector<8x128xf32>
    %cst_20 = arith.constant 1.000000e+00 : f32
    %32 = vector.broadcast %cst_20 : f32 to vector<8x128xf32>
    %33 = arith.addf %32, %31 : vector<8x128xf32>
    %34 = arith.divf %32, %33 : vector<8x128xf32>
    %35 = arith.index_cast %12 : i32 to index
    %c256 = arith.constant 256 : index
    %36 = vector.load %arg11[%35, %c256] : memref<64x512xf32, #tpu.memory_space<vmem>>, vector<8x128xf32>
    %c0_21 = arith.constant 0 : index
    %c256_22 = arith.constant 256 : index
    %37 = vector.load %arg4[%c0_21, %c256_22] : memref<128x512xbf16, #tpu.memory_space<vmem>>, vector<128x128xbf16>
    %cst_23 = arith.constant dense<0.000000e+00> : vector<8x128xf32>
    %38 = tpu.matmul %14, %37, %cst_23 {dimension_numbers = #tpu.dot_dimension_numbers<[1], [0], [0], [1], [0, 0, 1, 1], [], []>} : vector<8x128xbf16>, vector<128x128xbf16>, vector<8x128xf32> -> vector<8x128xf32>
    %39 = arith.addf %36, %38 : vector<8x128xf32>
    %40 = math.tanh %39 : vector<8x128xf32>
    %41 = arith.index_cast %12 : i32 to index
    %c384 = arith.constant 384 : index
    %42 = vector.load %arg11[%41, %c384] : memref<64x512xf32, #tpu.memory_space<vmem>>, vector<8x128xf32>
    %c0_24 = arith.constant 0 : index
    %c384_25 = arith.constant 384 : index
    %43 = vector.load %arg4[%c0_24, %c384_25] : memref<128x512xbf16, #tpu.memory_space<vmem>>, vector<128x128xbf16>
    %cst_26 = arith.constant dense<0.000000e+00> : vector<8x128xf32>
    %44 = tpu.matmul %14, %43, %cst_26 {dimension_numbers = #tpu.dot_dimension_numbers<[1], [0], [0], [1], [0, 0, 1, 1], [], []>} : vector<8x128xbf16>, vector<128x128xbf16>, vector<8x128xf32> -> vector<8x128xf32>
    %45 = arith.addf %42, %44 : vector<8x128xf32>
    %46 = arith.negf %45 : vector<8x128xf32>
    %47 = math.exp %46 : vector<8x128xf32>
    %cst_27 = arith.constant 1.000000e+00 : f32
    %48 = vector.broadcast %cst_27 : f32 to vector<8x128xf32>
    %49 = arith.addf %48, %47 : vector<8x128xf32>
    %50 = arith.divf %48, %49 : vector<8x128xf32>
    %c0_28 = arith.constant 0 : index
    %c0_29 = arith.constant 0 : index
    %51 = vector.load %arg14[%c0_28, %c0_29] : memref<8x128xf32, #tpu.memory_space<vmem>>, vector<8x128xf32>
    %52 = arith.mulf %34, %51 : vector<8x128xf32>
    %53 = arith.mulf %24, %40 : vector<8x128xf32>
    %54 = arith.addf %52, %53 : vector<8x128xf32>
    %55 = math.tanh %54 : vector<8x128xf32>
    %56 = arith.mulf %50, %55 : vector<8x128xf32>
    %c0_30 = arith.constant 0 : index
    %c0_31 = arith.constant 0 : index
    %57 = vector.load %arg14[%c0_30, %c0_31] : memref<8x128xf32, #tpu.memory_space<vmem>>, vector<8x128xf32>
    tpu.vector_store %arg14[%c0_30, %c0_31], %54 {strides = array<i32>} : memref<8x128xf32, #tpu.memory_space<vmem>>, vector<8x128xf32>,
    %c0_32 = arith.constant 0 : index
    %c0_33 = arith.constant 0 : index
    %58 = vector.load %arg13[%c0_32, %c0_33] : memref<8x128xf32, #tpu.memory_space<vmem>>, vector<8x128xf32>
    tpu.vector_store %arg13[%c0_32, %c0_33], %56 {strides = array<i32>} : memref<8x128xf32, #tpu.memory_space<vmem>>, vector<8x128xf32>,
    %59 = arith.index_cast %12 : i32 to index
    %c0_34 = arith.constant 0 : index
    %60 = vector.load %arg12[%59, %c0_34] : memref<64x128xf32, #tpu.memory_space<vmem>>, vector<8x128xf32>
    tpu.vector_store %arg12[%59, %c0_34], %56 {strides = array<i32>} : memref<64x128xf32, #tpu.memory_space<vmem>>, vector<8x128xf32>,
    %c1_i32 = arith.constant 1 : i32
    %c8_i32_35 = arith.constant 8 : i32
    %61 = arith.muli %c1_i32, %c8_i32_35 : i32
    %62 = tpu.assume_multiple %61, 8 : i32
    %c0_36 = arith.constant 0 : index
    %c0_37 = arith.constant 0 : index
    %63 = vector.load %arg13[%c0_36, %c0_37] : memref<8x128xf32, #tpu.memory_space<vmem>>, vector<8x128xf32>
    %64 = arith.truncf %63 : vector<8x128xf32> to vector<8x128xbf16>
    %65 = arith.index_cast %62 : i32 to index
    %c0_38 = arith.constant 0 : index
    %66 = vector.load %arg11[%65, %c0_38] : memref<64x512xf32, #tpu.memory_space<vmem>>, vector<8x128xf32>
    %c0_39 = arith.constant 0 : index
    %c0_40 = arith.constant 0 : index
    %67 = vector.load %arg4[%c0_39, %c0_40] : memref<128x512xbf16, #tpu.memory_space<vmem>>, vector<128x128xbf16>
    %cst_41 = arith.constant dense<0.000000e+00> : vector<8x128xf32>
    %68 = tpu.matmul %64, %67, %cst_41 {dimension_numbers = #tpu.dot_dimension_numbers<[1], [0], [0], [1], [0, 0, 1, 1], [], []>} : vector<8x128xbf16>, vector<128x128xbf16>, vector<8x128xf32> -> vector<8x128xf32>
    %69 = arith.addf %66, %68 : vector<8x128xf32>
    %70 = arith.negf %69 : vector<8x128xf32>
    %71 = math.exp %70 : vector<8x128xf32>
    %cst_42 = arith.constant 1.000000e+00 : f32
    %72 = vector.broadcast %cst_42 : f32 to vector<8x128xf32>
    %73 = arith.addf %72, %71 : vector<8x128xf32>
    %74 = arith.divf %72, %73 : vector<8x128xf32>
    %75 = arith.index_cast %62 : i32 to index
    %c128_43 = arith.constant 128 : index
    %76 = vector.load %arg11[%75, %c128_43] : memref<64x512xf32, #tpu.memory_space<vmem>>, vector<8x128xf32>
    %c0_44 = arith.constant 0 : index
    %c128_45 = arith.constant 128 : index
    %77 = vector.load %arg4[%c0_44, %c128_45] : memref<128x512xbf16, #tpu.memory_space<vmem>>, vector<128x128xbf16>
    %cst_46 = arith.constant dense<0.000000e+00> : vector<8x128xf32>
    %78 = tpu.matmul %64, %77, %cst_46 {dimension_numbers = #tpu.dot_dimension_numbers<[1], [0], [0], [1], [0, 0, 1, 1], [], []>} : vector<8x128xbf16>, vector<128x128xbf16>, vector<8x128xf32> -> vector<8x128xf32>
    %79 = arith.addf %76, %78 : vector<8x128xf32>
    %80 = arith.negf %79 : vector<8x128xf32>
    %81 = math.exp %80 : vector<8x128xf32>
    %cst_47 = arith.constant 1.000000e+00 : f32
    %82 = vector.broadcast %cst_47 : f32 to vector<8x128xf32>
    %83 = arith.addf %82, %81 : vector<8x128xf32>
    %84 = arith.divf %82, %83 : vector<8x128xf32>
    %85 = arith.index_cast %62 : i32 to index
    %c256_48 = arith.constant 256 : index
    %86 = vector.load %arg11[%85, %c256_48] : memref<64x512xf32, #tpu.memory_space<vmem>>, vector<8x128xf32>
    %c0_49 = arith.constant 0 : index
    %c256_50 = arith.constant 256 : index
    %87 = vector.load %arg4[%c0_49, %c256_50] : memref<128x512xbf16, #tpu.memory_space<vmem>>, vector<128x128xbf16>
    %cst_51 = arith.constant dense<0.000000e+00> : vector<8x128xf32>
    %88 = tpu.matmul %64, %87, %cst_51 {dimension_numbers = #tpu.dot_dimension_numbers<[1], [0], [0], [1], [0, 0, 1, 1], [], []>} : vector<8x128xbf16>, vector<128x128xbf16>, vector<8x128xf32> -> vector<8x128xf32>
    %89 = arith.addf %86, %88 : vector<8x128xf32>
    %90 = math.tanh %89 : vector<8x128xf32>
    %91 = arith.index_cast %62 : i32 to index
    %c384_52 = arith.constant 384 : index
    %92 = vector.load %arg11[%91, %c384_52] : memref<64x512xf32, #tpu.memory_space<vmem>>, vector<8x128xf32>
    %c0_53 = arith.constant 0 : index
    %c384_54 = arith.constant 384 : index
    %93 = vector.load %arg4[%c0_53, %c384_54] : memref<128x512xbf16, #tpu.memory_space<vmem>>, vector<128x128xbf16>
    %cst_55 = arith.constant dense<0.000000e+00> : vector<8x128xf32>
    %94 = tpu.matmul %64, %93, %cst_55 {dimension_numbers = #tpu.dot_dimension_numbers<[1], [0], [0], [1], [0, 0, 1, 1], [], []>} : vector<8x128xbf16>, vector<128x128xbf16>, vector<8x128xf32> -> vector<8x128xf32>
    %95 = arith.addf %92, %94 : vector<8x128xf32>
    %96 = arith.negf %95 : vector<8x128xf32>
    %97 = math.exp %96 : vector<8x128xf32>
    %cst_56 = arith.constant 1.000000e+00 : f32
    %98 = vector.broadcast %cst_56 : f32 to vector<8x128xf32>
    %99 = arith.addf %98, %97 : vector<8x128xf32>
    %100 = arith.divf %98, %99 : vector<8x128xf32>
    %c0_57 = arith.constant 0 : index
    %c0_58 = arith.constant 0 : index
    %101 = vector.load %arg14[%c0_57, %c0_58] : memref<8x128xf32, #tpu.memory_space<vmem>>, vector<8x128xf32>
    %102 = arith.mulf %84, %101 : vector<8x128xf32>
    %103 = arith.mulf %74, %90 : vector<8x128xf32>
    %104 = arith.addf %102, %103 : vector<8x128xf32>
    %105 = math.tanh %104 : vector<8x128xf32>
    %106 = arith.mulf %100, %105 : vector<8x128xf32>
    %c0_59 = arith.constant 0 : index
    %c0_60 = arith.constant 0 : index
    %107 = vector.load %arg14[%c0_59, %c0_60] : memref<8x128xf32, #tpu.memory_space<vmem>>, vector<8x128xf32>
    tpu.vector_store %arg14[%c0_59, %c0_60], %104 {strides = array<i32>} : memref<8x128xf32, #tpu.memory_space<vmem>>, vector<8x128xf32>,
    %c0_61 = arith.constant 0 : index
    %c0_62 = arith.constant 0 : index
    %108 = vector.load %arg13[%c0_61, %c0_62] : memref<8x128xf32, #tpu.memory_space<vmem>>, vector<8x128xf32>
    tpu.vector_store %arg13[%c0_61, %c0_62], %106 {strides = array<i32>} : memref<8x128xf32, #tpu.memory_space<vmem>>, vector<8x128xf32>,
    %109 = arith.index_cast %62 : i32 to index
    %c0_63 = arith.constant 0 : index
    %110 = vector.load %arg12[%109, %c0_63] : memref<64x128xf32, #tpu.memory_space<vmem>>, vector<8x128xf32>
    tpu.vector_store %arg12[%109, %c0_63], %106 {strides = array<i32>} : memref<64x128xf32, #tpu.memory_space<vmem>>, vector<8x128xf32>,
    %c2_i32 = arith.constant 2 : i32
    %c8_i32_64 = arith.constant 8 : i32
    %111 = arith.muli %c2_i32, %c8_i32_64 : i32
    %112 = tpu.assume_multiple %111, 8 : i32
    %c0_65 = arith.constant 0 : index
    %c0_66 = arith.constant 0 : index
    %113 = vector.load %arg13[%c0_65, %c0_66] : memref<8x128xf32, #tpu.memory_space<vmem>>, vector<8x128xf32>
    %114 = arith.truncf %113 : vector<8x128xf32> to vector<8x128xbf16>
    %115 = arith.index_cast %112 : i32 to index
    %c0_67 = arith.constant 0 : index
    %116 = vector.load %arg11[%115, %c0_67] : memref<64x512xf32, #tpu.memory_space<vmem>>, vector<8x128xf32>
    %c0_68 = arith.constant 0 : index
    %c0_69 = arith.constant 0 : index
    %117 = vector.load %arg4[%c0_68, %c0_69] : memref<128x512xbf16, #tpu.memory_space<vmem>>, vector<128x128xbf16>
    %cst_70 = arith.constant dense<0.000000e+00> : vector<8x128xf32>
    %118 = tpu.matmul %114, %117, %cst_70 {dimension_numbers = #tpu.dot_dimension_numbers<[1], [0], [0], [1], [0, 0, 1, 1], [], []>} : vector<8x128xbf16>, vector<128x128xbf16>, vector<8x128xf32> -> vector<8x128xf32>
    %119 = arith.addf %116, %118 : vector<8x128xf32>
    %120 = arith.negf %119 : vector<8x128xf32>
    %121 = math.exp %120 : vector<8x128xf32>
    %cst_71 = arith.constant 1.000000e+00 : f32
    %122 = vector.broadcast %cst_71 : f32 to vector<8x128xf32>
    %123 = arith.addf %122, %121 : vector<8x128xf32>
    %124 = arith.divf %122, %123 : vector<8x128xf32>
    %125 = arith.index_cast %112 : i32 to index
    %c128_72 = arith.constant 128 : index
    %126 = vector.load %arg11[%125, %c128_72] : memref<64x512xf32, #tpu.memory_space<vmem>>, vector<8x128xf32>
    %c0_73 = arith.constant 0 : index
    %c128_74 = arith.constant 128 : index
    %127 = vector.load %arg4[%c0_73, %c128_74] : memref<128x512xbf16, #tpu.memory_space<vmem>>, vector<128x128xbf16>
    %cst_75 = arith.constant dense<0.000000e+00> : vector<8x128xf32>
    %128 = tpu.matmul %114, %127, %cst_75 {dimension_numbers = #tpu.dot_dimension_numbers<[1], [0], [0], [1], [0, 0, 1, 1], [], []>} : vector<8x128xbf16>, vector<128x128xbf16>, vector<8x128xf32> -> vector<8x128xf32>
    %129 = arith.addf %126, %128 : vector<8x128xf32>
    %130 = arith.negf %129 : vector<8x128xf32>
    %131 = math.exp %130 : vector<8x128xf32>
    %cst_76 = arith.constant 1.000000e+00 : f32
    %132 = vector.broadcast %cst_76 : f32 to vector<8x128xf32>
    %133 = arith.addf %132, %131 : vector<8x128xf32>
    %134 = arith.divf %132, %133 : vector<8x128xf32>
    %135 = arith.index_cast %112 : i32 to index
    %c256_77 = arith.constant 256 : index
    %136 = vector.load %arg11[%135, %c256_77] : memref<64x512xf32, #tpu.memory_space<vmem>>, vector<8x128xf32>
    %c0_78 = arith.constant 0 : index
    %c256_79 = arith.constant 256 : index
    %137 = vector.load %arg4[%c0_78, %c256_79] : memref<128x512xbf16, #tpu.memory_space<vmem>>, vector<128x128xbf16>
    %cst_80 = arith.constant dense<0.000000e+00> : vector<8x128xf32>
    %138 = tpu.matmul %114, %137, %cst_80 {dimension_numbers = #tpu.dot_dimension_numbers<[1], [0], [0], [1], [0, 0, 1, 1], [], []>} : vector<8x128xbf16>, vector<128x128xbf16>, vector<8x128xf32> -> vector<8x128xf32>
    %139 = arith.addf %136, %138 : vector<8x128xf32>
    %140 = math.tanh %139 : vector<8x128xf32>
    %141 = arith.index_cast %112 : i32 to index
    %c384_81 = arith.constant 384 : index
    %142 = vector.load %arg11[%141, %c384_81] : memref<64x512xf32, #tpu.memory_space<vmem>>, vector<8x128xf32>
    %c0_82 = arith.constant 0 : index
    %c384_83 = arith.constant 384 : index
    %143 = vector.load %arg4[%c0_82, %c384_83] : memref<128x512xbf16, #tpu.memory_space<vmem>>, vector<128x128xbf16>
    %cst_84 = arith.constant dense<0.000000e+00> : vector<8x128xf32>
    %144 = tpu.matmul %114, %143, %cst_84 {dimension_numbers = #tpu.dot_dimension_numbers<[1], [0], [0], [1], [0, 0, 1, 1], [], []>} : vector<8x128xbf16>, vector<128x128xbf16>, vector<8x128xf32> -> vector<8x128xf32>
    %145 = arith.addf %142, %144 : vector<8x128xf32>
    %146 = arith.negf %145 : vector<8x128xf32>
    %147 = math.exp %146 : vector<8x128xf32>
    %cst_85 = arith.constant 1.000000e+00 : f32
    %148 = vector.broadcast %cst_85 : f32 to vector<8x128xf32>
    %149 = arith.addf %148, %147 : vector<8x128xf32>
    %150 = arith.divf %148, %149 : vector<8x128xf32>
    %c0_86 = arith.constant 0 : index
    %c0_87 = arith.constant 0 : index
    %151 = vector.load %arg14[%c0_86, %c0_87] : memref<8x128xf32, #tpu.memory_space<vmem>>, vector<8x128xf32>
    %152 = arith.mulf %134, %151 : vector<8x128xf32>
    %153 = arith.mulf %124, %140 : vector<8x128xf32>
    %154 = arith.addf %152, %153 : vector<8x128xf32>
    %155 = math.tanh %154 : vector<8x128xf32>
    %156 = arith.mulf %150, %155 : vector<8x128xf32>
    %c0_88 = arith.constant 0 : index
    %c0_89 = arith.constant 0 : index
    %157 = vector.load %arg14[%c0_88, %c0_89] : memref<8x128xf32, #tpu.memory_space<vmem>>, vector<8x128xf32>
    tpu.vector_store %arg14[%c0_88, %c0_89], %154 {strides = array<i32>} : memref<8x128xf32, #tpu.memory_space<vmem>>, vector<8x128xf32>,
    %c0_90 = arith.constant 0 : index
    %c0_91 = arith.constant 0 : index
    %158 = vector.load %arg13[%c0_90, %c0_91] : memref<8x128xf32, #tpu.memory_space<vmem>>, vector<8x128xf32>
    tpu.vector_store %arg13[%c0_90, %c0_91], %156 {strides = array<i32>} : memref<8x128xf32, #tpu.memory_space<vmem>>, vector<8x128xf32>,
    %159 = arith.index_cast %112 : i32 to index
    %c0_92 = arith.constant 0 : index
    %160 = vector.load %arg12[%159, %c0_92] : memref<64x128xf32, #tpu.memory_space<vmem>>, vector<8x128xf32>
    tpu.vector_store %arg12[%159, %c0_92], %156 {strides = array<i32>} : memref<64x128xf32, #tpu.memory_space<vmem>>, vector<8x128xf32>,
    %c3_i32 = arith.constant 3 : i32
    %c8_i32_93 = arith.constant 8 : i32
    %161 = arith.muli %c3_i32, %c8_i32_93 : i32
    %162 = tpu.assume_multiple %161, 8 : i32
    %c0_94 = arith.constant 0 : index
    %c0_95 = arith.constant 0 : index
    %163 = vector.load %arg13[%c0_94, %c0_95] : memref<8x128xf32, #tpu.memory_space<vmem>>, vector<8x128xf32>
    %164 = arith.truncf %163 : vector<8x128xf32> to vector<8x128xbf16>
    %165 = arith.index_cast %162 : i32 to index
    %c0_96 = arith.constant 0 : index
    %166 = vector.load %arg11[%165, %c0_96] : memref<64x512xf32, #tpu.memory_space<vmem>>, vector<8x128xf32>
    %c0_97 = arith.constant 0 : index
    %c0_98 = arith.constant 0 : index
    %167 = vector.load %arg4[%c0_97, %c0_98] : memref<128x512xbf16, #tpu.memory_space<vmem>>, vector<128x128xbf16>
    %cst_99 = arith.constant dense<0.000000e+00> : vector<8x128xf32>
    %168 = tpu.matmul %164, %167, %cst_99 {dimension_numbers = #tpu.dot_dimension_numbers<[1], [0], [0], [1], [0, 0, 1, 1], [], []>} : vector<8x128xbf16>, vector<128x128xbf16>, vector<8x128xf32> -> vector<8x128xf32>
    %169 = arith.addf %166, %168 : vector<8x128xf32>
    %170 = arith.negf %169 : vector<8x128xf32>
    %171 = math.exp %170 : vector<8x128xf32>
    %cst_100 = arith.constant 1.000000e+00 : f32
    %172 = vector.broadcast %cst_100 : f32 to vector<8x128xf32>
    %173 = arith.addf %172, %171 : vector<8x128xf32>
    %174 = arith.divf %172, %173 : vector<8x128xf32>
    %175 = arith.index_cast %162 : i32 to index
    %c128_101 = arith.constant 128 : index
    %176 = vector.load %arg11[%175, %c128_101] : memref<64x512xf32, #tpu.memory_space<vmem>>, vector<8x128xf32>
    %c0_102 = arith.constant 0 : index
    %c128_103 = arith.constant 128 : index
    %177 = vector.load %arg4[%c0_102, %c128_103] : memref<128x512xbf16, #tpu.memory_space<vmem>>, vector<128x128xbf16>
    %cst_104 = arith.constant dense<0.000000e+00> : vector<8x128xf32>
    %178 = tpu.matmul %164, %177, %cst_104 {dimension_numbers = #tpu.dot_dimension_numbers<[1], [0], [0], [1], [0, 0, 1, 1], [], []>} : vector<8x128xbf16>, vector<128x128xbf16>, vector<8x128xf32> -> vector<8x128xf32>
    %179 = arith.addf %176, %178 : vector<8x128xf32>
    %180 = arith.negf %179 : vector<8x128xf32>
    %181 = math.exp %180 : vector<8x128xf32>
    %cst_105 = arith.constant 1.000000e+00 : f32
    %182 = vector.broadcast %cst_105 : f32 to vector<8x128xf32>
    %183 = arith.addf %182, %181 : vector<8x128xf32>
    %184 = arith.divf %182, %183 : vector<8x128xf32>
    %185 = arith.index_cast %162 : i32 to index
    %c256_106 = arith.constant 256 : index
    %186 = vector.load %arg11[%185, %c256_106] : memref<64x512xf32, #tpu.memory_space<vmem>>, vector<8x128xf32>
    %c0_107 = arith.constant 0 : index
    %c256_108 = arith.constant 256 : index
    %187 = vector.load %arg4[%c0_107, %c256_108] : memref<128x512xbf16, #tpu.memory_space<vmem>>, vector<128x128xbf16>
    %cst_109 = arith.constant dense<0.000000e+00> : vector<8x128xf32>
    %188 = tpu.matmul %164, %187, %cst_109 {dimension_numbers = #tpu.dot_dimension_numbers<[1], [0], [0], [1], [0, 0, 1, 1], [], []>} : vector<8x128xbf16>, vector<128x128xbf16>, vector<8x128xf32> -> vector<8x128xf32>
    %189 = arith.addf %186, %188 : vector<8x128xf32>
    %190 = math.tanh %189 : vector<8x128xf32>
    %191 = arith.index_cast %162 : i32 to index
    %c384_110 = arith.constant 384 : index
    %192 = vector.load %arg11[%191, %c384_110] : memref<64x512xf32, #tpu.memory_space<vmem>>, vector<8x128xf32>
    %c0_111 = arith.constant 0 : index
    %c384_112 = arith.constant 384 : index
    %193 = vector.load %arg4[%c0_111, %c384_112] : memref<128x512xbf16, #tpu.memory_space<vmem>>, vector<128x128xbf16>
    %cst_113 = arith.constant dense<0.000000e+00> : vector<8x128xf32>
    %194 = tpu.matmul %164, %193, %cst_113 {dimension_numbers = #tpu.dot_dimension_numbers<[1], [0], [0], [1], [0, 0, 1, 1], [], []>} : vector<8x128xbf16>, vector<128x128xbf16>, vector<8x128xf32> -> vector<8x128xf32>
    %195 = arith.addf %192, %194 : vector<8x128xf32>
    %196 = arith.negf %195 : vector<8x128xf32>
    %197 = math.exp %196 : vector<8x128xf32>
    %cst_114 = arith.constant 1.000000e+00 : f32
    %198 = vector.broadcast %cst_114 : f32 to vector<8x128xf32>
    %199 = arith.addf %198, %197 : vector<8x128xf32>
    %200 = arith.divf %198, %199 : vector<8x128xf32>
    %c0_115 = arith.constant 0 : index
    %c0_116 = arith.constant 0 : index
    %201 = vector.load %arg14[%c0_115, %c0_116] : memref<8x128xf32, #tpu.memory_space<vmem>>, vector<8x128xf32>
    %202 = arith.mulf %184, %201 : vector<8x128xf32>
    %203 = arith.mulf %174, %190 : vector<8x128xf32>
    %204 = arith.addf %202, %203 : vector<8x128xf32>
    %205 = math.tanh %204 : vector<8x128xf32>
    %206 = arith.mulf %200, %205 : vector<8x128xf32>
    %c0_117 = arith.constant 0 : index
    %c0_118 = arith.constant 0 : index
    %207 = vector.load %arg14[%c0_117, %c0_118] : memref<8x128xf32, #tpu.memory_space<vmem>>, vector<8x128xf32>
    tpu.vector_store %arg14[%c0_117, %c0_118], %204 {strides = array<i32>} : memref<8x128xf32, #tpu.memory_space<vmem>>, vector<8x128xf32>,
    %c0_119 = arith.constant 0 : index
    %c0_120 = arith.constant 0 : index
    %208 = vector.load %arg13[%c0_119, %c0_120] : memref<8x128xf32, #tpu.memory_space<vmem>>, vector<8x128xf32>
    tpu.vector_store %arg13[%c0_119, %c0_120], %206 {strides = array<i32>} : memref<8x128xf32, #tpu.memory_space<vmem>>, vector<8x128xf32>,
    %209 = arith.index_cast %162 : i32 to index
    %c0_121 = arith.constant 0 : index
    %210 = vector.load %arg12[%209, %c0_121] : memref<64x128xf32, #tpu.memory_space<vmem>>, vector<8x128xf32>
    tpu.vector_store %arg12[%209, %c0_121], %206 {strides = array<i32>} : memref<64x128xf32, #tpu.memory_space<vmem>>, vector<8x128xf32>,
    %c4_i32 = arith.constant 4 : i32
    %c8_i32_122 = arith.constant 8 : i32
    %211 = arith.muli %c4_i32, %c8_i32_122 : i32
    %212 = tpu.assume_multiple %211, 8 : i32
    %c0_123 = arith.constant 0 : index
    %c0_124 = arith.constant 0 : index
    %213 = vector.load %arg13[%c0_123, %c0_124] : memref<8x128xf32, #tpu.memory_space<vmem>>, vector<8x128xf32>
    %214 = arith.truncf %213 : vector<8x128xf32> to vector<8x128xbf16>
    %215 = arith.index_cast %212 : i32 to index
    %c0_125 = arith.constant 0 : index
    %216 = vector.load %arg11[%215, %c0_125] : memref<64x512xf32, #tpu.memory_space<vmem>>, vector<8x128xf32>
    %c0_126 = arith.constant 0 : index
    %c0_127 = arith.constant 0 : index
    %217 = vector.load %arg4[%c0_126, %c0_127] : memref<128x512xbf16, #tpu.memory_space<vmem>>, vector<128x128xbf16>
    %cst_128 = arith.constant dense<0.000000e+00> : vector<8x128xf32>
    %218 = tpu.matmul %214, %217, %cst_128 {dimension_numbers = #tpu.dot_dimension_numbers<[1], [0], [0], [1], [0, 0, 1, 1], [], []>} : vector<8x128xbf16>, vector<128x128xbf16>, vector<8x128xf32> -> vector<8x128xf32>
    %219 = arith.addf %216, %218 : vector<8x128xf32>
    %220 = arith.negf %219 : vector<8x128xf32>
    %221 = math.exp %220 : vector<8x128xf32>
    %cst_129 = arith.constant 1.000000e+00 : f32
    %222 = vector.broadcast %cst_129 : f32 to vector<8x128xf32>
    %223 = arith.addf %222, %221 : vector<8x128xf32>
    %224 = arith.divf %222, %223 : vector<8x128xf32>
    %225 = arith.index_cast %212 : i32 to index
    %c128_130 = arith.constant 128 : index
    %226 = vector.load %arg11[%225, %c128_130] : memref<64x512xf32, #tpu.memory_space<vmem>>, vector<8x128xf32>
    %c0_131 = arith.constant 0 : index
    %c128_132 = arith.constant 128 : index
    %227 = vector.load %arg4[%c0_131, %c128_132] : memref<128x512xbf16, #tpu.memory_space<vmem>>, vector<128x128xbf16>
    %cst_133 = arith.constant dense<0.000000e+00> : vector<8x128xf32>
    %228 = tpu.matmul %214, %227, %cst_133 {dimension_numbers = #tpu.dot_dimension_numbers<[1], [0], [0], [1], [0, 0, 1, 1], [], []>} : vector<8x128xbf16>, vector<128x128xbf16>, vector<8x128xf32> -> vector<8x128xf32>
    %229 = arith.addf %226, %228 : vector<8x128xf32>
    %230 = arith.negf %229 : vector<8x128xf32>
    %231 = math.exp %230 : vector<8x128xf32>
    %cst_134 = arith.constant 1.000000e+00 : f32
    %232 = vector.broadcast %cst_134 : f32 to vector<8x128xf32>
    %233 = arith.addf %232, %231 : vector<8x128xf32>
    %234 = arith.divf %232, %233 : vector<8x128xf32>
    %235 = arith.index_cast %212 : i32 to index
    %c256_135 = arith.constant 256 : index
    %236 = vector.load %arg11[%235, %c256_135] : memref<64x512xf32, #tpu.memory_space<vmem>>, vector<8x128xf32>
    %c0_136 = arith.constant 0 : index
    %c256_137 = arith.constant 256 : index
    %237 = vector.load %arg4[%c0_136, %c256_137] : memref<128x512xbf16, #tpu.memory_space<vmem>>, vector<128x128xbf16>
    %cst_138 = arith.constant dense<0.000000e+00> : vector<8x128xf32>
    %238 = tpu.matmul %214, %237, %cst_138 {dimension_numbers = #tpu.dot_dimension_numbers<[1], [0], [0], [1], [0, 0, 1, 1], [], []>} : vector<8x128xbf16>, vector<128x128xbf16>, vector<8x128xf32> -> vector<8x128xf32>
    %239 = arith.addf %236, %238 : vector<8x128xf32>
    %240 = math.tanh %239 : vector<8x128xf32>
    %241 = arith.index_cast %212 : i32 to index
    %c384_139 = arith.constant 384 : index
    %242 = vector.load %arg11[%241, %c384_139] : memref<64x512xf32, #tpu.memory_space<vmem>>, vector<8x128xf32>
    %c0_140 = arith.constant 0 : index
    %c384_141 = arith.constant 384 : index
    %243 = vector.load %arg4[%c0_140, %c384_141] : memref<128x512xbf16, #tpu.memory_space<vmem>>, vector<128x128xbf16>
    %cst_142 = arith.constant dense<0.000000e+00> : vector<8x128xf32>
    %244 = tpu.matmul %214, %243, %cst_142 {dimension_numbers = #tpu.dot_dimension_numbers<[1], [0], [0], [1], [0, 0, 1, 1], [], []>} : vector<8x128xbf16>, vector<128x128xbf16>, vector<8x128xf32> -> vector<8x128xf32>
    %245 = arith.addf %242, %244 : vector<8x128xf32>
    %246 = arith.negf %245 : vector<8x128xf32>
    %247 = math.exp %246 : vector<8x128xf32>
    %cst_143 = arith.constant 1.000000e+00 : f32
    %248 = vector.broadcast %cst_143 : f32 to vector<8x128xf32>
    %249 = arith.addf %248, %247 : vector<8x128xf32>
    %250 = arith.divf %248, %249 : vector<8x128xf32>
    %c0_144 = arith.constant 0 : index
    %c0_145 = arith.constant 0 : index
    %251 = vector.load %arg14[%c0_144, %c0_145] : memref<8x128xf32, #tpu.memory_space<vmem>>, vector<8x128xf32>
    %252 = arith.mulf %234, %251 : vector<8x128xf32>
    %253 = arith.mulf %224, %240 : vector<8x128xf32>
    %254 = arith.addf %252, %253 : vector<8x128xf32>
    %255 = math.tanh %254 : vector<8x128xf32>
    %256 = arith.mulf %250, %255 : vector<8x128xf32>
    %c0_146 = arith.constant 0 : index
    %c0_147 = arith.constant 0 : index
    %257 = vector.load %arg14[%c0_146, %c0_147] : memref<8x128xf32, #tpu.memory_space<vmem>>, vector<8x128xf32>
    tpu.vector_store %arg14[%c0_146, %c0_147], %254 {strides = array<i32>} : memref<8x128xf32, #tpu.memory_space<vmem>>, vector<8x128xf32>,
    %c0_148 = arith.constant 0 : index
    %c0_149 = arith.constant 0 : index
    %258 = vector.load %arg13[%c0_148, %c0_149] : memref<8x128xf32, #tpu.memory_space<vmem>>, vector<8x128xf32>
    tpu.vector_store %arg13[%c0_148, %c0_149], %256 {strides = array<i32>} : memref<8x128xf32, #tpu.memory_space<vmem>>, vector<8x128xf32>,
    %259 = arith.index_cast %212 : i32 to index
    %c0_150 = arith.constant 0 : index
    %260 = vector.load %arg12[%259, %c0_150] : memref<64x128xf32, #tpu.memory_space<vmem>>, vector<8x128xf32>
    tpu.vector_store %arg12[%259, %c0_150], %256 {strides = array<i32>} : memref<64x128xf32, #tpu.memory_space<vmem>>, vector<8x128xf32>,
    %c5_i32 = arith.constant 5 : i32
    %c8_i32_151 = arith.constant 8 : i32
    %261 = arith.muli %c5_i32, %c8_i32_151 : i32
    %262 = tpu.assume_multiple %261, 8 : i32
    %c0_152 = arith.constant 0 : index
    %c0_153 = arith.constant 0 : index
    %263 = vector.load %arg13[%c0_152, %c0_153] : memref<8x128xf32, #tpu.memory_space<vmem>>, vector<8x128xf32>
    %264 = arith.truncf %263 : vector<8x128xf32> to vector<8x128xbf16>
    %265 = arith.index_cast %262 : i32 to index
    %c0_154 = arith.constant 0 : index
    %266 = vector.load %arg11[%265, %c0_154] : memref<64x512xf32, #tpu.memory_space<vmem>>, vector<8x128xf32>
    %c0_155 = arith.constant 0 : index
    %c0_156 = arith.constant 0 : index
    %267 = vector.load %arg4[%c0_155, %c0_156] : memref<128x512xbf16, #tpu.memory_space<vmem>>, vector<128x128xbf16>
    %cst_157 = arith.constant dense<0.000000e+00> : vector<8x128xf32>
    %268 = tpu.matmul %264, %267, %cst_157 {dimension_numbers = #tpu.dot_dimension_numbers<[1], [0], [0], [1], [0, 0, 1, 1], [], []>} : vector<8x128xbf16>, vector<128x128xbf16>, vector<8x128xf32> -> vector<8x128xf32>
    %269 = arith.addf %266, %268 : vector<8x128xf32>
    %270 = arith.negf %269 : vector<8x128xf32>
    %271 = math.exp %270 : vector<8x128xf32>
    %cst_158 = arith.constant 1.000000e+00 : f32
    %272 = vector.broadcast %cst_158 : f32 to vector<8x128xf32>
    %273 = arith.addf %272, %271 : vector<8x128xf32>
    %274 = arith.divf %272, %273 : vector<8x128xf32>
    %275 = arith.index_cast %262 : i32 to index
    %c128_159 = arith.constant 128 : index
    %276 = vector.load %arg11[%275, %c128_159] : memref<64x512xf32, #tpu.memory_space<vmem>>, vector<8x128xf32>
    %c0_160 = arith.constant 0 : index
    %c128_161 = arith.constant 128 : index
    %277 = vector.load %arg4[%c0_160, %c128_161] : memref<128x512xbf16, #tpu.memory_space<vmem>>, vector<128x128xbf16>
    %cst_162 = arith.constant dense<0.000000e+00> : vector<8x128xf32>
    %278 = tpu.matmul %264, %277, %cst_162 {dimension_numbers = #tpu.dot_dimension_numbers<[1], [0], [0], [1], [0, 0, 1, 1], [], []>} : vector<8x128xbf16>, vector<128x128xbf16>, vector<8x128xf32> -> vector<8x128xf32>
    %279 = arith.addf %276, %278 : vector<8x128xf32>
    %280 = arith.negf %279 : vector<8x128xf32>
    %281 = math.exp %280 : vector<8x128xf32>
    %cst_163 = arith.constant 1.000000e+00 : f32
    %282 = vector.broadcast %cst_163 : f32 to vector<8x128xf32>
    %283 = arith.addf %282, %281 : vector<8x128xf32>
    %284 = arith.divf %282, %283 : vector<8x128xf32>
    %285 = arith.index_cast %262 : i32 to index
    %c256_164 = arith.constant 256 : index
    %286 = vector.load %arg11[%285, %c256_164] : memref<64x512xf32, #tpu.memory_space<vmem>>, vector<8x128xf32>
    %c0_165 = arith.constant 0 : index
    %c256_166 = arith.constant 256 : index
    %287 = vector.load %arg4[%c0_165, %c256_166] : memref<128x512xbf16, #tpu.memory_space<vmem>>, vector<128x128xbf16>
    %cst_167 = arith.constant dense<0.000000e+00> : vector<8x128xf32>
    %288 = tpu.matmul %264, %287, %cst_167 {dimension_numbers = #tpu.dot_dimension_numbers<[1], [0], [0], [1], [0, 0, 1, 1], [], []>} : vector<8x128xbf16>, vector<128x128xbf16>, vector<8x128xf32> -> vector<8x128xf32>
    %289 = arith.addf %286, %288 : vector<8x128xf32>
    %290 = math.tanh %289 : vector<8x128xf32>
    %291 = arith.index_cast %262 : i32 to index
    %c384_168 = arith.constant 384 : index
    %292 = vector.load %arg11[%291, %c384_168] : memref<64x512xf32, #tpu.memory_space<vmem>>, vector<8x128xf32>
    %c0_169 = arith.constant 0 : index
    %c384_170 = arith.constant 384 : index
    %293 = vector.load %arg4[%c0_169, %c384_170] : memref<128x512xbf16, #tpu.memory_space<vmem>>, vector<128x128xbf16>
    %cst_171 = arith.constant dense<0.000000e+00> : vector<8x128xf32>
    %294 = tpu.matmul %264, %293, %cst_171 {dimension_numbers = #tpu.dot_dimension_numbers<[1], [0], [0], [1], [0, 0, 1, 1], [], []>} : vector<8x128xbf16>, vector<128x128xbf16>, vector<8x128xf32> -> vector<8x128xf32>
    %295 = arith.addf %292, %294 : vector<8x128xf32>
    %296 = arith.negf %295 : vector<8x128xf32>
    %297 = math.exp %296 : vector<8x128xf32>
    %cst_172 = arith.constant 1.000000e+00 : f32
    %298 = vector.broadcast %cst_172 : f32 to vector<8x128xf32>
    %299 = arith.addf %298, %297 : vector<8x128xf32>
    %300 = arith.divf %298, %299 : vector<8x128xf32>
    %c0_173 = arith.constant 0 : index
    %c0_174 = arith.constant 0 : index
    %301 = vector.load %arg14[%c0_173, %c0_174] : memref<8x128xf32, #tpu.memory_space<vmem>>, vector<8x128xf32>
    %302 = arith.mulf %284, %301 : vector<8x128xf32>
    %303 = arith.mulf %274, %290 : vector<8x128xf32>
    %304 = arith.addf %302, %303 : vector<8x128xf32>
    %305 = math.tanh %304 : vector<8x128xf32>
    %306 = arith.mulf %300, %305 : vector<8x128xf32>
    %c0_175 = arith.constant 0 : index
    %c0_176 = arith.constant 0 : index
    %307 = vector.load %arg14[%c0_175, %c0_176] : memref<8x128xf32, #tpu.memory_space<vmem>>, vector<8x128xf32>
    tpu.vector_store %arg14[%c0_175, %c0_176], %304 {strides = array<i32>} : memref<8x128xf32, #tpu.memory_space<vmem>>, vector<8x128xf32>,
    %c0_177 = arith.constant 0 : index
    %c0_178 = arith.constant 0 : index
    %308 = vector.load %arg13[%c0_177, %c0_178] : memref<8x128xf32, #tpu.memory_space<vmem>>, vector<8x128xf32>
    tpu.vector_store %arg13[%c0_177, %c0_178], %306 {strides = array<i32>} : memref<8x128xf32, #tpu.memory_space<vmem>>, vector<8x128xf32>,
    %309 = arith.index_cast %262 : i32 to index
    %c0_179 = arith.constant 0 : index
    %310 = vector.load %arg12[%309, %c0_179] : memref<64x128xf32, #tpu.memory_space<vmem>>, vector<8x128xf32>
    tpu.vector_store %arg12[%309, %c0_179], %306 {strides = array<i32>} : memref<64x128xf32, #tpu.memory_space<vmem>>, vector<8x128xf32>,
    %c6_i32 = arith.constant 6 : i32
    %c8_i32_180 = arith.constant 8 : i32
    %311 = arith.muli %c6_i32, %c8_i32_180 : i32
    %312 = tpu.assume_multiple %311, 8 : i32
    %c0_181 = arith.constant 0 : index
    %c0_182 = arith.constant 0 : index
    %313 = vector.load %arg13[%c0_181, %c0_182] : memref<8x128xf32, #tpu.memory_space<vmem>>, vector<8x128xf32>
    %314 = arith.truncf %313 : vector<8x128xf32> to vector<8x128xbf16>
    %315 = arith.index_cast %312 : i32 to index
    %c0_183 = arith.constant 0 : index
    %316 = vector.load %arg11[%315, %c0_183] : memref<64x512xf32, #tpu.memory_space<vmem>>, vector<8x128xf32>
    %c0_184 = arith.constant 0 : index
    %c0_185 = arith.constant 0 : index
    %317 = vector.load %arg4[%c0_184, %c0_185] : memref<128x512xbf16, #tpu.memory_space<vmem>>, vector<128x128xbf16>
    %cst_186 = arith.constant dense<0.000000e+00> : vector<8x128xf32>
    %318 = tpu.matmul %314, %317, %cst_186 {dimension_numbers = #tpu.dot_dimension_numbers<[1], [0], [0], [1], [0, 0, 1, 1], [], []>} : vector<8x128xbf16>, vector<128x128xbf16>, vector<8x128xf32> -> vector<8x128xf32>
    %319 = arith.addf %316, %318 : vector<8x128xf32>
    %320 = arith.negf %319 : vector<8x128xf32>
    %321 = math.exp %320 : vector<8x128xf32>
    %cst_187 = arith.constant 1.000000e+00 : f32
    %322 = vector.broadcast %cst_187 : f32 to vector<8x128xf32>
    %323 = arith.addf %322, %321 : vector<8x128xf32>
    %324 = arith.divf %322, %323 : vector<8x128xf32>
    %325 = arith.index_cast %312 : i32 to index
    %c128_188 = arith.constant 128 : index
    %326 = vector.load %arg11[%325, %c128_188] : memref<64x512xf32, #tpu.memory_space<vmem>>, vector<8x128xf32>
    %c0_189 = arith.constant 0 : index
    %c128_190 = arith.constant 128 : index
    %327 = vector.load %arg4[%c0_189, %c128_190] : memref<128x512xbf16, #tpu.memory_space<vmem>>, vector<128x128xbf16>
    %cst_191 = arith.constant dense<0.000000e+00> : vector<8x128xf32>
    %328 = tpu.matmul %314, %327, %cst_191 {dimension_numbers = #tpu.dot_dimension_numbers<[1], [0], [0], [1], [0, 0, 1, 1], [], []>} : vector<8x128xbf16>, vector<128x128xbf16>, vector<8x128xf32> -> vector<8x128xf32>
    %329 = arith.addf %326, %328 : vector<8x128xf32>
    %330 = arith.negf %329 : vector<8x128xf32>
    %331 = math.exp %330 : vector<8x128xf32>
    %cst_192 = arith.constant 1.000000e+00 : f32
    %332 = vector.broadcast %cst_192 : f32 to vector<8x128xf32>
    %333 = arith.addf %332, %331 : vector<8x128xf32>
    %334 = arith.divf %332, %333 : vector<8x128xf32>
    %335 = arith.index_cast %312 : i32 to index
    %c256_193 = arith.constant 256 : index
    %336 = vector.load %arg11[%335, %c256_193] : memref<64x512xf32, #tpu.memory_space<vmem>>, vector<8x128xf32>
    %c0_194 = arith.constant 0 : index
    %c256_195 = arith.constant 256 : index
    %337 = vector.load %arg4[%c0_194, %c256_195] : memref<128x512xbf16, #tpu.memory_space<vmem>>, vector<128x128xbf16>
    %cst_196 = arith.constant dense<0.000000e+00> : vector<8x128xf32>
    %338 = tpu.matmul %314, %337, %cst_196 {dimension_numbers = #tpu.dot_dimension_numbers<[1], [0], [0], [1], [0, 0, 1, 1], [], []>} : vector<8x128xbf16>, vector<128x128xbf16>, vector<8x128xf32> -> vector<8x128xf32>
    %339 = arith.addf %336, %338 : vector<8x128xf32>
    %340 = math.tanh %339 : vector<8x128xf32>
    %341 = arith.index_cast %312 : i32 to index
    %c384_197 = arith.constant 384 : index
    %342 = vector.load %arg11[%341, %c384_197] : memref<64x512xf32, #tpu.memory_space<vmem>>, vector<8x128xf32>
    %c0_198 = arith.constant 0 : index
    %c384_199 = arith.constant 384 : index
    %343 = vector.load %arg4[%c0_198, %c384_199] : memref<128x512xbf16, #tpu.memory_space<vmem>>, vector<128x128xbf16>
    %cst_200 = arith.constant dense<0.000000e+00> : vector<8x128xf32>
    %344 = tpu.matmul %314, %343, %cst_200 {dimension_numbers = #tpu.dot_dimension_numbers<[1], [0], [0], [1], [0, 0, 1, 1], [], []>} : vector<8x128xbf16>, vector<128x128xbf16>, vector<8x128xf32> -> vector<8x128xf32>
    %345 = arith.addf %342, %344 : vector<8x128xf32>
    %346 = arith.negf %345 : vector<8x128xf32>
    %347 = math.exp %346 : vector<8x128xf32>
    %cst_201 = arith.constant 1.000000e+00 : f32
    %348 = vector.broadcast %cst_201 : f32 to vector<8x128xf32>
    %349 = arith.addf %348, %347 : vector<8x128xf32>
    %350 = arith.divf %348, %349 : vector<8x128xf32>
    %c0_202 = arith.constant 0 : index
    %c0_203 = arith.constant 0 : index
    %351 = vector.load %arg14[%c0_202, %c0_203] : memref<8x128xf32, #tpu.memory_space<vmem>>, vector<8x128xf32>
    %352 = arith.mulf %334, %351 : vector<8x128xf32>
    %353 = arith.mulf %324, %340 : vector<8x128xf32>
    %354 = arith.addf %352, %353 : vector<8x128xf32>
    %355 = math.tanh %354 : vector<8x128xf32>
    %356 = arith.mulf %350, %355 : vector<8x128xf32>
    %c0_204 = arith.constant 0 : index
    %c0_205 = arith.constant 0 : index
    %357 = vector.load %arg14[%c0_204, %c0_205] : memref<8x128xf32, #tpu.memory_space<vmem>>, vector<8x128xf32>
    tpu.vector_store %arg14[%c0_204, %c0_205], %354 {strides = array<i32>} : memref<8x128xf32, #tpu.memory_space<vmem>>, vector<8x128xf32>,
    %c0_206 = arith.constant 0 : index
    %c0_207 = arith.constant 0 : index
    %358 = vector.load %arg13[%c0_206, %c0_207] : memref<8x128xf32, #tpu.memory_space<vmem>>, vector<8x128xf32>
    tpu.vector_store %arg13[%c0_206, %c0_207], %356 {strides = array<i32>} : memref<8x128xf32, #tpu.memory_space<vmem>>, vector<8x128xf32>,
    %359 = arith.index_cast %312 : i32 to index
    %c0_208 = arith.constant 0 : index
    %360 = vector.load %arg12[%359, %c0_208] : memref<64x128xf32, #tpu.memory_space<vmem>>, vector<8x128xf32>
    tpu.vector_store %arg12[%359, %c0_208], %356 {strides = array<i32>} : memref<64x128xf32, #tpu.memory_space<vmem>>, vector<8x128xf32>,
    %c7_i32 = arith.constant 7 : i32
    %c8_i32_209 = arith.constant 8 : i32
    %361 = arith.muli %c7_i32, %c8_i32_209 : i32
    %362 = tpu.assume_multiple %361, 8 : i32
    %c0_210 = arith.constant 0 : index
    %c0_211 = arith.constant 0 : index
    %363 = vector.load %arg13[%c0_210, %c0_211] : memref<8x128xf32, #tpu.memory_space<vmem>>, vector<8x128xf32>
    %364 = arith.truncf %363 : vector<8x128xf32> to vector<8x128xbf16>
    %365 = arith.index_cast %362 : i32 to index
    %c0_212 = arith.constant 0 : index
    %366 = vector.load %arg11[%365, %c0_212] : memref<64x512xf32, #tpu.memory_space<vmem>>, vector<8x128xf32>
    %c0_213 = arith.constant 0 : index
    %c0_214 = arith.constant 0 : index
    %367 = vector.load %arg4[%c0_213, %c0_214] : memref<128x512xbf16, #tpu.memory_space<vmem>>, vector<128x128xbf16>
    %cst_215 = arith.constant dense<0.000000e+00> : vector<8x128xf32>
    %368 = tpu.matmul %364, %367, %cst_215 {dimension_numbers = #tpu.dot_dimension_numbers<[1], [0], [0], [1], [0, 0, 1, 1], [], []>} : vector<8x128xbf16>, vector<128x128xbf16>, vector<8x128xf32> -> vector<8x128xf32>
    %369 = arith.addf %366, %368 : vector<8x128xf32>
    %370 = arith.negf %369 : vector<8x128xf32>
    %371 = math.exp %370 : vector<8x128xf32>
    %cst_216 = arith.constant 1.000000e+00 : f32
    %372 = vector.broadcast %cst_216 : f32 to vector<8x128xf32>
    %373 = arith.addf %372, %371 : vector<8x128xf32>
    %374 = arith.divf %372, %373 : vector<8x128xf32>
    %375 = arith.index_cast %362 : i32 to index
    %c128_217 = arith.constant 128 : index
    %376 = vector.load %arg11[%375, %c128_217] : memref<64x512xf32, #tpu.memory_space<vmem>>, vector<8x128xf32>
    %c0_218 = arith.constant 0 : index
    %c128_219 = arith.constant 128 : index
    %377 = vector.load %arg4[%c0_218, %c128_219] : memref<128x512xbf16, #tpu.memory_space<vmem>>, vector<128x128xbf16>
    %cst_220 = arith.constant dense<0.000000e+00> : vector<8x128xf32>
    %378 = tpu.matmul %364, %377, %cst_220 {dimension_numbers = #tpu.dot_dimension_numbers<[1], [0], [0], [1], [0, 0, 1, 1], [], []>} : vector<8x128xbf16>, vector<128x128xbf16>, vector<8x128xf32> -> vector<8x128xf32>
    %379 = arith.addf %376, %378 : vector<8x128xf32>
    %380 = arith.negf %379 : vector<8x128xf32>
    %381 = math.exp %380 : vector<8x128xf32>
    %cst_221 = arith.constant 1.000000e+00 : f32
    %382 = vector.broadcast %cst_221 : f32 to vector<8x128xf32>
    %383 = arith.addf %382, %381 : vector<8x128xf32>
    %384 = arith.divf %382, %383 : vector<8x128xf32>
    %385 = arith.index_cast %362 : i32 to index
    %c256_222 = arith.constant 256 : index
    %386 = vector.load %arg11[%385, %c256_222] : memref<64x512xf32, #tpu.memory_space<vmem>>, vector<8x128xf32>
    %c0_223 = arith.constant 0 : index
    %c256_224 = arith.constant 256 : index
    %387 = vector.load %arg4[%c0_223, %c256_224] : memref<128x512xbf16, #tpu.memory_space<vmem>>, vector<128x128xbf16>
    %cst_225 = arith.constant dense<0.000000e+00> : vector<8x128xf32>
    %388 = tpu.matmul %364, %387, %cst_225 {dimension_numbers = #tpu.dot_dimension_numbers<[1], [0], [0], [1], [0, 0, 1, 1], [], []>} : vector<8x128xbf16>, vector<128x128xbf16>, vector<8x128xf32> -> vector<8x128xf32>
    %389 = arith.addf %386, %388 : vector<8x128xf32>
    %390 = math.tanh %389 : vector<8x128xf32>
    %391 = arith.index_cast %362 : i32 to index
    %c384_226 = arith.constant 384 : index
    %392 = vector.load %arg11[%391, %c384_226] : memref<64x512xf32, #tpu.memory_space<vmem>>, vector<8x128xf32>
    %c0_227 = arith.constant 0 : index
    %c384_228 = arith.constant 384 : index
    %393 = vector.load %arg4[%c0_227, %c384_228] : memref<128x512xbf16, #tpu.memory_space<vmem>>, vector<128x128xbf16>
    %cst_229 = arith.constant dense<0.000000e+00> : vector<8x128xf32>
    %394 = tpu.matmul %364, %393, %cst_229 {dimension_numbers = #tpu.dot_dimension_numbers<[1], [0], [0], [1], [0, 0, 1, 1], [], []>} : vector<8x128xbf16>, vector<128x128xbf16>, vector<8x128xf32> -> vector<8x128xf32>
    %395 = arith.addf %392, %394 : vector<8x128xf32>
    %396 = arith.negf %395 : vector<8x128xf32>
    %397 = math.exp %396 : vector<8x128xf32>
    %cst_230 = arith.constant 1.000000e+00 : f32
    %398 = vector.broadcast %cst_230 : f32 to vector<8x128xf32>
    %399 = arith.addf %398, %397 : vector<8x128xf32>
    %400 = arith.divf %398, %399 : vector<8x128xf32>
    %c0_231 = arith.constant 0 : index
    %c0_232 = arith.constant 0 : index
    %401 = vector.load %arg14[%c0_231, %c0_232] : memref<8x128xf32, #tpu.memory_space<vmem>>, vector<8x128xf32>
    %402 = arith.mulf %384, %401 : vector<8x128xf32>
    %403 = arith.mulf %374, %390 : vector<8x128xf32>
    %404 = arith.addf %402, %403 : vector<8x128xf32>
    %405 = math.tanh %404 : vector<8x128xf32>
    %406 = arith.mulf %400, %405 : vector<8x128xf32>
    %c0_233 = arith.constant 0 : index
    %c0_234 = arith.constant 0 : index
    %407 = vector.load %arg14[%c0_233, %c0_234] : memref<8x128xf32, #tpu.memory_space<vmem>>, vector<8x128xf32>
    tpu.vector_store %arg14[%c0_233, %c0_234], %404 {strides = array<i32>} : memref<8x128xf32, #tpu.memory_space<vmem>>, vector<8x128xf32>,
    %c0_235 = arith.constant 0 : index
    %c0_236 = arith.constant 0 : index
    %408 = vector.load %arg13[%c0_235, %c0_236] : memref<8x128xf32, #tpu.memory_space<vmem>>, vector<8x128xf32>
    tpu.vector_store %arg13[%c0_235, %c0_236], %406 {strides = array<i32>} : memref<8x128xf32, #tpu.memory_space<vmem>>, vector<8x128xf32>,
    %409 = arith.index_cast %362 : i32 to index
    %c0_237 = arith.constant 0 : index
    %410 = vector.load %arg12[%409, %c0_237] : memref<64x128xf32, #tpu.memory_space<vmem>>, vector<8x128xf32>
    tpu.vector_store %arg12[%409, %c0_237], %406 {strides = array<i32>} : memref<64x128xf32, #tpu.memory_space<vmem>>, vector<8x128xf32>,
    %c8_i32_238 = arith.constant 8 : i32
    %c0_239 = arith.constant 0 : index
    %c0_240 = arith.constant 0 : index
    %411 = vector.load %arg12[%c0_239, %c0_240] : memref<64x128xf32, #tpu.memory_space<vmem>>, vector<64x128xf32>
    %412 = arith.truncf %411 : vector<64x128xf32> to vector<64x128xbf16>
    %c0_241 = arith.constant 0 : index
    %c0_242 = arith.constant 0 : index
    %c0_243 = arith.constant 0 : index
    %413 = vector.load %arg8[%c0_241, %c0_242, %c0_243] : memref<1x64x128xbf16, #tpu.memory_space<vmem>>, vector<1x64x128xbf16>
    %414 = vector.shape_cast %413 : vector<1x64x128xbf16> to vector<64x128xbf16>
    %415 = vector.shape_cast %412 : vector<64x128xbf16> to vector<1x64x128xbf16>
    tpu.vector_store %arg8[%c0_241, %c0_242, %c0_243], %415 {strides = array<i32>} : memref<1x64x128xbf16, #tpu.memory_space<vmem>>, vector<1x64x128xbf16>,
    %c0_i32_244 = arith.constant 0 : i32
    %416 = arith.cmpi eq, %arg1, %c0_i32_244 : i32
    %417 = arith.extui %416 : i1 to i32
    %c0_i32_245 = arith.constant 0 : i32
    %418 = arith.cmpi ne, %417, %c0_i32_245 : i32
    scf.if %418 {
      %c0_246 = arith.constant 0 : index
      %c0_247 = arith.constant 0 : index
      %419 = vector.load %arg13[%c0_246, %c0_247] : memref<8x128xf32, #tpu.memory_space<vmem>>, vector<8x128xf32>
      %c0_248 = arith.constant 0 : index
      %c0_249 = arith.constant 0 : index
      %c0_250 = arith.constant 0 : index
      %420 = vector.load %arg9[%c0_248, %c0_249, %c0_250] : memref<1x8x128xf32, #tpu.memory_space<vmem>>, vector<1x8x128xf32>
      %421 = vector.shape_cast %420 : vector<1x8x128xf32> to vector<8x128xf32>
      %422 = vector.shape_cast %419 : vector<8x128xf32> to vector<1x8x128xf32>
      tpu.vector_store %arg9[%c0_248, %c0_249, %c0_250], %422 {strides = array<i32>} : memref<1x8x128xf32, #tpu.memory_space<vmem>>, vector<1x8x128xf32>,
      %c0_251 = arith.constant 0 : index
      %c0_252 = arith.constant 0 : index
      %423 = vector.load %arg14[%c0_251, %c0_252] : memref<8x128xf32, #tpu.memory_space<vmem>>, vector<8x128xf32>
      %c0_253 = arith.constant 0 : index
      %c0_254 = arith.constant 0 : index
      %c0_255 = arith.constant 0 : index
      %424 = vector.load %arg10[%c0_253, %c0_254, %c0_255] : memref<1x8x128xf32, #tpu.memory_space<vmem>>, vector<1x8x128xf32>
      %425 = vector.shape_cast %424 : vector<1x8x128xf32> to vector<8x128xf32>
      %426 = vector.shape_cast %423 : vector<8x128xf32> to vector<1x8x128xf32>
      tpu.vector_store %arg10[%c0_253, %c0_254, %c0_255], %426 {strides = array<i32>} : memref<1x8x128xf32, #tpu.memory_space<vmem>>, vector<1x8x128xf32>,
    } else {
    }
    return
  }
  func.func @transform_0(%arg0: i32, %arg1: i32) -> (i32, i32, i32) {
    %c0_i32 = arith.constant 0 : i32
    %c0_i32_0 = arith.constant 0 : i32
    return %arg0, %arg1, %c0_i32 : i32, i32, i32
  }
  func.func @transform_1(%arg0: i32, %arg1: i32) -> (i32, i32) {
    %c0_i32 = arith.constant 0 : i32
    %c0_i32_0 = arith.constant 0 : i32
    %c0_i32_1 = arith.constant 0 : i32
    return %c0_i32, %c0_i32_0 : i32, i32
  }
  func.func @transform_2(%arg0: i32, %arg1: i32) -> (i32, i32) {
    %c0_i32 = arith.constant 0 : i32
    %c0_i32_0 = arith.constant 0 : i32
    %c0_i32_1 = arith.constant 0 : i32
    return %c0_i32, %c0_i32_0 : i32, i32
  }
  func.func @transform_3(%arg0: i32, %arg1: i32) -> (i32, i32) {
    %c0_i32 = arith.constant 0 : i32
    %c0_i32_0 = arith.constant 0 : i32
    %c0_i32_1 = arith.constant 0 : i32
    return %c0_i32, %c0_i32_0 : i32, i32
  }
  func.func @transform_4(%arg0: i32, %arg1: i32) -> (i32, i32, i32) {
    %c0_i32 = arith.constant 0 : i32
    %c0_i32_0 = arith.constant 0 : i32
    %c0_i32_1 = arith.constant 0 : i32
    return %arg0, %c0_i32, %c0_i32_0 : i32, i32, i32
  }
  func.func @transform_5(%arg0: i32, %arg1: i32) -> (i32, i32, i32) {
    %c0_i32 = arith.constant 0 : i32
    %c0_i32_0 = arith.constant 0 : i32
    %c0_i32_1 = arith.constant 0 : i32
    return %arg0, %c0_i32, %c0_i32_0 : i32, i32, i32
  }
  func.func @transform_6(%arg0: i32, %arg1: i32) -> (i32, i32, i32) {
    %c0_i32 = arith.constant 0 : i32
    %c0_i32_0 = arith.constant 0 : i32
    return %arg0, %arg1, %c0_i32 : i32, i32, i32
  }
  func.func @transform_7(%arg0: i32, %arg1: i32) -> (i32, i32, i32) {
    %c0_i32 = arith.constant 0 : i32
    %c0_i32_0 = arith.constant 0 : i32
    %c0_i32_1 = arith.constant 0 : i32
    return %arg0, %c0_i32, %c0_i32_0 : i32, i32, i32
  }
  func.func @transform_8(%arg0: i32, %arg1: i32) -> (i32, i32, i32) {
    %c0_i32 = arith.constant 0 : i32
    %c0_i32_0 = arith.constant 0 : i32
    %c0_i32_1 = arith.constant 0 : i32
    return %arg0, %c0_i32, %c0_i32_0 : i32, i32, i32
  }
}

module attributes {stable_mosaic.version = 11 : i64} {
  func.func @_matmul_bias_kernel(%arg0: i32, %arg1: i32, %arg2: memref<32x128xbf16, #tpu.memory_space<vmem>>, %arg3: memref<128x128xbf16, #tpu.memory_space<vmem>>, %arg4: memref<1x128xf32, #tpu.memory_space<vmem>>, %arg5: memref<32x128xf32, #tpu.memory_space<vmem>>) attributes {dimension_semantics = [#tpu.dimension_semantics<parallel>, #tpu.dimension_semantics<parallel>], iteration_bounds = array<i64: 1, 1>, scalar_prefetch = 0 : i64, scratch_operands = 0 : i64, tpu.core_type = #tpu.core_type<tc>, window_params = [{transform_indices = @transform_0, window_bounds = array<i64: 32, 128>}, {transform_indices = @transform_1, window_bounds = array<i64: 128, 128>}, {transform_indices = @transform_2, window_bounds = array<i64: 1, 128>}, {transform_indices = @transform_3, window_bounds = array<i64: 32, 128>}]} {
    %c0 = arith.constant 0 : index
    %c0_0 = arith.constant 0 : index
    %0 = vector.load %arg2[%c0, %c0_0] : memref<32x128xbf16, #tpu.memory_space<vmem>>, vector<32x128xbf16>
    %c0_1 = arith.constant 0 : index
    %c0_2 = arith.constant 0 : index
    %1 = vector.load %arg3[%c0_1, %c0_2] : memref<128x128xbf16, #tpu.memory_space<vmem>>, vector<128x128xbf16>
    %cst = arith.constant dense<0.000000e+00> : vector<32x128xf32>
    %2 = tpu.matmul %0, %1, %cst {dimension_numbers = #tpu.dot_dimension_numbers<[1], [0], [0], [1], [0, 0, 1, 1], [], []>} : vector<32x128xbf16>, vector<128x128xbf16>, vector<32x128xf32> -> vector<32x128xf32>
    %c0_3 = arith.constant 0 : index
    %c0_4 = arith.constant 0 : index
    %3 = vector.load %arg4[%c0_3, %c0_4] : memref<1x128xf32, #tpu.memory_space<vmem>>, vector<1x128xf32>
    %4 = vector.broadcast %3 : vector<1x128xf32> to vector<32x128xf32>
    %5 = arith.addf %2, %4 : vector<32x128xf32>
    %c0_5 = arith.constant 0 : index
    %c0_6 = arith.constant 0 : index
    %6 = vector.load %arg5[%c0_5, %c0_6] : memref<32x128xf32, #tpu.memory_space<vmem>>, vector<32x128xf32>
    tpu.vector_store %arg5[%c0_5, %c0_6], %5 {strides = array<i32>} : memref<32x128xf32, #tpu.memory_space<vmem>>, vector<32x128xf32>,
    return
  }
  func.func @transform_0(%arg0: i32, %arg1: i32) -> (i32, i32) {
    %c0_i32 = arith.constant 0 : i32
    %c0_i32_0 = arith.constant 0 : i32
    return %arg0, %c0_i32 : i32, i32
  }
  func.func @transform_1(%arg0: i32, %arg1: i32) -> (i32, i32) {
    %c0_i32 = arith.constant 0 : i32
    %c0_i32_0 = arith.constant 0 : i32
    return %c0_i32, %arg1 : i32, i32
  }
  func.func @transform_2(%arg0: i32, %arg1: i32) -> (i32, i32) {
    %c0_i32 = arith.constant 0 : i32
    %c0_i32_0 = arith.constant 0 : i32
    return %c0_i32, %arg1 : i32, i32
  }
  func.func @transform_3(%arg0: i32, %arg1: i32) -> (i32, i32) {
    %c0_i32 = arith.constant 0 : i32
    return %arg0, %arg1 : i32, i32
  }
}

module attributes {stable_mosaic.version = 11 : i64} {
  func.func @_lstm_layer_kernel(%arg0: i32, %arg1: i32, %arg2: memref<1x64x128xbf16, #tpu.memory_space<vmem>>, %arg3: memref<128x512xbf16, #tpu.memory_space<vmem>>, %arg4: memref<128x512xbf16, #tpu.memory_space<vmem>>, %arg5: memref<1x512xf32, #tpu.memory_space<vmem>>, %arg6: memref<1x8x128xf32, #tpu.memory_space<vmem>>, %arg7: memref<1x8x128xf32, #tpu.memory_space<vmem>>, %arg8: memref<1x64x128xbf16, #tpu.memory_space<vmem>>, %arg9: memref<1x8x128xf32, #tpu.memory_space<vmem>>, %arg10: memref<1x8x128xf32, #tpu.memory_space<vmem>>, %arg11: memref<64x512xf32, #tpu.memory_space<vmem>>, %arg12: memref<64x128xf32, #tpu.memory_space<vmem>>, %arg13: memref<8x128xf32, #tpu.memory_space<vmem>>, %arg14: memref<8x128xf32, #tpu.memory_space<vmem>>) attributes {dimension_semantics = [#tpu.dimension_semantics<parallel>, #tpu.dimension_semantics<arbitrary>], iteration_bounds = array<i64: 1, 1>, scalar_prefetch = 0 : i64, scratch_operands = 4 : i64, tpu.core_type = #tpu.core_type<tc>, window_params = [{transform_indices = @transform_0, window_bounds = array<i64: 1, 64, 128>}, {pipeline_mode = #tpu.pipeline_mode<synchronous>, transform_indices = @transform_1, window_bounds = array<i64: 128, 512>}, {pipeline_mode = #tpu.pipeline_mode<synchronous>, transform_indices = @transform_2, window_bounds = array<i64: 128, 512>}, {pipeline_mode = #tpu.pipeline_mode<synchronous>, transform_indices = @transform_3, window_bounds = array<i64: 1, 512>}, {transform_indices = @transform_4, window_bounds = array<i64: 1, 8, 128>}, {transform_indices = @transform_5, window_bounds = array<i64: 1, 8, 128>}, {transform_indices = @transform_6, window_bounds = array<i64: 1, 64, 128>}, {transform_indices = @transform_7, window_bounds = array<i64: 1, 8, 128>}, {transform_indices = @transform_8, window_bounds = array<i64: 1, 8, 128>}]} {
    %c0_i32 = arith.constant 0 : i32
    %0 = arith.cmpi eq, %arg1, %c0_i32 : i32
    %1 = arith.extui %0 : i1 to i32
    %c0_i32_0 = arith.constant 0 : i32
    %2 = arith.cmpi ne, %1, %c0_i32_0 : i32
    scf.if %2 {
      %c0_246 = arith.constant 0 : index
      %c0_247 = arith.constant 0 : index
      %c0_248 = arith.constant 0 : index
      %419 = vector.load %arg6[%c0_246, %c0_247, %c0_248] : memref<1x8x128xf32, #tpu.memory_space<vmem>>, vector<1x8x128xf32>
      %420 = vector.shape_cast %419 : vector<1x8x128xf32> to vector<8x128xf32>
      %c0_249 = arith.constant 0 : index
      %c0_250 = arith.constant 0 : index
      %421 = vector.load %arg13[%c0_249, %c0_250] : memref<8x128xf32, #tpu.memory_space<vmem>>, vector<8x128xf32>
      tpu.vector_store %arg13[%c0_249, %c0_250], %420 {strides = array<i32>} : memref<8x128xf32, #tpu.memory_space<vmem>>, vector<8x128xf32>,
      %c0_251 = arith.constant 0 : index
      %c0_252 = arith.constant 0 : index
      %c0_253 = arith.constant 0 : index
      %422 = vector.load %arg7[%c0_251, %c0_252, %c0_253] : memref<1x8x128xf32, #tpu.memory_space<vmem>>, vector<1x8x128xf32>
      %423 = vector.shape_cast %422 : vector<1x8x128xf32> to vector<8x128xf32>
      %c0_254 = arith.constant 0 : index
      %c0_255 = arith.constant 0 : index
      %424 = vector.load %arg14[%c0_254, %c0_255] : memref<8x128xf32, #tpu.memory_space<vmem>>, vector<8x128xf32>
      tpu.vector_store %arg14[%c0_254, %c0_255], %423 {strides = array<i32>} : memref<8x128xf32, #tpu.memory_space<vmem>>, vector<8x128xf32>,
    } else {
    }
    %c0 = arith.constant 0 : index
    %c0_1 = arith.constant 0 : index
    %c0_2 = arith.constant 0 : index
    %3 = vector.load %arg2[%c0, %c0_1, %c0_2] : memref<1x64x128xbf16, #tpu.memory_space<vmem>>, vector<1x64x128xbf16>
    %4 = vector.shape_cast %3 : vector<1x64x128xbf16> to vector<64x128xbf16>
    %c0_3 = arith.constant 0 : index
    %c0_4 = arith.constant 0 : index
    %5 = vector.load %arg3[%c0_3, %c0_4] : memref<128x512xbf16, #tpu.memory_space<vmem>>, vector<128x512xbf16>
    %cst = arith.constant dense<0.000000e+00> : vector<64x512xf32>
    %6 = tpu.matmul %4, %5, %cst {dimension_numbers = #tpu.dot_dimension_numbers<[1], [0], [0], [1], [0, 0, 1, 1], [], []>} : vector<64x128xbf16>, vector<128x512xbf16>, vector<64x512xf32> -> vector<64x512xf32>
    %c0_5 = arith.constant 0 : index
    %c0_6 = arith.constant 0 : index
    %7 = vector.load %arg5[%c0_5, %c0_6] : memref<1x512xf32, #tpu.memory_space<vmem>>, vector<1x512xf32>
    %8 = vector.broadcast %7 : vector<1x512xf32> to vector<64x512xf32>
    %9 = arith.addf %6, %8 : vector<64x512xf32>
    %c0_7 = arith.constant 0 : index
    %c0_8 = arith.constant 0 : index
    %10 = vector.load %arg11[%c0_7, %c0_8] : memref<64x512xf32, #tpu.memory_space<vmem>>, vector<64x512xf32>
    tpu.vector_store %arg11[%c0_7, %c0_8], %9 {strides = array<i32>} : memref<64x512xf32, #tpu.memory_space<vmem>>, vector<64x512xf32>,
    %c0_i32_9 = arith.constant 0 : i32
    %c8_i32 = arith.constant 8 : i32
    %11 = arith.muli %c0_i32_9, %c8_i32 : i32
    %12 = tpu.assume_multiple %11, 8 : i32
    %c0_10 = arith.constant 0 : index
    %c0_11 = arith.constant 0 : index
    %13 = vector.load %arg13[%c0_10, %c0_11] : memref<8x128xf32, #tpu.memory_space<vmem>>, vector<8x128xf32>
    %14 = arith.truncf %13 : vector<8x128xf32> to vector<8x128xbf16>
    %15 = arith.index_cast %12 : i32 to index
    %c0_12 = arith.constant 0 : index
    %16 = vector.load %arg11[%15, %c0_12] : memref<64x512xf32, #tpu.memory_space<vmem>>, vector<8x128xf32>
    %c0_13 = arith.constant 0 : index
    %c0_14 = arith.constant 0 : index
    %17 = vector.load %arg4[%c0_13, %c0_14] : memref<128x512xbf16, #tpu.memory_space<vmem>>, vector<128x128xbf16>
    %cst_15 = arith.constant dense<0.000000e+00> : vector<8x128xf32>
    %18 = tpu.matmul %14, %17, %cst_15 {dimension_numbers = #tpu.dot_dimension_numbers<[1], [0], [0], [1], [0, 0, 1, 1], [], []>} : vector<8x128xbf16>, vector<128x128xbf16>, vector<8x128xf32> -> vector<8x128xf32>
    %19 = arith.addf %16, %18 : vector<8x128xf32>
    %20 = arith.negf %19 : vector<8x128xf32>
    %21 = math.exp %20 : vector<8x128xf32>
    %cst_16 = arith.constant 1.000000e+00 : f32
    %22 = vector.broadcast %cst_16 : f32 to vector<8x128xf32>
    %23 = arith.addf %22, %21 : vector<8x128xf32>
    %24 = arith.divf %22, %23 : vector<8x128xf32>
    %25 = arith.index_cast %12 : i32 to index
    %c128 = arith.constant 128 : index
    %26 = vector.load %arg11[%25, %c128] : memref<64x512xf32, #tpu.memory_space<vmem>>, vector<8x128xf32>
    %c0_17 = arith.constant 0 : index
    %c128_18 = arith.constant 128 : index
    %27 = vector.load %arg4[%c0_17, %c128_18] : memref<128x512xbf16, #tpu.memory_space<vmem>>, vector<128x128xbf16>
    %cst_19 = arith.constant dense<0.000000e+00> : vector<8x128xf32>
    %28 = tpu.matmul %14, %27, %cst_19 {dimension_numbers = #tpu.dot_dimension_numbers<[1], [0], [0], [1], [0, 0, 1, 1], [], []>} : vector<8x128xbf16>, vector<128x128xbf16>, vector<8x128xf32> -> vector<8x128xf32>
    %29 = arith.addf %26, %28 : vector<8x128xf32>
    %30 = arith.negf %29 : vector<8x128xf32>
    %31 = math.exp %30 : vector<8x128xf32>
    %cst_20 = arith.constant 1.000000e+00 : f32
    %32 = vector.broadcast %cst_20 : f32 to vector<8x128xf32>
    %33 = arith.addf %32, %31 : vector<8x128xf32>
    %34 = arith.divf %32, %33 : vector<8x128xf32>
    %35 = arith.index_cast %12 : i32 to index
    %c256 = arith.constant 256 : index
    %36 = vector.load %arg11[%35, %c256] : memref<64x512xf32, #tpu.memory_space<vmem>>, vector<8x128xf32>
    %c0_21 = arith.constant 0 : index
    %c256_22 = arith.constant 256 : index
    %37 = vector.load %arg4[%c0_21, %c256_22] : memref<128x512xbf16, #tpu.memory_space<vmem>>, vector<128x128xbf16>
    %cst_23 = arith.constant dense<0.000000e+00> : vector<8x128xf32>
    %38 = tpu.matmul %14, %37, %cst_23 {dimension_numbers = #tpu.dot_dimension_numbers<[1], [0], [0], [1], [0, 0, 1, 1], [], []>} : vector<8x128xbf16>, vector<128x128xbf16>, vector<8x128xf32> -> vector<8x128xf32>
    %39 = arith.addf %36, %38 : vector<8x128xf32>
    %40 = math.tanh %39 : vector<8x128xf32>
    %41 = arith.index_cast %12 : i32 to index
    %c384 = arith.constant 384 : index
    %42 = vector.load %arg11[%41, %c384] : memref<64x512xf32, #tpu.memory_space<vmem>>, vector<8x128xf32>
    %c0_24 = arith.constant 0 : index
    %c384_25 = arith.constant 384 : index
    %43 = vector.load %arg4[%c0_24, %c384_25] : memref<128x512xbf16, #tpu.memory_space<vmem>>, vector<128x128xbf16>
    %cst_26 = arith.constant dense<0.000000e+00> : vector<8x128xf32>
    %44 = tpu.matmul %14, %43, %cst_26 {dimension_numbers = #tpu.dot_dimension_numbers<[1], [0], [0], [1], [0, 0, 1, 1], [], []>} : vector<8x128xbf16>, vector<128x128xbf16>, vector<8x128xf32> -> vector<8x128xf32>
    %45 = arith.addf %42, %44 : vector<8x128xf32>
    %46 = arith.negf %45 : vector<8x128xf32>
    %47 = math.exp %46 : vector<8x128xf32>
    %cst_27 = arith.constant 1.000000e+00 : f32
    %48 = vector.broadcast %cst_27 : f32 to vector<8x128xf32>
    %49 = arith.addf %48, %47 : vector<8x128xf32>
    %50 = arith.divf %48, %49 : vector<8x128xf32>
    %c0_28 = arith.constant 0 : index
    %c0_29 = arith.constant 0 : index
    %51 = vector.load %arg14[%c0_28, %c0_29] : memref<8x128xf32, #tpu.memory_space<vmem>>, vector<8x128xf32>
    %52 = arith.mulf %34, %51 : vector<8x128xf32>
    %53 = arith.mulf %24, %40 : vector<8x128xf32>
    %54 = arith.addf %52, %53 : vector<8x128xf32>
    %55 = math.tanh %54 : vector<8x128xf32>
    %56 = arith.mulf %50, %55 : vector<8x128xf32>
    %c0_30 = arith.constant 0 : index
    %c0_31 = arith.constant 0 : index
    %57 = vector.load %arg14[%c0_30, %c0_31] : memref<8x128xf32, #tpu.memory_space<vmem>>, vector<8x128xf32>
    tpu.vector_store %arg14[%c0_30, %c0_31], %54 {strides = array<i32>} : memref<8x128xf32, #tpu.memory_space<vmem>>, vector<8x128xf32>,
    %c0_32 = arith.constant 0 : index
    %c0_33 = arith.constant 0 : index
    %58 = vector.load %arg13[%c0_32, %c0_33] : memref<8x128xf32, #tpu.memory_space<vmem>>, vector<8x128xf32>
    tpu.vector_store %arg13[%c0_32, %c0_33], %56 {strides = array<i32>} : memref<8x128xf32, #tpu.memory_space<vmem>>, vector<8x128xf32>,
    %59 = arith.index_cast %12 : i32 to index
    %c0_34 = arith.constant 0 : index
    %60 = vector.load %arg12[%59, %c0_34] : memref<64x128xf32, #tpu.memory_space<vmem>>, vector<8x128xf32>
    tpu.vector_store %arg12[%59, %c0_34], %56 {strides = array<i32>} : memref<64x128xf32, #tpu.memory_space<vmem>>, vector<8x128xf32>,
    %c1_i32 = arith.constant 1 : i32
    %c8_i32_35 = arith.constant 8 : i32
    %61 = arith.muli %c1_i32, %c8_i32_35 : i32
    %62 = tpu.assume_multiple %61, 8 : i32
    %c0_36 = arith.constant 0 : index
    %c0_37 = arith.constant 0 : index
    %63 = vector.load %arg13[%c0_36, %c0_37] : memref<8x128xf32, #tpu.memory_space<vmem>>, vector<8x128xf32>
    %64 = arith.truncf %63 : vector<8x128xf32> to vector<8x128xbf16>
    %65 = arith.index_cast %62 : i32 to index
    %c0_38 = arith.constant 0 : index
    %66 = vector.load %arg11[%65, %c0_38] : memref<64x512xf32, #tpu.memory_space<vmem>>, vector<8x128xf32>
    %c0_39 = arith.constant 0 : index
    %c0_40 = arith.constant 0 : index
    %67 = vector.load %arg4[%c0_39, %c0_40] : memref<128x512xbf16, #tpu.memory_space<vmem>>, vector<128x128xbf16>
    %cst_41 = arith.constant dense<0.000000e+00> : vector<8x128xf32>
    %68 = tpu.matmul %64, %67, %cst_41 {dimension_numbers = #tpu.dot_dimension_numbers<[1], [0], [0], [1], [0, 0, 1, 1], [], []>} : vector<8x128xbf16>, vector<128x128xbf16>, vector<8x128xf32> -> vector<8x128xf32>
    %69 = arith.addf %66, %68 : vector<8x128xf32>
    %70 = arith.negf %69 : vector<8x128xf32>
    %71 = math.exp %70 : vector<8x128xf32>
    %cst_42 = arith.constant 1.000000e+00 : f32
    %72 = vector.broadcast %cst_42 : f32 to vector<8x128xf32>
    %73 = arith.addf %72, %71 : vector<8x128xf32>
    %74 = arith.divf %72, %73 : vector<8x128xf32>
    %75 = arith.index_cast %62 : i32 to index
    %c128_43 = arith.constant 128 : index
    %76 = vector.load %arg11[%75, %c128_43] : memref<64x512xf32, #tpu.memory_space<vmem>>, vector<8x128xf32>
    %c0_44 = arith.constant 0 : index
    %c128_45 = arith.constant 128 : index
    %77 = vector.load %arg4[%c0_44, %c128_45] : memref<128x512xbf16, #tpu.memory_space<vmem>>, vector<128x128xbf16>
    %cst_46 = arith.constant dense<0.000000e+00> : vector<8x128xf32>
    %78 = tpu.matmul %64, %77, %cst_46 {dimension_numbers = #tpu.dot_dimension_numbers<[1], [0], [0], [1], [0, 0, 1, 1], [], []>} : vector<8x128xbf16>, vector<128x128xbf16>, vector<8x128xf32> -> vector<8x128xf32>
    %79 = arith.addf %76, %78 : vector<8x128xf32>
    %80 = arith.negf %79 : vector<8x128xf32>
    %81 = math.exp %80 : vector<8x128xf32>
    %cst_47 = arith.constant 1.000000e+00 : f32
    %82 = vector.broadcast %cst_47 : f32 to vector<8x128xf32>
    %83 = arith.addf %82, %81 : vector<8x128xf32>
    %84 = arith.divf %82, %83 : vector<8x128xf32>
    %85 = arith.index_cast %62 : i32 to index
    %c256_48 = arith.constant 256 : index
    %86 = vector.load %arg11[%85, %c256_48] : memref<64x512xf32, #tpu.memory_space<vmem>>, vector<8x128xf32>
    %c0_49 = arith.constant 0 : index
    %c256_50 = arith.constant 256 : index
    %87 = vector.load %arg4[%c0_49, %c256_50] : memref<128x512xbf16, #tpu.memory_space<vmem>>, vector<128x128xbf16>
    %cst_51 = arith.constant dense<0.000000e+00> : vector<8x128xf32>
    %88 = tpu.matmul %64, %87, %cst_51 {dimension_numbers = #tpu.dot_dimension_numbers<[1], [0], [0], [1], [0, 0, 1, 1], [], []>} : vector<8x128xbf16>, vector<128x128xbf16>, vector<8x128xf32> -> vector<8x128xf32>
    %89 = arith.addf %86, %88 : vector<8x128xf32>
    %90 = math.tanh %89 : vector<8x128xf32>
    %91 = arith.index_cast %62 : i32 to index
    %c384_52 = arith.constant 384 : index
    %92 = vector.load %arg11[%91, %c384_52] : memref<64x512xf32, #tpu.memory_space<vmem>>, vector<8x128xf32>
    %c0_53 = arith.constant 0 : index
    %c384_54 = arith.constant 384 : index
    %93 = vector.load %arg4[%c0_53, %c384_54] : memref<128x512xbf16, #tpu.memory_space<vmem>>, vector<128x128xbf16>
    %cst_55 = arith.constant dense<0.000000e+00> : vector<8x128xf32>
    %94 = tpu.matmul %64, %93, %cst_55 {dimension_numbers = #tpu.dot_dimension_numbers<[1], [0], [0], [1], [0, 0, 1, 1], [], []>} : vector<8x128xbf16>, vector<128x128xbf16>, vector<8x128xf32> -> vector<8x128xf32>
    %95 = arith.addf %92, %94 : vector<8x128xf32>
    %96 = arith.negf %95 : vector<8x128xf32>
    %97 = math.exp %96 : vector<8x128xf32>
    %cst_56 = arith.constant 1.000000e+00 : f32
    %98 = vector.broadcast %cst_56 : f32 to vector<8x128xf32>
    %99 = arith.addf %98, %97 : vector<8x128xf32>
    %100 = arith.divf %98, %99 : vector<8x128xf32>
    %c0_57 = arith.constant 0 : index
    %c0_58 = arith.constant 0 : index
    %101 = vector.load %arg14[%c0_57, %c0_58] : memref<8x128xf32, #tpu.memory_space<vmem>>, vector<8x128xf32>
    %102 = arith.mulf %84, %101 : vector<8x128xf32>
    %103 = arith.mulf %74, %90 : vector<8x128xf32>
    %104 = arith.addf %102, %103 : vector<8x128xf32>
    %105 = math.tanh %104 : vector<8x128xf32>
    %106 = arith.mulf %100, %105 : vector<8x128xf32>
    %c0_59 = arith.constant 0 : index
    %c0_60 = arith.constant 0 : index
    %107 = vector.load %arg14[%c0_59, %c0_60] : memref<8x128xf32, #tpu.memory_space<vmem>>, vector<8x128xf32>
    tpu.vector_store %arg14[%c0_59, %c0_60], %104 {strides = array<i32>} : memref<8x128xf32, #tpu.memory_space<vmem>>, vector<8x128xf32>,
    %c0_61 = arith.constant 0 : index
    %c0_62 = arith.constant 0 : index
    %108 = vector.load %arg13[%c0_61, %c0_62] : memref<8x128xf32, #tpu.memory_space<vmem>>, vector<8x128xf32>
    tpu.vector_store %arg13[%c0_61, %c0_62], %106 {strides = array<i32>} : memref<8x128xf32, #tpu.memory_space<vmem>>, vector<8x128xf32>,
    %109 = arith.index_cast %62 : i32 to index
    %c0_63 = arith.constant 0 : index
    %110 = vector.load %arg12[%109, %c0_63] : memref<64x128xf32, #tpu.memory_space<vmem>>, vector<8x128xf32>
    tpu.vector_store %arg12[%109, %c0_63], %106 {strides = array<i32>} : memref<64x128xf32, #tpu.memory_space<vmem>>, vector<8x128xf32>,
    %c2_i32 = arith.constant 2 : i32
    %c8_i32_64 = arith.constant 8 : i32
    %111 = arith.muli %c2_i32, %c8_i32_64 : i32
    %112 = tpu.assume_multiple %111, 8 : i32
    %c0_65 = arith.constant 0 : index
    %c0_66 = arith.constant 0 : index
    %113 = vector.load %arg13[%c0_65, %c0_66] : memref<8x128xf32, #tpu.memory_space<vmem>>, vector<8x128xf32>
    %114 = arith.truncf %113 : vector<8x128xf32> to vector<8x128xbf16>
    %115 = arith.index_cast %112 : i32 to index
    %c0_67 = arith.constant 0 : index
    %116 = vector.load %arg11[%115, %c0_67] : memref<64x512xf32, #tpu.memory_space<vmem>>, vector<8x128xf32>
    %c0_68 = arith.constant 0 : index
    %c0_69 = arith.constant 0 : index
    %117 = vector.load %arg4[%c0_68, %c0_69] : memref<128x512xbf16, #tpu.memory_space<vmem>>, vector<128x128xbf16>
    %cst_70 = arith.constant dense<0.000000e+00> : vector<8x128xf32>
    %118 = tpu.matmul %114, %117, %cst_70 {dimension_numbers = #tpu.dot_dimension_numbers<[1], [0], [0], [1], [0, 0, 1, 1], [], []>} : vector<8x128xbf16>, vector<128x128xbf16>, vector<8x128xf32> -> vector<8x128xf32>
    %119 = arith.addf %116, %118 : vector<8x128xf32>
    %120 = arith.negf %119 : vector<8x128xf32>
    %121 = math.exp %120 : vector<8x128xf32>
    %cst_71 = arith.constant 1.000000e+00 : f32
    %122 = vector.broadcast %cst_71 : f32 to vector<8x128xf32>
    %123 = arith.addf %122, %121 : vector<8x128xf32>
    %124 = arith.divf %122, %123 : vector<8x128xf32>
    %125 = arith.index_cast %112 : i32 to index
    %c128_72 = arith.constant 128 : index
    %126 = vector.load %arg11[%125, %c128_72] : memref<64x512xf32, #tpu.memory_space<vmem>>, vector<8x128xf32>
    %c0_73 = arith.constant 0 : index
    %c128_74 = arith.constant 128 : index
    %127 = vector.load %arg4[%c0_73, %c128_74] : memref<128x512xbf16, #tpu.memory_space<vmem>>, vector<128x128xbf16>
    %cst_75 = arith.constant dense<0.000000e+00> : vector<8x128xf32>
    %128 = tpu.matmul %114, %127, %cst_75 {dimension_numbers = #tpu.dot_dimension_numbers<[1], [0], [0], [1], [0, 0, 1, 1], [], []>} : vector<8x128xbf16>, vector<128x128xbf16>, vector<8x128xf32> -> vector<8x128xf32>
    %129 = arith.addf %126, %128 : vector<8x128xf32>
    %130 = arith.negf %129 : vector<8x128xf32>
    %131 = math.exp %130 : vector<8x128xf32>
    %cst_76 = arith.constant 1.000000e+00 : f32
    %132 = vector.broadcast %cst_76 : f32 to vector<8x128xf32>
    %133 = arith.addf %132, %131 : vector<8x128xf32>
    %134 = arith.divf %132, %133 : vector<8x128xf32>
    %135 = arith.index_cast %112 : i32 to index
    %c256_77 = arith.constant 256 : index
    %136 = vector.load %arg11[%135, %c256_77] : memref<64x512xf32, #tpu.memory_space<vmem>>, vector<8x128xf32>
    %c0_78 = arith.constant 0 : index
    %c256_79 = arith.constant 256 : index
    %137 = vector.load %arg4[%c0_78, %c256_79] : memref<128x512xbf16, #tpu.memory_space<vmem>>, vector<128x128xbf16>
    %cst_80 = arith.constant dense<0.000000e+00> : vector<8x128xf32>
    %138 = tpu.matmul %114, %137, %cst_80 {dimension_numbers = #tpu.dot_dimension_numbers<[1], [0], [0], [1], [0, 0, 1, 1], [], []>} : vector<8x128xbf16>, vector<128x128xbf16>, vector<8x128xf32> -> vector<8x128xf32>
    %139 = arith.addf %136, %138 : vector<8x128xf32>
    %140 = math.tanh %139 : vector<8x128xf32>
    %141 = arith.index_cast %112 : i32 to index
    %c384_81 = arith.constant 384 : index
    %142 = vector.load %arg11[%141, %c384_81] : memref<64x512xf32, #tpu.memory_space<vmem>>, vector<8x128xf32>
    %c0_82 = arith.constant 0 : index
    %c384_83 = arith.constant 384 : index
    %143 = vector.load %arg4[%c0_82, %c384_83] : memref<128x512xbf16, #tpu.memory_space<vmem>>, vector<128x128xbf16>
    %cst_84 = arith.constant dense<0.000000e+00> : vector<8x128xf32>
    %144 = tpu.matmul %114, %143, %cst_84 {dimension_numbers = #tpu.dot_dimension_numbers<[1], [0], [0], [1], [0, 0, 1, 1], [], []>} : vector<8x128xbf16>, vector<128x128xbf16>, vector<8x128xf32> -> vector<8x128xf32>
    %145 = arith.addf %142, %144 : vector<8x128xf32>
    %146 = arith.negf %145 : vector<8x128xf32>
    %147 = math.exp %146 : vector<8x128xf32>
    %cst_85 = arith.constant 1.000000e+00 : f32
    %148 = vector.broadcast %cst_85 : f32 to vector<8x128xf32>
    %149 = arith.addf %148, %147 : vector<8x128xf32>
    %150 = arith.divf %148, %149 : vector<8x128xf32>
    %c0_86 = arith.constant 0 : index
    %c0_87 = arith.constant 0 : index
    %151 = vector.load %arg14[%c0_86, %c0_87] : memref<8x128xf32, #tpu.memory_space<vmem>>, vector<8x128xf32>
    %152 = arith.mulf %134, %151 : vector<8x128xf32>
    %153 = arith.mulf %124, %140 : vector<8x128xf32>
    %154 = arith.addf %152, %153 : vector<8x128xf32>
    %155 = math.tanh %154 : vector<8x128xf32>
    %156 = arith.mulf %150, %155 : vector<8x128xf32>
    %c0_88 = arith.constant 0 : index
    %c0_89 = arith.constant 0 : index
    %157 = vector.load %arg14[%c0_88, %c0_89] : memref<8x128xf32, #tpu.memory_space<vmem>>, vector<8x128xf32>
    tpu.vector_store %arg14[%c0_88, %c0_89], %154 {strides = array<i32>} : memref<8x128xf32, #tpu.memory_space<vmem>>, vector<8x128xf32>,
    %c0_90 = arith.constant 0 : index
    %c0_91 = arith.constant 0 : index
    %158 = vector.load %arg13[%c0_90, %c0_91] : memref<8x128xf32, #tpu.memory_space<vmem>>, vector<8x128xf32>
    tpu.vector_store %arg13[%c0_90, %c0_91], %156 {strides = array<i32>} : memref<8x128xf32, #tpu.memory_space<vmem>>, vector<8x128xf32>,
    %159 = arith.index_cast %112 : i32 to index
    %c0_92 = arith.constant 0 : index
    %160 = vector.load %arg12[%159, %c0_92] : memref<64x128xf32, #tpu.memory_space<vmem>>, vector<8x128xf32>
    tpu.vector_store %arg12[%159, %c0_92], %156 {strides = array<i32>} : memref<64x128xf32, #tpu.memory_space<vmem>>, vector<8x128xf32>,
    %c3_i32 = arith.constant 3 : i32
    %c8_i32_93 = arith.constant 8 : i32
    %161 = arith.muli %c3_i32, %c8_i32_93 : i32
    %162 = tpu.assume_multiple %161, 8 : i32
    %c0_94 = arith.constant 0 : index
    %c0_95 = arith.constant 0 : index
    %163 = vector.load %arg13[%c0_94, %c0_95] : memref<8x128xf32, #tpu.memory_space<vmem>>, vector<8x128xf32>
    %164 = arith.truncf %163 : vector<8x128xf32> to vector<8x128xbf16>
    %165 = arith.index_cast %162 : i32 to index
    %c0_96 = arith.constant 0 : index
    %166 = vector.load %arg11[%165, %c0_96] : memref<64x512xf32, #tpu.memory_space<vmem>>, vector<8x128xf32>
    %c0_97 = arith.constant 0 : index
    %c0_98 = arith.constant 0 : index
    %167 = vector.load %arg4[%c0_97, %c0_98] : memref<128x512xbf16, #tpu.memory_space<vmem>>, vector<128x128xbf16>
    %cst_99 = arith.constant dense<0.000000e+00> : vector<8x128xf32>
    %168 = tpu.matmul %164, %167, %cst_99 {dimension_numbers = #tpu.dot_dimension_numbers<[1], [0], [0], [1], [0, 0, 1, 1], [], []>} : vector<8x128xbf16>, vector<128x128xbf16>, vector<8x128xf32> -> vector<8x128xf32>
    %169 = arith.addf %166, %168 : vector<8x128xf32>
    %170 = arith.negf %169 : vector<8x128xf32>
    %171 = math.exp %170 : vector<8x128xf32>
    %cst_100 = arith.constant 1.000000e+00 : f32
    %172 = vector.broadcast %cst_100 : f32 to vector<8x128xf32>
    %173 = arith.addf %172, %171 : vector<8x128xf32>
    %174 = arith.divf %172, %173 : vector<8x128xf32>
    %175 = arith.index_cast %162 : i32 to index
    %c128_101 = arith.constant 128 : index
    %176 = vector.load %arg11[%175, %c128_101] : memref<64x512xf32, #tpu.memory_space<vmem>>, vector<8x128xf32>
    %c0_102 = arith.constant 0 : index
    %c128_103 = arith.constant 128 : index
    %177 = vector.load %arg4[%c0_102, %c128_103] : memref<128x512xbf16, #tpu.memory_space<vmem>>, vector<128x128xbf16>
    %cst_104 = arith.constant dense<0.000000e+00> : vector<8x128xf32>
    %178 = tpu.matmul %164, %177, %cst_104 {dimension_numbers = #tpu.dot_dimension_numbers<[1], [0], [0], [1], [0, 0, 1, 1], [], []>} : vector<8x128xbf16>, vector<128x128xbf16>, vector<8x128xf32> -> vector<8x128xf32>
    %179 = arith.addf %176, %178 : vector<8x128xf32>
    %180 = arith.negf %179 : vector<8x128xf32>
    %181 = math.exp %180 : vector<8x128xf32>
    %cst_105 = arith.constant 1.000000e+00 : f32
    %182 = vector.broadcast %cst_105 : f32 to vector<8x128xf32>
    %183 = arith.addf %182, %181 : vector<8x128xf32>
    %184 = arith.divf %182, %183 : vector<8x128xf32>
    %185 = arith.index_cast %162 : i32 to index
    %c256_106 = arith.constant 256 : index
    %186 = vector.load %arg11[%185, %c256_106] : memref<64x512xf32, #tpu.memory_space<vmem>>, vector<8x128xf32>
    %c0_107 = arith.constant 0 : index
    %c256_108 = arith.constant 256 : index
    %187 = vector.load %arg4[%c0_107, %c256_108] : memref<128x512xbf16, #tpu.memory_space<vmem>>, vector<128x128xbf16>
    %cst_109 = arith.constant dense<0.000000e+00> : vector<8x128xf32>
    %188 = tpu.matmul %164, %187, %cst_109 {dimension_numbers = #tpu.dot_dimension_numbers<[1], [0], [0], [1], [0, 0, 1, 1], [], []>} : vector<8x128xbf16>, vector<128x128xbf16>, vector<8x128xf32> -> vector<8x128xf32>
    %189 = arith.addf %186, %188 : vector<8x128xf32>
    %190 = math.tanh %189 : vector<8x128xf32>
    %191 = arith.index_cast %162 : i32 to index
    %c384_110 = arith.constant 384 : index
    %192 = vector.load %arg11[%191, %c384_110] : memref<64x512xf32, #tpu.memory_space<vmem>>, vector<8x128xf32>
    %c0_111 = arith.constant 0 : index
    %c384_112 = arith.constant 384 : index
    %193 = vector.load %arg4[%c0_111, %c384_112] : memref<128x512xbf16, #tpu.memory_space<vmem>>, vector<128x128xbf16>
    %cst_113 = arith.constant dense<0.000000e+00> : vector<8x128xf32>
    %194 = tpu.matmul %164, %193, %cst_113 {dimension_numbers = #tpu.dot_dimension_numbers<[1], [0], [0], [1], [0, 0, 1, 1], [], []>} : vector<8x128xbf16>, vector<128x128xbf16>, vector<8x128xf32> -> vector<8x128xf32>
    %195 = arith.addf %192, %194 : vector<8x128xf32>
    %196 = arith.negf %195 : vector<8x128xf32>
    %197 = math.exp %196 : vector<8x128xf32>
    %cst_114 = arith.constant 1.000000e+00 : f32
    %198 = vector.broadcast %cst_114 : f32 to vector<8x128xf32>
    %199 = arith.addf %198, %197 : vector<8x128xf32>
    %200 = arith.divf %198, %199 : vector<8x128xf32>
    %c0_115 = arith.constant 0 : index
    %c0_116 = arith.constant 0 : index
    %201 = vector.load %arg14[%c0_115, %c0_116] : memref<8x128xf32, #tpu.memory_space<vmem>>, vector<8x128xf32>
    %202 = arith.mulf %184, %201 : vector<8x128xf32>
    %203 = arith.mulf %174, %190 : vector<8x128xf32>
    %204 = arith.addf %202, %203 : vector<8x128xf32>
    %205 = math.tanh %204 : vector<8x128xf32>
    %206 = arith.mulf %200, %205 : vector<8x128xf32>
    %c0_117 = arith.constant 0 : index
    %c0_118 = arith.constant 0 : index
    %207 = vector.load %arg14[%c0_117, %c0_118] : memref<8x128xf32, #tpu.memory_space<vmem>>, vector<8x128xf32>
    tpu.vector_store %arg14[%c0_117, %c0_118], %204 {strides = array<i32>} : memref<8x128xf32, #tpu.memory_space<vmem>>, vector<8x128xf32>,
    %c0_119 = arith.constant 0 : index
    %c0_120 = arith.constant 0 : index
    %208 = vector.load %arg13[%c0_119, %c0_120] : memref<8x128xf32, #tpu.memory_space<vmem>>, vector<8x128xf32>
    tpu.vector_store %arg13[%c0_119, %c0_120], %206 {strides = array<i32>} : memref<8x128xf32, #tpu.memory_space<vmem>>, vector<8x128xf32>,
    %209 = arith.index_cast %162 : i32 to index
    %c0_121 = arith.constant 0 : index
    %210 = vector.load %arg12[%209, %c0_121] : memref<64x128xf32, #tpu.memory_space<vmem>>, vector<8x128xf32>
    tpu.vector_store %arg12[%209, %c0_121], %206 {strides = array<i32>} : memref<64x128xf32, #tpu.memory_space<vmem>>, vector<8x128xf32>,
    %c4_i32 = arith.constant 4 : i32
    %c8_i32_122 = arith.constant 8 : i32
    %211 = arith.muli %c4_i32, %c8_i32_122 : i32
    %212 = tpu.assume_multiple %211, 8 : i32
    %c0_123 = arith.constant 0 : index
    %c0_124 = arith.constant 0 : index
    %213 = vector.load %arg13[%c0_123, %c0_124] : memref<8x128xf32, #tpu.memory_space<vmem>>, vector<8x128xf32>
    %214 = arith.truncf %213 : vector<8x128xf32> to vector<8x128xbf16>
    %215 = arith.index_cast %212 : i32 to index
    %c0_125 = arith.constant 0 : index
    %216 = vector.load %arg11[%215, %c0_125] : memref<64x512xf32, #tpu.memory_space<vmem>>, vector<8x128xf32>
    %c0_126 = arith.constant 0 : index
    %c0_127 = arith.constant 0 : index
    %217 = vector.load %arg4[%c0_126, %c0_127] : memref<128x512xbf16, #tpu.memory_space<vmem>>, vector<128x128xbf16>
    %cst_128 = arith.constant dense<0.000000e+00> : vector<8x128xf32>
    %218 = tpu.matmul %214, %217, %cst_128 {dimension_numbers = #tpu.dot_dimension_numbers<[1], [0], [0], [1], [0, 0, 1, 1], [], []>} : vector<8x128xbf16>, vector<128x128xbf16>, vector<8x128xf32> -> vector<8x128xf32>
    %219 = arith.addf %216, %218 : vector<8x128xf32>
    %220 = arith.negf %219 : vector<8x128xf32>
    %221 = math.exp %220 : vector<8x128xf32>
    %cst_129 = arith.constant 1.000000e+00 : f32
    %222 = vector.broadcast %cst_129 : f32 to vector<8x128xf32>
    %223 = arith.addf %222, %221 : vector<8x128xf32>
    %224 = arith.divf %222, %223 : vector<8x128xf32>
    %225 = arith.index_cast %212 : i32 to index
    %c128_130 = arith.constant 128 : index
    %226 = vector.load %arg11[%225, %c128_130] : memref<64x512xf32, #tpu.memory_space<vmem>>, vector<8x128xf32>
    %c0_131 = arith.constant 0 : index
    %c128_132 = arith.constant 128 : index
    %227 = vector.load %arg4[%c0_131, %c128_132] : memref<128x512xbf16, #tpu.memory_space<vmem>>, vector<128x128xbf16>
    %cst_133 = arith.constant dense<0.000000e+00> : vector<8x128xf32>
    %228 = tpu.matmul %214, %227, %cst_133 {dimension_numbers = #tpu.dot_dimension_numbers<[1], [0], [0], [1], [0, 0, 1, 1], [], []>} : vector<8x128xbf16>, vector<128x128xbf16>, vector<8x128xf32> -> vector<8x128xf32>
    %229 = arith.addf %226, %228 : vector<8x128xf32>
    %230 = arith.negf %229 : vector<8x128xf32>
    %231 = math.exp %230 : vector<8x128xf32>
    %cst_134 = arith.constant 1.000000e+00 : f32
    %232 = vector.broadcast %cst_134 : f32 to vector<8x128xf32>
    %233 = arith.addf %232, %231 : vector<8x128xf32>
    %234 = arith.divf %232, %233 : vector<8x128xf32>
    %235 = arith.index_cast %212 : i32 to index
    %c256_135 = arith.constant 256 : index
    %236 = vector.load %arg11[%235, %c256_135] : memref<64x512xf32, #tpu.memory_space<vmem>>, vector<8x128xf32>
    %c0_136 = arith.constant 0 : index
    %c256_137 = arith.constant 256 : index
    %237 = vector.load %arg4[%c0_136, %c256_137] : memref<128x512xbf16, #tpu.memory_space<vmem>>, vector<128x128xbf16>
    %cst_138 = arith.constant dense<0.000000e+00> : vector<8x128xf32>
    %238 = tpu.matmul %214, %237, %cst_138 {dimension_numbers = #tpu.dot_dimension_numbers<[1], [0], [0], [1], [0, 0, 1, 1], [], []>} : vector<8x128xbf16>, vector<128x128xbf16>, vector<8x128xf32> -> vector<8x128xf32>
    %239 = arith.addf %236, %238 : vector<8x128xf32>
    %240 = math.tanh %239 : vector<8x128xf32>
    %241 = arith.index_cast %212 : i32 to index
    %c384_139 = arith.constant 384 : index
    %242 = vector.load %arg11[%241, %c384_139] : memref<64x512xf32, #tpu.memory_space<vmem>>, vector<8x128xf32>
    %c0_140 = arith.constant 0 : index
    %c384_141 = arith.constant 384 : index
    %243 = vector.load %arg4[%c0_140, %c384_141] : memref<128x512xbf16, #tpu.memory_space<vmem>>, vector<128x128xbf16>
    %cst_142 = arith.constant dense<0.000000e+00> : vector<8x128xf32>
    %244 = tpu.matmul %214, %243, %cst_142 {dimension_numbers = #tpu.dot_dimension_numbers<[1], [0], [0], [1], [0, 0, 1, 1], [], []>} : vector<8x128xbf16>, vector<128x128xbf16>, vector<8x128xf32> -> vector<8x128xf32>
    %245 = arith.addf %242, %244 : vector<8x128xf32>
    %246 = arith.negf %245 : vector<8x128xf32>
    %247 = math.exp %246 : vector<8x128xf32>
    %cst_143 = arith.constant 1.000000e+00 : f32
    %248 = vector.broadcast %cst_143 : f32 to vector<8x128xf32>
    %249 = arith.addf %248, %247 : vector<8x128xf32>
    %250 = arith.divf %248, %249 : vector<8x128xf32>
    %c0_144 = arith.constant 0 : index
    %c0_145 = arith.constant 0 : index
    %251 = vector.load %arg14[%c0_144, %c0_145] : memref<8x128xf32, #tpu.memory_space<vmem>>, vector<8x128xf32>
    %252 = arith.mulf %234, %251 : vector<8x128xf32>
    %253 = arith.mulf %224, %240 : vector<8x128xf32>
    %254 = arith.addf %252, %253 : vector<8x128xf32>
    %255 = math.tanh %254 : vector<8x128xf32>
    %256 = arith.mulf %250, %255 : vector<8x128xf32>
    %c0_146 = arith.constant 0 : index
    %c0_147 = arith.constant 0 : index
    %257 = vector.load %arg14[%c0_146, %c0_147] : memref<8x128xf32, #tpu.memory_space<vmem>>, vector<8x128xf32>
    tpu.vector_store %arg14[%c0_146, %c0_147], %254 {strides = array<i32>} : memref<8x128xf32, #tpu.memory_space<vmem>>, vector<8x128xf32>,
    %c0_148 = arith.constant 0 : index
    %c0_149 = arith.constant 0 : index
    %258 = vector.load %arg13[%c0_148, %c0_149] : memref<8x128xf32, #tpu.memory_space<vmem>>, vector<8x128xf32>
    tpu.vector_store %arg13[%c0_148, %c0_149], %256 {strides = array<i32>} : memref<8x128xf32, #tpu.memory_space<vmem>>, vector<8x128xf32>,
    %259 = arith.index_cast %212 : i32 to index
    %c0_150 = arith.constant 0 : index
    %260 = vector.load %arg12[%259, %c0_150] : memref<64x128xf32, #tpu.memory_space<vmem>>, vector<8x128xf32>
    tpu.vector_store %arg12[%259, %c0_150], %256 {strides = array<i32>} : memref<64x128xf32, #tpu.memory_space<vmem>>, vector<8x128xf32>,
    %c5_i32 = arith.constant 5 : i32
    %c8_i32_151 = arith.constant 8 : i32
    %261 = arith.muli %c5_i32, %c8_i32_151 : i32
    %262 = tpu.assume_multiple %261, 8 : i32
    %c0_152 = arith.constant 0 : index
    %c0_153 = arith.constant 0 : index
    %263 = vector.load %arg13[%c0_152, %c0_153] : memref<8x128xf32, #tpu.memory_space<vmem>>, vector<8x128xf32>
    %264 = arith.truncf %263 : vector<8x128xf32> to vector<8x128xbf16>
    %265 = arith.index_cast %262 : i32 to index
    %c0_154 = arith.constant 0 : index
    %266 = vector.load %arg11[%265, %c0_154] : memref<64x512xf32, #tpu.memory_space<vmem>>, vector<8x128xf32>
    %c0_155 = arith.constant 0 : index
    %c0_156 = arith.constant 0 : index
    %267 = vector.load %arg4[%c0_155, %c0_156] : memref<128x512xbf16, #tpu.memory_space<vmem>>, vector<128x128xbf16>
    %cst_157 = arith.constant dense<0.000000e+00> : vector<8x128xf32>
    %268 = tpu.matmul %264, %267, %cst_157 {dimension_numbers = #tpu.dot_dimension_numbers<[1], [0], [0], [1], [0, 0, 1, 1], [], []>} : vector<8x128xbf16>, vector<128x128xbf16>, vector<8x128xf32> -> vector<8x128xf32>
    %269 = arith.addf %266, %268 : vector<8x128xf32>
    %270 = arith.negf %269 : vector<8x128xf32>
    %271 = math.exp %270 : vector<8x128xf32>
    %cst_158 = arith.constant 1.000000e+00 : f32
    %272 = vector.broadcast %cst_158 : f32 to vector<8x128xf32>
    %273 = arith.addf %272, %271 : vector<8x128xf32>
    %274 = arith.divf %272, %273 : vector<8x128xf32>
    %275 = arith.index_cast %262 : i32 to index
    %c128_159 = arith.constant 128 : index
    %276 = vector.load %arg11[%275, %c128_159] : memref<64x512xf32, #tpu.memory_space<vmem>>, vector<8x128xf32>
    %c0_160 = arith.constant 0 : index
    %c128_161 = arith.constant 128 : index
    %277 = vector.load %arg4[%c0_160, %c128_161] : memref<128x512xbf16, #tpu.memory_space<vmem>>, vector<128x128xbf16>
    %cst_162 = arith.constant dense<0.000000e+00> : vector<8x128xf32>
    %278 = tpu.matmul %264, %277, %cst_162 {dimension_numbers = #tpu.dot_dimension_numbers<[1], [0], [0], [1], [0, 0, 1, 1], [], []>} : vector<8x128xbf16>, vector<128x128xbf16>, vector<8x128xf32> -> vector<8x128xf32>
    %279 = arith.addf %276, %278 : vector<8x128xf32>
    %280 = arith.negf %279 : vector<8x128xf32>
    %281 = math.exp %280 : vector<8x128xf32>
    %cst_163 = arith.constant 1.000000e+00 : f32
    %282 = vector.broadcast %cst_163 : f32 to vector<8x128xf32>
    %283 = arith.addf %282, %281 : vector<8x128xf32>
    %284 = arith.divf %282, %283 : vector<8x128xf32>
    %285 = arith.index_cast %262 : i32 to index
    %c256_164 = arith.constant 256 : index
    %286 = vector.load %arg11[%285, %c256_164] : memref<64x512xf32, #tpu.memory_space<vmem>>, vector<8x128xf32>
    %c0_165 = arith.constant 0 : index
    %c256_166 = arith.constant 256 : index
    %287 = vector.load %arg4[%c0_165, %c256_166] : memref<128x512xbf16, #tpu.memory_space<vmem>>, vector<128x128xbf16>
    %cst_167 = arith.constant dense<0.000000e+00> : vector<8x128xf32>
    %288 = tpu.matmul %264, %287, %cst_167 {dimension_numbers = #tpu.dot_dimension_numbers<[1], [0], [0], [1], [0, 0, 1, 1], [], []>} : vector<8x128xbf16>, vector<128x128xbf16>, vector<8x128xf32> -> vector<8x128xf32>
    %289 = arith.addf %286, %288 : vector<8x128xf32>
    %290 = math.tanh %289 : vector<8x128xf32>
    %291 = arith.index_cast %262 : i32 to index
    %c384_168 = arith.constant 384 : index
    %292 = vector.load %arg11[%291, %c384_168] : memref<64x512xf32, #tpu.memory_space<vmem>>, vector<8x128xf32>
    %c0_169 = arith.constant 0 : index
    %c384_170 = arith.constant 384 : index
    %293 = vector.load %arg4[%c0_169, %c384_170] : memref<128x512xbf16, #tpu.memory_space<vmem>>, vector<128x128xbf16>
    %cst_171 = arith.constant dense<0.000000e+00> : vector<8x128xf32>
    %294 = tpu.matmul %264, %293, %cst_171 {dimension_numbers = #tpu.dot_dimension_numbers<[1], [0], [0], [1], [0, 0, 1, 1], [], []>} : vector<8x128xbf16>, vector<128x128xbf16>, vector<8x128xf32> -> vector<8x128xf32>
    %295 = arith.addf %292, %294 : vector<8x128xf32>
    %296 = arith.negf %295 : vector<8x128xf32>
    %297 = math.exp %296 : vector<8x128xf32>
    %cst_172 = arith.constant 1.000000e+00 : f32
    %298 = vector.broadcast %cst_172 : f32 to vector<8x128xf32>
    %299 = arith.addf %298, %297 : vector<8x128xf32>
    %300 = arith.divf %298, %299 : vector<8x128xf32>
    %c0_173 = arith.constant 0 : index
    %c0_174 = arith.constant 0 : index
    %301 = vector.load %arg14[%c0_173, %c0_174] : memref<8x128xf32, #tpu.memory_space<vmem>>, vector<8x128xf32>
    %302 = arith.mulf %284, %301 : vector<8x128xf32>
    %303 = arith.mulf %274, %290 : vector<8x128xf32>
    %304 = arith.addf %302, %303 : vector<8x128xf32>
    %305 = math.tanh %304 : vector<8x128xf32>
    %306 = arith.mulf %300, %305 : vector<8x128xf32>
    %c0_175 = arith.constant 0 : index
    %c0_176 = arith.constant 0 : index
    %307 = vector.load %arg14[%c0_175, %c0_176] : memref<8x128xf32, #tpu.memory_space<vmem>>, vector<8x128xf32>
    tpu.vector_store %arg14[%c0_175, %c0_176], %304 {strides = array<i32>} : memref<8x128xf32, #tpu.memory_space<vmem>>, vector<8x128xf32>,
    %c0_177 = arith.constant 0 : index
    %c0_178 = arith.constant 0 : index
    %308 = vector.load %arg13[%c0_177, %c0_178] : memref<8x128xf32, #tpu.memory_space<vmem>>, vector<8x128xf32>
    tpu.vector_store %arg13[%c0_177, %c0_178], %306 {strides = array<i32>} : memref<8x128xf32, #tpu.memory_space<vmem>>, vector<8x128xf32>,
    %309 = arith.index_cast %262 : i32 to index
    %c0_179 = arith.constant 0 : index
    %310 = vector.load %arg12[%309, %c0_179] : memref<64x128xf32, #tpu.memory_space<vmem>>, vector<8x128xf32>
    tpu.vector_store %arg12[%309, %c0_179], %306 {strides = array<i32>} : memref<64x128xf32, #tpu.memory_space<vmem>>, vector<8x128xf32>,
    %c6_i32 = arith.constant 6 : i32
    %c8_i32_180 = arith.constant 8 : i32
    %311 = arith.muli %c6_i32, %c8_i32_180 : i32
    %312 = tpu.assume_multiple %311, 8 : i32
    %c0_181 = arith.constant 0 : index
    %c0_182 = arith.constant 0 : index
    %313 = vector.load %arg13[%c0_181, %c0_182] : memref<8x128xf32, #tpu.memory_space<vmem>>, vector<8x128xf32>
    %314 = arith.truncf %313 : vector<8x128xf32> to vector<8x128xbf16>
    %315 = arith.index_cast %312 : i32 to index
    %c0_183 = arith.constant 0 : index
    %316 = vector.load %arg11[%315, %c0_183] : memref<64x512xf32, #tpu.memory_space<vmem>>, vector<8x128xf32>
    %c0_184 = arith.constant 0 : index
    %c0_185 = arith.constant 0 : index
    %317 = vector.load %arg4[%c0_184, %c0_185] : memref<128x512xbf16, #tpu.memory_space<vmem>>, vector<128x128xbf16>
    %cst_186 = arith.constant dense<0.000000e+00> : vector<8x128xf32>
    %318 = tpu.matmul %314, %317, %cst_186 {dimension_numbers = #tpu.dot_dimension_numbers<[1], [0], [0], [1], [0, 0, 1, 1], [], []>} : vector<8x128xbf16>, vector<128x128xbf16>, vector<8x128xf32> -> vector<8x128xf32>
    %319 = arith.addf %316, %318 : vector<8x128xf32>
    %320 = arith.negf %319 : vector<8x128xf32>
    %321 = math.exp %320 : vector<8x128xf32>
    %cst_187 = arith.constant 1.000000e+00 : f32
    %322 = vector.broadcast %cst_187 : f32 to vector<8x128xf32>
    %323 = arith.addf %322, %321 : vector<8x128xf32>
    %324 = arith.divf %322, %323 : vector<8x128xf32>
    %325 = arith.index_cast %312 : i32 to index
    %c128_188 = arith.constant 128 : index
    %326 = vector.load %arg11[%325, %c128_188] : memref<64x512xf32, #tpu.memory_space<vmem>>, vector<8x128xf32>
    %c0_189 = arith.constant 0 : index
    %c128_190 = arith.constant 128 : index
    %327 = vector.load %arg4[%c0_189, %c128_190] : memref<128x512xbf16, #tpu.memory_space<vmem>>, vector<128x128xbf16>
    %cst_191 = arith.constant dense<0.000000e+00> : vector<8x128xf32>
    %328 = tpu.matmul %314, %327, %cst_191 {dimension_numbers = #tpu.dot_dimension_numbers<[1], [0], [0], [1], [0, 0, 1, 1], [], []>} : vector<8x128xbf16>, vector<128x128xbf16>, vector<8x128xf32> -> vector<8x128xf32>
    %329 = arith.addf %326, %328 : vector<8x128xf32>
    %330 = arith.negf %329 : vector<8x128xf32>
    %331 = math.exp %330 : vector<8x128xf32>
    %cst_192 = arith.constant 1.000000e+00 : f32
    %332 = vector.broadcast %cst_192 : f32 to vector<8x128xf32>
    %333 = arith.addf %332, %331 : vector<8x128xf32>
    %334 = arith.divf %332, %333 : vector<8x128xf32>
    %335 = arith.index_cast %312 : i32 to index
    %c256_193 = arith.constant 256 : index
    %336 = vector.load %arg11[%335, %c256_193] : memref<64x512xf32, #tpu.memory_space<vmem>>, vector<8x128xf32>
    %c0_194 = arith.constant 0 : index
    %c256_195 = arith.constant 256 : index
    %337 = vector.load %arg4[%c0_194, %c256_195] : memref<128x512xbf16, #tpu.memory_space<vmem>>, vector<128x128xbf16>
    %cst_196 = arith.constant dense<0.000000e+00> : vector<8x128xf32>
    %338 = tpu.matmul %314, %337, %cst_196 {dimension_numbers = #tpu.dot_dimension_numbers<[1], [0], [0], [1], [0, 0, 1, 1], [], []>} : vector<8x128xbf16>, vector<128x128xbf16>, vector<8x128xf32> -> vector<8x128xf32>
    %339 = arith.addf %336, %338 : vector<8x128xf32>
    %340 = math.tanh %339 : vector<8x128xf32>
    %341 = arith.index_cast %312 : i32 to index
    %c384_197 = arith.constant 384 : index
    %342 = vector.load %arg11[%341, %c384_197] : memref<64x512xf32, #tpu.memory_space<vmem>>, vector<8x128xf32>
    %c0_198 = arith.constant 0 : index
    %c384_199 = arith.constant 384 : index
    %343 = vector.load %arg4[%c0_198, %c384_199] : memref<128x512xbf16, #tpu.memory_space<vmem>>, vector<128x128xbf16>
    %cst_200 = arith.constant dense<0.000000e+00> : vector<8x128xf32>
    %344 = tpu.matmul %314, %343, %cst_200 {dimension_numbers = #tpu.dot_dimension_numbers<[1], [0], [0], [1], [0, 0, 1, 1], [], []>} : vector<8x128xbf16>, vector<128x128xbf16>, vector<8x128xf32> -> vector<8x128xf32>
    %345 = arith.addf %342, %344 : vector<8x128xf32>
    %346 = arith.negf %345 : vector<8x128xf32>
    %347 = math.exp %346 : vector<8x128xf32>
    %cst_201 = arith.constant 1.000000e+00 : f32
    %348 = vector.broadcast %cst_201 : f32 to vector<8x128xf32>
    %349 = arith.addf %348, %347 : vector<8x128xf32>
    %350 = arith.divf %348, %349 : vector<8x128xf32>
    %c0_202 = arith.constant 0 : index
    %c0_203 = arith.constant 0 : index
    %351 = vector.load %arg14[%c0_202, %c0_203] : memref<8x128xf32, #tpu.memory_space<vmem>>, vector<8x128xf32>
    %352 = arith.mulf %334, %351 : vector<8x128xf32>
    %353 = arith.mulf %324, %340 : vector<8x128xf32>
    %354 = arith.addf %352, %353 : vector<8x128xf32>
    %355 = math.tanh %354 : vector<8x128xf32>
    %356 = arith.mulf %350, %355 : vector<8x128xf32>
    %c0_204 = arith.constant 0 : index
    %c0_205 = arith.constant 0 : index
    %357 = vector.load %arg14[%c0_204, %c0_205] : memref<8x128xf32, #tpu.memory_space<vmem>>, vector<8x128xf32>
    tpu.vector_store %arg14[%c0_204, %c0_205], %354 {strides = array<i32>} : memref<8x128xf32, #tpu.memory_space<vmem>>, vector<8x128xf32>,
    %c0_206 = arith.constant 0 : index
    %c0_207 = arith.constant 0 : index
    %358 = vector.load %arg13[%c0_206, %c0_207] : memref<8x128xf32, #tpu.memory_space<vmem>>, vector<8x128xf32>
    tpu.vector_store %arg13[%c0_206, %c0_207], %356 {strides = array<i32>} : memref<8x128xf32, #tpu.memory_space<vmem>>, vector<8x128xf32>,
    %359 = arith.index_cast %312 : i32 to index
    %c0_208 = arith.constant 0 : index
    %360 = vector.load %arg12[%359, %c0_208] : memref<64x128xf32, #tpu.memory_space<vmem>>, vector<8x128xf32>
    tpu.vector_store %arg12[%359, %c0_208], %356 {strides = array<i32>} : memref<64x128xf32, #tpu.memory_space<vmem>>, vector<8x128xf32>,
    %c7_i32 = arith.constant 7 : i32
    %c8_i32_209 = arith.constant 8 : i32
    %361 = arith.muli %c7_i32, %c8_i32_209 : i32
    %362 = tpu.assume_multiple %361, 8 : i32
    %c0_210 = arith.constant 0 : index
    %c0_211 = arith.constant 0 : index
    %363 = vector.load %arg13[%c0_210, %c0_211] : memref<8x128xf32, #tpu.memory_space<vmem>>, vector<8x128xf32>
    %364 = arith.truncf %363 : vector<8x128xf32> to vector<8x128xbf16>
    %365 = arith.index_cast %362 : i32 to index
    %c0_212 = arith.constant 0 : index
    %366 = vector.load %arg11[%365, %c0_212] : memref<64x512xf32, #tpu.memory_space<vmem>>, vector<8x128xf32>
    %c0_213 = arith.constant 0 : index
    %c0_214 = arith.constant 0 : index
    %367 = vector.load %arg4[%c0_213, %c0_214] : memref<128x512xbf16, #tpu.memory_space<vmem>>, vector<128x128xbf16>
    %cst_215 = arith.constant dense<0.000000e+00> : vector<8x128xf32>
    %368 = tpu.matmul %364, %367, %cst_215 {dimension_numbers = #tpu.dot_dimension_numbers<[1], [0], [0], [1], [0, 0, 1, 1], [], []>} : vector<8x128xbf16>, vector<128x128xbf16>, vector<8x128xf32> -> vector<8x128xf32>
    %369 = arith.addf %366, %368 : vector<8x128xf32>
    %370 = arith.negf %369 : vector<8x128xf32>
    %371 = math.exp %370 : vector<8x128xf32>
    %cst_216 = arith.constant 1.000000e+00 : f32
    %372 = vector.broadcast %cst_216 : f32 to vector<8x128xf32>
    %373 = arith.addf %372, %371 : vector<8x128xf32>
    %374 = arith.divf %372, %373 : vector<8x128xf32>
    %375 = arith.index_cast %362 : i32 to index
    %c128_217 = arith.constant 128 : index
    %376 = vector.load %arg11[%375, %c128_217] : memref<64x512xf32, #tpu.memory_space<vmem>>, vector<8x128xf32>
    %c0_218 = arith.constant 0 : index
    %c128_219 = arith.constant 128 : index
    %377 = vector.load %arg4[%c0_218, %c128_219] : memref<128x512xbf16, #tpu.memory_space<vmem>>, vector<128x128xbf16>
    %cst_220 = arith.constant dense<0.000000e+00> : vector<8x128xf32>
    %378 = tpu.matmul %364, %377, %cst_220 {dimension_numbers = #tpu.dot_dimension_numbers<[1], [0], [0], [1], [0, 0, 1, 1], [], []>} : vector<8x128xbf16>, vector<128x128xbf16>, vector<8x128xf32> -> vector<8x128xf32>
    %379 = arith.addf %376, %378 : vector<8x128xf32>
    %380 = arith.negf %379 : vector<8x128xf32>
    %381 = math.exp %380 : vector<8x128xf32>
    %cst_221 = arith.constant 1.000000e+00 : f32
    %382 = vector.broadcast %cst_221 : f32 to vector<8x128xf32>
    %383 = arith.addf %382, %381 : vector<8x128xf32>
    %384 = arith.divf %382, %383 : vector<8x128xf32>
    %385 = arith.index_cast %362 : i32 to index
    %c256_222 = arith.constant 256 : index
    %386 = vector.load %arg11[%385, %c256_222] : memref<64x512xf32, #tpu.memory_space<vmem>>, vector<8x128xf32>
    %c0_223 = arith.constant 0 : index
    %c256_224 = arith.constant 256 : index
    %387 = vector.load %arg4[%c0_223, %c256_224] : memref<128x512xbf16, #tpu.memory_space<vmem>>, vector<128x128xbf16>
    %cst_225 = arith.constant dense<0.000000e+00> : vector<8x128xf32>
    %388 = tpu.matmul %364, %387, %cst_225 {dimension_numbers = #tpu.dot_dimension_numbers<[1], [0], [0], [1], [0, 0, 1, 1], [], []>} : vector<8x128xbf16>, vector<128x128xbf16>, vector<8x128xf32> -> vector<8x128xf32>
    %389 = arith.addf %386, %388 : vector<8x128xf32>
    %390 = math.tanh %389 : vector<8x128xf32>
    %391 = arith.index_cast %362 : i32 to index
    %c384_226 = arith.constant 384 : index
    %392 = vector.load %arg11[%391, %c384_226] : memref<64x512xf32, #tpu.memory_space<vmem>>, vector<8x128xf32>
    %c0_227 = arith.constant 0 : index
    %c384_228 = arith.constant 384 : index
    %393 = vector.load %arg4[%c0_227, %c384_228] : memref<128x512xbf16, #tpu.memory_space<vmem>>, vector<128x128xbf16>
    %cst_229 = arith.constant dense<0.000000e+00> : vector<8x128xf32>
    %394 = tpu.matmul %364, %393, %cst_229 {dimension_numbers = #tpu.dot_dimension_numbers<[1], [0], [0], [1], [0, 0, 1, 1], [], []>} : vector<8x128xbf16>, vector<128x128xbf16>, vector<8x128xf32> -> vector<8x128xf32>
    %395 = arith.addf %392, %394 : vector<8x128xf32>
    %396 = arith.negf %395 : vector<8x128xf32>
    %397 = math.exp %396 : vector<8x128xf32>
    %cst_230 = arith.constant 1.000000e+00 : f32
    %398 = vector.broadcast %cst_230 : f32 to vector<8x128xf32>
    %399 = arith.addf %398, %397 : vector<8x128xf32>
    %400 = arith.divf %398, %399 : vector<8x128xf32>
    %c0_231 = arith.constant 0 : index
    %c0_232 = arith.constant 0 : index
    %401 = vector.load %arg14[%c0_231, %c0_232] : memref<8x128xf32, #tpu.memory_space<vmem>>, vector<8x128xf32>
    %402 = arith.mulf %384, %401 : vector<8x128xf32>
    %403 = arith.mulf %374, %390 : vector<8x128xf32>
    %404 = arith.addf %402, %403 : vector<8x128xf32>
    %405 = math.tanh %404 : vector<8x128xf32>
    %406 = arith.mulf %400, %405 : vector<8x128xf32>
    %c0_233 = arith.constant 0 : index
    %c0_234 = arith.constant 0 : index
    %407 = vector.load %arg14[%c0_233, %c0_234] : memref<8x128xf32, #tpu.memory_space<vmem>>, vector<8x128xf32>
    tpu.vector_store %arg14[%c0_233, %c0_234], %404 {strides = array<i32>} : memref<8x128xf32, #tpu.memory_space<vmem>>, vector<8x128xf32>,
    %c0_235 = arith.constant 0 : index
    %c0_236 = arith.constant 0 : index
    %408 = vector.load %arg13[%c0_235, %c0_236] : memref<8x128xf32, #tpu.memory_space<vmem>>, vector<8x128xf32>
    tpu.vector_store %arg13[%c0_235, %c0_236], %406 {strides = array<i32>} : memref<8x128xf32, #tpu.memory_space<vmem>>, vector<8x128xf32>,
    %409 = arith.index_cast %362 : i32 to index
    %c0_237 = arith.constant 0 : index
    %410 = vector.load %arg12[%409, %c0_237] : memref<64x128xf32, #tpu.memory_space<vmem>>, vector<8x128xf32>
    tpu.vector_store %arg12[%409, %c0_237], %406 {strides = array<i32>} : memref<64x128xf32, #tpu.memory_space<vmem>>, vector<8x128xf32>,
    %c8_i32_238 = arith.constant 8 : i32
    %c0_239 = arith.constant 0 : index
    %c0_240 = arith.constant 0 : index
    %411 = vector.load %arg12[%c0_239, %c0_240] : memref<64x128xf32, #tpu.memory_space<vmem>>, vector<64x128xf32>
    %412 = arith.truncf %411 : vector<64x128xf32> to vector<64x128xbf16>
    %c0_241 = arith.constant 0 : index
    %c0_242 = arith.constant 0 : index
    %c0_243 = arith.constant 0 : index
    %413 = vector.load %arg8[%c0_241, %c0_242, %c0_243] : memref<1x64x128xbf16, #tpu.memory_space<vmem>>, vector<1x64x128xbf16>
    %414 = vector.shape_cast %413 : vector<1x64x128xbf16> to vector<64x128xbf16>
    %415 = vector.shape_cast %412 : vector<64x128xbf16> to vector<1x64x128xbf16>
    tpu.vector_store %arg8[%c0_241, %c0_242, %c0_243], %415 {strides = array<i32>} : memref<1x64x128xbf16, #tpu.memory_space<vmem>>, vector<1x64x128xbf16>,
    %c0_i32_244 = arith.constant 0 : i32
    %416 = arith.cmpi eq, %arg1, %c0_i32_244 : i32
    %417 = arith.extui %416 : i1 to i32
    %c0_i32_245 = arith.constant 0 : i32
    %418 = arith.cmpi ne, %417, %c0_i32_245 : i32
    scf.if %418 {
      %c0_246 = arith.constant 0 : index
      %c0_247 = arith.constant 0 : index
      %419 = vector.load %arg13[%c0_246, %c0_247] : memref<8x128xf32, #tpu.memory_space<vmem>>, vector<8x128xf32>
      %c0_248 = arith.constant 0 : index
      %c0_249 = arith.constant 0 : index
      %c0_250 = arith.constant 0 : index
      %420 = vector.load %arg9[%c0_248, %c0_249, %c0_250] : memref<1x8x128xf32, #tpu.memory_space<vmem>>, vector<1x8x128xf32>
      %421 = vector.shape_cast %420 : vector<1x8x128xf32> to vector<8x128xf32>
      %422 = vector.shape_cast %419 : vector<8x128xf32> to vector<1x8x128xf32>
      tpu.vector_store %arg9[%c0_248, %c0_249, %c0_250], %422 {strides = array<i32>} : memref<1x8x128xf32, #tpu.memory_space<vmem>>, vector<1x8x128xf32>,
      %c0_251 = arith.constant 0 : index
      %c0_252 = arith.constant 0 : index
      %423 = vector.load %arg14[%c0_251, %c0_252] : memref<8x128xf32, #tpu.memory_space<vmem>>, vector<8x128xf32>
      %c0_253 = arith.constant 0 : index
      %c0_254 = arith.constant 0 : index
      %c0_255 = arith.constant 0 : index
      %424 = vector.load %arg10[%c0_253, %c0_254, %c0_255] : memref<1x8x128xf32, #tpu.memory_space<vmem>>, vector<1x8x128xf32>
      %425 = vector.shape_cast %424 : vector<1x8x128xf32> to vector<8x128xf32>
      %426 = vector.shape_cast %423 : vector<8x128xf32> to vector<1x8x128xf32>
      tpu.vector_store %arg10[%c0_253, %c0_254, %c0_255], %426 {strides = array<i32>} : memref<1x8x128xf32, #tpu.memory_space<vmem>>, vector<1x8x128xf32>,
    } else {
    }
    return
  }
  func.func @transform_0(%arg0: i32, %arg1: i32) -> (i32, i32, i32) {
    %c0_i32 = arith.constant 0 : i32
    %c0_i32_0 = arith.constant 0 : i32
    return %arg0, %arg1, %c0_i32 : i32, i32, i32
  }
  func.func @transform_1(%arg0: i32, %arg1: i32) -> (i32, i32) {
    %c0_i32 = arith.constant 0 : i32
    %c0_i32_0 = arith.constant 0 : i32
    %c0_i32_1 = arith.constant 0 : i32
    return %c0_i32, %c0_i32_0 : i32, i32
  }
  func.func @transform_2(%arg0: i32, %arg1: i32) -> (i32, i32) {
    %c0_i32 = arith.constant 0 : i32
    %c0_i32_0 = arith.constant 0 : i32
    %c0_i32_1 = arith.constant 0 : i32
    return %c0_i32, %c0_i32_0 : i32, i32
  }
  func.func @transform_3(%arg0: i32, %arg1: i32) -> (i32, i32) {
    %c0_i32 = arith.constant 0 : i32
    %c0_i32_0 = arith.constant 0 : i32
    %c0_i32_1 = arith.constant 0 : i32
    return %c0_i32, %c0_i32_0 : i32, i32
  }
  func.func @transform_4(%arg0: i32, %arg1: i32) -> (i32, i32, i32) {
    %c0_i32 = arith.constant 0 : i32
    %c0_i32_0 = arith.constant 0 : i32
    %c0_i32_1 = arith.constant 0 : i32
    return %arg0, %c0_i32, %c0_i32_0 : i32, i32, i32
  }
  func.func @transform_5(%arg0: i32, %arg1: i32) -> (i32, i32, i32) {
    %c0_i32 = arith.constant 0 : i32
    %c0_i32_0 = arith.constant 0 : i32
    %c0_i32_1 = arith.constant 0 : i32
    return %arg0, %c0_i32, %c0_i32_0 : i32, i32, i32
  }
  func.func @transform_6(%arg0: i32, %arg1: i32) -> (i32, i32, i32) {
    %c0_i32 = arith.constant 0 : i32
    %c0_i32_0 = arith.constant 0 : i32
    return %arg0, %arg1, %c0_i32 : i32, i32, i32
  }
  func.func @transform_7(%arg0: i32, %arg1: i32) -> (i32, i32, i32) {
    %c0_i32 = arith.constant 0 : i32
    %c0_i32_0 = arith.constant 0 : i32
    %c0_i32_1 = arith.constant 0 : i32
    return %arg0, %c0_i32, %c0_i32_0 : i32, i32, i32
  }
  func.func @transform_8(%arg0: i32, %arg1: i32) -> (i32, i32, i32) {
    %c0_i32 = arith.constant 0 : i32
    %c0_i32_0 = arith.constant 0 : i32
    %c0_i32_1 = arith.constant 0 : i32
    return %arg0, %c0_i32, %c0_i32_0 : i32, i32, i32
  }
}

</mosaic_0001>

<llo_original>
// kernel: tpu_custom_call.1
$region0: #{tpu_custom_call.1}
  #allocation0 [shape = 'u32[]', space=smem, size = 0x4, offset = 0x4, fixed_abs, tag = 'smem constant byte address 0x4 - core index']
  #allocation1 [shape = 'u32[72,128]{1,0:T(1,128)}', space=vmem, size = 0x9000, scoped, tag = 'internal scratch']
  %s0 = inlined_call_operand.hbm [shape: f32[8,128], index: 0, kind: input, shape index: {}]
  %s1 = inlined_call_operand.hbm [shape: f32[8,128], index: 1, kind: output, shape index: {}]
  %s2 = sld [smem:[#allocation0]]
  $region18: #{tpu_custom_call.1} parent=0
    _
  %s4 = ssub.s32 1, %s2
  %s5 = scalar_select 0, %s4, %s2
  $region1: #{tpu_custom_call.1} parent=0
    #allocation2 [shape = 'u8[4096]{0}', space=vmem, size = 0x1000, scoped, tag = 'input window, operand 0, single buffered']
    #allocation3 [shape = 's32[1]{0}', space=sflag, size = 0x4, scoped, tag = 'scoped memory for tpu_custom_call.1']
    #allocation4 [shape = 's32[1]{0}', space=sflag, size = 0x4, scoped, tag = 'scoped memory for tpu_custom_call.1']
    #allocation5 [shape = 'u8[4096]{0}', space=vmem, size = 0x1000, scoped, tag = 'output window, operand 0, single buffered']
    %6 = vsyncpa [#allocation3], 0
    %7 = vsyncpa [#allocation4], 0
    // Predicated region
    $region2: #{tpu_custom_call.1} parent=1 // pred_check
      _
    $region3: #{tpu_custom_call.1} parent=1 // pred_check_branch
      %9 = sbr.rel (0) target = $region5
    $region4: #{tpu_custom_call.1} parent=1 // pred_region
      %11 = vsyncadd [#allocation3], 0
      %s13 = sshll.u32 %s0, 4
      %s14 = int_to_ptr.hbm [resolvable:$true] %s13
      %s15 = sshll.u32 [#allocation2], 4
      %s16 = int_to_ptr.vmem [resolvable:$true] %s15
      %18 = dma.hbm_to_vmem [thread:$0]  %s14, 128, %s16, [#allocation3]
    $region5: #{tpu_custom_call.1} parent=1 // pred_fallthru
      _
    // Predicated region
    $region6: #{tpu_custom_call.1} parent=1 // pred_check
      _
    $region7: #{tpu_custom_call.1} parent=1 // pred_check_branch
      %20 = sbr.rel (0) target = $region9
    $region8: #{tpu_custom_call.1} parent=1 // pred_region
      %22 = dma.done [#allocation3], 128
    $region9: #{tpu_custom_call.1} parent=1 // pred_fallthru
      _
    %v23 = vld [vmem:[#allocation2] sm:$0xff]
    %v24 = vmul.f32 %v23, 2.0
    %25 = vst [vmem:[#allocation5] sm:$0xff] %v24
    // Predicated region
    $region10: #{tpu_custom_call.1} parent=1 // pred_check
      _
    $region11: #{tpu_custom_call.1} parent=1 // pred_check_branch
      %27 = sbr.rel (0) target = $region13
    $region12: #{tpu_custom_call.1} parent=1 // pred_region
      %29 = vsyncadd [#allocation4], 0
      %s31 = sshll.u32 [#allocation5], 4
      %s32 = int_to_ptr.vmem [resolvable:$true] %s31
      %s33 = sshll.u32 %s1, 4
      %s34 = int_to_ptr.hbm [resolvable:$true] %s33
      %36 = dma.vmem_to_hbm [thread:$0]  %s32, 128, %s34, [#allocation4]
    $region13: #{tpu_custom_call.1} parent=1 // pred_fallthru
      _
    // Predicated region
    $region14: #{tpu_custom_call.1} parent=1 // pred_check
      _
    $region15: #{tpu_custom_call.1} parent=1 // pred_check_branch
      %38 = sbr.rel (0) target = $region17
    $region16: #{tpu_custom_call.1} parent=1 // pred_region
      %40 = dma.done [#allocation4], 128
    $region17: #{tpu_custom_call.1} parent=1 // pred_fallthru
      _
    %41 = vsyncpa [#allocation3], 1
    %42 = vsyncpa [#allocation4], 1

// kernel: rnn_model_forward.5
$region0: #{rnn_model_forward.5}
  #allocation0 [shape = 'u32[]', space=smem, size = 0x4, offset = 0x4, fixed_abs, tag = 'smem constant byte address 0x4 - core index']
  #allocation1 [shape = 'u32[72,128]{1,0:T(1,128)}', space=vmem, size = 0x9000, scoped, tag = 'internal scratch']
  %s0 = inlined_call_operand.vmem [shape: bf16[32,128], index: 0, kind: input, shape index: {}]
  %s1 = inlined_call_operand.vmem [shape: bf16[128,128], index: 1, kind: input, shape index: {}]
  %s2 = inlined_call_operand.vmem [shape: f32[1,128], index: 2, kind: input, shape index: {}]
  %s3 = inlined_call_operand.hbm [shape: f32[32,128], index: 3, kind: output, shape index: {}]
  %s4 = sld [smem:[#allocation0]]
  $region22: #{rnn_model_forward.5} parent=0
    _
  %s6 = ssub.s32 1, %s4
  %s7 = scalar_select 0, %s6, %s4
  $region1: #{rnn_model_forward.5} parent=0
    #allocation2 [shape = 'u8[16384]{0}', space=vmem, size = 0x4000, scoped, tag = 'output window, operand 0, single buffered']
    #allocation3 [shape = 's32[1]{0}', space=sflag, size = 0x4, scoped, tag = 'scoped memory for rnn_model_forward.5']
    %8 = vsyncpa [#allocation3], 0
    // Predicated region
    $region2: #{rnn_model_forward.5} parent=1 // pred_check
      _
    $region3: #{rnn_model_forward.5} parent=1 // pred_check_branch
      %10 = sbr.rel (0) target = $region5
    $region4: #{rnn_model_forward.5} parent=1 // pred_region
      _
    $region5: #{rnn_model_forward.5} parent=1 // pred_fallthru
      _
    // Predicated region
    $region6: #{rnn_model_forward.5} parent=1 // pred_check
      _
    $region7: #{rnn_model_forward.5} parent=1 // pred_check_branch
      %12 = sbr.rel (0) target = $region9
    $region8: #{rnn_model_forward.5} parent=1 // pred_region
      _
    $region9: #{rnn_model_forward.5} parent=1 // pred_fallthru
      _
    // Predicated region
    $region10: #{rnn_model_forward.5} parent=1 // pred_check
      _
    $region11: #{rnn_model_forward.5} parent=1 // pred_check_branch
      %14 = sbr.rel (0) target = $region13
    $region12: #{rnn_model_forward.5} parent=1 // pred_region
      _
    $region13: #{rnn_model_forward.5} parent=1 // pred_fallthru
      _
    %v15 = vld [vmem:[%s0] sm:$0xf]
    %v16 = vld [vmem:[%s0 + $0x4] sm:$0xf]
    %v17 = vld [vmem:[%s0 + $0x8] sm:$0xf]
    %v18 = vld [vmem:[%s0 + $0xc] sm:$0xf]
    %v19 = vld [vmem:[%s1] sm:$0xf]
    %v20 = vld [vmem:[%s1 + $0x4] sm:$0xf]
    %v21 = vld [vmem:[%s1 + $0x8] sm:$0xf]
    %v22 = vld [vmem:[%s1 + $0xc] sm:$0xf]
    %v23 = vld [vmem:[%s1 + $0x10] sm:$0xf]
    %v24 = vld [vmem:[%s1 + $0x14] sm:$0xf]
    %v25 = vld [vmem:[%s1 + $0x18] sm:$0xf]
    %v26 = vld [vmem:[%s1 + $0x1c] sm:$0xf]
    %v27 = vld [vmem:[%s1 + $0x20] sm:$0xf]
    %v28 = vld [vmem:[%s1 + $0x24] sm:$0xf]
    %v29 = vld [vmem:[%s1 + $0x28] sm:$0xf]
    %v30 = vld [vmem:[%s1 + $0x2c] sm:$0xf]
    %v31 = vld [vmem:[%s1 + $0x30] sm:$0xf]
    %v32 = vld [vmem:[%s1 + $0x34] sm:$0xf]
    %v33 = vld [vmem:[%s1 + $0x38] sm:$0xf]
    %v34 = vld [vmem:[%s1 + $0x3c] sm:$0xf]
    %v35 = vld [vmem:[%s2] sm:$0x1]
    %v37 = vperm.slane %v35, 0
    %v43 = vunpack.c.l.b16 %v15
    %v44 = vunpack.c.l.b16 %v16
    %v45 = vunpack.c.l.b16 %v17
    %v46 = vunpack.c.l.b16 %v18
    %v47 = vpack.c.b16 %v44, %v43
    %v48 = vpack.c.b16 %v46, %v45
    %v67 = vunpack.c.l.b16 %v19
    %v68 = vunpack.c.l.b16 %v20
    %v69 = vunpack.c.l.b16 %v21
    %v70 = vunpack.c.l.b16 %v22
    %v71 = vunpack.c.l.b16 %v23
    %v72 = vunpack.c.l.b16 %v24
    %v73 = vunpack.c.l.b16 %v25
    %v74 = vunpack.c.l.b16 %v26
    %v75 = vunpack.c.l.b16 %v27
    %v76 = vunpack.c.l.b16 %v28
    %v77 = vunpack.c.l.b16 %v29
    %v78 = vunpack.c.l.b16 %v30
    %v79 = vunpack.c.l.b16 %v31
    %v80 = vunpack.c.l.b16 %v32
    %v81 = vunpack.c.l.b16 %v33
    %v82 = vunpack.c.l.b16 %v34
    %v83 = vpack.c.b16 %v68, %v67
    %v84 = vpack.c.b16 %v70, %v69
    %v85 = vpack.c.b16 %v72, %v71
    %v86 = vpack.c.b16 %v74, %v73
    %v87 = vpack.c.b16 %v76, %v75
    %v88 = vpack.c.b16 %v78, %v77
    %v89 = vpack.c.b16 %v80, %v79
    %v90 = vpack.c.b16 %v82, %v81
    %99 = vmatpush.bf16.msra.mxu0 %v90
    %100 = vmatpush.bf16.msra.mxu0 %v89
    %101 = vmatpush.bf16.msra.mxu0 %v88
    %102 = vmatpush.bf16.msra.mxu0 %v87
    %103 = vmatpush.bf16.msra.mxu0 %v86
    %104 = vmatpush.bf16.msra.mxu0 %v85
    %105 = vmatpush.bf16.msra.mxu0 %v84
    %106 = vmatpush.bf16.msra.mxu0 %v83
    %107 = vmatmul.bf16.gmra.mxu0 %v47
    %v108 = vpop.f32.mrf.mxu0
    %v109 = vadd.f32 %v37, %v108
    %v110 = vpop.f32.mrf.mxu0
    %v111 = vadd.f32 %v37, %v110
    %112 = vmatmul.bf16.gmra.mxu0 %v48
    %v113 = vpop.f32.mrf.mxu0
    %v114 = vadd.f32 %v37, %v113
    %v115 = vpop.f32.mrf.mxu0
    %v116 = vadd.f32 %v37, %v115
    %117 = vdwg.mxu0
    %118 = vst [vmem:[#allocation2] sm:$0xff] %v109
    %119 = vst [vmem:[#allocation2 + $0x8] sm:$0xff] %v111
    %120 = vst [vmem:[#allocation2 + $0x10] sm:$0xff] %v114
    %121 = vst [vmem:[#allocation2 + $0x18] sm:$0xff] %v116
    // Predicated region
    $region14: #{rnn_model_forward.5} parent=1 // pred_check
      _
    $region15: #{rnn_model_forward.5} parent=1 // pred_check_branch
      %123 = sbr.rel (0) target = $region17
    $region16: #{rnn_model_forward.5} parent=1 // pred_region
      %125 = vsyncadd [#allocation3], 0
      %s126 = sshll.u32 [#allocation2], 4
      %s127 = int_to_ptr.vmem [resolvable:$true] %s126
      %s128 = sshll.u32 %s3, 4
      %s129 = int_to_ptr.hbm [resolvable:$true] %s128
      %134 = dma.vmem_to_hbm [thread:$0]  %s127, 512, %s129, [#allocation3], 128, 128, 8
    $region17: #{rnn_model_forward.5} parent=1 // pred_fallthru
      _
    // Predicated region
    $region18: #{rnn_model_forward.5} parent=1 // pred_check
      _
    $region19: #{rnn_model_forward.5} parent=1 // pred_check_branch
      %136 = sbr.rel (0) target = $region21
    $region20: #{rnn_model_forward.5} parent=1 // pred_region
      %138 = dma.done [#allocation3], 512
    $region21: #{rnn_model_forward.5} parent=1 // pred_fallthru
      _
    %139 = vsyncpa [#allocation3], 1

// kernel: rnn_model_forward.3
$region0: #{rnn_model_forward.3}
  #allocation0 [shape = 'u32[]', space=smem, size = 0x4, offset = 0x4, fixed_abs, tag = 'smem constant byte address 0x4 - core index']
  #allocation1 [shape = 'u32[72,128]{1,0:T(1,128)}', space=vmem, size = 0x9000, scoped, tag = 'internal scratch']
  #allocation2 [shape = 'f32[64,512]{1,0:T(8,128)}', space=vmem, size = 0x20000, scoped, tag = 'scratch operand']
  #allocation3 [shape = 'f32[64,128]{1,0:T(8,128)}', space=vmem, size = 0x8000, scoped, tag = 'scratch operand']
  #allocation4 [shape = 'f32[8,128]{1,0:T(8,128)}', space=vmem, size = 0x1000, scoped, tag = 'scratch operand']
  #allocation5 [shape = 'f32[8,128]{1,0:T(8,128)}', space=vmem, size = 0x1000, scoped, tag = 'scratch operand']
  %s0 = inlined_call_operand.vmem [shape: bf16[1,64,128], index: 0, kind: input, shape index: {}]
  %s1 = inlined_call_operand.vmem [shape: bf16[128,512], index: 1, kind: input, shape index: {}]
  %s2 = inlined_call_operand.hbm [shape: bf16[128,512], index: 2, kind: input, shape index: {}]
  %s3 = inlined_call_operand.vmem [shape: f32[1,512], index: 3, kind: input, shape index: {}]
  %s4 = inlined_call_operand.vmem [shape: f32[1,8,128], index: 4, kind: input, shape index: {}]
  %s5 = inlined_call_operand.vmem [shape: f32[1,8,128], index: 5, kind: input, shape index: {}]
  %s6 = inlined_call_operand.vmem [shape: bf16[1,64,128], index: 6, kind: output, shape index: {0}]
  %s7 = inlined_call_operand.vmem [shape: f32[1,8,128], index: 7, kind: output, shape index: {1}]
  %s8 = inlined_call_operand.vmem [shape: f32[1,8,128], index: 8, kind: output, shape index: {2}]
  %9 = xla_tuple %s6, %s7, %s8
  %s10 = sld [smem:[#allocation0]]
  $region62: #{rnn_model_forward.3} parent=0
    _
  %s12 = ssub.s32 1, %s10
  %s13 = scalar_select 0, %s12, %s10
  $region1: #{rnn_model_forward.3} parent=0
    #allocation6 [shape = 'u8[131072]{0}', space=vmem, size = 0x20000, scoped, tag = 'input window, operand 2, single buffered']
    #allocation7 [shape = 's32[1]{0}', space=sflag, size = 0x4, scoped, tag = 'scoped memory for rnn_model_forward.3']
    %14 = vsyncpa [#allocation7], 0
    // Predicated region
    $region2: #{rnn_model_forward.3} parent=1 // pred_check
      _
    $region3: #{rnn_model_forward.3} parent=1 // pred_check_branch
      %16 = sbr.rel (0) target = $region5
    $region4: #{rnn_model_forward.3} parent=1 // pred_region
      _
    $region5: #{rnn_model_forward.3} parent=1 // pred_fallthru
      _
    // Predicated region
    $region6: #{rnn_model_forward.3} parent=1 // pred_check
      _
    $region7: #{rnn_model_forward.3} parent=1 // pred_check_branch
      %18 = sbr.rel (0) target = $region9
    $region8: #{rnn_model_forward.3} parent=1 // pred_region
      _
    $region9: #{rnn_model_forward.3} parent=1 // pred_fallthru
      _
    // Predicated region
    $region10: #{rnn_model_forward.3} parent=1 // pred_check
      _
    $region11: #{rnn_model_forward.3} parent=1 // pred_check_branch
      %20 = sbr.rel (0) target = $region13
    $region12: #{rnn_model_forward.3} parent=1 // pred_region
      %22 = vsyncadd [#allocation7], 0
      %s23 = sshll.u32 %s2, 4
      %s24 = int_to_ptr.hbm [resolvable:$true] %s23
      %s25 = sshll.u32 [#allocation6], 4
      %s26 = int_to_ptr.vmem [resolvable:$true] %s25
      %31 = dma.hbm_to_vmem [thread:$0]  %s24, 4096, %s26, [#allocation7], 256, 256, 16
    $region13: #{rnn_model_forward.3} parent=1 // pred_fallthru
      _
    // Predicated region
    $region14: #{rnn_model_forward.3} parent=1 // pred_check
      _
    $region15: #{rnn_model_forward.3} parent=1 // pred_check_branch
      %33 = sbr.rel (0) target = $region17
    $region16: #{rnn_model_forward.3} parent=1 // pred_region
      _
    $region17: #{rnn_model_forward.3} parent=1 // pred_fallthru
      _
    // Predicated region
    $region18: #{rnn_model_forward.3} parent=1 // pred_check
      _
    $region19: #{rnn_model_forward.3} parent=1 // pred_check_branch
      %35 = sbr.rel (0) target = $region21
    $region20: #{rnn_model_forward.3} parent=1 // pred_region
      _
    $region21: #{rnn_model_forward.3} parent=1 // pred_fallthru
      _
    // Predicated region
    $region22: #{rnn_model_forward.3} parent=1 // pred_check
      _
    $region23: #{rnn_model_forward.3} parent=1 // pred_check_branch
      %37 = sbr.rel (0) target = $region25
    $region24: #{rnn_model_forward.3} parent=1 // pred_region
      _
    $region25: #{rnn_model_forward.3} parent=1 // pred_fallthru
      _
    // Predicated region
    $region26: #{rnn_model_forward.3} parent=1 // pred_check
      _
    $region27: #{rnn_model_forward.3} parent=1 // pred_check_branch
      %39 = sbr.rel (0) target = $region29
    $region28: #{rnn_model_forward.3} parent=1 // pred_region
      %41 = dma.done [#allocation7], 4096
    $region29: #{rnn_model_forward.3} parent=1 // pred_fallthru
      _
    %p42 = scmp.eq.s32.totalorder 0, 0
    // Predicated region
    $region30: #{rnn_model_forward.3} parent=1 // pred_check
      %p43 = pneg %p42
    $region31: #{rnn_model_forward.3} parent=1 // pred_check_branch
      %45 = sbr.rel (%p43) target = $region33
    $region32: #{rnn_model_forward.3} parent=1 // pred_region
      %v46 = vld [vmem:[%s4] sm:$0xff]
      %47 = vst [vmem:[#allocation4] sm:$0xff] %v46
      %v48 = vld [vmem:[%s5] sm:$0xff]
      %49 = vst [vmem:[#allocation5] sm:$0xff] %v48
    $region33: #{rnn_model_forward.3} parent=1 // pred_fallthru
      _
    %v50 = vld [vmem:[%s0] sm:$0xf]
    %v51 = vld [vmem:[%s0 + $0x4] sm:$0xf]
    %v52 = vld [vmem:[%s0 + $0x8] sm:$0xf]
    %v53 = vld [vmem:[%s0 + $0xc] sm:$0xf]
    %v54 = vld [vmem:[%s0 + $0x10] sm:$0xf]
    %v55 = vld [vmem:[%s0 + $0x14] sm:$0xf]
    %v56 = vld [vmem:[%s0 + $0x18] sm:$0xf]
    %v57 = vld [vmem:[%s0 + $0x1c] sm:$0xf]
    %v58 = vld [vmem:[%s1] sm:$0xff]
    %v59 = vld [vmem:[%s1 + $0x8] sm:$0xff]
    %v60 = vld [vmem:[%s1 + $0x10] sm:$0xff]
    %v61 = vld [vmem:[%s1 + $0x18] sm:$0xff]
    %v62 = vld [vmem:[%s1 + $0x20] sm:$0xff]
    %v63 = vld [vmem:[%s1 + $0x28] sm:$0xff]
    %v64 = vld [vmem:[%s1 + $0x30] sm:$0xff]
    %v65 = vld [vmem:[%s1 + $0x38] sm:$0xff]
    %v66 = vld [vmem:[%s1 + $0x40] sm:$0xff]
    %v67 = vld [vmem:[%s1 + $0x48] sm:$0xff]
    %v68 = vld [vmem:[%s1 + $0x50] sm:$0xff]
    %v69 = vld [vmem:[%s1 + $0x58] sm:$0xff]
    %v70 = vld [vmem:[%s1 + $0x60] sm:$0xff]
    %v71 = vld [vmem:[%s1 + $0x68] sm:$0xff]
    %v72 = vld [vmem:[%s1 + $0x70] sm:$0xff]
    %v73 = vld [vmem:[%s1 + $0x78] sm:$0xff]
    %v74 = vld [vmem:[%s1 + $0x80] sm:$0xff]
    %v75 = vld [vmem:[%s1 + $0x88] sm:$0xff]
    %v76 = vld [vmem:[%s1 + $0x90] sm:$0xff]
    %v77 = vld [vmem:[%s1 + $0x98] sm:$0xff]
    %v78 = vld [vmem:[%s1 + $0xa0] sm:$0xff]
    %v79 = vld [vmem:[%s1 + $0xa8] sm:$0xff]
    %v80 = vld [vmem:[%s1 + $0xb0] sm:$0xff]
    %v81 = vld [vmem:[%s1 + $0xb8] sm:$0xff]
    %v82 = vld [vmem:[%s1 + $0xc0] sm:$0xff]
    %v83 = vld [vmem:[%s1 + $0xc8] sm:$0xff]
    %v84 = vld [vmem:[%s1 + $0xd0] sm:$0xff]
    %v85 = vld [vmem:[%s1 + $0xd8] sm:$0xff]
    %v86 = vld [vmem:[%s1 + $0xe0] sm:$0xff]
    %v87 = vld [vmem:[%s1 + $0xe8] sm:$0xff]
    %v88 = vld [vmem:[%s1 + $0xf0] sm:$0xff]
    %v89 = vld [vmem:[%s1 + $0xf8] sm:$0xff]
    %v90 = vld [vmem:[%s3] sm:$0xf]
    %v92 = vperm.slane %v90, 0
    %v93 = vperm.slane %v90, 1
    %v94 = vperm.slane %v90, 2
    %v95 = vperm.slane %v90, 3
    %v108 = vunpack.c.l.b16 %v50
    %v109 = vunpack.c.l.b16 %v51
    %v110 = vunpack.c.l.b16 %v52
    %v111 = vunpack.c.l.b16 %v53
    %v112 = vunpack.c.l.b16 %v54
    %v113 = vunpack.c.l.b16 %v55
    %v114 = vunpack.c.l.b16 %v56
    %v115 = vunpack.c.l.b16 %v57
    %v116 = vpack.c.b16 %v109, %v108
    %v117 = vpack.c.b16 %v111, %v110
    %v118 = vpack.c.b16 %v113, %v112
    %v119 = vpack.c.b16 %v115, %v114
    %v156 = vunpack.c.l.b16 %v58
    %v157 = vunpack.c.h.b16 %v58
    %v158 = vunpack.c.l.b16 %v59
    %v159 = vunpack.c.h.b16 %v59
    %v160 = vunpack.c.l.b16 %v60
    %v161 = vunpack.c.h.b16 %v60
    %v162 = vunpack.c.l.b16 %v61
    %v163 = vunpack.c.h.b16 %v61
    %v164 = vunpack.c.l.b16 %v62
    %v165 = vunpack.c.h.b16 %v62
    %v166 = vunpack.c.l.b16 %v63
    %v167 = vunpack.c.h.b16 %v63
    %v168 = vunpack.c.l.b16 %v64
    %v169 = vunpack.c.h.b16 %v64
    %v170 = vunpack.c.l.b16 %v65
    %v171 = vunpack.c.h.b16 %v65
    %v172 = vunpack.c.l.b16 %v66
    %v173 = vunpack.c.h.b16 %v66
    %v174 = vunpack.c.l.b16 %v67
    %v175 = vunpack.c.h.b16 %v67
    %v176 = vunpack.c.l.b16 %v68
    %v177 = vunpack.c.h.b16 %v68
    %v178 = vunpack.c.l.b16 %v69
    %v179 = vunpack.c.h.b16 %v69
    %v180 = vunpack.c.l.b16 %v70
    %v181 = vunpack.c.h.b16 %v70
    %v182 = vunpack.c.l.b16 %v71
    %v183 = vunpack.c.h.b16 %v71
    %v184 = vunpack.c.l.b16 %v72
    %v185 = vunpack.c.h.b16 %v72
    %v186 = vunpack.c.l.b16 %v73
    %v187 = vunpack.c.h.b16 %v73
    %v188 = vunpack.c.l.b16 %v74
    %v189 = vunpack.c.h.b16 %v74
    %v190 = vunpack.c.l.b16 %v75
    %v191 = vunpack.c.h.b16 %v75
    %v192 = vunpack.c.l.b16 %v76
    %v193 = vunpack.c.h.b16 %v76
    %v194 = vunpack.c.l.b16 %v77
    %v195 = vunpack.c.h.b16 %v77
    %v196 = vunpack.c.l.b16 %v78
    %v197 = vunpack.c.h.b16 %v78
    %v198 = vunpack.c.l.b16 %v79
    %v199 = vunpack.c.h.b16 %v79
    %v200 = vunpack.c.l.b16 %v80
    %v201 = vunpack.c.h.b16 %v80
    %v202 = vunpack.c.l.b16 %v81
    %v203 = vunpack.c.h.b16 %v81
    %v204 = vunpack.c.l.b16 %v82
    %v205 = vunpack.c.h.b16 %v82
    %v206 = vunpack.c.l.b16 %v83
    %v207 = vunpack.c.h.b16 %v83
    %v208 = vunpack.c.l.b16 %v84
    %v209 = vunpack.c.h.b16 %v84
    %v210 = vunpack.c.l.b16 %v85
    %v211 = vunpack.c.h.b16 %v85
    %v212 = vunpack.c.l.b16 %v86
    %v213 = vunpack.c.h.b16 %v86
    %v214 = vunpack.c.l.b16 %v87
    %v215 = vunpack.c.h.b16 %v87
    %v216 = vunpack.c.l.b16 %v88
    %v217 = vunpack.c.h.b16 %v88
    %v218 = vunpack.c.l.b16 %v89
    %v219 = vunpack.c.h.b16 %v89
    %v220 = vpack.c.b16 %v160, %v156
    %v221 = vpack.c.b16 %v161, %v157
    %v222 = vpack.c.b16 %v162, %v158
    %v223 = vpack.c.b16 %v163, %v159
    %v224 = vpack.c.b16 %v168, %v164
    %v225 = vpack.c.b16 %v169, %v165
    %v226 = vpack.c.b16 %v170, %v166
    %v227 = vpack.c.b16 %v171, %v167
    %v228 = vpack.c.b16 %v176, %v172
    %v229 = vpack.c.b16 %v177, %v173
    %v230 = vpack.c.b16 %v178, %v174
    %v231 = vpack.c.b16 %v179, %v175
    %v232 = vpack.c.b16 %v184, %v180
    %v233 = vpack.c.b16 %v185, %v181
    %v234 = vpack.c.b16 %v186, %v182
    %v235 = vpack.c.b16 %v187, %v183
    %v236 = vpack.c.b16 %v192, %v188
    %v237 = vpack.c.b16 %v193, %v189
    %v238 = vpack.c.b16 %v194, %v190
    %v239 = vpack.c.b16 %v195, %v191
    %v240 = vpack.c.b16 %v200, %v196
    %v241 = vpack.c.b16 %v201, %v197
    %v242 = vpack.c.b16 %v202, %v198
    %v243 = vpack.c.b16 %v203, %v199
    %v244 = vpack.c.b16 %v208, %v204
    %v245 = vpack.c.b16 %v209, %v205
    %v246 = vpack.c.b16 %v210, %v206
    %v247 = vpack.c.b16 %v211, %v207
    %v248 = vpack.c.b16 %v216, %v212
    %v249 = vpack.c.b16 %v217, %v213
    %v250 = vpack.c.b16 %v218, %v214
    %v251 = vpack.c.b16 %v219, %v215
    %284 = vmatpush.bf16.msra.mxu0 %v248
    %285 = vmatpush.bf16.msra.mxu0 %v244
    %286 = vmatpush.bf16.msra.mxu0 %v240
    %287 = vmatpush.bf16.msra.mxu0 %v236
    %288 = vmatpush.bf16.msra.mxu0 %v232
    %289 = vmatpush.bf16.msra.mxu0 %v228
    %290 = vmatpush.bf16.msra.mxu0 %v224
    %291 = vmatpush.bf16.msra.mxu0 %v220
    %292 = vmatmul.bf16.gmra.mxu0 %v116
    %v293 = vpop.f32.mrf.mxu0
    %v294 = vadd.f32 %v92, %v293
    %v295 = vpop.f32.mrf.mxu0
    %v296 = vadd.f32 %v92, %v295
    %297 = vmatmul.bf16.gmra.mxu0 %v117
    %v298 = vpop.f32.mrf.mxu0
    %v299 = vadd.f32 %v92, %v298
    %v300 = vpop.f32.mrf.mxu0
    %v301 = vadd.f32 %v92, %v300
    %302 = vmatmul.bf16.gmra.mxu0 %v118
    %v303 = vpop.f32.mrf.mxu0
    %v304 = vadd.f32 %v92, %v303
    %v305 = vpop.f32.mrf.mxu0
    %v306 = vadd.f32 %v92, %v305
    %307 = vmatmul.bf16.gmra.mxu0 %v119
    %v308 = vpop.f32.mrf.mxu0
    %v309 = vadd.f32 %v92, %v308
    %v310 = vpop.f32.mrf.mxu0
    %v311 = vadd.f32 %v92, %v310
    %312 = vdwg.mxu0
    %313 = vmatpush.bf16.msra.mxu0 %v249
    %314 = vmatpush.bf16.msra.mxu0 %v245
    %315 = vmatpush.bf16.msra.mxu0 %v241
    %316 = vmatpush.bf16.msra.mxu0 %v237
    %317 = vmatpush.bf16.msra.mxu0 %v233
    %318 = vmatpush.bf16.msra.mxu0 %v229
    %319 = vmatpush.bf16.msra.mxu0 %v225
    %320 = vmatpush.bf16.msra.mxu0 %v221
    %321 = vmatmul.bf16.gmra.mxu0 %v116
    %v322 = vpop.f32.mrf.mxu0
    %v323 = vadd.f32 %v93, %v322
    %v324 = vpop.f32.mrf.mxu0
    %v325 = vadd.f32 %v93, %v324
    %326 = vmatmul.bf16.gmra.mxu0 %v117
    %v327 = vpop.f32.mrf.mxu0
    %v328 = vadd.f32 %v93, %v327
    %v329 = vpop.f32.mrf.mxu0
    %v330 = vadd.f32 %v93, %v329
    %331 = vmatmul.bf16.gmra.mxu0 %v118
    %v332 = vpop.f32.mrf.mxu0
    %v333 = vadd.f32 %v93, %v332
    %v334 = vpop.f32.mrf.mxu0
    %v335 = vadd.f32 %v93, %v334
    %336 = vmatmul.bf16.gmra.mxu0 %v119
    %v337 = vpop.f32.mrf.mxu0
    %v338 = vadd.f32 %v93, %v337
    %v339 = vpop.f32.mrf.mxu0
    %v340 = vadd.f32 %v93, %v339
    %341 = vdwg.mxu0
    %342 = vmatpush.bf16.msra.mxu0 %v250
    %343 = vmatpush.bf16.msra.mxu0 %v246
    %344 = vmatpush.bf16.msra.mxu0 %v242
    %345 = vmatpush.bf16.msra.mxu0 %v238
    %346 = vmatpush.bf16.msra.mxu0 %v234
    %347 = vmatpush.bf16.msra.mxu0 %v230
    %348 = vmatpush.bf16.msra.mxu0 %v226
    %349 = vmatpush.bf16.msra.mxu0 %v222
    %350 = vmatmul.bf16.gmra.mxu0 %v116
    %v351 = vpop.f32.mrf.mxu0
    %v352 = vadd.f32 %v94, %v351
    %v353 = vpop.f32.mrf.mxu0
    %v354 = vadd.f32 %v94, %v353
    %355 = vmatmul.bf16.gmra.mxu0 %v117
    %v356 = vpop.f32.mrf.mxu0
    %v357 = vadd.f32 %v94, %v356
    %v358 = vpop.f32.mrf.mxu0
    %v359 = vadd.f32 %v94, %v358
    %360 = vmatmul.bf16.gmra.mxu0 %v118
    %v361 = vpop.f32.mrf.mxu0
    %v362 = vadd.f32 %v94, %v361
    %v363 = vpop.f32.mrf.mxu0
    %v364 = vadd.f32 %v94, %v363
    %365 = vmatmul.bf16.gmra.mxu0 %v119
    %v366 = vpop.f32.mrf.mxu0
    %v367 = vadd.f32 %v94, %v366
    %v368 = vpop.f32.mrf.mxu0
    %v369 = vadd.f32 %v94, %v368
    %370 = vdwg.mxu0
    %371 = vmatpush.bf16.msra.mxu0 %v251
    %372 = vmatpush.bf16.msra.mxu0 %v247
    %373 = vmatpush.bf16.msra.mxu0 %v243
    %374 = vmatpush.bf16.msra.mxu0 %v239
    %375 = vmatpush.bf16.msra.mxu0 %v235
    %376 = vmatpush.bf16.msra.mxu0 %v231
    %377 = vmatpush.bf16.msra.mxu0 %v227
    %378 = vmatpush.bf16.msra.mxu0 %v223
    %379 = vmatmul.bf16.gmra.mxu0 %v116
    %v380 = vpop.f32.mrf.mxu0
    %v381 = vadd.f32 %v95, %v380
    %v382 = vpop.f32.mrf.mxu0
    %v383 = vadd.f32 %v95, %v382
    %384 = vmatmul.bf16.gmra.mxu0 %v117
    %v385 = vpop.f32.mrf.mxu0
    %v386 = vadd.f32 %v95, %v385
    %v387 = vpop.f32.mrf.mxu0
    %v388 = vadd.f32 %v95, %v387
    %389 = vmatmul.bf16.gmra.mxu0 %v118
    %v390 = vpop.f32.mrf.mxu0
    %v391 = vadd.f32 %v95, %v390
    %v392 = vpop.f32.mrf.mxu0
    %v393 = vadd.f32 %v95, %v392
    %394 = vmatmul.bf16.gmra.mxu0 %v119
    %v395 = vpop.f32.mrf.mxu0
    %v396 = vadd.f32 %v95, %v395
    %v397 = vpop.f32.mrf.mxu0
    %v398 = vadd.f32 %v95, %v397
    %399 = vdwg.mxu0
    %400 = vst [vmem:[#allocation2] sm:$0xff] %v294
    %401 = vst [vmem:[#allocation2 + $0x8] sm:$0xff] %v323
    %402 = vst [vmem:[#allocation2 + $0x10] sm:$0xff] %v352
    %403 = vst [vmem:[#allocation2 + $0x18] sm:$0xff] %v381
    %404 = vst [vmem:[#allocation2 + $0x20] sm:$0xff] %v296
    %405 = vst [vmem:[#allocation2 + $0x28] sm:$0xff] %v325
    %406 = vst [vmem:[#allocation2 + $0x30] sm:$0xff] %v354
    %407 = vst [vmem:[#allocation2 + $0x38] sm:$0xff] %v383
    %408 = vst [vmem:[#allocation2 + $0x40] sm:$0xff] %v299
    %409 = vst [vmem:[#allocation2 + $0x48] sm:$0xff] %v328
    %410 = vst [vmem:[#allocation2 + $0x50] sm:$0xff] %v357
    %411 = vst [vmem:[#allocation2 + $0x58] sm:$0xff] %v386
    %412 = vst [vmem:[#allocation2 + $0x60] sm:$0xff] %v301
    %413 = vst [vmem:[#allocation2 + $0x68] sm:$0xff] %v330
    %414 = vst [vmem:[#allocation2 + $0x70] sm:$0xff] %v359
    %415 = vst [vmem:[#allocation2 + $0x78] sm:$0xff] %v388
    %416 = vst [vmem:[#allocation2 + $0x80] sm:$0xff] %v304
    %417 = vst [vmem:[#allocation2 + $0x88] sm:$0xff] %v333
    %418 = vst [vmem:[#allocation2 + $0x90] sm:$0xff] %v362
    %419 = vst [vmem:[#allocation2 + $0x98] sm:$0xff] %v391
    %420 = vst [vmem:[#allocation2 + $0xa0] sm:$0xff] %v306
    %421 = vst [vmem:[#allocation2 + $0xa8] sm:$0xff] %v335
    %422 = vst [vmem:[#allocation2 + $0xb0] sm:$0xff] %v364
    %423 = vst [vmem:[#allocation2 + $0xb8] sm:$0xff] %v393
    %424 = vst [vmem:[#allocation2 + $0xc0] sm:$0xff] %v309
    %425 = vst [vmem:[#allocation2 + $0xc8] sm:$0xff] %v338
    %426 = vst [vmem:[#allocation2 + $0xd0] sm:$0xff] %v367
    %427 = vst [vmem:[#allocation2 + $0xd8] sm:$0xff] %v396
    %428 = vst [vmem:[#allocation2 + $0xe0] sm:$0xff] %v311
    %429 = vst [vmem:[#allocation2 + $0xe8] sm:$0xff] %v340
    %430 = vst [vmem:[#allocation2 + $0xf0] sm:$0xff] %v369
    %431 = vst [vmem:[#allocation2 + $0xf8] sm:$0xff] %v398
    %v432 = vld [vmem:[#allocation4] sm:$0xff]
    %v433 = vpack.c.bf16 %v432, %v432
    %s434 = smul.u32 0, 4
    %s435 = smul.addr %s434, 8
    %s436 = scalar_lea.vmem [#allocation2], %s435
    %v437 = vld [vmem:[%s436] sm:$0xff]
    %v438 = vld [vmem:[#allocation6] sm:$0xf]
    %v439 = vld [vmem:[#allocation6 + $0x10] sm:$0xf]
    %v440 = vld [vmem:[#allocation6 + $0x20] sm:$0xf]
    %v441 = vld [vmem:[#allocation6 + $0x30] sm:$0xf]
    %v442 = vld [vmem:[#allocation6 + $0x40] sm:$0xf]
    %v443 = vld [vmem:[#allocation6 + $0x50] sm:$0xf]
    %v444 = vld [vmem:[#allocation6 + $0x60] sm:$0xf]
    %v445 = vld [vmem:[#allocation6 + $0x70] sm:$0xf]
    %v446 = vld [vmem:[#allocation6 + $0x80] sm:$0xf]
    %v447 = vld [vmem:[#allocation6 + $0x90] sm:$0xf]
    %v448 = vld [vmem:[#allocation6 + $0xa0] sm:$0xf]
    %v449 = vld [vmem:[#allocation6 + $0xb0] sm:$0xf]
    %v450 = vld [vmem:[#allocation6 + $0xc0] sm:$0xf]
    %v451 = vld [vmem:[#allocation6 + $0xd0] sm:$0xf]
    %v452 = vld [vmem:[#allocation6 + $0xe0] sm:$0xf]
    %v453 = vld [vmem:[#allocation6 + $0xf0] sm:$0xf]
    %v470 = vunpack.c.l.b16 %v438
    %v471 = vunpack.c.l.b16 %v439
    %v472 = vunpack.c.l.b16 %v440
    %v473 = vunpack.c.l.b16 %v441
    %v474 = vunpack.c.l.b16 %v442
    %v475 = vunpack.c.l.b16 %v443
    %v476 = vunpack.c.l.b16 %v444
    %v477 = vunpack.c.l.b16 %v445
    %v478 = vunpack.c.l.b16 %v446
    %v479 = vunpack.c.l.b16 %v447
    %v480 = vunpack.c.l.b16 %v448
    %v481 = vunpack.c.l.b16 %v449
    %v482 = vunpack.c.l.b16 %v450
    %v483 = vunpack.c.l.b16 %v451
    %v484 = vunpack.c.l.b16 %v452
    %v485 = vunpack.c.l.b16 %v453
    %v486 = vpack.c.b16 %v471, %v470
    %v487 = vpack.c.b16 %v473, %v472
    %v488 = vpack.c.b16 %v475, %v474
    %v489 = vpack.c.b16 %v477, %v476
    %v490 = vpack.c.b16 %v479, %v478
    %v491 = vpack.c.b16 %v481, %v480
    %v492 = vpack.c.b16 %v483, %v482
    %v493 = vpack.c.b16 %v485, %v484
    %502 = vmatpush.bf16.msra.mxu0 %v493
    %503 = vmatpush.bf16.msra.mxu0 %v492
    %504 = vmatpush.bf16.msra.mxu0 %v491
    %505 = vmatpush.bf16.msra.mxu0 %v490
    %506 = vmatpush.bf16.msra.mxu0 %v489
    %507 = vmatpush.bf16.msra.mxu0 %v488
    %508 = vmatpush.bf16.msra.mxu0 %v487
    %509 = vmatpush.bf16.msra.mxu0 %v486
    %510 = vmatmul.bf16.gmra.mxu0 %v433
    %v511 = vpop.f32.mrf.mxu0
    %v512 = vadd.f32 0.0, %v511
    %v513 = vpop.f32.mrf.mxu0
    %514 = vdwg.mxu0
    %v515 = vadd.f32 %v437, %v512
    %v516 = vxor.u32 %v515, 2147483648
    %v517 = vmul.f32 %v516, 1.442695
    %v518 = vpow.pop %v517
    %v519 = vadd.f32 %v518, 1.0
    %v520 = vrcp.pop %v519
    %v521 = vmul.f32 %v519, %v520
    %v522 = vsub.f32 1.0, %v521
    %v523 = vmul.f32 %v520, %v522
    %v524 = vadd.f32 %v520, %v523
    %vm525 = vweird.f32 %v519
    %vm526 = vweird.f32 %v520
    %vm527 = vmor %vm525, %vm526
    %v528 = vsel %vm527, %v520, %v524
    %v529 = vand.u32 2147483647, %v519
    %vm530 = vcmp.eq.f32.partialorder %v529, 8.507059e+37
    %v531 = vand.u32 %v519, 2147483648
    %v532 = vor.u32 1.1754944e-38, %v531
    %v533 = vsel %vm530, %v532, %v528
    %v534 = vmul.f32 1.0, %v533
    %v535 = vld [vmem:[%s436 + $0x8] sm:$0xff]
    %v536 = vld [vmem:[#allocation6 + $0x4] sm:$0xf]
    %v537 = vld [vmem:[#allocation6 + $0x14] sm:$0xf]
    %v538 = vld [vmem:[#allocation6 + $0x24] sm:$0xf]
    %v539 = vld [vmem:[#allocation6 + $0x34] sm:$0xf]
    %v540 = vld [vmem:[#allocation6 + $0x44] sm:$0xf]
    %v541 = vld [vmem:[#allocation6 + $0x54] sm:$0xf]
    %v542 = vld [vmem:[#allocation6 + $0x64] sm:$0xf]
    %v543 = vld [vmem:[#allocation6 + $0x74] sm:$0xf]
    %v544 = vld [vmem:[#allocation6 + $0x84] sm:$0xf]
    %v545 = vld [vmem:[#allocation6 + $0x94] sm:$0xf]
    %v546 = vld [vmem:[#allocation6 + $0xa4] sm:$0xf]
    %v547 = vld [vmem:[#allocation6 + $0xb4] sm:$0xf]
    %v548 = vld [vmem:[#allocation6 + $0xc4] sm:$0xf]
    %v549 = vld [vmem:[#allocation6 + $0xd4] sm:$0xf]
    %v550 = vld [vmem:[#allocation6 + $0xe4] sm:$0xf]
    %v551 = vld [vmem:[#allocation6 + $0xf4] sm:$0xf]
    %v568 = vunpack.c.l.b16 %v536
    %v569 = vunpack.c.l.b16 %v537
    %v570 = vunpack.c.l.b16 %v538
    %v571 = vunpack.c.l.b16 %v539
    %v572 = vunpack.c.l.b16 %v540
    %v573 = vunpack.c.l.b16 %v541
    %v574 = vunpack.c.l.b16 %v542
    %v575 = vunpack.c.l.b16 %v543
    %v576 = vunpack.c.l.b16 %v544
    %v577 = vunpack.c.l.b16 %v545
    %v578 = vunpack.c.l.b16 %v546
    %v579 = vunpack.c.l.b16 %v547
    %v580 = vunpack.c.l.b16 %v548
    %v581 = vunpack.c.l.b16 %v549
    %v582 = vunpack.c.l.b16 %v550
    %v583 = vunpack.c.l.b16 %v551
    %v584 = vpack.c.b16 %v569, %v568
    %v585 = vpack.c.b16 %v571, %v570
    %v586 = vpack.c.b16 %v573, %v572
    %v587 = vpack.c.b16 %v575, %v574
    %v588 = vpack.c.b16 %v577, %v576
    %v589 = vpack.c.b16 %v579, %v578
    %v590 = vpack.c.b16 %v581, %v580
    %v591 = vpack.c.b16 %v583, %v582
    %600 = vmatpush.bf16.msra.mxu0 %v591
    %601 = vmatpush.bf16.msra.mxu0 %v590
    %602 = vmatpush.bf16.msra.mxu0 %v589
    %603 = vmatpush.bf16.msra.mxu0 %v588
    %604 = vmatpush.bf16.msra.mxu0 %v587
    %605 = vmatpush.bf16.msra.mxu0 %v586
    %606 = vmatpush.bf16.msra.mxu0 %v585
    %607 = vmatpush.bf16.msra.mxu0 %v584
    %608 = vmatmul.bf16.gmra.mxu0 %v433
    %v609 = vpop.f32.mrf.mxu0
    %v610 = vadd.f32 0.0, %v609
    %v611 = vpop.f32.mrf.mxu0
    %612 = vdwg.mxu0
    %v613 = vadd.f32 %v535, %v610
    %v614 = vxor.u32 %v613, 2147483648
    %v615 = vmul.f32 %v614, 1.442695
    %v616 = vpow.pop %v615
    %v617 = vadd.f32 %v616, 1.0
    %v618 = vrcp.pop %v617
    %v619 = vmul.f32 %v617, %v618
    %v620 = vsub.f32 1.0, %v619
    %v621 = vmul.f32 %v618, %v620
    %v622 = vadd.f32 %v618, %v621
    %vm623 = vweird.f32 %v617
    %vm624 = vweird.f32 %v618
    %vm625 = vmor %vm623, %vm624
    %v626 = vsel %vm625, %v618, %v622
    %v627 = vand.u32 2147483647, %v617
    %vm628 = vcmp.eq.f32.partialorder %v627, 8.507059e+37
    %v629 = vand.u32 %v617, 2147483648
    %v630 = vor.u32 1.1754944e-38, %v629
    %v631 = vsel %vm628, %v630, %v626
    %v632 = vmul.f32 1.0, %v631
    %v633 = vld [vmem:[%s436 + $0x10] sm:$0xff]
    %v634 = vld [vmem:[#allocation6 + $0x8] sm:$0xf]
    %v635 = vld [vmem:[#allocation6 + $0x18] sm:$0xf]
    %v636 = vld [vmem:[#allocation6 + $0x28] sm:$0xf]
    %v637 = vld [vmem:[#allocation6 + $0x38] sm:$0xf]
    %v638 = vld [vmem:[#allocation6 + $0x48] sm:$0xf]
    %v639 = vld [vmem:[#allocation6 + $0x58] sm:$0xf]
    %v640 = vld [vmem:[#allocation6 + $0x68] sm:$0xf]
    %v641 = vld [vmem:[#allocation6 + $0x78] sm:$0xf]
    %v642 = vld [vmem:[#allocation6 + $0x88] sm:$0xf]
    %v643 = vld [vmem:[#allocation6 + $0x98] sm:$0xf]
    %v644 = vld [vmem:[#allocation6 + $0xa8] sm:$0xf]
    %v645 = vld [vmem:[#allocation6 + $0xb8] sm:$0xf]
    %v646 = vld [vmem:[#allocation6 + $0xc8] sm:$0xf]
    %v647 = vld [vmem:[#allocation6 + $0xd8] sm:$0xf]
    %v648 = vld [vmem:[#allocation6 + $0xe8] sm:$0xf]
    %v649 = vld [vmem:[#allocation6 + $0xf8] sm:$0xf]
    %v666 = vunpack.c.l.b16 %v634
    %v667 = vunpack.c.l.b16 %v635
    %v668 = vunpack.c.l.b16 %v636
    %v669 = vunpack.c.l.b16 %v637
    %v670 = vunpack.c.l.b16 %v638
    %v671 = vunpack.c.l.b16 %v639
    %v672 = vunpack.c.l.b16 %v640
    %v673 = vunpack.c.l.b16 %v641
    %v674 = vunpack.c.l.b16 %v642
    %v675 = vunpack.c.l.b16 %v643
    %v676 = vunpack.c.l.b16 %v644
    %v677 = vunpack.c.l.b16 %v645
    %v678 = vunpack.c.l.b16 %v646
    %v679 = vunpack.c.l.b16 %v647
    %v680 = vunpack.c.l.b16 %v648
    %v681 = vunpack.c.l.b16 %v649
    %v682 = vpack.c.b16 %v667, %v666
    %v683 = vpack.c.b16 %v669, %v668
    %v684 = vpack.c.b16 %v671, %v670
    %v685 = vpack.c.b16 %v673, %v672
    %v686 = vpack.c.b16 %v675, %v674
    %v687 = vpack.c.b16 %v677, %v676
    %v688 = vpack.c.b16 %v679, %v678
    %v689 = vpack.c.b16 %v681, %v680
    %698 = vmatpush.bf16.msra.mxu0 %v689
    %699 = vmatpush.bf16.msra.mxu0 %v688
    %700 = vmatpush.bf16.msra.mxu0 %v687
    %701 = vmatpush.bf16.msra.mxu0 %v686
    %702 = vmatpush.bf16.msra.mxu0 %v685
    %703 = vmatpush.bf16.msra.mxu0 %v684
    %704 = vmatpush.bf16.msra.mxu0 %v683
    %705 = vmatpush.bf16.msra.mxu0 %v682
    %706 = vmatmul.bf16.gmra.mxu0 %v433
    %v707 = vpop.f32.mrf.mxu0
    %v708 = vadd.f32 0.0, %v707
    %v709 = vpop.f32.mrf.mxu0
    %710 = vdwg.mxu0
    %v711 = vadd.f32 %v633, %v708
    %v712 = vtanh.pop %v711
    %v713 = vld [vmem:[%s436 + $0x18] sm:$0xff]
    %v714 = vld [vmem:[#allocation6 + $0xc] sm:$0xf]
    %v715 = vld [vmem:[#allocation6 + $0x1c] sm:$0xf]
    %v716 = vld [vmem:[#allocation6 + $0x2c] sm:$0xf]
    %v717 = vld [vmem:[#allocation6 + $0x3c] sm:$0xf]
    %v718 = vld [vmem:[#allocation6 + $0x4c] sm:$0xf]
    %v719 = vld [vmem:[#allocation6 + $0x5c] sm:$0xf]
    %v720 = vld [vmem:[#allocation6 + $0x6c] sm:$0xf]
    %v721 = vld [vmem:[#allocation6 + $0x7c] sm:$0xf]
    %v722 = vld [vmem:[#allocation6 + $0x8c] sm:$0xf]
    %v723 = vld [vmem:[#allocation6 + $0x9c] sm:$0xf]
    %v724 = vld [vmem:[#allocation6 + $0xac] sm:$0xf]
    %v725 = vld [vmem:[#allocation6 + $0xbc] sm:$0xf]
    %v726 = vld [vmem:[#allocation6 + $0xcc] sm:$0xf]
    %v727 = vld [vmem:[#allocation6 + $0xdc] sm:$0xf]
    %v728 = vld [vmem:[#allocation6 + $0xec] sm:$0xf]
    %v729 = vld [vmem:[#allocation6 + $0xfc] sm:$0xf]
    %v746 = vunpack.c.l.b16 %v714
    %v747 = vunpack.c.l.b16 %v715
    %v748 = vunpack.c.l.b16 %v716
    %v749 = vunpack.c.l.b16 %v717
    %v750 = vunpack.c.l.b16 %v718
    %v751 = vunpack.c.l.b16 %v719
    %v752 = vunpack.c.l.b16 %v720
    %v753 = vunpack.c.l.b16 %v721
    %v754 = vunpack.c.l.b16 %v722
    %v755 = vunpack.c.l.b16 %v723
    %v756 = vunpack.c.l.b16 %v724
    %v757 = vunpack.c.l.b16 %v725
    %v758 = vunpack.c.l.b16 %v726
    %v759 = vunpack.c.l.b16 %v727
    %v760 = vunpack.c.l.b16 %v728
    %v761 = vunpack.c.l.b16 %v729
    %v762 = vpack.c.b16 %v747, %v746
    %v763 = vpack.c.b16 %v749, %v748
    %v764 = vpack.c.b16 %v751, %v750
    %v765 = vpack.c.b16 %v753, %v752
    %v766 = vpack.c.b16 %v755, %v754
    %v767 = vpack.c.b16 %v757, %v756
    %v768 = vpack.c.b16 %v759, %v758
    %v769 = vpack.c.b16 %v761, %v760
    %778 = vmatpush.bf16.msra.mxu0 %v769
    %779 = vmatpush.bf16.msra.mxu0 %v768
    %780 = vmatpush.bf16.msra.mxu0 %v767
    %781 = vmatpush.bf16.msra.mxu0 %v766
    %782 = vmatpush.bf16.msra.mxu0 %v765
    %783 = vmatpush.bf16.msra.mxu0 %v764
    %784 = vmatpush.bf16.msra.mxu0 %v763
    %785 = vmatpush.bf16.msra.mxu0 %v762
    %786 = vmatmul.bf16.gmra.mxu0 %v433
    %v787 = vpop.f32.mrf.mxu0
    %v788 = vadd.f32 0.0, %v787
    %v789 = vpop.f32.mrf.mxu0
    %790 = vdwg.mxu0
    %v791 = vadd.f32 %v713, %v788
    %v792 = vxor.u32 %v791, 2147483648
    %v793 = vmul.f32 %v792, 1.442695
    %v794 = vpow.pop %v793
    %v795 = vadd.f32 %v794, 1.0
    %v796 = vrcp.pop %v795
    %v797 = vmul.f32 %v795, %v796
    %v798 = vsub.f32 1.0, %v797
    %v799 = vmul.f32 %v796, %v798
    %v800 = vadd.f32 %v796, %v799
    %vm801 = vweird.f32 %v795
    %vm802 = vweird.f32 %v796
    %vm803 = vmor %vm801, %vm802
    %v804 = vsel %vm803, %v796, %v800
    %v805 = vand.u32 2147483647, %v795
    %vm806 = vcmp.eq.f32.partialorder %v805, 8.507059e+37
    %v807 = vand.u32 %v795, 2147483648
    %v808 = vor.u32 1.1754944e-38, %v807
    %v809 = vsel %vm806, %v808, %v804
    %v810 = vmul.f32 1.0, %v809
    %v811 = vld [vmem:[#allocation5] sm:$0xff]
    %v812 = vmul.f32 %v632, %v811
    %v813 = vmul.f32 %v534, %v712
    %v814 = vadd.f32 %v812, %v813
    %v815 = vtanh.pop %v814
    %v816 = vmul.f32 %v810, %v815
    %817 = vst [vmem:[#allocation5] sm:$0xff] %v814
    %818 = vst [vmem:[#allocation4] sm:$0xff] %v816
    %819 = vst [vmem:[#allocation3] sm:$0xff] %v816
    %v820 = vld [vmem:[#allocation4] sm:$0xff]
    %v821 = vpack.c.bf16 %v820, %v820
    %s822 = smul.u32 1, 4
    %s823 = smul.addr %s822, 8
    %s824 = scalar_lea.vmem [#allocation2], %s823
    %v825 = vld [vmem:[%s824] sm:$0xff]
    %v826 = vld [vmem:[#allocation6] sm:$0xf]
    %v827 = vld [vmem:[#allocation6 + $0x10] sm:$0xf]
    %v828 = vld [vmem:[#allocation6 + $0x20] sm:$0xf]
    %v829 = vld [vmem:[#allocation6 + $0x30] sm:$0xf]
    %v830 = vld [vmem:[#allocation6 + $0x40] sm:$0xf]
    %v831 = vld [vmem:[#allocation6 + $0x50] sm:$0xf]
    %v832 = vld [vmem:[#allocation6 + $0x60] sm:$0xf]
    %v833 = vld [vmem:[#allocation6 + $0x70] sm:$0xf]
    %v834 = vld [vmem:[#allocation6 + $0x80] sm:$0xf]
    %v835 = vld [vmem:[#allocation6 + $0x90] sm:$0xf]
    %v836 = vld [vmem:[#allocation6 + $0xa0] sm:$0xf]
    %v837 = vld [vmem:[#allocation6 + $0xb0] sm:$0xf]
    %v838 = vld [vmem:[#allocation6 + $0xc0] sm:$0xf]
    %v839 = vld [vmem:[#allocation6 + $0xd0] sm:$0xf]
    %v840 = vld [vmem:[#allocation6 + $0xe0] sm:$0xf]
    %v841 = vld [vmem:[#allocation6 + $0xf0] sm:$0xf]
    %v858 = vunpack.c.l.b16 %v826
    %v859 = vunpack.c.l.b16 %v827
    %v860 = vunpack.c.l.b16 %v828
    %v861 = vunpack.c.l.b16 %v829
    %v862 = vunpack.c.l.b16 %v830
    %v863 = vunpack.c.l.b16 %v831
    %v864 = vunpack.c.l.b16 %v832
    %v865 = vunpack.c.l.b16 %v833
    %v866 = vunpack.c.l.b16 %v834
    %v867 = vunpack.c.l.b16 %v835
    %v868 = vunpack.c.l.b16 %v836
    %v869 = vunpack.c.l.b16 %v837
    %v870 = vunpack.c.l.b16 %v838
    %v871 = vunpack.c.l.b16 %v839
    %v872 = vunpack.c.l.b16 %v840
    %v873 = vunpack.c.l.b16 %v841
    %v874 = vpack.c.b16 %v859, %v858
    %v875 = vpack.c.b16 %v861, %v860
    %v876 = vpack.c.b16 %v863, %v862
    %v877 = vpack.c.b16 %v865, %v864
    %v878 = vpack.c.b16 %v867, %v866
    %v879 = vpack.c.b16 %v869, %v868
    %v880 = vpack.c.b16 %v871, %v870
    %v881 = vpack.c.b16 %v873, %v872
    %890 = vmatpush.bf16.msra.mxu0 %v881
    %891 = vmatpush.bf16.msra.mxu0 %v880
    %892 = vmatpush.bf16.msra.mxu0 %v879
    %893 = vmatpush.bf16.msra.mxu0 %v878
    %894 = vmatpush.bf16.msra.mxu0 %v877
    %895 = vmatpush.bf16.msra.mxu0 %v876
    %896 = vmatpush.bf16.msra.mxu0 %v875
    %897 = vmatpush.bf16.msra.mxu0 %v874
    %898 = vmatmul.bf16.gmra.mxu0 %v821
    %v899 = vpop.f32.mrf.mxu0
    %v900 = vadd.f32 0.0, %v899
    %v901 = vpop.f32.mrf.mxu0
    %902 = vdwg.mxu0
    %v903 = vadd.f32 %v825, %v900
    %v904 = vxor.u32 %v903, 2147483648
    %v905 = vmul.f32 %v904, 1.442695
    %v906 = vpow.pop %v905
    %v907 = vadd.f32 %v906, 1.0
    %v908 = vrcp.pop %v907
    %v909 = vmul.f32 %v907, %v908
    %v910 = vsub.f32 1.0, %v909
    %v911 = vmul.f32 %v908, %v910
    %v912 = vadd.f32 %v908, %v911
    %vm913 = vweird.f32 %v907
    %vm914 = vweird.f32 %v908
    %vm915 = vmor %vm913, %vm914
    %v916 = vsel %vm915, %v908, %v912
    %v917 = vand.u32 2147483647, %v907
    %vm918 = vcmp.eq.f32.partialorder %v917, 8.507059e+37
    %v919 = vand.u32 %v907, 2147483648
    %v920 = vor.u32 1.1754944e-38, %v919
    %v921 = vsel %vm918, %v920, %v916
    %v922 = vmul.f32 1.0, %v921
    %v923 = vld [vmem:[%s824 + $0x8] sm:$0xff]
    %v924 = vld [vmem:[#allocation6 + $0x4] sm:$0xf]
    %v925 = vld [vmem:[#allocation6 + $0x14] sm:$0xf]
    %v926 = vld [vmem:[#allocation6 + $0x24] sm:$0xf]
    %v927 = vld [vmem:[#allocation6 + $0x34] sm:$0xf]
    %v928 = vld [vmem:[#allocation6 + $0x44] sm:$0xf]
    %v929 = vld [vmem:[#allocation6 + $0x54] sm:$0xf]
    %v930 = vld [vmem:[#allocation6 + $0x64] sm:$0xf]
    %v931 = vld [vmem:[#allocation6 + $0x74] sm:$0xf]
    %v932 = vld [vmem:[#allocation6 + $0x84] sm:$0xf]
    %v933 = vld [vmem:[#allocation6 + $0x94] sm:$0xf]
    %v934 = vld [vmem:[#allocation6 + $0xa4] sm:$0xf]
    %v935 = vld [vmem:[#allocation6 + $0xb4] sm:$0xf]
    %v936 = vld [vmem:[#allocation6 + $0xc4] sm:$0xf]
    %v937 = vld [vmem:[#allocation6 + $0xd4] sm:$0xf]
    %v938 = vld [vmem:[#allocation6 + $0xe4] sm:$0xf]
    %v939 = vld [vmem:[#allocation6 + $0xf4] sm:$0xf]
    %v956 = vunpack.c.l.b16 %v924
    %v957 = vunpack.c.l.b16 %v925
    %v958 = vunpack.c.l.b16 %v926
    %v959 = vunpack.c.l.b16 %v927
    %v960 = vunpack.c.l.b16 %v928
    %v961 = vunpack.c.l.b16 %v929
    %v962 = vunpack.c.l.b16 %v930
    %v963 = vunpack.c.l.b16 %v931
    %v964 = vunpack.c.l.b16 %v932
    %v965 = vunpack.c.l.b16 %v933
    %v966 = vunpack.c.l.b16 %v934
    %v967 = vunpack.c.l.b16 %v935
    %v968 = vunpack.c.l.b16 %v936
    %v969 = vunpack.c.l.b16 %v937
    %v970 = vunpack.c.l.b16 %v938
    %v971 = vunpack.c.l.b16 %v939
    %v972 = vpack.c.b16 %v957, %v956
    %v973 = vpack.c.b16 %v959, %v958
    %v974 = vpack.c.b16 %v961, %v960
    %v975 = vpack.c.b16 %v963, %v962
    %v976 = vpack.c.b16 %v965, %v964
    %v977 = vpack.c.b16 %v967, %v966
    %v978 = vpack.c.b16 %v969, %v968
    %v979 = vpack.c.b16 %v971, %v970
    %988 = vmatpush.bf16.msra.mxu0 %v979
    %989 = vmatpush.bf16.msra.mxu0 %v978
    %990 = vmatpush.bf16.msra.mxu0 %v977
    %991 = vmatpush.bf16.msra.mxu0 %v976
    %992 = vmatpush.bf16.msra.mxu0 %v975
    %993 = vmatpush.bf16.msra.mxu0 %v974
    %994 = vmatpush.bf16.msra.mxu0 %v973
    %995 = vmatpush.bf16.msra.mxu0 %v972
    %996 = vmatmul.bf16.gmra.mxu0 %v821
    %v997 = vpop.f32.mrf.mxu0
    %v998 = vadd.f32 0.0, %v997
    %v999 = vpop.f32.mrf.mxu0
    %1000 = vdwg.mxu0
    %v1001 = vadd.f32 %v923, %v998
    %v1002 = vxor.u32 %v1001, 2147483648
    %v1003 = vmul.f32 %v1002, 1.442695
    %v1004 = vpow.pop %v1003
    %v1005 = vadd.f32 %v1004, 1.0
    %v1006 = vrcp.pop %v1005
    %v1007 = vmul.f32 %v1005, %v1006
    %v1008 = vsub.f32 1.0, %v1007
    %v1009 = vmul.f32 %v1006, %v1008
    %v1010 = vadd.f32 %v1006, %v1009
    %vm1011 = vweird.f32 %v1005
    %vm1012 = vweird.f32 %v1006
    %vm1013 = vmor %vm1011, %vm1012
    %v1014 = vsel %vm1013, %v1006, %v1010
    %v1015 = vand.u32 2147483647, %v1005
    %vm1016 = vcmp.eq.f32.partialorder %v1015, 8.507059e+37
    %v1017 = vand.u32 %v1005, 2147483648
    %v1018 = vor.u32 1.1754944e-38, %v1017
    %v1019 = vsel %vm1016, %v1018, %v1014
    %v1020 = vmul.f32 1.0, %v1019
    %v1021 = vld [vmem:[%s824 + $0x10] sm:$0xff]
    %v1022 = vld [vmem:[#allocation6 + $0x8] sm:$0xf]
    %v1023 = vld [vmem:[#allocation6 + $0x18] sm:$0xf]
    %v1024 = vld [vmem:[#allocation6 + $0x28] sm:$0xf]
    %v1025 = vld [vmem:[#allocation6 + $0x38] sm:$0xf]
    %v1026 = vld [vmem:[#allocation6 + $0x48] sm:$0xf]
    %v1027 = vld [vmem:[#allocation6 + $0x58] sm:$0xf]
    %v1028 = vld [vmem:[#allocation6 + $0x68] sm:$0xf]
    %v1029 = vld [vmem:[#allocation6 + $0x78] sm:$0xf]
    %v1030 = vld [vmem:[#allocation6 + $0x88] sm:$0xf]
    %v1031 = vld [vmem:[#allocation6 + $0x98] sm:$0xf]
    %v1032 = vld [vmem:[#allocation6 + $0xa8] sm:$0xf]
    %v1033 = vld [vmem:[#allocation6 + $0xb8] sm:$0xf]
    %v1034 = vld [vmem:[#allocation6 + $0xc8] sm:$0xf]
    %v1035 = vld [vmem:[#allocation6 + $0xd8] sm:$0xf]
    %v1036 = vld [vmem:[#allocation6 + $0xe8] sm:$0xf]
    %v1037 = vld [vmem:[#allocation6 + $0xf8] sm:$0xf]
    %v1054 = vunpack.c.l.b16 %v1022
    %v1055 = vunpack.c.l.b16 %v1023
    %v1056 = vunpack.c.l.b16 %v1024
    %v1057 = vunpack.c.l.b16 %v1025
    %v1058 = vunpack.c.l.b16 %v1026
    %v1059 = vunpack.c.l.b16 %v1027
    %v1060 = vunpack.c.l.b16 %v1028
    %v1061 = vunpack.c.l.b16 %v1029
    %v1062 = vunpack.c.l.b16 %v1030
    %v1063 = vunpack.c.l.b16 %v1031
    %v1064 = vunpack.c.l.b16 %v1032
    %v1065 = vunpack.c.l.b16 %v1033
    %v1066 = vunpack.c.l.b16 %v1034
    %v1067 = vunpack.c.l.b16 %v1035
    %v1068 = vunpack.c.l.b16 %v1036
    %v1069 = vunpack.c.l.b16 %v1037
    %v1070 = vpack.c.b16 %v1055, %v1054
    %v1071 = vpack.c.b16 %v1057, %v1056
    %v1072 = vpack.c.b16 %v1059, %v1058
    %v1073 = vpack.c.b16 %v1061, %v1060
    %v1074 = vpack.c.b16 %v1063, %v1062
    %v1075 = vpack.c.b16 %v1065, %v1064
    %v1076 = vpack.c.b16 %v1067, %v1066
    %v1077 = vpack.c.b16 %v1069, %v1068
    %1086 = vmatpush.bf16.msra.mxu0 %v1077
    %1087 = vmatpush.bf16.msra.mxu0 %v1076
    %1088 = vmatpush.bf16.msra.mxu0 %v1075
    %1089 = vmatpush.bf16.msra.mxu0 %v1074
    %1090 = vmatpush.bf16.msra.mxu0 %v1073
    %1091 = vmatpush.bf16.msra.mxu0 %v1072
    %1092 = vmatpush.bf16.msra.mxu0 %v1071
    %1093 = vmatpush.bf16.msra.mxu0 %v1070
    %1094 = vmatmul.bf16.gmra.mxu0 %v821
    %v1095 = vpop.f32.mrf.mxu0
    %v1096 = vadd.f32 0.0, %v1095
    %v1097 = vpop.f32.mrf.mxu0
    %1098 = vdwg.mxu0
    %v1099 = vadd.f32 %v1021, %v1096
    %v1100 = vtanh.pop %v1099
    %v1101 = vld [vmem:[%s824 + $0x18] sm:$0xff]
    %v1102 = vld [vmem:[#allocation6 + $0xc] sm:$0xf]
    %v1103 = vld [vmem:[#allocation6 + $0x1c] sm:$0xf]
    %v1104 = vld [vmem:[#allocation6 + $0x2c] sm:$0xf]
    %v1105 = vld [vmem:[#allocation6 + $0x3c] sm:$0xf]
    %v1106 = vld [vmem:[#allocation6 + $0x4c] sm:$0xf]
    %v1107 = vld [vmem:[#allocation6 + $0x5c] sm:$0xf]
    %v1108 = vld [vmem:[#allocation6 + $0x6c] sm:$0xf]
    %v1109 = vld [vmem:[#allocation6 + $0x7c] sm:$0xf]
    %v1110 = vld [vmem:[#allocation6 + $0x8c] sm:$0xf]
    %v1111 = vld [vmem:[#allocation6 + $0x9c] sm:$0xf]
    %v1112 = vld [vmem:[#allocation6 + $0xac] sm:$0xf]
    %v1113 = vld [vmem:[#allocation6 + $0xbc] sm:$0xf]
    %v1114 = vld [vmem:[#allocation6 + $0xcc] sm:$0xf]
    %v1115 = vld [vmem:[#allocation6 + $0xdc] sm:$0xf]
    %v1116 = vld [vmem:[#allocation6 + $0xec] sm:$0xf]
    %v1117 = vld [vmem:[#allocation6 + $0xfc] sm:$0xf]
    %v1134 = vunpack.c.l.b16 %v1102
    %v1135 = vunpack.c.l.b16 %v1103
    %v1136 = vunpack.c.l.b16 %v1104
    %v1137 = vunpack.c.l.b16 %v1105
    %v1138 = vunpack.c.l.b16 %v1106
    %v1139 = vunpack.c.l.b16 %v1107
    %v1140 = vunpack.c.l.b16 %v1108
    %v1141 = vunpack.c.l.b16 %v1109
    %v1142 = vunpack.c.l.b16 %v1110
    %v1143 = vunpack.c.l.b16 %v1111
    %v1144 = vunpack.c.l.b16 %v1112
    %v1145 = vunpack.c.l.b16 %v1113
    %v1146 = vunpack.c.l.b16 %v1114
    %v1147 = vunpack.c.l.b16 %v1115
    %v1148 = vunpack.c.l.b16 %v1116
    %v1149 = vunpack.c.l.b16 %v1117
    %v1150 = vpack.c.b16 %v1135, %v1134
    %v1151 = vpack.c.b16 %v1137, %v1136
    %v1152 = vpack.c.b16 %v1139, %v1138
    %v1153 = vpack.c.b16 %v1141, %v1140
    %v1154 = vpack.c.b16 %v1143, %v1142
    %v1155 = vpack.c.b16 %v1145, %v1144
    %v1156 = vpack.c.b16 %v1147, %v1146
    %v1157 = vpack.c.b16 %v1149, %v1148
    %1166 = vmatpush.bf16.msra.mxu0 %v1157
    %1167 = vmatpush.bf16.msra.mxu0 %v1156
    %1168 = vmatpush.bf16.msra.mxu0 %v1155
    %1169 = vmatpush.bf16.msra.mxu0 %v1154
    %1170 = vmatpush.bf16.msra.mxu0 %v1153
    %1171 = vmatpush.bf16.msra.mxu0 %v1152
    %1172 = vmatpush.bf16.msra.mxu0 %v1151
    %1173 = vmatpush.bf16.msra.mxu0 %v1150
    %1174 = vmatmul.bf16.gmra.mxu0 %v821
    %v1175 = vpop.f32.mrf.mxu0
    %v1176 = vadd.f32 0.0, %v1175
    %v1177 = vpop.f32.mrf.mxu0
    %1178 = vdwg.mxu0
    %v1179 = vadd.f32 %v1101, %v1176
    %v1180 = vxor.u32 %v1179, 2147483648
    %v1181 = vmul.f32 %v1180, 1.442695
    %v1182 = vpow.pop %v1181
    %v1183 = vadd.f32 %v1182, 1.0
    %v1184 = vrcp.pop %v1183
    %v1185 = vmul.f32 %v1183, %v1184
    %v1186 = vsub.f32 1.0, %v1185
    %v1187 = vmul.f32 %v1184, %v1186
    %v1188 = vadd.f32 %v1184, %v1187
    %vm1189 = vweird.f32 %v1183
    %vm1190 = vweird.f32 %v1184
    %vm1191 = vmor %vm1189, %vm1190
    %v1192 = vsel %vm1191, %v1184, %v1188
    %v1193 = vand.u32 2147483647, %v1183
    %vm1194 = vcmp.eq.f32.partialorder %v1193, 8.507059e+37
    %v1195 = vand.u32 %v1183, 2147483648
    %v1196 = vor.u32 1.1754944e-38, %v1195
    %v1197 = vsel %vm1194, %v1196, %v1192
    %v1198 = vmul.f32 1.0, %v1197
    %v1199 = vld [vmem:[#allocation5] sm:$0xff]
    %v1200 = vmul.f32 %v1020, %v1199
    %v1201 = vmul.f32 %v922, %v1100
    %v1202 = vadd.f32 %v1200, %v1201
    %v1203 = vtanh.pop %v1202
    %v1204 = vmul.f32 %v1198, %v1203
    %1205 = vst [vmem:[#allocation5] sm:$0xff] %v1202
    %1206 = vst [vmem:[#allocation4] sm:$0xff] %v1204
    %s1207 = scalar_lea.vmem [#allocation3], 8
    %1208 = vst [vmem:[%s1207] sm:$0xff] %v1204
    %v1209 = vld [vmem:[#allocation4] sm:$0xff]
    %v1210 = vpack.c.bf16 %v1209, %v1209
    %s1211 = smul.u32 2, 4
    %s1212 = smul.addr %s1211, 8
    %s1213 = scalar_lea.vmem [#allocation2], %s1212
    %v1214 = vld [vmem:[%s1213] sm:$0xff]
    %v1215 = vld [vmem:[#allocation6] sm:$0xf]
    %v1216 = vld [vmem:[#allocation6 + $0x10] sm:$0xf]
    %v1217 = vld [vmem:[#allocation6 + $0x20] sm:$0xf]
    %v1218 = vld [vmem:[#allocation6 + $0x30] sm:$0xf]
    %v1219 = vld [vmem:[#allocation6 + $0x40] sm:$0xf]
    %v1220 = vld [vmem:[#allocation6 + $0x50] sm:$0xf]
    %v1221 = vld [vmem:[#allocation6 + $0x60] sm:$0xf]
    %v1222 = vld [vmem:[#allocation6 + $0x70] sm:$0xf]
    %v1223 = vld [vmem:[#allocation6 + $0x80] sm:$0xf]
    %v1224 = vld [vmem:[#allocation6 + $0x90] sm:$0xf]
    %v1225 = vld [vmem:[#allocation6 + $0xa0] sm:$0xf]
    %v1226 = vld [vmem:[#allocation6 + $0xb0] sm:$0xf]
    %v1227 = vld [vmem:[#allocation6 + $0xc0] sm:$0xf]
    %v1228 = vld [vmem:[#allocation6 + $0xd0] sm:$0xf]
    %v1229 = vld [vmem:[#allocation6 + $0xe0] sm:$0xf]
    %v1230 = vld [vmem:[#allocation6 + $0xf0] sm:$0xf]
    %v1247 = vunpack.c.l.b16 %v1215
    %v1248 = vunpack.c.l.b16 %v1216
    %v1249 = vunpack.c.l.b16 %v1217
    %v1250 = vunpack.c.l.b16 %v1218
    %v1251 = vunpack.c.l.b16 %v1219
    %v1252 = vunpack.c.l.b16 %v1220
    %v1253 = vunpack.c.l.b16 %v1221
    %v1254 = vunpack.c.l.b16 %v1222
    %v1255 = vunpack.c.l.b16 %v1223
    %v1256 = vunpack.c.l.b16 %v1224
    %v1257 = vunpack.c.l.b16 %v1225
    %v1258 = vunpack.c.l.b16 %v1226
    %v1259 = vunpack.c.l.b16 %v1227
    %v1260 = vunpack.c.l.b16 %v1228
    %v1261 = vunpack.c.l.b16 %v1229
    %v1262 = vunpack.c.l.b16 %v1230
    %v1263 = vpack.c.b16 %v1248, %v1247
    %v1264 = vpack.c.b16 %v1250, %v1249
    %v1265 = vpack.c.b16 %v1252, %v1251
    %v1266 = vpack.c.b16 %v1254, %v1253
    %v1267 = vpack.c.b16 %v1256, %v1255
    %v1268 = vpack.c.b16 %v1258, %v1257
    %v1269 = vpack.c.b16 %v1260, %v1259
    %v1270 = vpack.c.b16 %v1262, %v1261
    %1279 = vmatpush.bf16.msra.mxu0 %v1270
    %1280 = vmatpush.bf16.msra.mxu0 %v1269
    %1281 = vmatpush.bf16.msra.mxu0 %v1268
    %1282 = vmatpush.bf16.msra.mxu0 %v1267
    %1283 = vmatpush.bf16.msra.mxu0 %v1266
    %1284 = vmatpush.bf16.msra.mxu0 %v1265
    %1285 = vmatpush.bf16.msra.mxu0 %v1264
    %1286 = vmatpush.bf16.msra.mxu0 %v1263
    %1287 = vmatmul.bf16.gmra.mxu0 %v1210
    %v1288 = vpop.f32.mrf.mxu0
    %v1289 = vadd.f32 0.0, %v1288
    %v1290 = vpop.f32.mrf.mxu0
    %1291 = vdwg.mxu0
    %v1292 = vadd.f32 %v1214, %v1289
    %v1293 = vxor.u32 %v1292, 2147483648
    %v1294 = vmul.f32 %v1293, 1.442695
    %v1295 = vpow.pop %v1294
    %v1296 = vadd.f32 %v1295, 1.0
    %v1297 = vrcp.pop %v1296
    %v1298 = vmul.f32 %v1296, %v1297
    %v1299 = vsub.f32 1.0, %v1298
    %v1300 = vmul.f32 %v1297, %v1299
    %v1301 = vadd.f32 %v1297, %v1300
    %vm1302 = vweird.f32 %v1296
    %vm1303 = vweird.f32 %v1297
    %vm1304 = vmor %vm1302, %vm1303
    %v1305 = vsel %vm1304, %v1297, %v1301
    %v1306 = vand.u32 2147483647, %v1296
    %vm1307 = vcmp.eq.f32.partialorder %v1306, 8.507059e+37
    %v1308 = vand.u32 %v1296, 2147483648
    %v1309 = vor.u32 1.1754944e-38, %v1308
    %v1310 = vsel %vm1307, %v1309, %v1305
    %v1311 = vmul.f32 1.0, %v1310
    %v1312 = vld [vmem:[%s1213 + $0x8] sm:$0xff]
    %v1313 = vld [vmem:[#allocation6 + $0x4] sm:$0xf]
    %v1314 = vld [vmem:[#allocation6 + $0x14] sm:$0xf]
    %v1315 = vld [vmem:[#allocation6 + $0x24] sm:$0xf]
    %v1316 = vld [vmem:[#allocation6 + $0x34] sm:$0xf]
    %v1317 = vld [vmem:[#allocation6 + $0x44] sm:$0xf]
    %v1318 = vld [vmem:[#allocation6 + $0x54] sm:$0xf]
    %v1319 = vld [vmem:[#allocation6 + $0x64] sm:$0xf]
    %v1320 = vld [vmem:[#allocation6 + $0x74] sm:$0xf]
    %v1321 = vld [vmem:[#allocation6 + $0x84] sm:$0xf]
    %v1322 = vld [vmem:[#allocation6 + $0x94] sm:$0xf]
    %v1323 = vld [vmem:[#allocation6 + $0xa4] sm:$0xf]
    %v1324 = vld [vmem:[#allocation6 + $0xb4] sm:$0xf]
    %v1325 = vld [vmem:[#allocation6 + $0xc4] sm:$0xf]
    %v1326 = vld [vmem:[#allocation6 + $0xd4] sm:$0xf]
    %v1327 = vld [vmem:[#allocation6 + $0xe4] sm:$0xf]
    %v1328 = vld [vmem:[#allocation6 + $0xf4] sm:$0xf]
    %v1345 = vunpack.c.l.b16 %v1313
    %v1346 = vunpack.c.l.b16 %v1314
    %v1347 = vunpack.c.l.b16 %v1315
    %v1348 = vunpack.c.l.b16 %v1316
    %v1349 = vunpack.c.l.b16 %v1317
    %v1350 = vunpack.c.l.b16 %v1318
    %v1351 = vunpack.c.l.b16 %v1319
    %v1352 = vunpack.c.l.b16 %v1320
    %v1353 = vunpack.c.l.b16 %v1321
    %v1354 = vunpack.c.l.b16 %v1322
    %v1355 = vunpack.c.l.b16 %v1323
    %v1356 = vunpack.c.l.b16 %v1324
    %v1357 = vunpack.c.l.b16 %v1325
    %v1358 = vunpack.c.l.b16 %v1326
    %v1359 = vunpack.c.l.b16 %v1327
    %v1360 = vunpack.c.l.b16 %v1328
    %v1361 = vpack.c.b16 %v1346, %v1345
    %v1362 = vpack.c.b16 %v1348, %v1347
    %v1363 = vpack.c.b16 %v1350, %v1349
    %v1364 = vpack.c.b16 %v1352, %v1351
    %v1365 = vpack.c.b16 %v1354, %v1353
    %v1366 = vpack.c.b16 %v1356, %v1355
    %v1367 = vpack.c.b16 %v1358, %v1357
    %v1368 = vpack.c.b16 %v1360, %v1359
    %1377 = vmatpush.bf16.msra.mxu0 %v1368
    %1378 = vmatpush.bf16.msra.mxu0 %v1367
    %1379 = vmatpush.bf16.msra.mxu0 %v1366
    %1380 = vmatpush.bf16.msra.mxu0 %v1365
    %1381 = vmatpush.bf16.msra.mxu0 %v1364
    %1382 = vmatpush.bf16.msra.mxu0 %v1363
    %1383 = vmatpush.bf16.msra.mxu0 %v1362
    %1384 = vmatpush.bf16.msra.mxu0 %v1361
    %1385 = vmatmul.bf16.gmra.mxu0 %v1210
    %v1386 = vpop.f32.mrf.mxu0
    %v1387 = vadd.f32 0.0, %v1386
    %v1388 = vpop.f32.mrf.mxu0
    %1389 = vdwg.mxu0
    %v1390 = vadd.f32 %v1312, %v1387
    %v1391 = vxor.u32 %v1390, 2147483648
    %v1392 = vmul.f32 %v1391, 1.442695
    %v1393 = vpow.pop %v1392
    %v1394 = vadd.f32 %v1393, 1.0
    %v1395 = vrcp.pop %v1394
    %v1396 = vmul.f32 %v1394, %v1395
    %v1397 = vsub.f32 1.0, %v1396
    %v1398 = vmul.f32 %v1395, %v1397
    %v1399 = vadd.f32 %v1395, %v1398
    %vm1400 = vweird.f32 %v1394
    %vm1401 = vweird.f32 %v1395
    %vm1402 = vmor %vm1400, %vm1401
    %v1403 = vsel %vm1402, %v1395, %v1399
    %v1404 = vand.u32 2147483647, %v1394
    %vm1405 = vcmp.eq.f32.partialorder %v1404, 8.507059e+37
    %v1406 = vand.u32 %v1394, 2147483648
    %v1407 = vor.u32 1.1754944e-38, %v1406
    %v1408 = vsel %vm1405, %v1407, %v1403
    %v1409 = vmul.f32 1.0, %v1408
    %v1410 = vld [vmem:[%s1213 + $0x10] sm:$0xff]
    %v1411 = vld [vmem:[#allocation6 + $0x8] sm:$0xf]
    %v1412 = vld [vmem:[#allocation6 + $0x18] sm:$0xf]
    %v1413 = vld [vmem:[#allocation6 + $0x28] sm:$0xf]
    %v1414 = vld [vmem:[#allocation6 + $0x38] sm:$0xf]
    %v1415 = vld [vmem:[#allocation6 + $0x48] sm:$0xf]
    %v1416 = vld [vmem:[#allocation6 + $0x58] sm:$0xf]
    %v1417 = vld [vmem:[#allocation6 + $0x68] sm:$0xf]
    %v1418 = vld [vmem:[#allocation6 + $0x78] sm:$0xf]
    %v1419 = vld [vmem:[#allocation6 + $0x88] sm:$0xf]
    %v1420 = vld [vmem:[#allocation6 + $0x98] sm:$0xf]
    %v1421 = vld [vmem:[#allocation6 + $0xa8] sm:$0xf]
    %v1422 = vld [vmem:[#allocation6 + $0xb8] sm:$0xf]
    %v1423 = vld [vmem:[#allocation6 + $0xc8] sm:$0xf]
    %v1424 = vld [vmem:[#allocation6 + $0xd8] sm:$0xf]
    %v1425 = vld [vmem:[#allocation6 + $0xe8] sm:$0xf]
    %v1426 = vld [vmem:[#allocation6 + $0xf8] sm:$0xf]
    %v1443 = vunpack.c.l.b16 %v1411
    %v1444 = vunpack.c.l.b16 %v1412
    %v1445 = vunpack.c.l.b16 %v1413
    %v1446 = vunpack.c.l.b16 %v1414
    %v1447 = vunpack.c.l.b16 %v1415
    %v1448 = vunpack.c.l.b16 %v1416
    %v1449 = vunpack.c.l.b16 %v1417
    %v1450 = vunpack.c.l.b16 %v1418
    %v1451 = vunpack.c.l.b16 %v1419
    %v1452 = vunpack.c.l.b16 %v1420
    %v1453 = vunpack.c.l.b16 %v1421
    %v1454 = vunpack.c.l.b16 %v1422
    %v1455 = vunpack.c.l.b16 %v1423
    %v1456 = vunpack.c.l.b16 %v1424
    %v1457 = vunpack.c.l.b16 %v1425
    %v1458 = vunpack.c.l.b16 %v1426
    %v1459 = vpack.c.b16 %v1444, %v1443
    %v1460 = vpack.c.b16 %v1446, %v1445
    %v1461 = vpack.c.b16 %v1448, %v1447
    %v1462 = vpack.c.b16 %v1450, %v1449
    %v1463 = vpack.c.b16 %v1452, %v1451
    %v1464 = vpack.c.b16 %v1454, %v1453
    %v1465 = vpack.c.b16 %v1456, %v1455
    %v1466 = vpack.c.b16 %v1458, %v1457
    %1475 = vmatpush.bf16.msra.mxu0 %v1466
    %1476 = vmatpush.bf16.msra.mxu0 %v1465
    %1477 = vmatpush.bf16.msra.mxu0 %v1464
    %1478 = vmatpush.bf16.msra.mxu0 %v1463
    %1479 = vmatpush.bf16.msra.mxu0 %v1462
    %1480 = vmatpush.bf16.msra.mxu0 %v1461
    %1481 = vmatpush.bf16.msra.mxu0 %v1460
    %1482 = vmatpush.bf16.msra.mxu0 %v1459
    %1483 = vmatmul.bf16.gmra.mxu0 %v1210
    %v1484 = vpop.f32.mrf.mxu0
    %v1485 = vadd.f32 0.0, %v1484
    %v1486 = vpop.f32.mrf.mxu0
    %1487 = vdwg.mxu0
    %v1488 = vadd.f32 %v1410, %v1485
    %v1489 = vtanh.pop %v1488
    %v1490 = vld [vmem:[%s1213 + $0x18] sm:$0xff]
    %v1491 = vld [vmem:[#allocation6 + $0xc] sm:$0xf]
    %v1492 = vld [vmem:[#allocation6 + $0x1c] sm:$0xf]
    %v1493 = vld [vmem:[#allocation6 + $0x2c] sm:$0xf]
    %v1494 = vld [vmem:[#allocation6 + $0x3c] sm:$0xf]
    %v1495 = vld [vmem:[#allocation6 + $0x4c] sm:$0xf]
    %v1496 = vld [vmem:[#allocation6 + $0x5c] sm:$0xf]
    %v1497 = vld [vmem:[#allocation6 + $0x6c] sm:$0xf]
    %v1498 = vld [vmem:[#allocation6 + $0x7c] sm:$0xf]
    %v1499 = vld [vmem:[#allocation6 + $0x8c] sm:$0xf]
    %v1500 = vld [vmem:[#allocation6 + $0x9c] sm:$0xf]
    %v1501 = vld [vmem:[#allocation6 + $0xac] sm:$0xf]
    %v1502 = vld [vmem:[#allocation6 + $0xbc] sm:$0xf]
    %v1503 = vld [vmem:[#allocation6 + $0xcc] sm:$0xf]
    %v1504 = vld [vmem:[#allocation6 + $0xdc] sm:$0xf]
    %v1505 = vld [vmem:[#allocation6 + $0xec] sm:$0xf]
    %v1506 = vld [vmem:[#allocation6 + $0xfc] sm:$0xf]
    %v1523 = vunpack.c.l.b16 %v1491
    %v1524 = vunpack.c.l.b16 %v1492
    %v1525 = vunpack.c.l.b16 %v1493
    %v1526 = vunpack.c.l.b16 %v1494
    %v1527 = vunpack.c.l.b16 %v1495
    %v1528 = vunpack.c.l.b16 %v1496
    %v1529 = vunpack.c.l.b16 %v1497
    %v1530 = vunpack.c.l.b16 %v1498
    %v1531 = vunpack.c.l.b16 %v1499
    %v1532 = vunpack.c.l.b16 %v1500
    %v1533 = vunpack.c.l.b16 %v1501
    %v1534 = vunpack.c.l.b16 %v1502
    %v1535 = vunpack.c.l.b16 %v1503
    %v1536 = vunpack.c.l.b16 %v1504
    %v1537 = vunpack.c.l.b16 %v1505
    %v1538 = vunpack.c.l.b16 %v1506
    %v1539 = vpack.c.b16 %v1524, %v1523
    %v1540 = vpack.c.b16 %v1526, %v1525
    %v1541 = vpack.c.b16 %v1528, %v1527
    %v1542 = vpack.c.b16 %v1530, %v1529
    %v1543 = vpack.c.b16 %v1532, %v1531
    %v1544 = vpack.c.b16 %v1534, %v1533
    %v1545 = vpack.c.b16 %v1536, %v1535
    %v1546 = vpack.c.b16 %v1538, %v1537
    %1555 = vmatpush.bf16.msra.mxu0 %v1546
    %1556 = vmatpush.bf16.msra.mxu0 %v1545
    %1557 = vmatpush.bf16.msra.mxu0 %v1544
    %1558 = vmatpush.bf16.msra.mxu0 %v1543
    %1559 = vmatpush.bf16.msra.mxu0 %v1542
    %1560 = vmatpush.bf16.msra.mxu0 %v1541
    %1561 = vmatpush.bf16.msra.mxu0 %v1540
    %1562 = vmatpush.bf16.msra.mxu0 %v1539
    %1563 = vmatmul.bf16.gmra.mxu0 %v1210
    %v1564 = vpop.f32.mrf.mxu0
    %v1565 = vadd.f32 0.0, %v1564
    %v1566 = vpop.f32.mrf.mxu0
    %1567 = vdwg.mxu0
    %v1568 = vadd.f32 %v1490, %v1565
    %v1569 = vxor.u32 %v1568, 2147483648
    %v1570 = vmul.f32 %v1569, 1.442695
    %v1571 = vpow.pop %v1570
    %v1572 = vadd.f32 %v1571, 1.0
    %v1573 = vrcp.pop %v1572
    %v1574 = vmul.f32 %v1572, %v1573
    %v1575 = vsub.f32 1.0, %v1574
    %v1576 = vmul.f32 %v1573, %v1575
    %v1577 = vadd.f32 %v1573, %v1576
    %vm1578 = vweird.f32 %v1572
    %vm1579 = vweird.f32 %v1573
    %vm1580 = vmor %vm1578, %vm1579
    %v1581 = vsel %vm1580, %v1573, %v1577
    %v1582 = vand.u32 2147483647, %v1572
    %vm1583 = vcmp.eq.f32.partialorder %v1582, 8.507059e+37
    %v1584 = vand.u32 %v1572, 2147483648
    %v1585 = vor.u32 1.1754944e-38, %v1584
    %v1586 = vsel %vm1583, %v1585, %v1581
    %v1587 = vmul.f32 1.0, %v1586
    %v1588 = vld [vmem:[#allocation5] sm:$0xff]
    %v1589 = vmul.f32 %v1409, %v1588
    %v1590 = vmul.f32 %v1311, %v1489
    %v1591 = vadd.f32 %v1589, %v1590
    %v1592 = vtanh.pop %v1591
    %v1593 = vmul.f32 %v1587, %v1592
    %1594 = vst [vmem:[#allocation5] sm:$0xff] %v1591
    %1595 = vst [vmem:[#allocation4] sm:$0xff] %v1593
    %s1596 = scalar_lea.vmem [#allocation3], 16
    %1597 = vst [vmem:[%s1596] sm:$0xff] %v1593
    %v1598 = vld [vmem:[#allocation4] sm:$0xff]
    %v1599 = vpack.c.bf16 %v1598, %v1598
    %s1600 = smul.u32 3, 4
    %s1601 = smul.addr %s1600, 8
    %s1602 = scalar_lea.vmem [#allocation2], %s1601
    %v1603 = vld [vmem:[%s1602] sm:$0xff]
    %v1604 = vld [vmem:[#allocation6] sm:$0xf]
    %v1605 = vld [vmem:[#allocation6 + $0x10] sm:$0xf]
    %v1606 = vld [vmem:[#allocation6 + $0x20] sm:$0xf]
    %v1607 = vld [vmem:[#allocation6 + $0x30] sm:$0xf]
    %v1608 = vld [vmem:[#allocation6 + $0x40] sm:$0xf]
    %v1609 = vld [vmem:[#allocation6 + $0x50] sm:$0xf]
    %v1610 = vld [vmem:[#allocation6 + $0x60] sm:$0xf]
    %v1611 = vld [vmem:[#allocation6 + $0x70] sm:$0xf]
    %v1612 = vld [vmem:[#allocation6 + $0x80] sm:$0xf]
    %v1613 = vld [vmem:[#allocation6 + $0x90] sm:$0xf]
    %v1614 = vld [vmem:[#allocation6 + $0xa0] sm:$0xf]
    %v1615 = vld [vmem:[#allocation6 + $0xb0] sm:$0xf]
    %v1616 = vld [vmem:[#allocation6 + $0xc0] sm:$0xf]
    %v1617 = vld [vmem:[#allocation6 + $0xd0] sm:$0xf]
    %v1618 = vld [vmem:[#allocation6 + $0xe0] sm:$0xf]
    %v1619 = vld [vmem:[#allocation6 + $0xf0] sm:$0xf]
    %v1636 = vunpack.c.l.b16 %v1604
    %v1637 = vunpack.c.l.b16 %v1605
    %v1638 = vunpack.c.l.b16 %v1606
    %v1639 = vunpack.c.l.b16 %v1607
    %v1640 = vunpack.c.l.b16 %v1608
    %v1641 = vunpack.c.l.b16 %v1609
    %v1642 = vunpack.c.l.b16 %v1610
    %v1643 = vunpack.c.l.b16 %v1611
    %v1644 = vunpack.c.l.b16 %v1612
    %v1645 = vunpack.c.l.b16 %v1613
    %v1646 = vunpack.c.l.b16 %v1614
    %v1647 = vunpack.c.l.b16 %v1615
    %v1648 = vunpack.c.l.b16 %v1616
    %v1649 = vunpack.c.l.b16 %v1617
    %v1650 = vunpack.c.l.b16 %v1618
    %v1651 = vunpack.c.l.b16 %v1619
    %v1652 = vpack.c.b16 %v1637, %v1636
    %v1653 = vpack.c.b16 %v1639, %v1638
    %v1654 = vpack.c.b16 %v1641, %v1640
    %v1655 = vpack.c.b16 %v1643, %v1642
    %v1656 = vpack.c.b16 %v1645, %v1644
    %v1657 = vpack.c.b16 %v1647, %v1646
    %v1658 = vpack.c.b16 %v1649, %v1648
    %v1659 = vpack.c.b16 %v1651, %v1650
    %1668 = vmatpush.bf16.msra.mxu0 %v1659
    %1669 = vmatpush.bf16.msra.mxu0 %v1658
    %1670 = vmatpush.bf16.msra.mxu0 %v1657
    %1671 = vmatpush.bf16.msra.mxu0 %v1656
    %1672 = vmatpush.bf16.msra.mxu0 %v1655
    %1673 = vmatpush.bf16.msra.mxu0 %v1654
    %1674 = vmatpush.bf16.msra.mxu0 %v1653
    %1675 = vmatpush.bf16.msra.mxu0 %v1652
    %1676 = vmatmul.bf16.gmra.mxu0 %v1599
    %v1677 = vpop.f32.mrf.mxu0
    %v1678 = vadd.f32 0.0, %v1677
    %v1679 = vpop.f32.mrf.mxu0
    %1680 = vdwg.mxu0
    %v1681 = vadd.f32 %v1603, %v1678
    %v1682 = vxor.u32 %v1681, 2147483648
    %v1683 = vmul.f32 %v1682, 1.442695
    %v1684 = vpow.pop %v1683
    %v1685 = vadd.f32 %v1684, 1.0
    %v1686 = vrcp.pop %v1685
    %v1687 = vmul.f32 %v1685, %v1686
    %v1688 = vsub.f32 1.0, %v1687
    %v1689 = vmul.f32 %v1686, %v1688
    %v1690 = vadd.f32 %v1686, %v1689
    %vm1691 = vweird.f32 %v1685
    %vm1692 = vweird.f32 %v1686
    %vm1693 = vmor %vm1691, %vm1692
    %v1694 = vsel %vm1693, %v1686, %v1690
    %v1695 = vand.u32 2147483647, %v1685
    %vm1696 = vcmp.eq.f32.partialorder %v1695, 8.507059e+37
    %v1697 = vand.u32 %v1685, 2147483648
    %v1698 = vor.u32 1.1754944e-38, %v1697
    %v1699 = vsel %vm1696, %v1698, %v1694
    %v1700 = vmul.f32 1.0, %v1699
    %v1701 = vld [vmem:[%s1602 + $0x8] sm:$0xff]
    %v1702 = vld [vmem:[#allocation6 + $0x4] sm:$0xf]
    %v1703 = vld [vmem:[#allocation6 + $0x14] sm:$0xf]
    %v1704 = vld [vmem:[#allocation6 + $0x24] sm:$0xf]
    %v1705 = vld [vmem:[#allocation6 + $0x34] sm:$0xf]
    %v1706 = vld [vmem:[#allocation6 + $0x44] sm:$0xf]
    %v1707 = vld [vmem:[#allocation6 + $0x54] sm:$0xf]
    %v1708 = vld [vmem:[#allocation6 + $0x64] sm:$0xf]
    %v1709 = vld [vmem:[#allocation6 + $0x74] sm:$0xf]
    %v1710 = vld [vmem:[#allocation6 + $0x84] sm:$0xf]
    %v1711 = vld [vmem:[#allocation6 + $0x94] sm:$0xf]
    %v1712 = vld [vmem:[#allocation6 + $0xa4] sm:$0xf]
    %v1713 = vld [vmem:[#allocation6 + $0xb4] sm:$0xf]
    %v1714 = vld [vmem:[#allocation6 + $0xc4] sm:$0xf]
    %v1715 = vld [vmem:[#allocation6 + $0xd4] sm:$0xf]
    %v1716 = vld [vmem:[#allocation6 + $0xe4] sm:$0xf]
    %v1717 = vld [vmem:[#allocation6 + $0xf4] sm:$0xf]
    %v1734 = vunpack.c.l.b16 %v1702
    %v1735 = vunpack.c.l.b16 %v1703
    %v1736 = vunpack.c.l.b16 %v1704
    %v1737 = vunpack.c.l.b16 %v1705
    %v1738 = vunpack.c.l.b16 %v1706
    %v1739 = vunpack.c.l.b16 %v1707
    %v1740 = vunpack.c.l.b16 %v1708
    %v1741 = vunpack.c.l.b16 %v1709
    %v1742 = vunpack.c.l.b16 %v1710
    %v1743 = vunpack.c.l.b16 %v1711
    %v1744 = vunpack.c.l.b16 %v1712
    %v1745 = vunpack.c.l.b16 %v1713
    %v1746 = vunpack.c.l.b16 %v1714
    %v1747 = vunpack.c.l.b16 %v1715
    %v1748 = vunpack.c.l.b16 %v1716
    %v1749 = vunpack.c.l.b16 %v1717
    %v1750 = vpack.c.b16 %v1735, %v1734
    %v1751 = vpack.c.b16 %v1737, %v1736
    %v1752 = vpack.c.b16 %v1739, %v1738
    %v1753 = vpack.c.b16 %v1741, %v1740
    %v1754 = vpack.c.b16 %v1743, %v1742
    %v1755 = vpack.c.b16 %v1745, %v1744
    %v1756 = vpack.c.b16 %v1747, %v1746
    %v1757 = vpack.c.b16 %v1749, %v1748
    %1766 = vmatpush.bf16.msra.mxu0 %v1757
    %1767 = vmatpush.bf16.msra.mxu0 %v1756
    %1768 = vmatpush.bf16.msra.mxu0 %v1755
    %1769 = vmatpush.bf16.msra.mxu0 %v1754
    %1770 = vmatpush.bf16.msra.mxu0 %v1753
    %1771 = vmatpush.bf16.msra.mxu0 %v1752
    %1772 = vmatpush.bf16.msra.mxu0 %v1751
    %1773 = vmatpush.bf16.msra.mxu0 %v1750
    %1774 = vmatmul.bf16.gmra.mxu0 %v1599
    %v1775 = vpop.f32.mrf.mxu0
    %v1776 = vadd.f32 0.0, %v1775
    %v1777 = vpop.f32.mrf.mxu0
    %1778 = vdwg.mxu0
    %v1779 = vadd.f32 %v1701, %v1776
    %v1780 = vxor.u32 %v1779, 2147483648
    %v1781 = vmul.f32 %v1780, 1.442695
    %v1782 = vpow.pop %v1781
    %v1783 = vadd.f32 %v1782, 1.0
    %v1784 = vrcp.pop %v1783
    %v1785 = vmul.f32 %v1783, %v1784
    %v1786 = vsub.f32 1.0, %v1785
    %v1787 = vmul.f32 %v1784, %v1786
    %v1788 = vadd.f32 %v1784, %v1787
    %vm1789 = vweird.f32 %v1783
    %vm1790 = vweird.f32 %v1784
    %vm1791 = vmor %vm1789, %vm1790
    %v1792 = vsel %vm1791, %v1784, %v1788
    %v1793 = vand.u32 2147483647, %v1783
    %vm1794 = vcmp.eq.f32.partialorder %v1793, 8.507059e+37
    %v1795 = vand.u32 %v1783, 2147483648
    %v1796 = vor.u32 1.1754944e-38, %v1795
    %v1797 = vsel %vm1794, %v1796, %v1792
    %v1798 = vmul.f32 1.0, %v1797
    %v1799 = vld [vmem:[%s1602 + $0x10] sm:$0xff]
    %v1800 = vld [vmem:[#allocation6 + $0x8] sm:$0xf]
    %v1801 = vld [vmem:[#allocation6 + $0x18] sm:$0xf]
    %v1802 = vld [vmem:[#allocation6 + $0x28] sm:$0xf]
    %v1803 = vld [vmem:[#allocation6 + $0x38] sm:$0xf]
    %v1804 = vld [vmem:[#allocation6 + $0x48] sm:$0xf]
    %v1805 = vld [vmem:[#allocation6 + $0x58] sm:$0xf]
    %v1806 = vld [vmem:[#allocation6 + $0x68] sm:$0xf]
    %v1807 = vld [vmem:[#allocation6 + $0x78] sm:$0xf]
    %v1808 = vld [vmem:[#allocation6 + $0x88] sm:$0xf]
    %v1809 = vld [vmem:[#allocation6 + $0x98] sm:$0xf]
    %v1810 = vld [vmem:[#allocation6 + $0xa8] sm:$0xf]
    %v1811 = vld [vmem:[#allocation6 + $0xb8] sm:$0xf]
    %v1812 = vld [vmem:[#allocation6 + $0xc8] sm:$0xf]
    %v1813 = vld [vmem:[#allocation6 + $0xd8] sm:$0xf]
    %v1814 = vld [vmem:[#allocation6 + $0xe8] sm:$0xf]
    %v1815 = vld [vmem:[#allocation6 + $0xf8] sm:$0xf]
    %v1832 = vunpack.c.l.b16 %v1800
    %v1833 = vunpack.c.l.b16 %v1801
    %v1834 = vunpack.c.l.b16 %v1802
    %v1835 = vunpack.c.l.b16 %v1803
    %v1836 = vunpack.c.l.b16 %v1804
    %v1837 = vunpack.c.l.b16 %v1805
    %v1838 = vunpack.c.l.b16 %v1806
    %v1839 = vunpack.c.l.b16 %v1807
    %v1840 = vunpack.c.l.b16 %v1808
    %v1841 = vunpack.c.l.b16 %v1809
    %v1842 = vunpack.c.l.b16 %v1810
    %v1843 = vunpack.c.l.b16 %v1811
    %v1844 = vunpack.c.l.b16 %v1812
    %v1845 = vunpack.c.l.b16 %v1813
    %v1846 = vunpack.c.l.b16 %v1814
    %v1847 = vunpack.c.l.b16 %v1815
    %v1848 = vpack.c.b16 %v1833, %v1832
    %v1849 = vpack.c.b16 %v1835, %v1834
    %v1850 = vpack.c.b16 %v1837, %v1836
    %v1851 = vpack.c.b16 %v1839, %v1838
    %v1852 = vpack.c.b16 %v1841, %v1840
    %v1853 = vpack.c.b16 %v1843, %v1842
    %v1854 = vpack.c.b16 %v1845, %v1844
    %v1855 = vpack.c.b16 %v1847, %v1846
    %1864 = vmatpush.bf16.msra.mxu0 %v1855
    %1865 = vmatpush.bf16.msra.mxu0 %v1854
    %1866 = vmatpush.bf16.msra.mxu0 %v1853
    %1867 = vmatpush.bf16.msra.mxu0 %v1852
    %1868 = vmatpush.bf16.msra.mxu0 %v1851
    %1869 = vmatpush.bf16.msra.mxu0 %v1850
    %1870 = vmatpush.bf16.msra.mxu0 %v1849
    %1871 = vmatpush.bf16.msra.mxu0 %v1848
    %1872 = vmatmul.bf16.gmra.mxu0 %v1599
    %v1873 = vpop.f32.mrf.mxu0
    %v1874 = vadd.f32 0.0, %v1873
    %v1875 = vpop.f32.mrf.mxu0
    %1876 = vdwg.mxu0
    %v1877 = vadd.f32 %v1799, %v1874
    %v1878 = vtanh.pop %v1877
    %v1879 = vld [vmem:[%s1602 + $0x18] sm:$0xff]
    %v1880 = vld [vmem:[#allocation6 + $0xc] sm:$0xf]
    %v1881 = vld [vmem:[#allocation6 + $0x1c] sm:$0xf]
    %v1882 = vld [vmem:[#allocation6 + $0x2c] sm:$0xf]
    %v1883 = vld [vmem:[#allocation6 + $0x3c] sm:$0xf]
    %v1884 = vld [vmem:[#allocation6 + $0x4c] sm:$0xf]
    %v1885 = vld [vmem:[#allocation6 + $0x5c] sm:$0xf]
    %v1886 = vld [vmem:[#allocation6 + $0x6c] sm:$0xf]
    %v1887 = vld [vmem:[#allocation6 + $0x7c] sm:$0xf]
    %v1888 = vld [vmem:[#allocation6 + $0x8c] sm:$0xf]
    %v1889 = vld [vmem:[#allocation6 + $0x9c] sm:$0xf]
    %v1890 = vld [vmem:[#allocation6 + $0xac] sm:$0xf]
    %v1891 = vld [vmem:[#allocation6 + $0xbc] sm:$0xf]
    %v1892 = vld [vmem:[#allocation6 + $0xcc] sm:$0xf]
    %v1893 = vld [vmem:[#allocation6 + $0xdc] sm:$0xf]
    %v1894 = vld [vmem:[#allocation6 + $0xec] sm:$0xf]
    %v1895 = vld [vmem:[#allocation6 + $0xfc] sm:$0xf]
    %v1912 = vunpack.c.l.b16 %v1880
    %v1913 = vunpack.c.l.b16 %v1881
    %v1914 = vunpack.c.l.b16 %v1882
    %v1915 = vunpack.c.l.b16 %v1883
    %v1916 = vunpack.c.l.b16 %v1884
    %v1917 = vunpack.c.l.b16 %v1885
    %v1918 = vunpack.c.l.b16 %v1886
    %v1919 = vunpack.c.l.b16 %v1887
    %v1920 = vunpack.c.l.b16 %v1888
    %v1921 = vunpack.c.l.b16 %v1889
    %v1922 = vunpack.c.l.b16 %v1890
    %v1923 = vunpack.c.l.b16 %v1891
    %v1924 = vunpack.c.l.b16 %v1892
    %v1925 = vunpack.c.l.b16 %v1893
    %v1926 = vunpack.c.l.b16 %v1894
    %v1927 = vunpack.c.l.b16 %v1895
    %v1928 = vpack.c.b16 %v1913, %v1912
    %v1929 = vpack.c.b16 %v1915, %v1914
    %v1930 = vpack.c.b16 %v1917, %v1916
    %v1931 = vpack.c.b16 %v1919, %v1918
    %v1932 = vpack.c.b16 %v1921, %v1920
    %v1933 = vpack.c.b16 %v1923, %v1922
    %v1934 = vpack.c.b16 %v1925, %v1924
    %v1935 = vpack.c.b16 %v1927, %v1926
    %1944 = vmatpush.bf16.msra.mxu0 %v1935
    %1945 = vmatpush.bf16.msra.mxu0 %v1934
    %1946 = vmatpush.bf16.msra.mxu0 %v1933
    %1947 = vmatpush.bf16.msra.mxu0 %v1932
    %1948 = vmatpush.bf16.msra.mxu0 %v1931
    %1949 = vmatpush.bf16.msra.mxu0 %v1930
    %1950 = vmatpush.bf16.msra.mxu0 %v1929
    %1951 = vmatpush.bf16.msra.mxu0 %v1928
    %1952 = vmatmul.bf16.gmra.mxu0 %v1599
    %v1953 = vpop.f32.mrf.mxu0
    %v1954 = vadd.f32 0.0, %v1953
    %v1955 = vpop.f32.mrf.mxu0
    %1956 = vdwg.mxu0
    %v1957 = vadd.f32 %v1879, %v1954
    %v1958 = vxor.u32 %v1957, 2147483648
    %v1959 = vmul.f32 %v1958, 1.442695
    %v1960 = vpow.pop %v1959
    %v1961 = vadd.f32 %v1960, 1.0
    %v1962 = vrcp.pop %v1961
    %v1963 = vmul.f32 %v1961, %v1962
    %v1964 = vsub.f32 1.0, %v1963
    %v1965 = vmul.f32 %v1962, %v1964
    %v1966 = vadd.f32 %v1962, %v1965
    %vm1967 = vweird.f32 %v1961
    %vm1968 = vweird.f32 %v1962
    %vm1969 = vmor %vm1967, %vm1968
    %v1970 = vsel %vm1969, %v1962, %v1966
    %v1971 = vand.u32 2147483647, %v1961
    %vm1972 = vcmp.eq.f32.partialorder %v1971, 8.507059e+37
    %v1973 = vand.u32 %v1961, 2147483648
    %v1974 = vor.u32 1.1754944e-38, %v1973
    %v1975 = vsel %vm1972, %v1974, %v1970
    %v1976 = vmul.f32 1.0, %v1975
    %v1977 = vld [vmem:[#allocation5] sm:$0xff]
    %v1978 = vmul.f32 %v1798, %v1977
    %v1979 = vmul.f32 %v1700, %v1878
    %v1980 = vadd.f32 %v1978, %v1979
    %v1981 = vtanh.pop %v1980
    %v1982 = vmul.f32 %v1976, %v1981
    %1983 = vst [vmem:[#allocation5] sm:$0xff] %v1980
    %1984 = vst [vmem:[#allocation4] sm:$0xff] %v1982
    %s1985 = scalar_lea.vmem [#allocation3], 24
    %1986 = vst [vmem:[%s1985] sm:$0xff] %v1982
    %v1987 = vld [vmem:[#allocation4] sm:$0xff]
    %v1988 = vpack.c.bf16 %v1987, %v1987
    %s1989 = smul.u32 4, 4
    %s1990 = smul.addr %s1989, 8
    %s1991 = scalar_lea.vmem [#allocation2], %s1990
    %v1992 = vld [vmem:[%s1991] sm:$0xff]
    %v1993 = vld [vmem:[#allocation6] sm:$0xf]
    %v1994 = vld [vmem:[#allocation6 + $0x10] sm:$0xf]
    %v1995 = vld [vmem:[#allocation6 + $0x20] sm:$0xf]
    %v1996 = vld [vmem:[#allocation6 + $0x30] sm:$0xf]
    %v1997 = vld [vmem:[#allocation6 + $0x40] sm:$0xf]
    %v1998 = vld [vmem:[#allocation6 + $0x50] sm:$0xf]
    %v1999 = vld [vmem:[#allocation6 + $0x60] sm:$0xf]
    %v2000 = vld [vmem:[#allocation6 + $0x70] sm:$0xf]
    %v2001 = vld [vmem:[#allocation6 + $0x80] sm:$0xf]
    %v2002 = vld [vmem:[#allocation6 + $0x90] sm:$0xf]
    %v2003 = vld [vmem:[#allocation6 + $0xa0] sm:$0xf]
    %v2004 = vld [vmem:[#allocation6 + $0xb0] sm:$0xf]
    %v2005 = vld [vmem:[#allocation6 + $0xc0] sm:$0xf]
    %v2006 = vld [vmem:[#allocation6 + $0xd0] sm:$0xf]
    %v2007 = vld [vmem:[#allocation6 + $0xe0] sm:$0xf]
    %v2008 = vld [vmem:[#allocation6 + $0xf0] sm:$0xf]
    %v2025 = vunpack.c.l.b16 %v1993
    %v2026 = vunpack.c.l.b16 %v1994
    %v2027 = vunpack.c.l.b16 %v1995
    %v2028 = vunpack.c.l.b16 %v1996
    %v2029 = vunpack.c.l.b16 %v1997
    %v2030 = vunpack.c.l.b16 %v1998
    %v2031 = vunpack.c.l.b16 %v1999
    %v2032 = vunpack.c.l.b16 %v2000
    %v2033 = vunpack.c.l.b16 %v2001
    %v2034 = vunpack.c.l.b16 %v2002
    %v2035 = vunpack.c.l.b16 %v2003
    %v2036 = vunpack.c.l.b16 %v2004
    %v2037 = vunpack.c.l.b16 %v2005
    %v2038 = vunpack.c.l.b16 %v2006
    %v2039 = vunpack.c.l.b16 %v2007
    %v2040 = vunpack.c.l.b16 %v2008
    %v2041 = vpack.c.b16 %v2026, %v2025
    %v2042 = vpack.c.b16 %v2028, %v2027
    %v2043 = vpack.c.b16 %v2030, %v2029
    %v2044 = vpack.c.b16 %v2032, %v2031
    %v2045 = vpack.c.b16 %v2034, %v2033
    %v2046 = vpack.c.b16 %v2036, %v2035
    %v2047 = vpack.c.b16 %v2038, %v2037
    %v2048 = vpack.c.b16 %v2040, %v2039
    %2057 = vmatpush.bf16.msra.mxu0 %v2048
    %2058 = vmatpush.bf16.msra.mxu0 %v2047
    %2059 = vmatpush.bf16.msra.mxu0 %v2046
    %2060 = vmatpush.bf16.msra.mxu0 %v2045
    %2061 = vmatpush.bf16.msra.mxu0 %v2044
    %2062 = vmatpush.bf16.msra.mxu0 %v2043
    %2063 = vmatpush.bf16.msra.mxu0 %v2042
    %2064 = vmatpush.bf16.msra.mxu0 %v2041
    %2065 = vmatmul.bf16.gmra.mxu0 %v1988
    %v2066 = vpop.f32.mrf.mxu0
    %v2067 = vadd.f32 0.0, %v2066
    %v2068 = vpop.f32.mrf.mxu0
    %2069 = vdwg.mxu0
    %v2070 = vadd.f32 %v1992, %v2067
    %v2071 = vxor.u32 %v2070, 2147483648
    %v2072 = vmul.f32 %v2071, 1.442695
    %v2073 = vpow.pop %v2072
    %v2074 = vadd.f32 %v2073, 1.0
    %v2075 = vrcp.pop %v2074
    %v2076 = vmul.f32 %v2074, %v2075
    %v2077 = vsub.f32 1.0, %v2076
    %v2078 = vmul.f32 %v2075, %v2077
    %v2079 = vadd.f32 %v2075, %v2078
    %vm2080 = vweird.f32 %v2074
    %vm2081 = vweird.f32 %v2075
    %vm2082 = vmor %vm2080, %vm2081
    %v2083 = vsel %vm2082, %v2075, %v2079
    %v2084 = vand.u32 2147483647, %v2074
    %vm2085 = vcmp.eq.f32.partialorder %v2084, 8.507059e+37
    %v2086 = vand.u32 %v2074, 2147483648
    %v2087 = vor.u32 1.1754944e-38, %v2086
    %v2088 = vsel %vm2085, %v2087, %v2083
    %v2089 = vmul.f32 1.0, %v2088
    %v2090 = vld [vmem:[%s1991 + $0x8] sm:$0xff]
    %v2091 = vld [vmem:[#allocation6 + $0x4] sm:$0xf]
    %v2092 = vld [vmem:[#allocation6 + $0x14] sm:$0xf]
    %v2093 = vld [vmem:[#allocation6 + $0x24] sm:$0xf]
    %v2094 = vld [vmem:[#allocation6 + $0x34] sm:$0xf]
    %v2095 = vld [vmem:[#allocation6 + $0x44] sm:$0xf]
    %v2096 = vld [vmem:[#allocation6 + $0x54] sm:$0xf]
    %v2097 = vld [vmem:[#allocation6 + $0x64] sm:$0xf]
    %v2098 = vld [vmem:[#allocation6 + $0x74] sm:$0xf]
    %v2099 = vld [vmem:[#allocation6 + $0x84] sm:$0xf]
    %v2100 = vld [vmem:[#allocation6 + $0x94] sm:$0xf]
    %v2101 = vld [vmem:[#allocation6 + $0xa4] sm:$0xf]
    %v2102 = vld [vmem:[#allocation6 + $0xb4] sm:$0xf]
    %v2103 = vld [vmem:[#allocation6 + $0xc4] sm:$0xf]
    %v2104 = vld [vmem:[#allocation6 + $0xd4] sm:$0xf]
    %v2105 = vld [vmem:[#allocation6 + $0xe4] sm:$0xf]
    %v2106 = vld [vmem:[#allocation6 + $0xf4] sm:$0xf]
    %v2123 = vunpack.c.l.b16 %v2091
    %v2124 = vunpack.c.l.b16 %v2092
    %v2125 = vunpack.c.l.b16 %v2093
    %v2126 = vunpack.c.l.b16 %v2094
    %v2127 = vunpack.c.l.b16 %v2095
    %v2128 = vunpack.c.l.b16 %v2096
    %v2129 = vunpack.c.l.b16 %v2097
    %v2130 = vunpack.c.l.b16 %v2098
    %v2131 = vunpack.c.l.b16 %v2099
    %v2132 = vunpack.c.l.b16 %v2100
    %v2133 = vunpack.c.l.b16 %v2101
    %v2134 = vunpack.c.l.b16 %v2102
    %v2135 = vunpack.c.l.b16 %v2103
    %v2136 = vunpack.c.l.b16 %v2104
    %v2137 = vunpack.c.l.b16 %v2105
    %v2138 = vunpack.c.l.b16 %v2106
    %v2139 = vpack.c.b16 %v2124, %v2123
    %v2140 = vpack.c.b16 %v2126, %v2125
    %v2141 = vpack.c.b16 %v2128, %v2127
    %v2142 = vpack.c.b16 %v2130, %v2129
    %v2143 = vpack.c.b16 %v2132, %v2131
    %v2144 = vpack.c.b16 %v2134, %v2133
    %v2145 = vpack.c.b16 %v2136, %v2135
    %v2146 = vpack.c.b16 %v2138, %v2137
    %2155 = vmatpush.bf16.msra.mxu0 %v2146
    %2156 = vmatpush.bf16.msra.mxu0 %v2145
    %2157 = vmatpush.bf16.msra.mxu0 %v2144
    %2158 = vmatpush.bf16.msra.mxu0 %v2143
    %2159 = vmatpush.bf16.msra.mxu0 %v2142
    %2160 = vmatpush.bf16.msra.mxu0 %v2141
    %2161 = vmatpush.bf16.msra.mxu0 %v2140
    %2162 = vmatpush.bf16.msra.mxu0 %v2139
    %2163 = vmatmul.bf16.gmra.mxu0 %v1988
    %v2164 = vpop.f32.mrf.mxu0
    %v2165 = vadd.f32 0.0, %v2164
    %v2166 = vpop.f32.mrf.mxu0
    %2167 = vdwg.mxu0
    %v2168 = vadd.f32 %v2090, %v2165
    %v2169 = vxor.u32 %v2168, 2147483648
    %v2170 = vmul.f32 %v2169, 1.442695
    %v2171 = vpow.pop %v2170
    %v2172 = vadd.f32 %v2171, 1.0
    %v2173 = vrcp.pop %v2172
    %v2174 = vmul.f32 %v2172, %v2173
    %v2175 = vsub.f32 1.0, %v2174
    %v2176 = vmul.f32 %v2173, %v2175
    %v2177 = vadd.f32 %v2173, %v2176
    %vm2178 = vweird.f32 %v2172
    %vm2179 = vweird.f32 %v2173
    %vm2180 = vmor %vm2178, %vm2179
    %v2181 = vsel %vm2180, %v2173, %v2177
    %v2182 = vand.u32 2147483647, %v2172
    %vm2183 = vcmp.eq.f32.partialorder %v2182, 8.507059e+37
    %v2184 = vand.u32 %v2172, 2147483648
    %v2185 = vor.u32 1.1754944e-38, %v2184
    %v2186 = vsel %vm2183, %v2185, %v2181
    %v2187 = vmul.f32 1.0, %v2186
    %v2188 = vld [vmem:[%s1991 + $0x10] sm:$0xff]
    %v2189 = vld [vmem:[#allocation6 + $0x8] sm:$0xf]
    %v2190 = vld [vmem:[#allocation6 + $0x18] sm:$0xf]
    %v2191 = vld [vmem:[#allocation6 + $0x28] sm:$0xf]
    %v2192 = vld [vmem:[#allocation6 + $0x38] sm:$0xf]
    %v2193 = vld [vmem:[#allocation6 + $0x48] sm:$0xf]
    %v2194 = vld [vmem:[#allocation6 + $0x58] sm:$0xf]
    %v2195 = vld [vmem:[#allocation6 + $0x68] sm:$0xf]
    %v2196 = vld [vmem:[#allocation6 + $0x78] sm:$0xf]
    %v2197 = vld [vmem:[#allocation6 + $0x88] sm:$0xf]
    %v2198 = vld [vmem:[#allocation6 + $0x98] sm:$0xf]
    %v2199 = vld [vmem:[#allocation6 + $0xa8] sm:$0xf]
    %v2200 = vld [vmem:[#allocation6 + $0xb8] sm:$0xf]
    %v2201 = vld [vmem:[#allocation6 + $0xc8] sm:$0xf]
    %v2202 = vld [vmem:[#allocation6 + $0xd8] sm:$0xf]
    %v2203 = vld [vmem:[#allocation6 + $0xe8] sm:$0xf]
    %v2204 = vld [vmem:[#allocation6 + $0xf8] sm:$0xf]
    %v2221 = vunpack.c.l.b16 %v2189
    %v2222 = vunpack.c.l.b16 %v2190
    %v2223 = vunpack.c.l.b16 %v2191
    %v2224 = vunpack.c.l.b16 %v2192
    %v2225 = vunpack.c.l.b16 %v2193
    %v2226 = vunpack.c.l.b16 %v2194
    %v2227 = vunpack.c.l.b16 %v2195
    %v2228 = vunpack.c.l.b16 %v2196
    %v2229 = vunpack.c.l.b16 %v2197
    %v2230 = vunpack.c.l.b16 %v2198
    %v2231 = vunpack.c.l.b16 %v2199
    %v2232 = vunpack.c.l.b16 %v2200
    %v2233 = vunpack.c.l.b16 %v2201
    %v2234 = vunpack.c.l.b16 %v2202
    %v2235 = vunpack.c.l.b16 %v2203
    %v2236 = vunpack.c.l.b16 %v2204
    %v2237 = vpack.c.b16 %v2222, %v2221
    %v2238 = vpack.c.b16 %v2224, %v2223
    %v2239 = vpack.c.b16 %v2226, %v2225
    %v2240 = vpack.c.b16 %v2228, %v2227
    %v2241 = vpack.c.b16 %v2230, %v2229
    %v2242 = vpack.c.b16 %v2232, %v2231
    %v2243 = vpack.c.b16 %v2234, %v2233
    %v2244 = vpack.c.b16 %v2236, %v2235
    %2253 = vmatpush.bf16.msra.mxu0 %v2244
    %2254 = vmatpush.bf16.msra.mxu0 %v2243
    %2255 = vmatpush.bf16.msra.mxu0 %v2242
    %2256 = vmatpush.bf16.msra.mxu0 %v2241
    %2257 = vmatpush.bf16.msra.mxu0 %v2240
    %2258 = vmatpush.bf16.msra.mxu0 %v2239
    %2259 = vmatpush.bf16.msra.mxu0 %v2238
    %2260 = vmatpush.bf16.msra.mxu0 %v2237
    %2261 = vmatmul.bf16.gmra.mxu0 %v1988
    %v2262 = vpop.f32.mrf.mxu0
    %v2263 = vadd.f32 0.0, %v2262
    %v2264 = vpop.f32.mrf.mxu0
    %2265 = vdwg.mxu0
    %v2266 = vadd.f32 %v2188, %v2263
    %v2267 = vtanh.pop %v2266
    %v2268 = vld [vmem:[%s1991 + $0x18] sm:$0xff]
    %v2269 = vld [vmem:[#allocation6 + $0xc] sm:$0xf]
    %v2270 = vld [vmem:[#allocation6 + $0x1c] sm:$0xf]
    %v2271 = vld [vmem:[#allocation6 + $0x2c] sm:$0xf]
    %v2272 = vld [vmem:[#allocation6 + $0x3c] sm:$0xf]
    %v2273 = vld [vmem:[#allocation6 + $0x4c] sm:$0xf]
    %v2274 = vld [vmem:[#allocation6 + $0x5c] sm:$0xf]
    %v2275 = vld [vmem:[#allocation6 + $0x6c] sm:$0xf]
    %v2276 = vld [vmem:[#allocation6 + $0x7c] sm:$0xf]
    %v2277 = vld [vmem:[#allocation6 + $0x8c] sm:$0xf]
    %v2278 = vld [vmem:[#allocation6 + $0x9c] sm:$0xf]
    %v2279 = vld [vmem:[#allocation6 + $0xac] sm:$0xf]
    %v2280 = vld [vmem:[#allocation6 + $0xbc] sm:$0xf]
    %v2281 = vld [vmem:[#allocation6 + $0xcc] sm:$0xf]
    %v2282 = vld [vmem:[#allocation6 + $0xdc] sm:$0xf]
    %v2283 = vld [vmem:[#allocation6 + $0xec] sm:$0xf]
    %v2284 = vld [vmem:[#allocation6 + $0xfc] sm:$0xf]
    %v2301 = vunpack.c.l.b16 %v2269
    %v2302 = vunpack.c.l.b16 %v2270
    %v2303 = vunpack.c.l.b16 %v2271
    %v2304 = vunpack.c.l.b16 %v2272
    %v2305 = vunpack.c.l.b16 %v2273
    %v2306 = vunpack.c.l.b16 %v2274
    %v2307 = vunpack.c.l.b16 %v2275
    %v2308 = vunpack.c.l.b16 %v2276
    %v2309 = vunpack.c.l.b16 %v2277
    %v2310 = vunpack.c.l.b16 %v2278
    %v2311 = vunpack.c.l.b16 %v2279
    %v2312 = vunpack.c.l.b16 %v2280
    %v2313 = vunpack.c.l.b16 %v2281
    %v2314 = vunpack.c.l.b16 %v2282
    %v2315 = vunpack.c.l.b16 %v2283
    %v2316 = vunpack.c.l.b16 %v2284
    %v2317 = vpack.c.b16 %v2302, %v2301
    %v2318 = vpack.c.b16 %v2304, %v2303
    %v2319 = vpack.c.b16 %v2306, %v2305
    %v2320 = vpack.c.b16 %v2308, %v2307
    %v2321 = vpack.c.b16 %v2310, %v2309
    %v2322 = vpack.c.b16 %v2312, %v2311
    %v2323 = vpack.c.b16 %v2314, %v2313
    %v2324 = vpack.c.b16 %v2316, %v2315
    %2333 = vmatpush.bf16.msra.mxu0 %v2324
    %2334 = vmatpush.bf16.msra.mxu0 %v2323
    %2335 = vmatpush.bf16.msra.mxu0 %v2322
    %2336 = vmatpush.bf16.msra.mxu0 %v2321
    %2337 = vmatpush.bf16.msra.mxu0 %v2320
    %2338 = vmatpush.bf16.msra.mxu0 %v2319
    %2339 = vmatpush.bf16.msra.mxu0 %v2318
    %2340 = vmatpush.bf16.msra.mxu0 %v2317
    %2341 = vmatmul.bf16.gmra.mxu0 %v1988
    %v2342 = vpop.f32.mrf.mxu0
    %v2343 = vadd.f32 0.0, %v2342
    %v2344 = vpop.f32.mrf.mxu0
    %2345 = vdwg.mxu0
    %v2346 = vadd.f32 %v2268, %v2343
    %v2347 = vxor.u32 %v2346, 2147483648
    %v2348 = vmul.f32 %v2347, 1.442695
    %v2349 = vpow.pop %v2348
    %v2350 = vadd.f32 %v2349, 1.0
    %v2351 = vrcp.pop %v2350
    %v2352 = vmul.f32 %v2350, %v2351
    %v2353 = vsub.f32 1.0, %v2352
    %v2354 = vmul.f32 %v2351, %v2353
    %v2355 = vadd.f32 %v2351, %v2354
    %vm2356 = vweird.f32 %v2350
    %vm2357 = vweird.f32 %v2351
    %vm2358 = vmor %vm2356, %vm2357
    %v2359 = vsel %vm2358, %v2351, %v2355
    %v2360 = vand.u32 2147483647, %v2350
    %vm2361 = vcmp.eq.f32.partialorder %v2360, 8.507059e+37
    %v2362 = vand.u32 %v2350, 2147483648
    %v2363 = vor.u32 1.1754944e-38, %v2362
    %v2364 = vsel %vm2361, %v2363, %v2359
    %v2365 = vmul.f32 1.0, %v2364
    %v2366 = vld [vmem:[#allocation5] sm:$0xff]
    %v2367 = vmul.f32 %v2187, %v2366
    %v2368 = vmul.f32 %v2089, %v2267
    %v2369 = vadd.f32 %v2367, %v2368
    %v2370 = vtanh.pop %v2369
    %v2371 = vmul.f32 %v2365, %v2370
    %2372 = vst [vmem:[#allocation5] sm:$0xff] %v2369
    %2373 = vst [vmem:[#allocation4] sm:$0xff] %v2371
    %s2374 = scalar_lea.vmem [#allocation3], 32
    %2375 = vst [vmem:[%s2374] sm:$0xff] %v2371
    %v2376 = vld [vmem:[#allocation4] sm:$0xff]
    %v2377 = vpack.c.bf16 %v2376, %v2376
    %s2378 = smul.u32 5, 4
    %s2379 = smul.addr %s2378, 8
    %s2380 = scalar_lea.vmem [#allocation2], %s2379
    %v2381 = vld [vmem:[%s2380] sm:$0xff]
    %v2382 = vld [vmem:[#allocation6] sm:$0xf]
    %v2383 = vld [vmem:[#allocation6 + $0x10] sm:$0xf]
    %v2384 = vld [vmem:[#allocation6 + $0x20] sm:$0xf]
    %v2385 = vld [vmem:[#allocation6 + $0x30] sm:$0xf]
    %v2386 = vld [vmem:[#allocation6 + $0x40] sm:$0xf]
    %v2387 = vld [vmem:[#allocation6 + $0x50] sm:$0xf]
    %v2388 = vld [vmem:[#allocation6 + $0x60] sm:$0xf]
    %v2389 = vld [vmem:[#allocation6 + $0x70] sm:$0xf]
    %v2390 = vld [vmem:[#allocation6 + $0x80] sm:$0xf]
    %v2391 = vld [vmem:[#allocation6 + $0x90] sm:$0xf]
    %v2392 = vld [vmem:[#allocation6 + $0xa0] sm:$0xf]
    %v2393 = vld [vmem:[#allocation6 + $0xb0] sm:$0xf]
    %v2394 = vld [vmem:[#allocation6 + $0xc0] sm:$0xf]
    %v2395 = vld [vmem:[#allocation6 + $0xd0] sm:$0xf]
    %v2396 = vld [vmem:[#allocation6 + $0xe0] sm:$0xf]
    %v2397 = vld [vmem:[#allocation6 + $0xf0] sm:$0xf]
    %v2414 = vunpack.c.l.b16 %v2382
    %v2415 = vunpack.c.l.b16 %v2383
    %v2416 = vunpack.c.l.b16 %v2384
    %v2417 = vunpack.c.l.b16 %v2385
    %v2418 = vunpack.c.l.b16 %v2386
    %v2419 = vunpack.c.l.b16 %v2387
    %v2420 = vunpack.c.l.b16 %v2388
    %v2421 = vunpack.c.l.b16 %v2389
    %v2422 = vunpack.c.l.b16 %v2390
    %v2423 = vunpack.c.l.b16 %v2391
    %v2424 = vunpack.c.l.b16 %v2392
    %v2425 = vunpack.c.l.b16 %v2393
    %v2426 = vunpack.c.l.b16 %v2394
    %v2427 = vunpack.c.l.b16 %v2395
    %v2428 = vunpack.c.l.b16 %v2396
    %v2429 = vunpack.c.l.b16 %v2397
    %v2430 = vpack.c.b16 %v2415, %v2414
    %v2431 = vpack.c.b16 %v2417, %v2416
    %v2432 = vpack.c.b16 %v2419, %v2418
    %v2433 = vpack.c.b16 %v2421, %v2420
    %v2434 = vpack.c.b16 %v2423, %v2422
    %v2435 = vpack.c.b16 %v2425, %v2424
    %v2436 = vpack.c.b16 %v2427, %v2426
    %v2437 = vpack.c.b16 %v2429, %v2428
    %2446 = vmatpush.bf16.msra.mxu0 %v2437
    %2447 = vmatpush.bf16.msra.mxu0 %v2436
    %2448 = vmatpush.bf16.msra.mxu0 %v2435
    %2449 = vmatpush.bf16.msra.mxu0 %v2434
    %2450 = vmatpush.bf16.msra.mxu0 %v2433
    %2451 = vmatpush.bf16.msra.mxu0 %v2432
    %2452 = vmatpush.bf16.msra.mxu0 %v2431
    %2453 = vmatpush.bf16.msra.mxu0 %v2430
    %2454 = vmatmul.bf16.gmra.mxu0 %v2377
    %v2455 = vpop.f32.mrf.mxu0
    %v2456 = vadd.f32 0.0, %v2455
    %v2457 = vpop.f32.mrf.mxu0
    %2458 = vdwg.mxu0
    %v2459 = vadd.f32 %v2381, %v2456
    %v2460 = vxor.u32 %v2459, 2147483648
    %v2461 = vmul.f32 %v2460, 1.442695
    %v2462 = vpow.pop %v2461
    %v2463 = vadd.f32 %v2462, 1.0
    %v2464 = vrcp.pop %v2463
    %v2465 = vmul.f32 %v2463, %v2464
    %v2466 = vsub.f32 1.0, %v2465
    %v2467 = vmul.f32 %v2464, %v2466
    %v2468 = vadd.f32 %v2464, %v2467
    %vm2469 = vweird.f32 %v2463
    %vm2470 = vweird.f32 %v2464
    %vm2471 = vmor %vm2469, %vm2470
    %v2472 = vsel %vm2471, %v2464, %v2468
    %v2473 = vand.u32 2147483647, %v2463
    %vm2474 = vcmp.eq.f32.partialorder %v2473, 8.507059e+37
    %v2475 = vand.u32 %v2463, 2147483648
    %v2476 = vor.u32 1.1754944e-38, %v2475
    %v2477 = vsel %vm2474, %v2476, %v2472
    %v2478 = vmul.f32 1.0, %v2477
    %v2479 = vld [vmem:[%s2380 + $0x8] sm:$0xff]
    %v2480 = vld [vmem:[#allocation6 + $0x4] sm:$0xf]
    %v2481 = vld [vmem:[#allocation6 + $0x14] sm:$0xf]
    %v2482 = vld [vmem:[#allocation6 + $0x24] sm:$0xf]
    %v2483 = vld [vmem:[#allocation6 + $0x34] sm:$0xf]
    %v2484 = vld [vmem:[#allocation6 + $0x44] sm:$0xf]
    %v2485 = vld [vmem:[#allocation6 + $0x54] sm:$0xf]
    %v2486 = vld [vmem:[#allocation6 + $0x64] sm:$0xf]
    %v2487 = vld [vmem:[#allocation6 + $0x74] sm:$0xf]
    %v2488 = vld [vmem:[#allocation6 + $0x84] sm:$0xf]
    %v2489 = vld [vmem:[#allocation6 + $0x94] sm:$0xf]
    %v2490 = vld [vmem:[#allocation6 + $0xa4] sm:$0xf]
    %v2491 = vld [vmem:[#allocation6 + $0xb4] sm:$0xf]
    %v2492 = vld [vmem:[#allocation6 + $0xc4] sm:$0xf]
    %v2493 = vld [vmem:[#allocation6 + $0xd4] sm:$0xf]
    %v2494 = vld [vmem:[#allocation6 + $0xe4] sm:$0xf]
    %v2495 = vld [vmem:[#allocation6 + $0xf4] sm:$0xf]
    %v2512 = vunpack.c.l.b16 %v2480
    %v2513 = vunpack.c.l.b16 %v2481
    %v2514 = vunpack.c.l.b16 %v2482
    %v2515 = vunpack.c.l.b16 %v2483
    %v2516 = vunpack.c.l.b16 %v2484
    %v2517 = vunpack.c.l.b16 %v2485
    %v2518 = vunpack.c.l.b16 %v2486
    %v2519 = vunpack.c.l.b16 %v2487
    %v2520 = vunpack.c.l.b16 %v2488
    %v2521 = vunpack.c.l.b16 %v2489
    %v2522 = vunpack.c.l.b16 %v2490
    %v2523 = vunpack.c.l.b16 %v2491
    %v2524 = vunpack.c.l.b16 %v2492
    %v2525 = vunpack.c.l.b16 %v2493
    %v2526 = vunpack.c.l.b16 %v2494
    %v2527 = vunpack.c.l.b16 %v2495
    %v2528 = vpack.c.b16 %v2513, %v2512
    %v2529 = vpack.c.b16 %v2515, %v2514
    %v2530 = vpack.c.b16 %v2517, %v2516
    %v2531 = vpack.c.b16 %v2519, %v2518
    %v2532 = vpack.c.b16 %v2521, %v2520
    %v2533 = vpack.c.b16 %v2523, %v2522
    %v2534 = vpack.c.b16 %v2525, %v2524
    %v2535 = vpack.c.b16 %v2527, %v2526
    %2544 = vmatpush.bf16.msra.mxu0 %v2535
    %2545 = vmatpush.bf16.msra.mxu0 %v2534
    %2546 = vmatpush.bf16.msra.mxu0 %v2533
    %2547 = vmatpush.bf16.msra.mxu0 %v2532
    %2548 = vmatpush.bf16.msra.mxu0 %v2531
    %2549 = vmatpush.bf16.msra.mxu0 %v2530
    %2550 = vmatpush.bf16.msra.mxu0 %v2529
    %2551 = vmatpush.bf16.msra.mxu0 %v2528
    %2552 = vmatmul.bf16.gmra.mxu0 %v2377
    %v2553 = vpop.f32.mrf.mxu0
    %v2554 = vadd.f32 0.0, %v2553
    %v2555 = vpop.f32.mrf.mxu0
    %2556 = vdwg.mxu0
    %v2557 = vadd.f32 %v2479, %v2554
    %v2558 = vxor.u32 %v2557, 2147483648
    %v2559 = vmul.f32 %v2558, 1.442695
    %v2560 = vpow.pop %v2559
    %v2561 = vadd.f32 %v2560, 1.0
    %v2562 = vrcp.pop %v2561
    %v2563 = vmul.f32 %v2561, %v2562
    %v2564 = vsub.f32 1.0, %v2563
    %v2565 = vmul.f32 %v2562, %v2564
    %v2566 = vadd.f32 %v2562, %v2565
    %vm2567 = vweird.f32 %v2561
    %vm2568 = vweird.f32 %v2562
    %vm2569 = vmor %vm2567, %vm2568
    %v2570 = vsel %vm2569, %v2562, %v2566
    %v2571 = vand.u32 2147483647, %v2561
    %vm2572 = vcmp.eq.f32.partialorder %v2571, 8.507059e+37
    %v2573 = vand.u32 %v2561, 2147483648
    %v2574 = vor.u32 1.1754944e-38, %v2573
    %v2575 = vsel %vm2572, %v2574, %v2570
    %v2576 = vmul.f32 1.0, %v2575
    %v2577 = vld [vmem:[%s2380 + $0x10] sm:$0xff]
    %v2578 = vld [vmem:[#allocation6 + $0x8] sm:$0xf]
    %v2579 = vld [vmem:[#allocation6 + $0x18] sm:$0xf]
    %v2580 = vld [vmem:[#allocation6 + $0x28] sm:$0xf]
    %v2581 = vld [vmem:[#allocation6 + $0x38] sm:$0xf]
    %v2582 = vld [vmem:[#allocation6 + $0x48] sm:$0xf]
    %v2583 = vld [vmem:[#allocation6 + $0x58] sm:$0xf]
    %v2584 = vld [vmem:[#allocation6 + $0x68] sm:$0xf]
    %v2585 = vld [vmem:[#allocation6 + $0x78] sm:$0xf]
    %v2586 = vld [vmem:[#allocation6 + $0x88] sm:$0xf]
    %v2587 = vld [vmem:[#allocation6 + $0x98] sm:$0xf]
    %v2588 = vld [vmem:[#allocation6 + $0xa8] sm:$0xf]
    %v2589 = vld [vmem:[#allocation6 + $0xb8] sm:$0xf]
    %v2590 = vld [vmem:[#allocation6 + $0xc8] sm:$0xf]
    %v2591 = vld [vmem:[#allocation6 + $0xd8] sm:$0xf]
    %v2592 = vld [vmem:[#allocation6 + $0xe8] sm:$0xf]
    %v2593 = vld [vmem:[#allocation6 + $0xf8] sm:$0xf]
    %v2610 = vunpack.c.l.b16 %v2578
    %v2611 = vunpack.c.l.b16 %v2579
    %v2612 = vunpack.c.l.b16 %v2580
    %v2613 = vunpack.c.l.b16 %v2581
    %v2614 = vunpack.c.l.b16 %v2582
    %v2615 = vunpack.c.l.b16 %v2583
    %v2616 = vunpack.c.l.b16 %v2584
    %v2617 = vunpack.c.l.b16 %v2585
    %v2618 = vunpack.c.l.b16 %v2586
    %v2619 = vunpack.c.l.b16 %v2587
    %v2620 = vunpack.c.l.b16 %v2588
    %v2621 = vunpack.c.l.b16 %v2589
    %v2622 = vunpack.c.l.b16 %v2590
    %v2623 = vunpack.c.l.b16 %v2591
    %v2624 = vunpack.c.l.b16 %v2592
    %v2625 = vunpack.c.l.b16 %v2593
    %v2626 = vpack.c.b16 %v2611, %v2610
    %v2627 = vpack.c.b16 %v2613, %v2612
    %v2628 = vpack.c.b16 %v2615, %v2614
    %v2629 = vpack.c.b16 %v2617, %v2616
    %v2630 = vpack.c.b16 %v2619, %v2618
    %v2631 = vpack.c.b16 %v2621, %v2620
    %v2632 = vpack.c.b16 %v2623, %v2622
    %v2633 = vpack.c.b16 %v2625, %v2624
    %2642 = vmatpush.bf16.msra.mxu0 %v2633
    %2643 = vmatpush.bf16.msra.mxu0 %v2632
    %2644 = vmatpush.bf16.msra.mxu0 %v2631
    %2645 = vmatpush.bf16.msra.mxu0 %v2630
    %2646 = vmatpush.bf16.msra.mxu0 %v2629
    %2647 = vmatpush.bf16.msra.mxu0 %v2628
    %2648 = vmatpush.bf16.msra.mxu0 %v2627
    %2649 = vmatpush.bf16.msra.mxu0 %v2626
    %2650 = vmatmul.bf16.gmra.mxu0 %v2377
    %v2651 = vpop.f32.mrf.mxu0
    %v2652 = vadd.f32 0.0, %v2651
    %v2653 = vpop.f32.mrf.mxu0
    %2654 = vdwg.mxu0
    %v2655 = vadd.f32 %v2577, %v2652
    %v2656 = vtanh.pop %v2655
    %v2657 = vld [vmem:[%s2380 + $0x18] sm:$0xff]
    %v2658 = vld [vmem:[#allocation6 + $0xc] sm:$0xf]
    %v2659 = vld [vmem:[#allocation6 + $0x1c] sm:$0xf]
    %v2660 = vld [vmem:[#allocation6 + $0x2c] sm:$0xf]
    %v2661 = vld [vmem:[#allocation6 + $0x3c] sm:$0xf]
    %v2662 = vld [vmem:[#allocation6 + $0x4c] sm:$0xf]
    %v2663 = vld [vmem:[#allocation6 + $0x5c] sm:$0xf]
    %v2664 = vld [vmem:[#allocation6 + $0x6c] sm:$0xf]
    %v2665 = vld [vmem:[#allocation6 + $0x7c] sm:$0xf]
    %v2666 = vld [vmem:[#allocation6 + $0x8c] sm:$0xf]
    %v2667 = vld [vmem:[#allocation6 + $0x9c] sm:$0xf]
    %v2668 = vld [vmem:[#allocation6 + $0xac] sm:$0xf]
    %v2669 = vld [vmem:[#allocation6 + $0xbc] sm:$0xf]
    %v2670 = vld [vmem:[#allocation6 + $0xcc] sm:$0xf]
    %v2671 = vld [vmem:[#allocation6 + $0xdc] sm:$0xf]
    %v2672 = vld [vmem:[#allocation6 + $0xec] sm:$0xf]
    %v2673 = vld [vmem:[#allocation6 + $0xfc] sm:$0xf]
    %v2690 = vunpack.c.l.b16 %v2658
    %v2691 = vunpack.c.l.b16 %v2659
    %v2692 = vunpack.c.l.b16 %v2660
    %v2693 = vunpack.c.l.b16 %v2661
    %v2694 = vunpack.c.l.b16 %v2662
    %v2695 = vunpack.c.l.b16 %v2663
    %v2696 = vunpack.c.l.b16 %v2664
    %v2697 = vunpack.c.l.b16 %v2665
    %v2698 = vunpack.c.l.b16 %v2666
    %v2699 = vunpack.c.l.b16 %v2667
    %v2700 = vunpack.c.l.b16 %v2668
    %v2701 = vunpack.c.l.b16 %v2669
    %v2702 = vunpack.c.l.b16 %v2670
    %v2703 = vunpack.c.l.b16 %v2671
    %v2704 = vunpack.c.l.b16 %v2672
    %v2705 = vunpack.c.l.b16 %v2673
    %v2706 = vpack.c.b16 %v2691, %v2690
    %v2707 = vpack.c.b16 %v2693, %v2692
    %v2708 = vpack.c.b16 %v2695, %v2694
    %v2709 = vpack.c.b16 %v2697, %v2696
    %v2710 = vpack.c.b16 %v2699, %v2698
    %v2711 = vpack.c.b16 %v2701, %v2700
    %v2712 = vpack.c.b16 %v2703, %v2702
    %v2713 = vpack.c.b16 %v2705, %v2704
    %2722 = vmatpush.bf16.msra.mxu0 %v2713
    %2723 = vmatpush.bf16.msra.mxu0 %v2712
    %2724 = vmatpush.bf16.msra.mxu0 %v2711
    %2725 = vmatpush.bf16.msra.mxu0 %v2710
    %2726 = vmatpush.bf16.msra.mxu0 %v2709
    %2727 = vmatpush.bf16.msra.mxu0 %v2708
    %2728 = vmatpush.bf16.msra.mxu0 %v2707
    %2729 = vmatpush.bf16.msra.mxu0 %v2706
    %2730 = vmatmul.bf16.gmra.mxu0 %v2377
    %v2731 = vpop.f32.mrf.mxu0
    %v2732 = vadd.f32 0.0, %v2731
    %v2733 = vpop.f32.mrf.mxu0
    %2734 = vdwg.mxu0
    %v2735 = vadd.f32 %v2657, %v2732
    %v2736 = vxor.u32 %v2735, 2147483648
    %v2737 = vmul.f32 %v2736, 1.442695
    %v2738 = vpow.pop %v2737
    %v2739 = vadd.f32 %v2738, 1.0
    %v2740 = vrcp.pop %v2739
    %v2741 = vmul.f32 %v2739, %v2740
    %v2742 = vsub.f32 1.0, %v2741
    %v2743 = vmul.f32 %v2740, %v2742
    %v2744 = vadd.f32 %v2740, %v2743
    %vm2745 = vweird.f32 %v2739
    %vm2746 = vweird.f32 %v2740
    %vm2747 = vmor %vm2745, %vm2746
    %v2748 = vsel %vm2747, %v2740, %v2744
    %v2749 = vand.u32 2147483647, %v2739
    %vm2750 = vcmp.eq.f32.partialorder %v2749, 8.507059e+37
    %v2751 = vand.u32 %v2739, 2147483648
    %v2752 = vor.u32 1.1754944e-38, %v2751
    %v2753 = vsel %vm2750, %v2752, %v2748
    %v2754 = vmul.f32 1.0, %v2753
    %v2755 = vld [vmem:[#allocation5] sm:$0xff]
    %v2756 = vmul.f32 %v2576, %v2755
    %v2757 = vmul.f32 %v2478, %v2656
    %v2758 = vadd.f32 %v2756, %v2757
    %v2759 = vtanh.pop %v2758
    %v2760 = vmul.f32 %v2754, %v2759
    %2761 = vst [vmem:[#allocation5] sm:$0xff] %v2758
    %2762 = vst [vmem:[#allocation4] sm:$0xff] %v2760
    %s2763 = scalar_lea.vmem [#allocation3], 40
    %2764 = vst [vmem:[%s2763] sm:$0xff] %v2760
    %v2765 = vld [vmem:[#allocation4] sm:$0xff]
    %v2766 = vpack.c.bf16 %v2765, %v2765
    %s2767 = smul.u32 6, 4
    %s2768 = smul.addr %s2767, 8
    %s2769 = scalar_lea.vmem [#allocation2], %s2768
    %v2770 = vld [vmem:[%s2769] sm:$0xff]
    %v2771 = vld [vmem:[#allocation6] sm:$0xf]
    %v2772 = vld [vmem:[#allocation6 + $0x10] sm:$0xf]
    %v2773 = vld [vmem:[#allocation6 + $0x20] sm:$0xf]
    %v2774 = vld [vmem:[#allocation6 + $0x30] sm:$0xf]
    %v2775 = vld [vmem:[#allocation6 + $0x40] sm:$0xf]
    %v2776 = vld [vmem:[#allocation6 + $0x50] sm:$0xf]
    %v2777 = vld [vmem:[#allocation6 + $0x60] sm:$0xf]
    %v2778 = vld [vmem:[#allocation6 + $0x70] sm:$0xf]
    %v2779 = vld [vmem:[#allocation6 + $0x80] sm:$0xf]
    %v2780 = vld [vmem:[#allocation6 + $0x90] sm:$0xf]
    %v2781 = vld [vmem:[#allocation6 + $0xa0] sm:$0xf]
    %v2782 = vld [vmem:[#allocation6 + $0xb0] sm:$0xf]
    %v2783 = vld [vmem:[#allocation6 + $0xc0] sm:$0xf]
    %v2784 = vld [vmem:[#allocation6 + $0xd0] sm:$0xf]
    %v2785 = vld [vmem:[#allocation6 + $0xe0] sm:$0xf]
    %v2786 = vld [vmem:[#allocation6 + $0xf0] sm:$0xf]
    %v2803 = vunpack.c.l.b16 %v2771
    %v2804 = vunpack.c.l.b16 %v2772
    %v2805 = vunpack.c.l.b16 %v2773
    %v2806 = vunpack.c.l.b16 %v2774
    %v2807 = vunpack.c.l.b16 %v2775
    %v2808 = vunpack.c.l.b16 %v2776
    %v2809 = vunpack.c.l.b16 %v2777
    %v2810 = vunpack.c.l.b16 %v2778
    %v2811 = vunpack.c.l.b16 %v2779
    %v2812 = vunpack.c.l.b16 %v2780
    %v2813 = vunpack.c.l.b16 %v2781
    %v2814 = vunpack.c.l.b16 %v2782
    %v2815 = vunpack.c.l.b16 %v2783
    %v2816 = vunpack.c.l.b16 %v2784
    %v2817 = vunpack.c.l.b16 %v2785
    %v2818 = vunpack.c.l.b16 %v2786
    %v2819 = vpack.c.b16 %v2804, %v2803
    %v2820 = vpack.c.b16 %v2806, %v2805
    %v2821 = vpack.c.b16 %v2808, %v2807
    %v2822 = vpack.c.b16 %v2810, %v2809
    %v2823 = vpack.c.b16 %v2812, %v2811
    %v2824 = vpack.c.b16 %v2814, %v2813
    %v2825 = vpack.c.b16 %v2816, %v2815
    %v2826 = vpack.c.b16 %v2818, %v2817
    %2835 = vmatpush.bf16.msra.mxu0 %v2826
    %2836 = vmatpush.bf16.msra.mxu0 %v2825
    %2837 = vmatpush.bf16.msra.mxu0 %v2824
    %2838 = vmatpush.bf16.msra.mxu0 %v2823
    %2839 = vmatpush.bf16.msra.mxu0 %v2822
    %2840 = vmatpush.bf16.msra.mxu0 %v2821
    %2841 = vmatpush.bf16.msra.mxu0 %v2820
    %2842 = vmatpush.bf16.msra.mxu0 %v2819
    %2843 = vmatmul.bf16.gmra.mxu0 %v2766
    %v2844 = vpop.f32.mrf.mxu0
    %v2845 = vadd.f32 0.0, %v2844
    %v2846 = vpop.f32.mrf.mxu0
    %2847 = vdwg.mxu0
    %v2848 = vadd.f32 %v2770, %v2845
    %v2849 = vxor.u32 %v2848, 2147483648
    %v2850 = vmul.f32 %v2849, 1.442695
    %v2851 = vpow.pop %v2850
    %v2852 = vadd.f32 %v2851, 1.0
    %v2853 = vrcp.pop %v2852
    %v2854 = vmul.f32 %v2852, %v2853
    %v2855 = vsub.f32 1.0, %v2854
    %v2856 = vmul.f32 %v2853, %v2855
    %v2857 = vadd.f32 %v2853, %v2856
    %vm2858 = vweird.f32 %v2852
    %vm2859 = vweird.f32 %v2853
    %vm2860 = vmor %vm2858, %vm2859
    %v2861 = vsel %vm2860, %v2853, %v2857
    %v2862 = vand.u32 2147483647, %v2852
    %vm2863 = vcmp.eq.f32.partialorder %v2862, 8.507059e+37
    %v2864 = vand.u32 %v2852, 2147483648
    %v2865 = vor.u32 1.1754944e-38, %v2864
    %v2866 = vsel %vm2863, %v2865, %v2861
    %v2867 = vmul.f32 1.0, %v2866
    %v2868 = vld [vmem:[%s2769 + $0x8] sm:$0xff]
    %v2869 = vld [vmem:[#allocation6 + $0x4] sm:$0xf]
    %v2870 = vld [vmem:[#allocation6 + $0x14] sm:$0xf]
    %v2871 = vld [vmem:[#allocation6 + $0x24] sm:$0xf]
    %v2872 = vld [vmem:[#allocation6 + $0x34] sm:$0xf]
    %v2873 = vld [vmem:[#allocation6 + $0x44] sm:$0xf]
    %v2874 = vld [vmem:[#allocation6 + $0x54] sm:$0xf]
    %v2875 = vld [vmem:[#allocation6 + $0x64] sm:$0xf]
    %v2876 = vld [vmem:[#allocation6 + $0x74] sm:$0xf]
    %v2877 = vld [vmem:[#allocation6 + $0x84] sm:$0xf]
    %v2878 = vld [vmem:[#allocation6 + $0x94] sm:$0xf]
    %v2879 = vld [vmem:[#allocation6 + $0xa4] sm:$0xf]
    %v2880 = vld [vmem:[#allocation6 + $0xb4] sm:$0xf]
    %v2881 = vld [vmem:[#allocation6 + $0xc4] sm:$0xf]
    %v2882 = vld [vmem:[#allocation6 + $0xd4] sm:$0xf]
    %v2883 = vld [vmem:[#allocation6 + $0xe4] sm:$0xf]
    %v2884 = vld [vmem:[#allocation6 + $0xf4] sm:$0xf]
    %v2901 = vunpack.c.l.b16 %v2869
    %v2902 = vunpack.c.l.b16 %v2870
    %v2903 = vunpack.c.l.b16 %v2871
    %v2904 = vunpack.c.l.b16 %v2872
    %v2905 = vunpack.c.l.b16 %v2873
    %v2906 = vunpack.c.l.b16 %v2874
    %v2907 = vunpack.c.l.b16 %v2875
    %v2908 = vunpack.c.l.b16 %v2876
    %v2909 = vunpack.c.l.b16 %v2877
    %v2910 = vunpack.c.l.b16 %v2878
    %v2911 = vunpack.c.l.b16 %v2879
    %v2912 = vunpack.c.l.b16 %v2880
    %v2913 = vunpack.c.l.b16 %v2881
    %v2914 = vunpack.c.l.b16 %v2882
    %v2915 = vunpack.c.l.b16 %v2883
    %v2916 = vunpack.c.l.b16 %v2884
    %v2917 = vpack.c.b16 %v2902, %v2901
    %v2918 = vpack.c.b16 %v2904, %v2903
    %v2919 = vpack.c.b16 %v2906, %v2905
    %v2920 = vpack.c.b16 %v2908, %v2907
    %v2921 = vpack.c.b16 %v2910, %v2909
    %v2922 = vpack.c.b16 %v2912, %v2911
    %v2923 = vpack.c.b16 %v2914, %v2913
    %v2924 = vpack.c.b16 %v2916, %v2915
    %2933 = vmatpush.bf16.msra.mxu0 %v2924
    %2934 = vmatpush.bf16.msra.mxu0 %v2923
    %2935 = vmatpush.bf16.msra.mxu0 %v2922
    %2936 = vmatpush.bf16.msra.mxu0 %v2921
    %2937 = vmatpush.bf16.msra.mxu0 %v2920
    %2938 = vmatpush.bf16.msra.mxu0 %v2919
    %2939 = vmatpush.bf16.msra.mxu0 %v2918
    %2940 = vmatpush.bf16.msra.mxu0 %v2917
    %2941 = vmatmul.bf16.gmra.mxu0 %v2766
    %v2942 = vpop.f32.mrf.mxu0
    %v2943 = vadd.f32 0.0, %v2942
    %v2944 = vpop.f32.mrf.mxu0
    %2945 = vdwg.mxu0
    %v2946 = vadd.f32 %v2868, %v2943
    %v2947 = vxor.u32 %v2946, 2147483648
    %v2948 = vmul.f32 %v2947, 1.442695
    %v2949 = vpow.pop %v2948
    %v2950 = vadd.f32 %v2949, 1.0
    %v2951 = vrcp.pop %v2950
    %v2952 = vmul.f32 %v2950, %v2951
    %v2953 = vsub.f32 1.0, %v2952
    %v2954 = vmul.f32 %v2951, %v2953
    %v2955 = vadd.f32 %v2951, %v2954
    %vm2956 = vweird.f32 %v2950
    %vm2957 = vweird.f32 %v2951
    %vm2958 = vmor %vm2956, %vm2957
    %v2959 = vsel %vm2958, %v2951, %v2955
    %v2960 = vand.u32 2147483647, %v2950
    %vm2961 = vcmp.eq.f32.partialorder %v2960, 8.507059e+37
    %v2962 = vand.u32 %v2950, 2147483648
    %v2963 = vor.u32 1.1754944e-38, %v2962
    %v2964 = vsel %vm2961, %v2963, %v2959
    %v2965 = vmul.f32 1.0, %v2964
    %v2966 = vld [vmem:[%s2769 + $0x10] sm:$0xff]
    %v2967 = vld [vmem:[#allocation6 + $0x8] sm:$0xf]
    %v2968 = vld [vmem:[#allocation6 + $0x18] sm:$0xf]
    %v2969 = vld [vmem:[#allocation6 + $0x28] sm:$0xf]
    %v2970 = vld [vmem:[#allocation6 + $0x38] sm:$0xf]
    %v2971 = vld [vmem:[#allocation6 + $0x48] sm:$0xf]
    %v2972 = vld [vmem:[#allocation6 + $0x58] sm:$0xf]
    %v2973 = vld [vmem:[#allocation6 + $0x68] sm:$0xf]
    %v2974 = vld [vmem:[#allocation6 + $0x78] sm:$0xf]
    %v2975 = vld [vmem:[#allocation6 + $0x88] sm:$0xf]
    %v2976 = vld [vmem:[#allocation6 + $0x98] sm:$0xf]
    %v2977 = vld [vmem:[#allocation6 + $0xa8] sm:$0xf]
    %v2978 = vld [vmem:[#allocation6 + $0xb8] sm:$0xf]
    %v2979 = vld [vmem:[#allocation6 + $0xc8] sm:$0xf]
    %v2980 = vld [vmem:[#allocation6 + $0xd8] sm:$0xf]
    %v2981 = vld [vmem:[#allocation6 + $0xe8] sm:$0xf]
    %v2982 = vld [vmem:[#allocation6 + $0xf8] sm:$0xf]
    %v2999 = vunpack.c.l.b16 %v2967
    %v3000 = vunpack.c.l.b16 %v2968
    %v3001 = vunpack.c.l.b16 %v2969
    %v3002 = vunpack.c.l.b16 %v2970
    %v3003 = vunpack.c.l.b16 %v2971
    %v3004 = vunpack.c.l.b16 %v2972
    %v3005 = vunpack.c.l.b16 %v2973
    %v3006 = vunpack.c.l.b16 %v2974
    %v3007 = vunpack.c.l.b16 %v2975
    %v3008 = vunpack.c.l.b16 %v2976
    %v3009 = vunpack.c.l.b16 %v2977
    %v3010 = vunpack.c.l.b16 %v2978
    %v3011 = vunpack.c.l.b16 %v2979
    %v3012 = vunpack.c.l.b16 %v2980
    %v3013 = vunpack.c.l.b16 %v2981
    %v3014 = vunpack.c.l.b16 %v2982
    %v3015 = vpack.c.b16 %v3000, %v2999
    %v3016 = vpack.c.b16 %v3002, %v3001
    %v3017 = vpack.c.b16 %v3004, %v3003
    %v3018 = vpack.c.b16 %v3006, %v3005
    %v3019 = vpack.c.b16 %v3008, %v3007
    %v3020 = vpack.c.b16 %v3010, %v3009
    %v3021 = vpack.c.b16 %v3012, %v3011
    %v3022 = vpack.c.b16 %v3014, %v3013
    %3031 = vmatpush.bf16.msra.mxu0 %v3022
    %3032 = vmatpush.bf16.msra.mxu0 %v3021
    %3033 = vmatpush.bf16.msra.mxu0 %v3020
    %3034 = vmatpush.bf16.msra.mxu0 %v3019
    %3035 = vmatpush.bf16.msra.mxu0 %v3018
    %3036 = vmatpush.bf16.msra.mxu0 %v3017
    %3037 = vmatpush.bf16.msra.mxu0 %v3016
    %3038 = vmatpush.bf16.msra.mxu0 %v3015
    %3039 = vmatmul.bf16.gmra.mxu0 %v2766
    %v3040 = vpop.f32.mrf.mxu0
    %v3041 = vadd.f32 0.0, %v3040
    %v3042 = vpop.f32.mrf.mxu0
    %3043 = vdwg.mxu0
    %v3044 = vadd.f32 %v2966, %v3041
    %v3045 = vtanh.pop %v3044
    %v3046 = vld [vmem:[%s2769 + $0x18] sm:$0xff]
    %v3047 = vld [vmem:[#allocation6 + $0xc] sm:$0xf]
    %v3048 = vld [vmem:[#allocation6 + $0x1c] sm:$0xf]
    %v3049 = vld [vmem:[#allocation6 + $0x2c] sm:$0xf]
    %v3050 = vld [vmem:[#allocation6 + $0x3c] sm:$0xf]
    %v3051 = vld [vmem:[#allocation6 + $0x4c] sm:$0xf]
    %v3052 = vld [vmem:[#allocation6 + $0x5c] sm:$0xf]
    %v3053 = vld [vmem:[#allocation6 + $0x6c] sm:$0xf]
    %v3054 = vld [vmem:[#allocation6 + $0x7c] sm:$0xf]
    %v3055 = vld [vmem:[#allocation6 + $0x8c] sm:$0xf]
    %v3056 = vld [vmem:[#allocation6 + $0x9c] sm:$0xf]
    %v3057 = vld [vmem:[#allocation6 + $0xac] sm:$0xf]
    %v3058 = vld [vmem:[#allocation6 + $0xbc] sm:$0xf]
    %v3059 = vld [vmem:[#allocation6 + $0xcc] sm:$0xf]
    %v3060 = vld [vmem:[#allocation6 + $0xdc] sm:$0xf]
    %v3061 = vld [vmem:[#allocation6 + $0xec] sm:$0xf]
    %v3062 = vld [vmem:[#allocation6 + $0xfc] sm:$0xf]
    %v3079 = vunpack.c.l.b16 %v3047
    %v3080 = vunpack.c.l.b16 %v3048
    %v3081 = vunpack.c.l.b16 %v3049
    %v3082 = vunpack.c.l.b16 %v3050
    %v3083 = vunpack.c.l.b16 %v3051
    %v3084 = vunpack.c.l.b16 %v3052
    %v3085 = vunpack.c.l.b16 %v3053
    %v3086 = vunpack.c.l.b16 %v3054
    %v3087 = vunpack.c.l.b16 %v3055
    %v3088 = vunpack.c.l.b16 %v3056
    %v3089 = vunpack.c.l.b16 %v3057
    %v3090 = vunpack.c.l.b16 %v3058
    %v3091 = vunpack.c.l.b16 %v3059
    %v3092 = vunpack.c.l.b16 %v3060
    %v3093 = vunpack.c.l.b16 %v3061
    %v3094 = vunpack.c.l.b16 %v3062
    %v3095 = vpack.c.b16 %v3080, %v3079
    %v3096 = vpack.c.b16 %v3082, %v3081
    %v3097 = vpack.c.b16 %v3084, %v3083
    %v3098 = vpack.c.b16 %v3086, %v3085
    %v3099 = vpack.c.b16 %v3088, %v3087
    %v3100 = vpack.c.b16 %v3090, %v3089
    %v3101 = vpack.c.b16 %v3092, %v3091
    %v3102 = vpack.c.b16 %v3094, %v3093
    %3111 = vmatpush.bf16.msra.mxu0 %v3102
    %3112 = vmatpush.bf16.msra.mxu0 %v3101
    %3113 = vmatpush.bf16.msra.mxu0 %v3100
    %3114 = vmatpush.bf16.msra.mxu0 %v3099
    %3115 = vmatpush.bf16.msra.mxu0 %v3098
    %3116 = vmatpush.bf16.msra.mxu0 %v3097
    %3117 = vmatpush.bf16.msra.mxu0 %v3096
    %3118 = vmatpush.bf16.msra.mxu0 %v3095
    %3119 = vmatmul.bf16.gmra.mxu0 %v2766
    %v3120 = vpop.f32.mrf.mxu0
    %v3121 = vadd.f32 0.0, %v3120
    %v3122 = vpop.f32.mrf.mxu0
    %3123 = vdwg.mxu0
    %v3124 = vadd.f32 %v3046, %v3121
    %v3125 = vxor.u32 %v3124, 2147483648
    %v3126 = vmul.f32 %v3125, 1.442695
    %v3127 = vpow.pop %v3126
    %v3128 = vadd.f32 %v3127, 1.0
    %v3129 = vrcp.pop %v3128
    %v3130 = vmul.f32 %v3128, %v3129
    %v3131 = vsub.f32 1.0, %v3130
    %v3132 = vmul.f32 %v3129, %v3131
    %v3133 = vadd.f32 %v3129, %v3132
    %vm3134 = vweird.f32 %v3128
    %vm3135 = vweird.f32 %v3129
    %vm3136 = vmor %vm3134, %vm3135
    %v3137 = vsel %vm3136, %v3129, %v3133
    %v3138 = vand.u32 2147483647, %v3128
    %vm3139 = vcmp.eq.f32.partialorder %v3138, 8.507059e+37
    %v3140 = vand.u32 %v3128, 2147483648
    %v3141 = vor.u32 1.1754944e-38, %v3140
    %v3142 = vsel %vm3139, %v3141, %v3137
    %v3143 = vmul.f32 1.0, %v3142
    %v3144 = vld [vmem:[#allocation5] sm:$0xff]
    %v3145 = vmul.f32 %v2965, %v3144
    %v3146 = vmul.f32 %v2867, %v3045
    %v3147 = vadd.f32 %v3145, %v3146
    %v3148 = vtanh.pop %v3147
    %v3149 = vmul.f32 %v3143, %v3148
    %3150 = vst [vmem:[#allocation5] sm:$0xff] %v3147
    %3151 = vst [vmem:[#allocation4] sm:$0xff] %v3149
    %s3152 = scalar_lea.vmem [#allocation3], 48
    %3153 = vst [vmem:[%s3152] sm:$0xff] %v3149
    %v3154 = vld [vmem:[#allocation4] sm:$0xff]
    %v3155 = vpack.c.bf16 %v3154, %v3154
    %s3156 = smul.u32 7, 4
    %s3157 = smul.addr %s3156, 8
    %s3158 = scalar_lea.vmem [#allocation2], %s3157
    %v3159 = vld [vmem:[%s3158] sm:$0xff]
    %v3160 = vld [vmem:[#allocation6] sm:$0xf]
    %v3161 = vld [vmem:[#allocation6 + $0x10] sm:$0xf]
    %v3162 = vld [vmem:[#allocation6 + $0x20] sm:$0xf]
    %v3163 = vld [vmem:[#allocation6 + $0x30] sm:$0xf]
    %v3164 = vld [vmem:[#allocation6 + $0x40] sm:$0xf]
    %v3165 = vld [vmem:[#allocation6 + $0x50] sm:$0xf]
    %v3166 = vld [vmem:[#allocation6 + $0x60] sm:$0xf]
    %v3167 = vld [vmem:[#allocation6 + $0x70] sm:$0xf]
    %v3168 = vld [vmem:[#allocation6 + $0x80] sm:$0xf]
    %v3169 = vld [vmem:[#allocation6 + $0x90] sm:$0xf]
    %v3170 = vld [vmem:[#allocation6 + $0xa0] sm:$0xf]
    %v3171 = vld [vmem:[#allocation6 + $0xb0] sm:$0xf]
    %v3172 = vld [vmem:[#allocation6 + $0xc0] sm:$0xf]
    %v3173 = vld [vmem:[#allocation6 + $0xd0] sm:$0xf]
    %v3174 = vld [vmem:[#allocation6 + $0xe0] sm:$0xf]
    %v3175 = vld [vmem:[#allocation6 + $0xf0] sm:$0xf]
    %v3192 = vunpack.c.l.b16 %v3160
    %v3193 = vunpack.c.l.b16 %v3161
    %v3194 = vunpack.c.l.b16 %v3162
    %v3195 = vunpack.c.l.b16 %v3163
    %v3196 = vunpack.c.l.b16 %v3164
    %v3197 = vunpack.c.l.b16 %v3165
    %v3198 = vunpack.c.l.b16 %v3166
    %v3199 = vunpack.c.l.b16 %v3167
    %v3200 = vunpack.c.l.b16 %v3168
    %v3201 = vunpack.c.l.b16 %v3169
    %v3202 = vunpack.c.l.b16 %v3170
    %v3203 = vunpack.c.l.b16 %v3171
    %v3204 = vunpack.c.l.b16 %v3172
    %v3205 = vunpack.c.l.b16 %v3173
    %v3206 = vunpack.c.l.b16 %v3174
    %v3207 = vunpack.c.l.b16 %v3175
    %v3208 = vpack.c.b16 %v3193, %v3192
    %v3209 = vpack.c.b16 %v3195, %v3194
    %v3210 = vpack.c.b16 %v3197, %v3196
    %v3211 = vpack.c.b16 %v3199, %v3198
    %v3212 = vpack.c.b16 %v3201, %v3200
    %v3213 = vpack.c.b16 %v3203, %v3202
    %v3214 = vpack.c.b16 %v3205, %v3204
    %v3215 = vpack.c.b16 %v3207, %v3206
    %3224 = vmatpush.bf16.msra.mxu0 %v3215
    %3225 = vmatpush.bf16.msra.mxu0 %v3214
    %3226 = vmatpush.bf16.msra.mxu0 %v3213
    %3227 = vmatpush.bf16.msra.mxu0 %v3212
    %3228 = vmatpush.bf16.msra.mxu0 %v3211
    %3229 = vmatpush.bf16.msra.mxu0 %v3210
    %3230 = vmatpush.bf16.msra.mxu0 %v3209
    %3231 = vmatpush.bf16.msra.mxu0 %v3208
    %3232 = vmatmul.bf16.gmra.mxu0 %v3155
    %v3233 = vpop.f32.mrf.mxu0
    %v3234 = vadd.f32 0.0, %v3233
    %v3235 = vpop.f32.mrf.mxu0
    %3236 = vdwg.mxu0
    %v3237 = vadd.f32 %v3159, %v3234
    %v3238 = vxor.u32 %v3237, 2147483648
    %v3239 = vmul.f32 %v3238, 1.442695
    %v3240 = vpow.pop %v3239
    %v3241 = vadd.f32 %v3240, 1.0
    %v3242 = vrcp.pop %v3241
    %v3243 = vmul.f32 %v3241, %v3242
    %v3244 = vsub.f32 1.0, %v3243
    %v3245 = vmul.f32 %v3242, %v3244
    %v3246 = vadd.f32 %v3242, %v3245
    %vm3247 = vweird.f32 %v3241
    %vm3248 = vweird.f32 %v3242
    %vm3249 = vmor %vm3247, %vm3248
    %v3250 = vsel %vm3249, %v3242, %v3246
    %v3251 = vand.u32 2147483647, %v3241
    %vm3252 = vcmp.eq.f32.partialorder %v3251, 8.507059e+37
    %v3253 = vand.u32 %v3241, 2147483648
    %v3254 = vor.u32 1.1754944e-38, %v3253
    %v3255 = vsel %vm3252, %v3254, %v3250
    %v3256 = vmul.f32 1.0, %v3255
    %v3257 = vld [vmem:[%s3158 + $0x8] sm:$0xff]
    %v3258 = vld [vmem:[#allocation6 + $0x4] sm:$0xf]
    %v3259 = vld [vmem:[#allocation6 + $0x14] sm:$0xf]
    %v3260 = vld [vmem:[#allocation6 + $0x24] sm:$0xf]
    %v3261 = vld [vmem:[#allocation6 + $0x34] sm:$0xf]
    %v3262 = vld [vmem:[#allocation6 + $0x44] sm:$0xf]
    %v3263 = vld [vmem:[#allocation6 + $0x54] sm:$0xf]
    %v3264 = vld [vmem:[#allocation6 + $0x64] sm:$0xf]
    %v3265 = vld [vmem:[#allocation6 + $0x74] sm:$0xf]
    %v3266 = vld [vmem:[#allocation6 + $0x84] sm:$0xf]
    %v3267 = vld [vmem:[#allocation6 + $0x94] sm:$0xf]
    %v3268 = vld [vmem:[#allocation6 + $0xa4] sm:$0xf]
    %v3269 = vld [vmem:[#allocation6 + $0xb4] sm:$0xf]
    %v3270 = vld [vmem:[#allocation6 + $0xc4] sm:$0xf]
    %v3271 = vld [vmem:[#allocation6 + $0xd4] sm:$0xf]
    %v3272 = vld [vmem:[#allocation6 + $0xe4] sm:$0xf]
    %v3273 = vld [vmem:[#allocation6 + $0xf4] sm:$0xf]
    %v3290 = vunpack.c.l.b16 %v3258
    %v3291 = vunpack.c.l.b16 %v3259
    %v3292 = vunpack.c.l.b16 %v3260
    %v3293 = vunpack.c.l.b16 %v3261
    %v3294 = vunpack.c.l.b16 %v3262
    %v3295 = vunpack.c.l.b16 %v3263
    %v3296 = vunpack.c.l.b16 %v3264
    %v3297 = vunpack.c.l.b16 %v3265
    %v3298 = vunpack.c.l.b16 %v3266
    %v3299 = vunpack.c.l.b16 %v3267
    %v3300 = vunpack.c.l.b16 %v3268
    %v3301 = vunpack.c.l.b16 %v3269
    %v3302 = vunpack.c.l.b16 %v3270
    %v3303 = vunpack.c.l.b16 %v3271
    %v3304 = vunpack.c.l.b16 %v3272
    %v3305 = vunpack.c.l.b16 %v3273
    %v3306 = vpack.c.b16 %v3291, %v3290
    %v3307 = vpack.c.b16 %v3293, %v3292
    %v3308 = vpack.c.b16 %v3295, %v3294
    %v3309 = vpack.c.b16 %v3297, %v3296
    %v3310 = vpack.c.b16 %v3299, %v3298
    %v3311 = vpack.c.b16 %v3301, %v3300
    %v3312 = vpack.c.b16 %v3303, %v3302
    %v3313 = vpack.c.b16 %v3305, %v3304
    %3322 = vmatpush.bf16.msra.mxu0 %v3313
    %3323 = vmatpush.bf16.msra.mxu0 %v3312
    %3324 = vmatpush.bf16.msra.mxu0 %v3311
    %3325 = vmatpush.bf16.msra.mxu0 %v3310
    %3326 = vmatpush.bf16.msra.mxu0 %v3309
    %3327 = vmatpush.bf16.msra.mxu0 %v3308
    %3328 = vmatpush.bf16.msra.mxu0 %v3307
    %3329 = vmatpush.bf16.msra.mxu0 %v3306
    %3330 = vmatmul.bf16.gmra.mxu0 %v3155
    %v3331 = vpop.f32.mrf.mxu0
    %v3332 = vadd.f32 0.0, %v3331
    %v3333 = vpop.f32.mrf.mxu0
    %3334 = vdwg.mxu0
    %v3335 = vadd.f32 %v3257, %v3332
    %v3336 = vxor.u32 %v3335, 2147483648
    %v3337 = vmul.f32 %v3336, 1.442695
    %v3338 = vpow.pop %v3337
    %v3339 = vadd.f32 %v3338, 1.0
    %v3340 = vrcp.pop %v3339
    %v3341 = vmul.f32 %v3339, %v3340
    %v3342 = vsub.f32 1.0, %v3341
    %v3343 = vmul.f32 %v3340, %v3342
    %v3344 = vadd.f32 %v3340, %v3343
    %vm3345 = vweird.f32 %v3339
    %vm3346 = vweird.f32 %v3340
    %vm3347 = vmor %vm3345, %vm3346
    %v3348 = vsel %vm3347, %v3340, %v3344
    %v3349 = vand.u32 2147483647, %v3339
    %vm3350 = vcmp.eq.f32.partialorder %v3349, 8.507059e+37
    %v3351 = vand.u32 %v3339, 2147483648
    %v3352 = vor.u32 1.1754944e-38, %v3351
    %v3353 = vsel %vm3350, %v3352, %v3348
    %v3354 = vmul.f32 1.0, %v3353
    %v3355 = vld [vmem:[%s3158 + $0x10] sm:$0xff]
    %v3356 = vld [vmem:[#allocation6 + $0x8] sm:$0xf]
    %v3357 = vld [vmem:[#allocation6 + $0x18] sm:$0xf]
    %v3358 = vld [vmem:[#allocation6 + $0x28] sm:$0xf]
    %v3359 = vld [vmem:[#allocation6 + $0x38] sm:$0xf]
    %v3360 = vld [vmem:[#allocation6 + $0x48] sm:$0xf]
    %v3361 = vld [vmem:[#allocation6 + $0x58] sm:$0xf]
    %v3362 = vld [vmem:[#allocation6 + $0x68] sm:$0xf]
    %v3363 = vld [vmem:[#allocation6 + $0x78] sm:$0xf]
    %v3364 = vld [vmem:[#allocation6 + $0x88] sm:$0xf]
    %v3365 = vld [vmem:[#allocation6 + $0x98] sm:$0xf]
    %v3366 = vld [vmem:[#allocation6 + $0xa8] sm:$0xf]
    %v3367 = vld [vmem:[#allocation6 + $0xb8] sm:$0xf]
    %v3368 = vld [vmem:[#allocation6 + $0xc8] sm:$0xf]
    %v3369 = vld [vmem:[#allocation6 + $0xd8] sm:$0xf]
    %v3370 = vld [vmem:[#allocation6 + $0xe8] sm:$0xf]
    %v3371 = vld [vmem:[#allocation6 + $0xf8] sm:$0xf]
    %v3388 = vunpack.c.l.b16 %v3356
    %v3389 = vunpack.c.l.b16 %v3357
    %v3390 = vunpack.c.l.b16 %v3358
    %v3391 = vunpack.c.l.b16 %v3359
    %v3392 = vunpack.c.l.b16 %v3360
    %v3393 = vunpack.c.l.b16 %v3361
    %v3394 = vunpack.c.l.b16 %v3362
    %v3395 = vunpack.c.l.b16 %v3363
    %v3396 = vunpack.c.l.b16 %v3364
    %v3397 = vunpack.c.l.b16 %v3365
    %v3398 = vunpack.c.l.b16 %v3366
    %v3399 = vunpack.c.l.b16 %v3367
    %v3400 = vunpack.c.l.b16 %v3368
    %v3401 = vunpack.c.l.b16 %v3369
    %v3402 = vunpack.c.l.b16 %v3370
    %v3403 = vunpack.c.l.b16 %v3371
    %v3404 = vpack.c.b16 %v3389, %v3388
    %v3405 = vpack.c.b16 %v3391, %v3390
    %v3406 = vpack.c.b16 %v3393, %v3392
    %v3407 = vpack.c.b16 %v3395, %v3394
    %v3408 = vpack.c.b16 %v3397, %v3396
    %v3409 = vpack.c.b16 %v3399, %v3398
    %v3410 = vpack.c.b16 %v3401, %v3400
    %v3411 = vpack.c.b16 %v3403, %v3402
    %3420 = vmatpush.bf16.msra.mxu0 %v3411
    %3421 = vmatpush.bf16.msra.mxu0 %v3410
    %3422 = vmatpush.bf16.msra.mxu0 %v3409
    %3423 = vmatpush.bf16.msra.mxu0 %v3408
    %3424 = vmatpush.bf16.msra.mxu0 %v3407
    %3425 = vmatpush.bf16.msra.mxu0 %v3406
    %3426 = vmatpush.bf16.msra.mxu0 %v3405
    %3427 = vmatpush.bf16.msra.mxu0 %v3404
    %3428 = vmatmul.bf16.gmra.mxu0 %v3155
    %v3429 = vpop.f32.mrf.mxu0
    %v3430 = vadd.f32 0.0, %v3429
    %v3431 = vpop.f32.mrf.mxu0
    %3432 = vdwg.mxu0
    %v3433 = vadd.f32 %v3355, %v3430
    %v3434 = vtanh.pop %v3433
    %v3435 = vld [vmem:[%s3158 + $0x18] sm:$0xff]
    %v3436 = vld [vmem:[#allocation6 + $0xc] sm:$0xf]
    %v3437 = vld [vmem:[#allocation6 + $0x1c] sm:$0xf]
    %v3438 = vld [vmem:[#allocation6 + $0x2c] sm:$0xf]
    %v3439 = vld [vmem:[#allocation6 + $0x3c] sm:$0xf]
    %v3440 = vld [vmem:[#allocation6 + $0x4c] sm:$0xf]
    %v3441 = vld [vmem:[#allocation6 + $0x5c] sm:$0xf]
    %v3442 = vld [vmem:[#allocation6 + $0x6c] sm:$0xf]
    %v3443 = vld [vmem:[#allocation6 + $0x7c] sm:$0xf]
    %v3444 = vld [vmem:[#allocation6 + $0x8c] sm:$0xf]
    %v3445 = vld [vmem:[#allocation6 + $0x9c] sm:$0xf]
    %v3446 = vld [vmem:[#allocation6 + $0xac] sm:$0xf]
    %v3447 = vld [vmem:[#allocation6 + $0xbc] sm:$0xf]
    %v3448 = vld [vmem:[#allocation6 + $0xcc] sm:$0xf]
    %v3449 = vld [vmem:[#allocation6 + $0xdc] sm:$0xf]
    %v3450 = vld [vmem:[#allocation6 + $0xec] sm:$0xf]
    %v3451 = vld [vmem:[#allocation6 + $0xfc] sm:$0xf]
    %v3468 = vunpack.c.l.b16 %v3436
    %v3469 = vunpack.c.l.b16 %v3437
    %v3470 = vunpack.c.l.b16 %v3438
    %v3471 = vunpack.c.l.b16 %v3439
    %v3472 = vunpack.c.l.b16 %v3440
    %v3473 = vunpack.c.l.b16 %v3441
    %v3474 = vunpack.c.l.b16 %v3442
    %v3475 = vunpack.c.l.b16 %v3443
    %v3476 = vunpack.c.l.b16 %v3444
    %v3477 = vunpack.c.l.b16 %v3445
    %v3478 = vunpack.c.l.b16 %v3446
    %v3479 = vunpack.c.l.b16 %v3447
    %v3480 = vunpack.c.l.b16 %v3448
    %v3481 = vunpack.c.l.b16 %v3449
    %v3482 = vunpack.c.l.b16 %v3450
    %v3483 = vunpack.c.l.b16 %v3451
    %v3484 = vpack.c.b16 %v3469, %v3468
    %v3485 = vpack.c.b16 %v3471, %v3470
    %v3486 = vpack.c.b16 %v3473, %v3472
    %v3487 = vpack.c.b16 %v3475, %v3474
    %v3488 = vpack.c.b16 %v3477, %v3476
    %v3489 = vpack.c.b16 %v3479, %v3478
    %v3490 = vpack.c.b16 %v3481, %v3480
    %v3491 = vpack.c.b16 %v3483, %v3482
    %3500 = vmatpush.bf16.msra.mxu0 %v3491
    %3501 = vmatpush.bf16.msra.mxu0 %v3490
    %3502 = vmatpush.bf16.msra.mxu0 %v3489
    %3503 = vmatpush.bf16.msra.mxu0 %v3488
    %3504 = vmatpush.bf16.msra.mxu0 %v3487
    %3505 = vmatpush.bf16.msra.mxu0 %v3486
    %3506 = vmatpush.bf16.msra.mxu0 %v3485
    %3507 = vmatpush.bf16.msra.mxu0 %v3484
    %3508 = vmatmul.bf16.gmra.mxu0 %v3155
    %v3509 = vpop.f32.mrf.mxu0
    %v3510 = vadd.f32 0.0, %v3509
    %v3511 = vpop.f32.mrf.mxu0
    %3512 = vdwg.mxu0
    %v3513 = vadd.f32 %v3435, %v3510
    %v3514 = vxor.u32 %v3513, 2147483648
    %v3515 = vmul.f32 %v3514, 1.442695
    %v3516 = vpow.pop %v3515
    %v3517 = vadd.f32 %v3516, 1.0
    %v3518 = vrcp.pop %v3517
    %v3519 = vmul.f32 %v3517, %v3518
    %v3520 = vsub.f32 1.0, %v3519
    %v3521 = vmul.f32 %v3518, %v3520
    %v3522 = vadd.f32 %v3518, %v3521
    %vm3523 = vweird.f32 %v3517
    %vm3524 = vweird.f32 %v3518
    %vm3525 = vmor %vm3523, %vm3524
    %v3526 = vsel %vm3525, %v3518, %v3522
    %v3527 = vand.u32 2147483647, %v3517
    %vm3528 = vcmp.eq.f32.partialorder %v3527, 8.507059e+37
    %v3529 = vand.u32 %v3517, 2147483648
    %v3530 = vor.u32 1.1754944e-38, %v3529
    %v3531 = vsel %vm3528, %v3530, %v3526
    %v3532 = vmul.f32 1.0, %v3531
    %v3533 = vld [vmem:[#allocation5] sm:$0xff]
    %v3534 = vmul.f32 %v3354, %v3533
    %v3535 = vmul.f32 %v3256, %v3434
    %v3536 = vadd.f32 %v3534, %v3535
    %v3537 = vtanh.pop %v3536
    %v3538 = vmul.f32 %v3532, %v3537
    %3539 = vst [vmem:[#allocation5] sm:$0xff] %v3536
    %3540 = vst [vmem:[#allocation4] sm:$0xff] %v3538
    %s3541 = scalar_lea.vmem [#allocation3], 56
    %3542 = vst [vmem:[%s3541] sm:$0xff] %v3538
    %v3543 = vld [vmem:[#allocation3] sm:$0xff]
    %v3544 = vld [vmem:[#allocation3 + $0x8] sm:$0xff]
    %v3545 = vld [vmem:[#allocation3 + $0x10] sm:$0xff]
    %v3546 = vld [vmem:[#allocation3 + $0x18] sm:$0xff]
    %v3547 = vld [vmem:[#allocation3 + $0x20] sm:$0xff]
    %v3548 = vld [vmem:[#allocation3 + $0x28] sm:$0xff]
    %v3549 = vld [vmem:[#allocation3 + $0x30] sm:$0xff]
    %v3550 = vld [vmem:[#allocation3 + $0x38] sm:$0xff]
    %v3551 = vpack.c.bf16 %v3543, %v3543
    %v3552 = vpack.c.bf16 %v3544, %v3544
    %v3553 = vpack.c.bf16 %v3545, %v3545
    %v3554 = vpack.c.bf16 %v3546, %v3546
    %v3555 = vpack.c.bf16 %v3547, %v3547
    %v3556 = vpack.c.bf16 %v3548, %v3548
    %v3557 = vpack.c.bf16 %v3549, %v3549
    %v3558 = vpack.c.bf16 %v3550, %v3550
    %3559 = vst [vmem:[%s6] sm:$0xf] %v3551
    %3560 = vst [vmem:[%s6 + $0x4] sm:$0xf] %v3552
    %3561 = vst [vmem:[%s6 + $0x8] sm:$0xf] %v3553
    %3562 = vst [vmem:[%s6 + $0xc] sm:$0xf] %v3554
    %3563 = vst [vmem:[%s6 + $0x10] sm:$0xf] %v3555
    %3564 = vst [vmem:[%s6 + $0x14] sm:$0xf] %v3556
    %3565 = vst [vmem:[%s6 + $0x18] sm:$0xf] %v3557
    %3566 = vst [vmem:[%s6 + $0x1c] sm:$0xf] %v3558
    // Predicated region
    $region34: #{rnn_model_forward.3} parent=1 // pred_check
      %p3567 = pneg %p42
    $region35: #{rnn_model_forward.3} parent=1 // pred_check_branch
      %3569 = sbr.rel (%p3567) target = $region37
    $region36: #{rnn_model_forward.3} parent=1 // pred_region
      %v3570 = vld [vmem:[#allocation4] sm:$0xff]
      %3571 = vst [vmem:[%s7] sm:$0xff] %v3570
      %v3572 = vld [vmem:[#allocation5] sm:$0xff]
      %3573 = vst [vmem:[%s8] sm:$0xff] %v3572
    $region37: #{rnn_model_forward.3} parent=1 // pred_fallthru
      _
    // Predicated region
    $region38: #{rnn_model_forward.3} parent=1 // pred_check
      _
    $region39: #{rnn_model_forward.3} parent=1 // pred_check_branch
      %3575 = sbr.rel (0) target = $region41
    $region40: #{rnn_model_forward.3} parent=1 // pred_region
      _
    $region41: #{rnn_model_forward.3} parent=1 // pred_fallthru
      _
    // Predicated region
    $region42: #{rnn_model_forward.3} parent=1 // pred_check
      _
    $region43: #{rnn_model_forward.3} parent=1 // pred_check_branch
      %3577 = sbr.rel (0) target = $region45
    $region44: #{rnn_model_forward.3} parent=1 // pred_region
      _
    $region45: #{rnn_model_forward.3} parent=1 // pred_fallthru
      _
    // Predicated region
    $region46: #{rnn_model_forward.3} parent=1 // pred_check
      _
    $region47: #{rnn_model_forward.3} parent=1 // pred_check_branch
      %3579 = sbr.rel (0) target = $region49
    $region48: #{rnn_model_forward.3} parent=1 // pred_region
      _
    $region49: #{rnn_model_forward.3} parent=1 // pred_fallthru
      _
    // Predicated region
    $region50: #{rnn_model_forward.3} parent=1 // pred_check
      _
    $region51: #{rnn_model_forward.3} parent=1 // pred_check_branch
      %3581 = sbr.rel (0) target = $region53
    $region52: #{rnn_model_forward.3} parent=1 // pred_region
      _
    $region53: #{rnn_model_forward.3} parent=1 // pred_fallthru
      _
    // Predicated region
    $region54: #{rnn_model_forward.3} parent=1 // pred_check
      _
    $region55: #{rnn_model_forward.3} parent=1 // pred_check_branch
      %3583 = sbr.rel (0) target = $region57
    $region56: #{rnn_model_forward.3} parent=1 // pred_region
      _
    $region57: #{rnn_model_forward.3} parent=1 // pred_fallthru
      _
    // Predicated region
    $region58: #{rnn_model_forward.3} parent=1 // pred_check
      _
    $region59: #{rnn_model_forward.3} parent=1 // pred_check_branch
      %3585 = sbr.rel (0) target = $region61
    $region60: #{rnn_model_forward.3} parent=1 // pred_region
      _
    $region61: #{rnn_model_forward.3} parent=1 // pred_fallthru
      _
    %3586 = vsyncpa [#allocation7], 1

// kernel: rnn_model_forward.4
$region0: #{rnn_model_forward.4}
  #allocation0 [shape = 'u32[]', space=smem, size = 0x4, offset = 0x4, fixed_abs, tag = 'smem constant byte address 0x4 - core index']
  #allocation1 [shape = 'u32[72,128]{1,0:T(1,128)}', space=vmem, size = 0x9000, scoped, tag = 'internal scratch']
  #allocation2 [shape = 'f32[64,512]{1,0:T(8,128)}', space=vmem, size = 0x20000, scoped, tag = 'scratch operand']
  #allocation3 [shape = 'f32[64,128]{1,0:T(8,128)}', space=vmem, size = 0x8000, scoped, tag = 'scratch operand']
  #allocation4 [shape = 'f32[8,128]{1,0:T(8,128)}', space=vmem, size = 0x1000, scoped, tag = 'scratch operand']
  #allocation5 [shape = 'f32[8,128]{1,0:T(8,128)}', space=vmem, size = 0x1000, scoped, tag = 'scratch operand']
  %s0 = inlined_call_operand.vmem [shape: bf16[1,64,128], index: 0, kind: input, shape index: {}]
  %s1 = inlined_call_operand.hbm [shape: bf16[128,512], index: 1, kind: input, shape index: {}]
  %s2 = inlined_call_operand.hbm [shape: bf16[128,512], index: 2, kind: input, shape index: {}]
  %s3 = inlined_call_operand.vmem [shape: f32[1,512], index: 3, kind: input, shape index: {}]
  %s4 = inlined_call_operand.vmem [shape: f32[1,8,128], index: 4, kind: input, shape index: {}]
  %s5 = inlined_call_operand.vmem [shape: f32[1,8,128], index: 5, kind: input, shape index: {}]
  %s6 = inlined_call_operand.vmem [shape: bf16[1,64,128], index: 6, kind: output, shape index: {0}]
  %s7 = inlined_call_operand.vmem [shape: f32[1,8,128], index: 7, kind: output, shape index: {1}]
  %s8 = inlined_call_operand.vmem [shape: f32[1,8,128], index: 8, kind: output, shape index: {2}]
  %9 = xla_tuple %s6, %s7, %s8
  %s10 = sld [smem:[#allocation0]]
  $region66: #{rnn_model_forward.4} parent=0
    _
  %s12 = ssub.s32 1, %s10
  %s13 = scalar_select 0, %s12, %s10
  $region1: #{rnn_model_forward.4} parent=0
    #allocation6 [shape = 'u8[131072]{0}', space=vmem, size = 0x20000, scoped, tag = 'input window, operand 1, single buffered']
    #allocation7 [shape = 's32[1]{0}', space=sflag, size = 0x4, scoped, tag = 'scoped memory for rnn_model_forward.4']
    #allocation8 [shape = 'u8[131072]{0}', space=vmem, size = 0x20000, scoped, tag = 'input window, operand 2, single buffered']
    #allocation9 [shape = 's32[1]{0}', space=sflag, size = 0x4, scoped, tag = 'scoped memory for rnn_model_forward.4']
    %14 = vsyncpa [#allocation7], 0
    %15 = vsyncpa [#allocation9], 0
    // Predicated region
    $region2: #{rnn_model_forward.4} parent=1 // pred_check
      _
    $region3: #{rnn_model_forward.4} parent=1 // pred_check_branch
      %17 = sbr.rel (0) target = $region5
    $region4: #{rnn_model_forward.4} parent=1 // pred_region
      _
    $region5: #{rnn_model_forward.4} parent=1 // pred_fallthru
      _
    // Predicated region
    $region6: #{rnn_model_forward.4} parent=1 // pred_check
      _
    $region7: #{rnn_model_forward.4} parent=1 // pred_check_branch
      %19 = sbr.rel (0) target = $region9
    $region8: #{rnn_model_forward.4} parent=1 // pred_region
      %21 = vsyncadd [#allocation7], 0
      %s22 = sshll.u32 %s1, 4
      %s23 = int_to_ptr.hbm [resolvable:$true] %s22
      %s24 = sshll.u32 [#allocation6], 4
      %s25 = int_to_ptr.vmem [resolvable:$true] %s24
      %30 = dma.hbm_to_vmem [thread:$0]  %s23, 4096, %s25, [#allocation7], 256, 256, 16
    $region9: #{rnn_model_forward.4} parent=1 // pred_fallthru
      _
    // Predicated region
    $region10: #{rnn_model_forward.4} parent=1 // pred_check
      _
    $region11: #{rnn_model_forward.4} parent=1 // pred_check_branch
      %32 = sbr.rel (0) target = $region13
    $region12: #{rnn_model_forward.4} parent=1 // pred_region
      %34 = vsyncadd [#allocation9], 0
      %s35 = sshll.u32 %s2, 4
      %s36 = int_to_ptr.hbm [resolvable:$true] %s35
      %s37 = sshll.u32 [#allocation8], 4
      %s38 = int_to_ptr.vmem [resolvable:$true] %s37
      %43 = dma.hbm_to_vmem [thread:$0]  %s36, 4096, %s38, [#allocation9], 256, 256, 16
    $region13: #{rnn_model_forward.4} parent=1 // pred_fallthru
      _
    // Predicated region
    $region14: #{rnn_model_forward.4} parent=1 // pred_check
      _
    $region15: #{rnn_model_forward.4} parent=1 // pred_check_branch
      %45 = sbr.rel (0) target = $region17
    $region16: #{rnn_model_forward.4} parent=1 // pred_region
      _
    $region17: #{rnn_model_forward.4} parent=1 // pred_fallthru
      _
    // Predicated region
    $region18: #{rnn_model_forward.4} parent=1 // pred_check
      _
    $region19: #{rnn_model_forward.4} parent=1 // pred_check_branch
      %47 = sbr.rel (0) target = $region21
    $region20: #{rnn_model_forward.4} parent=1 // pred_region
      _
    $region21: #{rnn_model_forward.4} parent=1 // pred_fallthru
      _
    // Predicated region
    $region22: #{rnn_model_forward.4} parent=1 // pred_check
      _
    $region23: #{rnn_model_forward.4} parent=1 // pred_check_branch
      %49 = sbr.rel (0) target = $region25
    $region24: #{rnn_model_forward.4} parent=1 // pred_region
      _
    $region25: #{rnn_model_forward.4} parent=1 // pred_fallthru
      _
    // Predicated region
    $region26: #{rnn_model_forward.4} parent=1 // pred_check
      _
    $region27: #{rnn_model_forward.4} parent=1 // pred_check_branch
      %51 = sbr.rel (0) target = $region29
    $region28: #{rnn_model_forward.4} parent=1 // pred_region
      %53 = dma.done [#allocation7], 4096
    $region29: #{rnn_model_forward.4} parent=1 // pred_fallthru
      _
    // Predicated region
    $region30: #{rnn_model_forward.4} parent=1 // pred_check
      _
    $region31: #{rnn_model_forward.4} parent=1 // pred_check_branch
      %55 = sbr.rel (0) target = $region33
    $region32: #{rnn_model_forward.4} parent=1 // pred_region
      %57 = dma.done [#allocation9], 4096
    $region33: #{rnn_model_forward.4} parent=1 // pred_fallthru
      _
    %p58 = scmp.eq.s32.totalorder 0, 0
    // Predicated region
    $region34: #{rnn_model_forward.4} parent=1 // pred_check
      %p59 = pneg %p58
    $region35: #{rnn_model_forward.4} parent=1 // pred_check_branch
      %61 = sbr.rel (%p59) target = $region37
    $region36: #{rnn_model_forward.4} parent=1 // pred_region
      %v62 = vld [vmem:[%s4] sm:$0xff]
      %63 = vst [vmem:[#allocation4] sm:$0xff] %v62
      %v64 = vld [vmem:[%s5] sm:$0xff]
      %65 = vst [vmem:[#allocation5] sm:$0xff] %v64
    $region37: #{rnn_model_forward.4} parent=1 // pred_fallthru
      _
    %v66 = vld [vmem:[%s0] sm:$0xf]
    %v67 = vld [vmem:[%s0 + $0x4] sm:$0xf]
    %v68 = vld [vmem:[%s0 + $0x8] sm:$0xf]
    %v69 = vld [vmem:[%s0 + $0xc] sm:$0xf]
    %v70 = vld [vmem:[%s0 + $0x10] sm:$0xf]
    %v71 = vld [vmem:[%s0 + $0x14] sm:$0xf]
    %v72 = vld [vmem:[%s0 + $0x18] sm:$0xf]
    %v73 = vld [vmem:[%s0 + $0x1c] sm:$0xf]
    %v74 = vld [vmem:[#allocation6] sm:$0xff]
    %v75 = vld [vmem:[#allocation6 + $0x8] sm:$0xff]
    %v76 = vld [vmem:[#allocation6 + $0x10] sm:$0xff]
    %v77 = vld [vmem:[#allocation6 + $0x18] sm:$0xff]
    %v78 = vld [vmem:[#allocation6 + $0x20] sm:$0xff]
    %v79 = vld [vmem:[#allocation6 + $0x28] sm:$0xff]
    %v80 = vld [vmem:[#allocation6 + $0x30] sm:$0xff]
    %v81 = vld [vmem:[#allocation6 + $0x38] sm:$0xff]
    %v82 = vld [vmem:[#allocation6 + $0x40] sm:$0xff]
    %v83 = vld [vmem:[#allocation6 + $0x48] sm:$0xff]
    %v84 = vld [vmem:[#allocation6 + $0x50] sm:$0xff]
    %v85 = vld [vmem:[#allocation6 + $0x58] sm:$0xff]
    %v86 = vld [vmem:[#allocation6 + $0x60] sm:$0xff]
    %v87 = vld [vmem:[#allocation6 + $0x68] sm:$0xff]
    %v88 = vld [vmem:[#allocation6 + $0x70] sm:$0xff]
    %v89 = vld [vmem:[#allocation6 + $0x78] sm:$0xff]
    %v90 = vld [vmem:[#allocation6 + $0x80] sm:$0xff]
    %v91 = vld [vmem:[#allocation6 + $0x88] sm:$0xff]
    %v92 = vld [vmem:[#allocation6 + $0x90] sm:$0xff]
    %v93 = vld [vmem:[#allocation6 + $0x98] sm:$0xff]
    %v94 = vld [vmem:[#allocation6 + $0xa0] sm:$0xff]
    %v95 = vld [vmem:[#allocation6 + $0xa8] sm:$0xff]
    %v96 = vld [vmem:[#allocation6 + $0xb0] sm:$0xff]
    %v97 = vld [vmem:[#allocation6 + $0xb8] sm:$0xff]
    %v98 = vld [vmem:[#allocation6 + $0xc0] sm:$0xff]
    %v99 = vld [vmem:[#allocation6 + $0xc8] sm:$0xff]
    %v100 = vld [vmem:[#allocation6 + $0xd0] sm:$0xff]
    %v101 = vld [vmem:[#allocation6 + $0xd8] sm:$0xff]
    %v102 = vld [vmem:[#allocation6 + $0xe0] sm:$0xff]
    %v103 = vld [vmem:[#allocation6 + $0xe8] sm:$0xff]
    %v104 = vld [vmem:[#allocation6 + $0xf0] sm:$0xff]
    %v105 = vld [vmem:[#allocation6 + $0xf8] sm:$0xff]
    %v106 = vld [vmem:[%s3] sm:$0xf]
    %v108 = vperm.slane %v106, 0
    %v109 = vperm.slane %v106, 1
    %v110 = vperm.slane %v106, 2
    %v111 = vperm.slane %v106, 3
    %v124 = vunpack.c.l.b16 %v66
    %v125 = vunpack.c.l.b16 %v67
    %v126 = vunpack.c.l.b16 %v68
    %v127 = vunpack.c.l.b16 %v69
    %v128 = vunpack.c.l.b16 %v70
    %v129 = vunpack.c.l.b16 %v71
    %v130 = vunpack.c.l.b16 %v72
    %v131 = vunpack.c.l.b16 %v73
    %v132 = vpack.c.b16 %v125, %v124
    %v133 = vpack.c.b16 %v127, %v126
    %v134 = vpack.c.b16 %v129, %v128
    %v135 = vpack.c.b16 %v131, %v130
    %v172 = vunpack.c.l.b16 %v74
    %v173 = vunpack.c.h.b16 %v74
    %v174 = vunpack.c.l.b16 %v75
    %v175 = vunpack.c.h.b16 %v75
    %v176 = vunpack.c.l.b16 %v76
    %v177 = vunpack.c.h.b16 %v76
    %v178 = vunpack.c.l.b16 %v77
    %v179 = vunpack.c.h.b16 %v77
    %v180 = vunpack.c.l.b16 %v78
    %v181 = vunpack.c.h.b16 %v78
    %v182 = vunpack.c.l.b16 %v79
    %v183 = vunpack.c.h.b16 %v79
    %v184 = vunpack.c.l.b16 %v80
    %v185 = vunpack.c.h.b16 %v80
    %v186 = vunpack.c.l.b16 %v81
    %v187 = vunpack.c.h.b16 %v81
    %v188 = vunpack.c.l.b16 %v82
    %v189 = vunpack.c.h.b16 %v82
    %v190 = vunpack.c.l.b16 %v83
    %v191 = vunpack.c.h.b16 %v83
    %v192 = vunpack.c.l.b16 %v84
    %v193 = vunpack.c.h.b16 %v84
    %v194 = vunpack.c.l.b16 %v85
    %v195 = vunpack.c.h.b16 %v85
    %v196 = vunpack.c.l.b16 %v86
    %v197 = vunpack.c.h.b16 %v86
    %v198 = vunpack.c.l.b16 %v87
    %v199 = vunpack.c.h.b16 %v87
    %v200 = vunpack.c.l.b16 %v88
    %v201 = vunpack.c.h.b16 %v88
    %v202 = vunpack.c.l.b16 %v89
    %v203 = vunpack.c.h.b16 %v89
    %v204 = vunpack.c.l.b16 %v90
    %v205 = vunpack.c.h.b16 %v90
    %v206 = vunpack.c.l.b16 %v91
    %v207 = vunpack.c.h.b16 %v91
    %v208 = vunpack.c.l.b16 %v92
    %v209 = vunpack.c.h.b16 %v92
    %v210 = vunpack.c.l.b16 %v93
    %v211 = vunpack.c.h.b16 %v93
    %v212 = vunpack.c.l.b16 %v94
    %v213 = vunpack.c.h.b16 %v94
    %v214 = vunpack.c.l.b16 %v95
    %v215 = vunpack.c.h.b16 %v95
    %v216 = vunpack.c.l.b16 %v96
    %v217 = vunpack.c.h.b16 %v96
    %v218 = vunpack.c.l.b16 %v97
    %v219 = vunpack.c.h.b16 %v97
    %v220 = vunpack.c.l.b16 %v98
    %v221 = vunpack.c.h.b16 %v98
    %v222 = vunpack.c.l.b16 %v99
    %v223 = vunpack.c.h.b16 %v99
    %v224 = vunpack.c.l.b16 %v100
    %v225 = vunpack.c.h.b16 %v100
    %v226 = vunpack.c.l.b16 %v101
    %v227 = vunpack.c.h.b16 %v101
    %v228 = vunpack.c.l.b16 %v102
    %v229 = vunpack.c.h.b16 %v102
    %v230 = vunpack.c.l.b16 %v103
    %v231 = vunpack.c.h.b16 %v103
    %v232 = vunpack.c.l.b16 %v104
    %v233 = vunpack.c.h.b16 %v104
    %v234 = vunpack.c.l.b16 %v105
    %v235 = vunpack.c.h.b16 %v105
    %v236 = vpack.c.b16 %v176, %v172
    %v237 = vpack.c.b16 %v177, %v173
    %v238 = vpack.c.b16 %v178, %v174
    %v239 = vpack.c.b16 %v179, %v175
    %v240 = vpack.c.b16 %v184, %v180
    %v241 = vpack.c.b16 %v185, %v181
    %v242 = vpack.c.b16 %v186, %v182
    %v243 = vpack.c.b16 %v187, %v183
    %v244 = vpack.c.b16 %v192, %v188
    %v245 = vpack.c.b16 %v193, %v189
    %v246 = vpack.c.b16 %v194, %v190
    %v247 = vpack.c.b16 %v195, %v191
    %v248 = vpack.c.b16 %v200, %v196
    %v249 = vpack.c.b16 %v201, %v197
    %v250 = vpack.c.b16 %v202, %v198
    %v251 = vpack.c.b16 %v203, %v199
    %v252 = vpack.c.b16 %v208, %v204
    %v253 = vpack.c.b16 %v209, %v205
    %v254 = vpack.c.b16 %v210, %v206
    %v255 = vpack.c.b16 %v211, %v207
    %v256 = vpack.c.b16 %v216, %v212
    %v257 = vpack.c.b16 %v217, %v213
    %v258 = vpack.c.b16 %v218, %v214
    %v259 = vpack.c.b16 %v219, %v215
    %v260 = vpack.c.b16 %v224, %v220
    %v261 = vpack.c.b16 %v225, %v221
    %v262 = vpack.c.b16 %v226, %v222
    %v263 = vpack.c.b16 %v227, %v223
    %v264 = vpack.c.b16 %v232, %v228
    %v265 = vpack.c.b16 %v233, %v229
    %v266 = vpack.c.b16 %v234, %v230
    %v267 = vpack.c.b16 %v235, %v231
    %300 = vmatpush.bf16.msra.mxu0 %v264
    %301 = vmatpush.bf16.msra.mxu0 %v260
    %302 = vmatpush.bf16.msra.mxu0 %v256
    %303 = vmatpush.bf16.msra.mxu0 %v252
    %304 = vmatpush.bf16.msra.mxu0 %v248
    %305 = vmatpush.bf16.msra.mxu0 %v244
    %306 = vmatpush.bf16.msra.mxu0 %v240
    %307 = vmatpush.bf16.msra.mxu0 %v236
    %308 = vmatmul.bf16.gmra.mxu0 %v132
    %v309 = vpop.f32.mrf.mxu0
    %v310 = vadd.f32 %v108, %v309
    %v311 = vpop.f32.mrf.mxu0
    %v312 = vadd.f32 %v108, %v311
    %313 = vmatmul.bf16.gmra.mxu0 %v133
    %v314 = vpop.f32.mrf.mxu0
    %v315 = vadd.f32 %v108, %v314
    %v316 = vpop.f32.mrf.mxu0
    %v317 = vadd.f32 %v108, %v316
    %318 = vmatmul.bf16.gmra.mxu0 %v134
    %v319 = vpop.f32.mrf.mxu0
    %v320 = vadd.f32 %v108, %v319
    %v321 = vpop.f32.mrf.mxu0
    %v322 = vadd.f32 %v108, %v321
    %323 = vmatmul.bf16.gmra.mxu0 %v135
    %v324 = vpop.f32.mrf.mxu0
    %v325 = vadd.f32 %v108, %v324
    %v326 = vpop.f32.mrf.mxu0
    %v327 = vadd.f32 %v108, %v326
    %328 = vdwg.mxu0
    %329 = vmatpush.bf16.msra.mxu0 %v265
    %330 = vmatpush.bf16.msra.mxu0 %v261
    %331 = vmatpush.bf16.msra.mxu0 %v257
    %332 = vmatpush.bf16.msra.mxu0 %v253
    %333 = vmatpush.bf16.msra.mxu0 %v249
    %334 = vmatpush.bf16.msra.mxu0 %v245
    %335 = vmatpush.bf16.msra.mxu0 %v241
    %336 = vmatpush.bf16.msra.mxu0 %v237
    %337 = vmatmul.bf16.gmra.mxu0 %v132
    %v338 = vpop.f32.mrf.mxu0
    %v339 = vadd.f32 %v109, %v338
    %v340 = vpop.f32.mrf.mxu0
    %v341 = vadd.f32 %v109, %v340
    %342 = vmatmul.bf16.gmra.mxu0 %v133
    %v343 = vpop.f32.mrf.mxu0
    %v344 = vadd.f32 %v109, %v343
    %v345 = vpop.f32.mrf.mxu0
    %v346 = vadd.f32 %v109, %v345
    %347 = vmatmul.bf16.gmra.mxu0 %v134
    %v348 = vpop.f32.mrf.mxu0
    %v349 = vadd.f32 %v109, %v348
    %v350 = vpop.f32.mrf.mxu0
    %v351 = vadd.f32 %v109, %v350
    %352 = vmatmul.bf16.gmra.mxu0 %v135
    %v353 = vpop.f32.mrf.mxu0
    %v354 = vadd.f32 %v109, %v353
    %v355 = vpop.f32.mrf.mxu0
    %v356 = vadd.f32 %v109, %v355
    %357 = vdwg.mxu0
    %358 = vmatpush.bf16.msra.mxu0 %v266
    %359 = vmatpush.bf16.msra.mxu0 %v262
    %360 = vmatpush.bf16.msra.mxu0 %v258
    %361 = vmatpush.bf16.msra.mxu0 %v254
    %362 = vmatpush.bf16.msra.mxu0 %v250
    %363 = vmatpush.bf16.msra.mxu0 %v246
    %364 = vmatpush.bf16.msra.mxu0 %v242
    %365 = vmatpush.bf16.msra.mxu0 %v238
    %366 = vmatmul.bf16.gmra.mxu0 %v132
    %v367 = vpop.f32.mrf.mxu0
    %v368 = vadd.f32 %v110, %v367
    %v369 = vpop.f32.mrf.mxu0
    %v370 = vadd.f32 %v110, %v369
    %371 = vmatmul.bf16.gmra.mxu0 %v133
    %v372 = vpop.f32.mrf.mxu0
    %v373 = vadd.f32 %v110, %v372
    %v374 = vpop.f32.mrf.mxu0
    %v375 = vadd.f32 %v110, %v374
    %376 = vmatmul.bf16.gmra.mxu0 %v134
    %v377 = vpop.f32.mrf.mxu0
    %v378 = vadd.f32 %v110, %v377
    %v379 = vpop.f32.mrf.mxu0
    %v380 = vadd.f32 %v110, %v379
    %381 = vmatmul.bf16.gmra.mxu0 %v135
    %v382 = vpop.f32.mrf.mxu0
    %v383 = vadd.f32 %v110, %v382
    %v384 = vpop.f32.mrf.mxu0
    %v385 = vadd.f32 %v110, %v384
    %386 = vdwg.mxu0
    %387 = vmatpush.bf16.msra.mxu0 %v267
    %388 = vmatpush.bf16.msra.mxu0 %v263
    %389 = vmatpush.bf16.msra.mxu0 %v259
    %390 = vmatpush.bf16.msra.mxu0 %v255
    %391 = vmatpush.bf16.msra.mxu0 %v251
    %392 = vmatpush.bf16.msra.mxu0 %v247
    %393 = vmatpush.bf16.msra.mxu0 %v243
    %394 = vmatpush.bf16.msra.mxu0 %v239
    %395 = vmatmul.bf16.gmra.mxu0 %v132
    %v396 = vpop.f32.mrf.mxu0
    %v397 = vadd.f32 %v111, %v396
    %v398 = vpop.f32.mrf.mxu0
    %v399 = vadd.f32 %v111, %v398
    %400 = vmatmul.bf16.gmra.mxu0 %v133
    %v401 = vpop.f32.mrf.mxu0
    %v402 = vadd.f32 %v111, %v401
    %v403 = vpop.f32.mrf.mxu0
    %v404 = vadd.f32 %v111, %v403
    %405 = vmatmul.bf16.gmra.mxu0 %v134
    %v406 = vpop.f32.mrf.mxu0
    %v407 = vadd.f32 %v111, %v406
    %v408 = vpop.f32.mrf.mxu0
    %v409 = vadd.f32 %v111, %v408
    %410 = vmatmul.bf16.gmra.mxu0 %v135
    %v411 = vpop.f32.mrf.mxu0
    %v412 = vadd.f32 %v111, %v411
    %v413 = vpop.f32.mrf.mxu0
    %v414 = vadd.f32 %v111, %v413
    %415 = vdwg.mxu0
    %416 = vst [vmem:[#allocation2] sm:$0xff] %v310
    %417 = vst [vmem:[#allocation2 + $0x8] sm:$0xff] %v339
    %418 = vst [vmem:[#allocation2 + $0x10] sm:$0xff] %v368
    %419 = vst [vmem:[#allocation2 + $0x18] sm:$0xff] %v397
    %420 = vst [vmem:[#allocation2 + $0x20] sm:$0xff] %v312
    %421 = vst [vmem:[#allocation2 + $0x28] sm:$0xff] %v341
    %422 = vst [vmem:[#allocation2 + $0x30] sm:$0xff] %v370
    %423 = vst [vmem:[#allocation2 + $0x38] sm:$0xff] %v399
    %424 = vst [vmem:[#allocation2 + $0x40] sm:$0xff] %v315
    %425 = vst [vmem:[#allocation2 + $0x48] sm:$0xff] %v344
    %426 = vst [vmem:[#allocation2 + $0x50] sm:$0xff] %v373
    %427 = vst [vmem:[#allocation2 + $0x58] sm:$0xff] %v402
    %428 = vst [vmem:[#allocation2 + $0x60] sm:$0xff] %v317
    %429 = vst [vmem:[#allocation2 + $0x68] sm:$0xff] %v346
    %430 = vst [vmem:[#allocation2 + $0x70] sm:$0xff] %v375
    %431 = vst [vmem:[#allocation2 + $0x78] sm:$0xff] %v404
    %432 = vst [vmem:[#allocation2 + $0x80] sm:$0xff] %v320
    %433 = vst [vmem:[#allocation2 + $0x88] sm:$0xff] %v349
    %434 = vst [vmem:[#allocation2 + $0x90] sm:$0xff] %v378
    %435 = vst [vmem:[#allocation2 + $0x98] sm:$0xff] %v407
    %436 = vst [vmem:[#allocation2 + $0xa0] sm:$0xff] %v322
    %437 = vst [vmem:[#allocation2 + $0xa8] sm:$0xff] %v351
    %438 = vst [vmem:[#allocation2 + $0xb0] sm:$0xff] %v380
    %439 = vst [vmem:[#allocation2 + $0xb8] sm:$0xff] %v409
    %440 = vst [vmem:[#allocation2 + $0xc0] sm:$0xff] %v325
    %441 = vst [vmem:[#allocation2 + $0xc8] sm:$0xff] %v354
    %442 = vst [vmem:[#allocation2 + $0xd0] sm:$0xff] %v383
    %443 = vst [vmem:[#allocation2 + $0xd8] sm:$0xff] %v412
    %444 = vst [vmem:[#allocation2 + $0xe0] sm:$0xff] %v327
    %445 = vst [vmem:[#allocation2 + $0xe8] sm:$0xff] %v356
    %446 = vst [vmem:[#allocation2 + $0xf0] sm:$0xff] %v385
    %447 = vst [vmem:[#allocation2 + $0xf8] sm:$0xff] %v414
    %v448 = vld [vmem:[#allocation4] sm:$0xff]
    %v449 = vpack.c.bf16 %v448, %v448
    %s450 = smul.u32 0, 4
    %s451 = smul.addr %s450, 8
    %s452 = scalar_lea.vmem [#allocation2], %s451
    %v453 = vld [vmem:[%s452] sm:$0xff]
    %v454 = vld [vmem:[#allocation8] sm:$0xf]
    %v455 = vld [vmem:[#allocation8 + $0x10] sm:$0xf]
    %v456 = vld [vmem:[#allocation8 + $0x20] sm:$0xf]
    %v457 = vld [vmem:[#allocation8 + $0x30] sm:$0xf]
    %v458 = vld [vmem:[#allocation8 + $0x40] sm:$0xf]
    %v459 = vld [vmem:[#allocation8 + $0x50] sm:$0xf]
    %v460 = vld [vmem:[#allocation8 + $0x60] sm:$0xf]
    %v461 = vld [vmem:[#allocation8 + $0x70] sm:$0xf]
    %v462 = vld [vmem:[#allocation8 + $0x80] sm:$0xf]
    %v463 = vld [vmem:[#allocation8 + $0x90] sm:$0xf]
    %v464 = vld [vmem:[#allocation8 + $0xa0] sm:$0xf]
    %v465 = vld [vmem:[#allocation8 + $0xb0] sm:$0xf]
    %v466 = vld [vmem:[#allocation8 + $0xc0] sm:$0xf]
    %v467 = vld [vmem:[#allocation8 + $0xd0] sm:$0xf]
    %v468 = vld [vmem:[#allocation8 + $0xe0] sm:$0xf]
    %v469 = vld [vmem:[#allocation8 + $0xf0] sm:$0xf]
    %v486 = vunpack.c.l.b16 %v454
    %v487 = vunpack.c.l.b16 %v455
    %v488 = vunpack.c.l.b16 %v456
    %v489 = vunpack.c.l.b16 %v457
    %v490 = vunpack.c.l.b16 %v458
    %v491 = vunpack.c.l.b16 %v459
    %v492 = vunpack.c.l.b16 %v460
    %v493 = vunpack.c.l.b16 %v461
    %v494 = vunpack.c.l.b16 %v462
    %v495 = vunpack.c.l.b16 %v463
    %v496 = vunpack.c.l.b16 %v464
    %v497 = vunpack.c.l.b16 %v465
    %v498 = vunpack.c.l.b16 %v466
    %v499 = vunpack.c.l.b16 %v467
    %v500 = vunpack.c.l.b16 %v468
    %v501 = vunpack.c.l.b16 %v469
    %v502 = vpack.c.b16 %v487, %v486
    %v503 = vpack.c.b16 %v489, %v488
    %v504 = vpack.c.b16 %v491, %v490
    %v505 = vpack.c.b16 %v493, %v492
    %v506 = vpack.c.b16 %v495, %v494
    %v507 = vpack.c.b16 %v497, %v496
    %v508 = vpack.c.b16 %v499, %v498
    %v509 = vpack.c.b16 %v501, %v500
    %518 = vmatpush.bf16.msra.mxu0 %v509
    %519 = vmatpush.bf16.msra.mxu0 %v508
    %520 = vmatpush.bf16.msra.mxu0 %v507
    %521 = vmatpush.bf16.msra.mxu0 %v506
    %522 = vmatpush.bf16.msra.mxu0 %v505
    %523 = vmatpush.bf16.msra.mxu0 %v504
    %524 = vmatpush.bf16.msra.mxu0 %v503
    %525 = vmatpush.bf16.msra.mxu0 %v502
    %526 = vmatmul.bf16.gmra.mxu0 %v449
    %v527 = vpop.f32.mrf.mxu0
    %v528 = vadd.f32 0.0, %v527
    %v529 = vpop.f32.mrf.mxu0
    %530 = vdwg.mxu0
    %v531 = vadd.f32 %v453, %v528
    %v532 = vxor.u32 %v531, 2147483648
    %v533 = vmul.f32 %v532, 1.442695
    %v534 = vpow.pop %v533
    %v535 = vadd.f32 %v534, 1.0
    %v536 = vrcp.pop %v535
    %v537 = vmul.f32 %v535, %v536
    %v538 = vsub.f32 1.0, %v537
    %v539 = vmul.f32 %v536, %v538
    %v540 = vadd.f32 %v536, %v539
    %vm541 = vweird.f32 %v535
    %vm542 = vweird.f32 %v536
    %vm543 = vmor %vm541, %vm542
    %v544 = vsel %vm543, %v536, %v540
    %v545 = vand.u32 2147483647, %v535
    %vm546 = vcmp.eq.f32.partialorder %v545, 8.507059e+37
    %v547 = vand.u32 %v535, 2147483648
    %v548 = vor.u32 1.1754944e-38, %v547
    %v549 = vsel %vm546, %v548, %v544
    %v550 = vmul.f32 1.0, %v549
    %v551 = vld [vmem:[%s452 + $0x8] sm:$0xff]
    %v552 = vld [vmem:[#allocation8 + $0x4] sm:$0xf]
    %v553 = vld [vmem:[#allocation8 + $0x14] sm:$0xf]
    %v554 = vld [vmem:[#allocation8 + $0x24] sm:$0xf]
    %v555 = vld [vmem:[#allocation8 + $0x34] sm:$0xf]
    %v556 = vld [vmem:[#allocation8 + $0x44] sm:$0xf]
    %v557 = vld [vmem:[#allocation8 + $0x54] sm:$0xf]
    %v558 = vld [vmem:[#allocation8 + $0x64] sm:$0xf]
    %v559 = vld [vmem:[#allocation8 + $0x74] sm:$0xf]
    %v560 = vld [vmem:[#allocation8 + $0x84] sm:$0xf]
    %v561 = vld [vmem:[#allocation8 + $0x94] sm:$0xf]
    %v562 = vld [vmem:[#allocation8 + $0xa4] sm:$0xf]
    %v563 = vld [vmem:[#allocation8 + $0xb4] sm:$0xf]
    %v564 = vld [vmem:[#allocation8 + $0xc4] sm:$0xf]
    %v565 = vld [vmem:[#allocation8 + $0xd4] sm:$0xf]
    %v566 = vld [vmem:[#allocation8 + $0xe4] sm:$0xf]
    %v567 = vld [vmem:[#allocation8 + $0xf4] sm:$0xf]
    %v584 = vunpack.c.l.b16 %v552
    %v585 = vunpack.c.l.b16 %v553
    %v586 = vunpack.c.l.b16 %v554
    %v587 = vunpack.c.l.b16 %v555
    %v588 = vunpack.c.l.b16 %v556
    %v589 = vunpack.c.l.b16 %v557
    %v590 = vunpack.c.l.b16 %v558
    %v591 = vunpack.c.l.b16 %v559
    %v592 = vunpack.c.l.b16 %v560
    %v593 = vunpack.c.l.b16 %v561
    %v594 = vunpack.c.l.b16 %v562
    %v595 = vunpack.c.l.b16 %v563
    %v596 = vunpack.c.l.b16 %v564
    %v597 = vunpack.c.l.b16 %v565
    %v598 = vunpack.c.l.b16 %v566
    %v599 = vunpack.c.l.b16 %v567
    %v600 = vpack.c.b16 %v585, %v584
    %v601 = vpack.c.b16 %v587, %v586
    %v602 = vpack.c.b16 %v589, %v588
    %v603 = vpack.c.b16 %v591, %v590
    %v604 = vpack.c.b16 %v593, %v592
    %v605 = vpack.c.b16 %v595, %v594
    %v606 = vpack.c.b16 %v597, %v596
    %v607 = vpack.c.b16 %v599, %v598
    %616 = vmatpush.bf16.msra.mxu0 %v607
    %617 = vmatpush.bf16.msra.mxu0 %v606
    %618 = vmatpush.bf16.msra.mxu0 %v605
    %619 = vmatpush.bf16.msra.mxu0 %v604
    %620 = vmatpush.bf16.msra.mxu0 %v603
    %621 = vmatpush.bf16.msra.mxu0 %v602
    %622 = vmatpush.bf16.msra.mxu0 %v601
    %623 = vmatpush.bf16.msra.mxu0 %v600
    %624 = vmatmul.bf16.gmra.mxu0 %v449
    %v625 = vpop.f32.mrf.mxu0
    %v626 = vadd.f32 0.0, %v625
    %v627 = vpop.f32.mrf.mxu0
    %628 = vdwg.mxu0
    %v629 = vadd.f32 %v551, %v626
    %v630 = vxor.u32 %v629, 2147483648
    %v631 = vmul.f32 %v630, 1.442695
    %v632 = vpow.pop %v631
    %v633 = vadd.f32 %v632, 1.0
    %v634 = vrcp.pop %v633
    %v635 = vmul.f32 %v633, %v634
    %v636 = vsub.f32 1.0, %v635
    %v637 = vmul.f32 %v634, %v636
    %v638 = vadd.f32 %v634, %v637
    %vm639 = vweird.f32 %v633
    %vm640 = vweird.f32 %v634
    %vm641 = vmor %vm639, %vm640
    %v642 = vsel %vm641, %v634, %v638
    %v643 = vand.u32 2147483647, %v633
    %vm644 = vcmp.eq.f32.partialorder %v643, 8.507059e+37
    %v645 = vand.u32 %v633, 2147483648
    %v646 = vor.u32 1.1754944e-38, %v645
    %v647 = vsel %vm644, %v646, %v642
    %v648 = vmul.f32 1.0, %v647
    %v649 = vld [vmem:[%s452 + $0x10] sm:$0xff]
    %v650 = vld [vmem:[#allocation8 + $0x8] sm:$0xf]
    %v651 = vld [vmem:[#allocation8 + $0x18] sm:$0xf]
    %v652 = vld [vmem:[#allocation8 + $0x28] sm:$0xf]
    %v653 = vld [vmem:[#allocation8 + $0x38] sm:$0xf]
    %v654 = vld [vmem:[#allocation8 + $0x48] sm:$0xf]
    %v655 = vld [vmem:[#allocation8 + $0x58] sm:$0xf]
    %v656 = vld [vmem:[#allocation8 + $0x68] sm:$0xf]
    %v657 = vld [vmem:[#allocation8 + $0x78] sm:$0xf]
    %v658 = vld [vmem:[#allocation8 + $0x88] sm:$0xf]
    %v659 = vld [vmem:[#allocation8 + $0x98] sm:$0xf]
    %v660 = vld [vmem:[#allocation8 + $0xa8] sm:$0xf]
    %v661 = vld [vmem:[#allocation8 + $0xb8] sm:$0xf]
    %v662 = vld [vmem:[#allocation8 + $0xc8] sm:$0xf]
    %v663 = vld [vmem:[#allocation8 + $0xd8] sm:$0xf]
    %v664 = vld [vmem:[#allocation8 + $0xe8] sm:$0xf]
    %v665 = vld [vmem:[#allocation8 + $0xf8] sm:$0xf]
    %v682 = vunpack.c.l.b16 %v650
    %v683 = vunpack.c.l.b16 %v651
    %v684 = vunpack.c.l.b16 %v652
    %v685 = vunpack.c.l.b16 %v653
    %v686 = vunpack.c.l.b16 %v654
    %v687 = vunpack.c.l.b16 %v655
    %v688 = vunpack.c.l.b16 %v656
    %v689 = vunpack.c.l.b16 %v657
    %v690 = vunpack.c.l.b16 %v658
    %v691 = vunpack.c.l.b16 %v659
    %v692 = vunpack.c.l.b16 %v660
    %v693 = vunpack.c.l.b16 %v661
    %v694 = vunpack.c.l.b16 %v662
    %v695 = vunpack.c.l.b16 %v663
    %v696 = vunpack.c.l.b16 %v664
    %v697 = vunpack.c.l.b16 %v665
    %v698 = vpack.c.b16 %v683, %v682
    %v699 = vpack.c.b16 %v685, %v684
    %v700 = vpack.c.b16 %v687, %v686
    %v701 = vpack.c.b16 %v689, %v688
    %v702 = vpack.c.b16 %v691, %v690
    %v703 = vpack.c.b16 %v693, %v692
    %v704 = vpack.c.b16 %v695, %v694
    %v705 = vpack.c.b16 %v697, %v696
    %714 = vmatpush.bf16.msra.mxu0 %v705
    %715 = vmatpush.bf16.msra.mxu0 %v704
    %716 = vmatpush.bf16.msra.mxu0 %v703
    %717 = vmatpush.bf16.msra.mxu0 %v702
    %718 = vmatpush.bf16.msra.mxu0 %v701
    %719 = vmatpush.bf16.msra.mxu0 %v700
    %720 = vmatpush.bf16.msra.mxu0 %v699
    %721 = vmatpush.bf16.msra.mxu0 %v698
    %722 = vmatmul.bf16.gmra.mxu0 %v449
    %v723 = vpop.f32.mrf.mxu0
    %v724 = vadd.f32 0.0, %v723
    %v725 = vpop.f32.mrf.mxu0
    %726 = vdwg.mxu0
    %v727 = vadd.f32 %v649, %v724
    %v728 = vtanh.pop %v727
    %v729 = vld [vmem:[%s452 + $0x18] sm:$0xff]
    %v730 = vld [vmem:[#allocation8 + $0xc] sm:$0xf]
    %v731 = vld [vmem:[#allocation8 + $0x1c] sm:$0xf]
    %v732 = vld [vmem:[#allocation8 + $0x2c] sm:$0xf]
    %v733 = vld [vmem:[#allocation8 + $0x3c] sm:$0xf]
    %v734 = vld [vmem:[#allocation8 + $0x4c] sm:$0xf]
    %v735 = vld [vmem:[#allocation8 + $0x5c] sm:$0xf]
    %v736 = vld [vmem:[#allocation8 + $0x6c] sm:$0xf]
    %v737 = vld [vmem:[#allocation8 + $0x7c] sm:$0xf]
    %v738 = vld [vmem:[#allocation8 + $0x8c] sm:$0xf]
    %v739 = vld [vmem:[#allocation8 + $0x9c] sm:$0xf]
    %v740 = vld [vmem:[#allocation8 + $0xac] sm:$0xf]
    %v741 = vld [vmem:[#allocation8 + $0xbc] sm:$0xf]
    %v742 = vld [vmem:[#allocation8 + $0xcc] sm:$0xf]
    %v743 = vld [vmem:[#allocation8 + $0xdc] sm:$0xf]
    %v744 = vld [vmem:[#allocation8 + $0xec] sm:$0xf]
    %v745 = vld [vmem:[#allocation8 + $0xfc] sm:$0xf]
    %v762 = vunpack.c.l.b16 %v730
    %v763 = vunpack.c.l.b16 %v731
    %v764 = vunpack.c.l.b16 %v732
    %v765 = vunpack.c.l.b16 %v733
    %v766 = vunpack.c.l.b16 %v734
    %v767 = vunpack.c.l.b16 %v735
    %v768 = vunpack.c.l.b16 %v736
    %v769 = vunpack.c.l.b16 %v737
    %v770 = vunpack.c.l.b16 %v738
    %v771 = vunpack.c.l.b16 %v739
    %v772 = vunpack.c.l.b16 %v740
    %v773 = vunpack.c.l.b16 %v741
    %v774 = vunpack.c.l.b16 %v742
    %v775 = vunpack.c.l.b16 %v743
    %v776 = vunpack.c.l.b16 %v744
    %v777 = vunpack.c.l.b16 %v745
    %v778 = vpack.c.b16 %v763, %v762
    %v779 = vpack.c.b16 %v765, %v764
    %v780 = vpack.c.b16 %v767, %v766
    %v781 = vpack.c.b16 %v769, %v768
    %v782 = vpack.c.b16 %v771, %v770
    %v783 = vpack.c.b16 %v773, %v772
    %v784 = vpack.c.b16 %v775, %v774
    %v785 = vpack.c.b16 %v777, %v776
    %794 = vmatpush.bf16.msra.mxu0 %v785
    %795 = vmatpush.bf16.msra.mxu0 %v784
    %796 = vmatpush.bf16.msra.mxu0 %v783
    %797 = vmatpush.bf16.msra.mxu0 %v782
    %798 = vmatpush.bf16.msra.mxu0 %v781
    %799 = vmatpush.bf16.msra.mxu0 %v780
    %800 = vmatpush.bf16.msra.mxu0 %v779
    %801 = vmatpush.bf16.msra.mxu0 %v778
    %802 = vmatmul.bf16.gmra.mxu0 %v449
    %v803 = vpop.f32.mrf.mxu0
    %v804 = vadd.f32 0.0, %v803
    %v805 = vpop.f32.mrf.mxu0
    %806 = vdwg.mxu0
    %v807 = vadd.f32 %v729, %v804
    %v808 = vxor.u32 %v807, 2147483648
    %v809 = vmul.f32 %v808, 1.442695
    %v810 = vpow.pop %v809
    %v811 = vadd.f32 %v810, 1.0
    %v812 = vrcp.pop %v811
    %v813 = vmul.f32 %v811, %v812
    %v814 = vsub.f32 1.0, %v813
    %v815 = vmul.f32 %v812, %v814
    %v816 = vadd.f32 %v812, %v815
    %vm817 = vweird.f32 %v811
    %vm818 = vweird.f32 %v812
    %vm819 = vmor %vm817, %vm818
    %v820 = vsel %vm819, %v812, %v816
    %v821 = vand.u32 2147483647, %v811
    %vm822 = vcmp.eq.f32.partialorder %v821, 8.507059e+37
    %v823 = vand.u32 %v811, 2147483648
    %v824 = vor.u32 1.1754944e-38, %v823
    %v825 = vsel %vm822, %v824, %v820
    %v826 = vmul.f32 1.0, %v825
    %v827 = vld [vmem:[#allocation5] sm:$0xff]
    %v828 = vmul.f32 %v648, %v827
    %v829 = vmul.f32 %v550, %v728
    %v830 = vadd.f32 %v828, %v829
    %v831 = vtanh.pop %v830
    %v832 = vmul.f32 %v826, %v831
    %833 = vst [vmem:[#allocation5] sm:$0xff] %v830
    %834 = vst [vmem:[#allocation4] sm:$0xff] %v832
    %835 = vst [vmem:[#allocation3] sm:$0xff] %v832
    %v836 = vld [vmem:[#allocation4] sm:$0xff]
    %v837 = vpack.c.bf16 %v836, %v836
    %s838 = smul.u32 1, 4
    %s839 = smul.addr %s838, 8
    %s840 = scalar_lea.vmem [#allocation2], %s839
    %v841 = vld [vmem:[%s840] sm:$0xff]
    %v842 = vld [vmem:[#allocation8] sm:$0xf]
    %v843 = vld [vmem:[#allocation8 + $0x10] sm:$0xf]
    %v844 = vld [vmem:[#allocation8 + $0x20] sm:$0xf]
    %v845 = vld [vmem:[#allocation8 + $0x30] sm:$0xf]
    %v846 = vld [vmem:[#allocation8 + $0x40] sm:$0xf]
    %v847 = vld [vmem:[#allocation8 + $0x50] sm:$0xf]
    %v848 = vld [vmem:[#allocation8 + $0x60] sm:$0xf]
    %v849 = vld [vmem:[#allocation8 + $0x70] sm:$0xf]
    %v850 = vld [vmem:[#allocation8 + $0x80] sm:$0xf]
    %v851 = vld [vmem:[#allocation8 + $0x90] sm:$0xf]
    %v852 = vld [vmem:[#allocation8 + $0xa0] sm:$0xf]
    %v853 = vld [vmem:[#allocation8 + $0xb0] sm:$0xf]
    %v854 = vld [vmem:[#allocation8 + $0xc0] sm:$0xf]
    %v855 = vld [vmem:[#allocation8 + $0xd0] sm:$0xf]
    %v856 = vld [vmem:[#allocation8 + $0xe0] sm:$0xf]
    %v857 = vld [vmem:[#allocation8 + $0xf0] sm:$0xf]
    %v874 = vunpack.c.l.b16 %v842
    %v875 = vunpack.c.l.b16 %v843
    %v876 = vunpack.c.l.b16 %v844
    %v877 = vunpack.c.l.b16 %v845
    %v878 = vunpack.c.l.b16 %v846
    %v879 = vunpack.c.l.b16 %v847
    %v880 = vunpack.c.l.b16 %v848
    %v881 = vunpack.c.l.b16 %v849
    %v882 = vunpack.c.l.b16 %v850
    %v883 = vunpack.c.l.b16 %v851
    %v884 = vunpack.c.l.b16 %v852
    %v885 = vunpack.c.l.b16 %v853
    %v886 = vunpack.c.l.b16 %v854
    %v887 = vunpack.c.l.b16 %v855
    %v888 = vunpack.c.l.b16 %v856
    %v889 = vunpack.c.l.b16 %v857
    %v890 = vpack.c.b16 %v875, %v874
    %v891 = vpack.c.b16 %v877, %v876
    %v892 = vpack.c.b16 %v879, %v878
    %v893 = vpack.c.b16 %v881, %v880
    %v894 = vpack.c.b16 %v883, %v882
    %v895 = vpack.c.b16 %v885, %v884
    %v896 = vpack.c.b16 %v887, %v886
    %v897 = vpack.c.b16 %v889, %v888
    %906 = vmatpush.bf16.msra.mxu0 %v897
    %907 = vmatpush.bf16.msra.mxu0 %v896
    %908 = vmatpush.bf16.msra.mxu0 %v895
    %909 = vmatpush.bf16.msra.mxu0 %v894
    %910 = vmatpush.bf16.msra.mxu0 %v893
    %911 = vmatpush.bf16.msra.mxu0 %v892
    %912 = vmatpush.bf16.msra.mxu0 %v891
    %913 = vmatpush.bf16.msra.mxu0 %v890
    %914 = vmatmul.bf16.gmra.mxu0 %v837
    %v915 = vpop.f32.mrf.mxu0
    %v916 = vadd.f32 0.0, %v915
    %v917 = vpop.f32.mrf.mxu0
    %918 = vdwg.mxu0
    %v919 = vadd.f32 %v841, %v916
    %v920 = vxor.u32 %v919, 2147483648
    %v921 = vmul.f32 %v920, 1.442695
    %v922 = vpow.pop %v921
    %v923 = vadd.f32 %v922, 1.0
    %v924 = vrcp.pop %v923
    %v925 = vmul.f32 %v923, %v924
    %v926 = vsub.f32 1.0, %v925
    %v927 = vmul.f32 %v924, %v926
    %v928 = vadd.f32 %v924, %v927
    %vm929 = vweird.f32 %v923
    %vm930 = vweird.f32 %v924
    %vm931 = vmor %vm929, %vm930
    %v932 = vsel %vm931, %v924, %v928
    %v933 = vand.u32 2147483647, %v923
    %vm934 = vcmp.eq.f32.partialorder %v933, 8.507059e+37
    %v935 = vand.u32 %v923, 2147483648
    %v936 = vor.u32 1.1754944e-38, %v935
    %v937 = vsel %vm934, %v936, %v932
    %v938 = vmul.f32 1.0, %v937
    %v939 = vld [vmem:[%s840 + $0x8] sm:$0xff]
    %v940 = vld [vmem:[#allocation8 + $0x4] sm:$0xf]
    %v941 = vld [vmem:[#allocation8 + $0x14] sm:$0xf]
    %v942 = vld [vmem:[#allocation8 + $0x24] sm:$0xf]
    %v943 = vld [vmem:[#allocation8 + $0x34] sm:$0xf]
    %v944 = vld [vmem:[#allocation8 + $0x44] sm:$0xf]
    %v945 = vld [vmem:[#allocation8 + $0x54] sm:$0xf]
    %v946 = vld [vmem:[#allocation8 + $0x64] sm:$0xf]
    %v947 = vld [vmem:[#allocation8 + $0x74] sm:$0xf]
    %v948 = vld [vmem:[#allocation8 + $0x84] sm:$0xf]
    %v949 = vld [vmem:[#allocation8 + $0x94] sm:$0xf]
    %v950 = vld [vmem:[#allocation8 + $0xa4] sm:$0xf]
    %v951 = vld [vmem:[#allocation8 + $0xb4] sm:$0xf]
    %v952 = vld [vmem:[#allocation8 + $0xc4] sm:$0xf]
    %v953 = vld [vmem:[#allocation8 + $0xd4] sm:$0xf]
    %v954 = vld [vmem:[#allocation8 + $0xe4] sm:$0xf]
    %v955 = vld [vmem:[#allocation8 + $0xf4] sm:$0xf]
    %v972 = vunpack.c.l.b16 %v940
    %v973 = vunpack.c.l.b16 %v941
    %v974 = vunpack.c.l.b16 %v942
    %v975 = vunpack.c.l.b16 %v943
    %v976 = vunpack.c.l.b16 %v944
    %v977 = vunpack.c.l.b16 %v945
    %v978 = vunpack.c.l.b16 %v946
    %v979 = vunpack.c.l.b16 %v947
    %v980 = vunpack.c.l.b16 %v948
    %v981 = vunpack.c.l.b16 %v949
    %v982 = vunpack.c.l.b16 %v950
    %v983 = vunpack.c.l.b16 %v951
    %v984 = vunpack.c.l.b16 %v952
    %v985 = vunpack.c.l.b16 %v953
    %v986 = vunpack.c.l.b16 %v954
    %v987 = vunpack.c.l.b16 %v955
    %v988 = vpack.c.b16 %v973, %v972
    %v989 = vpack.c.b16 %v975, %v974
    %v990 = vpack.c.b16 %v977, %v976
    %v991 = vpack.c.b16 %v979, %v978
    %v992 = vpack.c.b16 %v981, %v980
    %v993 = vpack.c.b16 %v983, %v982
    %v994 = vpack.c.b16 %v985, %v984
    %v995 = vpack.c.b16 %v987, %v986
    %1004 = vmatpush.bf16.msra.mxu0 %v995
    %1005 = vmatpush.bf16.msra.mxu0 %v994
    %1006 = vmatpush.bf16.msra.mxu0 %v993
    %1007 = vmatpush.bf16.msra.mxu0 %v992
    %1008 = vmatpush.bf16.msra.mxu0 %v991
    %1009 = vmatpush.bf16.msra.mxu0 %v990
    %1010 = vmatpush.bf16.msra.mxu0 %v989
    %1011 = vmatpush.bf16.msra.mxu0 %v988
    %1012 = vmatmul.bf16.gmra.mxu0 %v837
    %v1013 = vpop.f32.mrf.mxu0
    %v1014 = vadd.f32 0.0, %v1013
    %v1015 = vpop.f32.mrf.mxu0
    %1016 = vdwg.mxu0
    %v1017 = vadd.f32 %v939, %v1014
    %v1018 = vxor.u32 %v1017, 2147483648
    %v1019 = vmul.f32 %v1018, 1.442695
    %v1020 = vpow.pop %v1019
    %v1021 = vadd.f32 %v1020, 1.0
    %v1022 = vrcp.pop %v1021
    %v1023 = vmul.f32 %v1021, %v1022
    %v1024 = vsub.f32 1.0, %v1023
    %v1025 = vmul.f32 %v1022, %v1024
    %v1026 = vadd.f32 %v1022, %v1025
    %vm1027 = vweird.f32 %v1021
    %vm1028 = vweird.f32 %v1022
    %vm1029 = vmor %vm1027, %vm1028
    %v1030 = vsel %vm1029, %v1022, %v1026
    %v1031 = vand.u32 2147483647, %v1021
    %vm1032 = vcmp.eq.f32.partialorder %v1031, 8.507059e+37
    %v1033 = vand.u32 %v1021, 2147483648
    %v1034 = vor.u32 1.1754944e-38, %v1033
    %v1035 = vsel %vm1032, %v1034, %v1030
    %v1036 = vmul.f32 1.0, %v1035
    %v1037 = vld [vmem:[%s840 + $0x10] sm:$0xff]
    %v1038 = vld [vmem:[#allocation8 + $0x8] sm:$0xf]
    %v1039 = vld [vmem:[#allocation8 + $0x18] sm:$0xf]
    %v1040 = vld [vmem:[#allocation8 + $0x28] sm:$0xf]
    %v1041 = vld [vmem:[#allocation8 + $0x38] sm:$0xf]
    %v1042 = vld [vmem:[#allocation8 + $0x48] sm:$0xf]
    %v1043 = vld [vmem:[#allocation8 + $0x58] sm:$0xf]
    %v1044 = vld [vmem:[#allocation8 + $0x68] sm:$0xf]
    %v1045 = vld [vmem:[#allocation8 + $0x78] sm:$0xf]
    %v1046 = vld [vmem:[#allocation8 + $0x88] sm:$0xf]
    %v1047 = vld [vmem:[#allocation8 + $0x98] sm:$0xf]
    %v1048 = vld [vmem:[#allocation8 + $0xa8] sm:$0xf]
    %v1049 = vld [vmem:[#allocation8 + $0xb8] sm:$0xf]
    %v1050 = vld [vmem:[#allocation8 + $0xc8] sm:$0xf]
    %v1051 = vld [vmem:[#allocation8 + $0xd8] sm:$0xf]
    %v1052 = vld [vmem:[#allocation8 + $0xe8] sm:$0xf]
    %v1053 = vld [vmem:[#allocation8 + $0xf8] sm:$0xf]
    %v1070 = vunpack.c.l.b16 %v1038
    %v1071 = vunpack.c.l.b16 %v1039
    %v1072 = vunpack.c.l.b16 %v1040
    %v1073 = vunpack.c.l.b16 %v1041
    %v1074 = vunpack.c.l.b16 %v1042
    %v1075 = vunpack.c.l.b16 %v1043
    %v1076 = vunpack.c.l.b16 %v1044
    %v1077 = vunpack.c.l.b16 %v1045
    %v1078 = vunpack.c.l.b16 %v1046
    %v1079 = vunpack.c.l.b16 %v1047
    %v1080 = vunpack.c.l.b16 %v1048
    %v1081 = vunpack.c.l.b16 %v1049
    %v1082 = vunpack.c.l.b16 %v1050
    %v1083 = vunpack.c.l.b16 %v1051
    %v1084 = vunpack.c.l.b16 %v1052
    %v1085 = vunpack.c.l.b16 %v1053
    %v1086 = vpack.c.b16 %v1071, %v1070
    %v1087 = vpack.c.b16 %v1073, %v1072
    %v1088 = vpack.c.b16 %v1075, %v1074
    %v1089 = vpack.c.b16 %v1077, %v1076
    %v1090 = vpack.c.b16 %v1079, %v1078
    %v1091 = vpack.c.b16 %v1081, %v1080
    %v1092 = vpack.c.b16 %v1083, %v1082
    %v1093 = vpack.c.b16 %v1085, %v1084
    %1102 = vmatpush.bf16.msra.mxu0 %v1093
    %1103 = vmatpush.bf16.msra.mxu0 %v1092
    %1104 = vmatpush.bf16.msra.mxu0 %v1091
    %1105 = vmatpush.bf16.msra.mxu0 %v1090
    %1106 = vmatpush.bf16.msra.mxu0 %v1089
    %1107 = vmatpush.bf16.msra.mxu0 %v1088
    %1108 = vmatpush.bf16.msra.mxu0 %v1087
    %1109 = vmatpush.bf16.msra.mxu0 %v1086
    %1110 = vmatmul.bf16.gmra.mxu0 %v837
    %v1111 = vpop.f32.mrf.mxu0
    %v1112 = vadd.f32 0.0, %v1111
    %v1113 = vpop.f32.mrf.mxu0
    %1114 = vdwg.mxu0
    %v1115 = vadd.f32 %v1037, %v1112
    %v1116 = vtanh.pop %v1115
    %v1117 = vld [vmem:[%s840 + $0x18] sm:$0xff]
    %v1118 = vld [vmem:[#allocation8 + $0xc] sm:$0xf]
    %v1119 = vld [vmem:[#allocation8 + $0x1c] sm:$0xf]
    %v1120 = vld [vmem:[#allocation8 + $0x2c] sm:$0xf]
    %v1121 = vld [vmem:[#allocation8 + $0x3c] sm:$0xf]
    %v1122 = vld [vmem:[#allocation8 + $0x4c] sm:$0xf]
    %v1123 = vld [vmem:[#allocation8 + $0x5c] sm:$0xf]
    %v1124 = vld [vmem:[#allocation8 + $0x6c] sm:$0xf]
    %v1125 = vld [vmem:[#allocation8 + $0x7c] sm:$0xf]
    %v1126 = vld [vmem:[#allocation8 + $0x8c] sm:$0xf]
    %v1127 = vld [vmem:[#allocation8 + $0x9c] sm:$0xf]
    %v1128 = vld [vmem:[#allocation8 + $0xac] sm:$0xf]
    %v1129 = vld [vmem:[#allocation8 + $0xbc] sm:$0xf]
    %v1130 = vld [vmem:[#allocation8 + $0xcc] sm:$0xf]
    %v1131 = vld [vmem:[#allocation8 + $0xdc] sm:$0xf]
    %v1132 = vld [vmem:[#allocation8 + $0xec] sm:$0xf]
    %v1133 = vld [vmem:[#allocation8 + $0xfc] sm:$0xf]
    %v1150 = vunpack.c.l.b16 %v1118
    %v1151 = vunpack.c.l.b16 %v1119
    %v1152 = vunpack.c.l.b16 %v1120
    %v1153 = vunpack.c.l.b16 %v1121
    %v1154 = vunpack.c.l.b16 %v1122
    %v1155 = vunpack.c.l.b16 %v1123
    %v1156 = vunpack.c.l.b16 %v1124
    %v1157 = vunpack.c.l.b16 %v1125
    %v1158 = vunpack.c.l.b16 %v1126
    %v1159 = vunpack.c.l.b16 %v1127
    %v1160 = vunpack.c.l.b16 %v1128
    %v1161 = vunpack.c.l.b16 %v1129
    %v1162 = vunpack.c.l.b16 %v1130
    %v1163 = vunpack.c.l.b16 %v1131
    %v1164 = vunpack.c.l.b16 %v1132
    %v1165 = vunpack.c.l.b16 %v1133
    %v1166 = vpack.c.b16 %v1151, %v1150
    %v1167 = vpack.c.b16 %v1153, %v1152
    %v1168 = vpack.c.b16 %v1155, %v1154
    %v1169 = vpack.c.b16 %v1157, %v1156
    %v1170 = vpack.c.b16 %v1159, %v1158
    %v1171 = vpack.c.b16 %v1161, %v1160
    %v1172 = vpack.c.b16 %v1163, %v1162
    %v1173 = vpack.c.b16 %v1165, %v1164
    %1182 = vmatpush.bf16.msra.mxu0 %v1173
    %1183 = vmatpush.bf16.msra.mxu0 %v1172
    %1184 = vmatpush.bf16.msra.mxu0 %v1171
    %1185 = vmatpush.bf16.msra.mxu0 %v1170
    %1186 = vmatpush.bf16.msra.mxu0 %v1169
    %1187 = vmatpush.bf16.msra.mxu0 %v1168
    %1188 = vmatpush.bf16.msra.mxu0 %v1167
    %1189 = vmatpush.bf16.msra.mxu0 %v1166
    %1190 = vmatmul.bf16.gmra.mxu0 %v837
    %v1191 = vpop.f32.mrf.mxu0
    %v1192 = vadd.f32 0.0, %v1191
    %v1193 = vpop.f32.mrf.mxu0
    %1194 = vdwg.mxu0
    %v1195 = vadd.f32 %v1117, %v1192
    %v1196 = vxor.u32 %v1195, 2147483648
    %v1197 = vmul.f32 %v1196, 1.442695
    %v1198 = vpow.pop %v1197
    %v1199 = vadd.f32 %v1198, 1.0
    %v1200 = vrcp.pop %v1199
    %v1201 = vmul.f32 %v1199, %v1200
    %v1202 = vsub.f32 1.0, %v1201
    %v1203 = vmul.f32 %v1200, %v1202
    %v1204 = vadd.f32 %v1200, %v1203
    %vm1205 = vweird.f32 %v1199
    %vm1206 = vweird.f32 %v1200
    %vm1207 = vmor %vm1205, %vm1206
    %v1208 = vsel %vm1207, %v1200, %v1204
    %v1209 = vand.u32 2147483647, %v1199
    %vm1210 = vcmp.eq.f32.partialorder %v1209, 8.507059e+37
    %v1211 = vand.u32 %v1199, 2147483648
    %v1212 = vor.u32 1.1754944e-38, %v1211
    %v1213 = vsel %vm1210, %v1212, %v1208
    %v1214 = vmul.f32 1.0, %v1213
    %v1215 = vld [vmem:[#allocation5] sm:$0xff]
    %v1216 = vmul.f32 %v1036, %v1215
    %v1217 = vmul.f32 %v938, %v1116
    %v1218 = vadd.f32 %v1216, %v1217
    %v1219 = vtanh.pop %v1218
    %v1220 = vmul.f32 %v1214, %v1219
    %1221 = vst [vmem:[#allocation5] sm:$0xff] %v1218
    %1222 = vst [vmem:[#allocation4] sm:$0xff] %v1220
    %s1223 = scalar_lea.vmem [#allocation3], 8
    %1224 = vst [vmem:[%s1223] sm:$0xff] %v1220
    %v1225 = vld [vmem:[#allocation4] sm:$0xff]
    %v1226 = vpack.c.bf16 %v1225, %v1225
    %s1227 = smul.u32 2, 4
    %s1228 = smul.addr %s1227, 8
    %s1229 = scalar_lea.vmem [#allocation2], %s1228
    %v1230 = vld [vmem:[%s1229] sm:$0xff]
    %v1231 = vld [vmem:[#allocation8] sm:$0xf]
    %v1232 = vld [vmem:[#allocation8 + $0x10] sm:$0xf]
    %v1233 = vld [vmem:[#allocation8 + $0x20] sm:$0xf]
    %v1234 = vld [vmem:[#allocation8 + $0x30] sm:$0xf]
    %v1235 = vld [vmem:[#allocation8 + $0x40] sm:$0xf]
    %v1236 = vld [vmem:[#allocation8 + $0x50] sm:$0xf]
    %v1237 = vld [vmem:[#allocation8 + $0x60] sm:$0xf]
    %v1238 = vld [vmem:[#allocation8 + $0x70] sm:$0xf]
    %v1239 = vld [vmem:[#allocation8 + $0x80] sm:$0xf]
    %v1240 = vld [vmem:[#allocation8 + $0x90] sm:$0xf]
    %v1241 = vld [vmem:[#allocation8 + $0xa0] sm:$0xf]
    %v1242 = vld [vmem:[#allocation8 + $0xb0] sm:$0xf]
    %v1243 = vld [vmem:[#allocation8 + $0xc0] sm:$0xf]
    %v1244 = vld [vmem:[#allocation8 + $0xd0] sm:$0xf]
    %v1245 = vld [vmem:[#allocation8 + $0xe0] sm:$0xf]
    %v1246 = vld [vmem:[#allocation8 + $0xf0] sm:$0xf]
    %v1263 = vunpack.c.l.b16 %v1231
    %v1264 = vunpack.c.l.b16 %v1232
    %v1265 = vunpack.c.l.b16 %v1233
    %v1266 = vunpack.c.l.b16 %v1234
    %v1267 = vunpack.c.l.b16 %v1235
    %v1268 = vunpack.c.l.b16 %v1236
    %v1269 = vunpack.c.l.b16 %v1237
    %v1270 = vunpack.c.l.b16 %v1238
    %v1271 = vunpack.c.l.b16 %v1239
    %v1272 = vunpack.c.l.b16 %v1240
    %v1273 = vunpack.c.l.b16 %v1241
    %v1274 = vunpack.c.l.b16 %v1242
    %v1275 = vunpack.c.l.b16 %v1243
    %v1276 = vunpack.c.l.b16 %v1244
    %v1277 = vunpack.c.l.b16 %v1245
    %v1278 = vunpack.c.l.b16 %v1246
    %v1279 = vpack.c.b16 %v1264, %v1263
    %v1280 = vpack.c.b16 %v1266, %v1265
    %v1281 = vpack.c.b16 %v1268, %v1267
    %v1282 = vpack.c.b16 %v1270, %v1269
    %v1283 = vpack.c.b16 %v1272, %v1271
    %v1284 = vpack.c.b16 %v1274, %v1273
    %v1285 = vpack.c.b16 %v1276, %v1275
    %v1286 = vpack.c.b16 %v1278, %v1277
    %1295 = vmatpush.bf16.msra.mxu0 %v1286
    %1296 = vmatpush.bf16.msra.mxu0 %v1285
    %1297 = vmatpush.bf16.msra.mxu0 %v1284
    %1298 = vmatpush.bf16.msra.mxu0 %v1283
    %1299 = vmatpush.bf16.msra.mxu0 %v1282
    %1300 = vmatpush.bf16.msra.mxu0 %v1281
    %1301 = vmatpush.bf16.msra.mxu0 %v1280
    %1302 = vmatpush.bf16.msra.mxu0 %v1279
    %1303 = vmatmul.bf16.gmra.mxu0 %v1226
    %v1304 = vpop.f32.mrf.mxu0
    %v1305 = vadd.f32 0.0, %v1304
    %v1306 = vpop.f32.mrf.mxu0
    %1307 = vdwg.mxu0
    %v1308 = vadd.f32 %v1230, %v1305
    %v1309 = vxor.u32 %v1308, 2147483648
    %v1310 = vmul.f32 %v1309, 1.442695
    %v1311 = vpow.pop %v1310
    %v1312 = vadd.f32 %v1311, 1.0
    %v1313 = vrcp.pop %v1312
    %v1314 = vmul.f32 %v1312, %v1313
    %v1315 = vsub.f32 1.0, %v1314
    %v1316 = vmul.f32 %v1313, %v1315
    %v1317 = vadd.f32 %v1313, %v1316
    %vm1318 = vweird.f32 %v1312
    %vm1319 = vweird.f32 %v1313
    %vm1320 = vmor %vm1318, %vm1319
    %v1321 = vsel %vm1320, %v1313, %v1317
    %v1322 = vand.u32 2147483647, %v1312
    %vm1323 = vcmp.eq.f32.partialorder %v1322, 8.507059e+37
    %v1324 = vand.u32 %v1312, 2147483648
    %v1325 = vor.u32 1.1754944e-38, %v1324
    %v1326 = vsel %vm1323, %v1325, %v1321
    %v1327 = vmul.f32 1.0, %v1326
    %v1328 = vld [vmem:[%s1229 + $0x8] sm:$0xff]
    %v1329 = vld [vmem:[#allocation8 + $0x4] sm:$0xf]
    %v1330 = vld [vmem:[#allocation8 + $0x14] sm:$0xf]
    %v1331 = vld [vmem:[#allocation8 + $0x24] sm:$0xf]
    %v1332 = vld [vmem:[#allocation8 + $0x34] sm:$0xf]
    %v1333 = vld [vmem:[#allocation8 + $0x44] sm:$0xf]
    %v1334 = vld [vmem:[#allocation8 + $0x54] sm:$0xf]
    %v1335 = vld [vmem:[#allocation8 + $0x64] sm:$0xf]
    %v1336 = vld [vmem:[#allocation8 + $0x74] sm:$0xf]
    %v1337 = vld [vmem:[#allocation8 + $0x84] sm:$0xf]
    %v1338 = vld [vmem:[#allocation8 + $0x94] sm:$0xf]
    %v1339 = vld [vmem:[#allocation8 + $0xa4] sm:$0xf]
    %v1340 = vld [vmem:[#allocation8 + $0xb4] sm:$0xf]
    %v1341 = vld [vmem:[#allocation8 + $0xc4] sm:$0xf]
    %v1342 = vld [vmem:[#allocation8 + $0xd4] sm:$0xf]
    %v1343 = vld [vmem:[#allocation8 + $0xe4] sm:$0xf]
    %v1344 = vld [vmem:[#allocation8 + $0xf4] sm:$0xf]
    %v1361 = vunpack.c.l.b16 %v1329
    %v1362 = vunpack.c.l.b16 %v1330
    %v1363 = vunpack.c.l.b16 %v1331
    %v1364 = vunpack.c.l.b16 %v1332
    %v1365 = vunpack.c.l.b16 %v1333
    %v1366 = vunpack.c.l.b16 %v1334
    %v1367 = vunpack.c.l.b16 %v1335
    %v1368 = vunpack.c.l.b16 %v1336
    %v1369 = vunpack.c.l.b16 %v1337
    %v1370 = vunpack.c.l.b16 %v1338
    %v1371 = vunpack.c.l.b16 %v1339
    %v1372 = vunpack.c.l.b16 %v1340
    %v1373 = vunpack.c.l.b16 %v1341
    %v1374 = vunpack.c.l.b16 %v1342
    %v1375 = vunpack.c.l.b16 %v1343
    %v1376 = vunpack.c.l.b16 %v1344
    %v1377 = vpack.c.b16 %v1362, %v1361
    %v1378 = vpack.c.b16 %v1364, %v1363
    %v1379 = vpack.c.b16 %v1366, %v1365
    %v1380 = vpack.c.b16 %v1368, %v1367
    %v1381 = vpack.c.b16 %v1370, %v1369
    %v1382 = vpack.c.b16 %v1372, %v1371
    %v1383 = vpack.c.b16 %v1374, %v1373
    %v1384 = vpack.c.b16 %v1376, %v1375
    %1393 = vmatpush.bf16.msra.mxu0 %v1384
    %1394 = vmatpush.bf16.msra.mxu0 %v1383
    %1395 = vmatpush.bf16.msra.mxu0 %v1382
    %1396 = vmatpush.bf16.msra.mxu0 %v1381
    %1397 = vmatpush.bf16.msra.mxu0 %v1380
    %1398 = vmatpush.bf16.msra.mxu0 %v1379
    %1399 = vmatpush.bf16.msra.mxu0 %v1378
    %1400 = vmatpush.bf16.msra.mxu0 %v1377
    %1401 = vmatmul.bf16.gmra.mxu0 %v1226
    %v1402 = vpop.f32.mrf.mxu0
    %v1403 = vadd.f32 0.0, %v1402
    %v1404 = vpop.f32.mrf.mxu0
    %1405 = vdwg.mxu0
    %v1406 = vadd.f32 %v1328, %v1403
    %v1407 = vxor.u32 %v1406, 2147483648
    %v1408 = vmul.f32 %v1407, 1.442695
    %v1409 = vpow.pop %v1408
    %v1410 = vadd.f32 %v1409, 1.0
    %v1411 = vrcp.pop %v1410
    %v1412 = vmul.f32 %v1410, %v1411
    %v1413 = vsub.f32 1.0, %v1412
    %v1414 = vmul.f32 %v1411, %v1413
    %v1415 = vadd.f32 %v1411, %v1414
    %vm1416 = vweird.f32 %v1410
    %vm1417 = vweird.f32 %v1411
    %vm1418 = vmor %vm1416, %vm1417
    %v1419 = vsel %vm1418, %v1411, %v1415
    %v1420 = vand.u32 2147483647, %v1410
    %vm1421 = vcmp.eq.f32.partialorder %v1420, 8.507059e+37
    %v1422 = vand.u32 %v1410, 2147483648
    %v1423 = vor.u32 1.1754944e-38, %v1422
    %v1424 = vsel %vm1421, %v1423, %v1419
    %v1425 = vmul.f32 1.0, %v1424
    %v1426 = vld [vmem:[%s1229 + $0x10] sm:$0xff]
    %v1427 = vld [vmem:[#allocation8 + $0x8] sm:$0xf]
    %v1428 = vld [vmem:[#allocation8 + $0x18] sm:$0xf]
    %v1429 = vld [vmem:[#allocation8 + $0x28] sm:$0xf]
    %v1430 = vld [vmem:[#allocation8 + $0x38] sm:$0xf]
    %v1431 = vld [vmem:[#allocation8 + $0x48] sm:$0xf]
    %v1432 = vld [vmem:[#allocation8 + $0x58] sm:$0xf]
    %v1433 = vld [vmem:[#allocation8 + $0x68] sm:$0xf]
    %v1434 = vld [vmem:[#allocation8 + $0x78] sm:$0xf]
    %v1435 = vld [vmem:[#allocation8 + $0x88] sm:$0xf]
    %v1436 = vld [vmem:[#allocation8 + $0x98] sm:$0xf]
    %v1437 = vld [vmem:[#allocation8 + $0xa8] sm:$0xf]
    %v1438 = vld [vmem:[#allocation8 + $0xb8] sm:$0xf]
    %v1439 = vld [vmem:[#allocation8 + $0xc8] sm:$0xf]
    %v1440 = vld [vmem:[#allocation8 + $0xd8] sm:$0xf]
    %v1441 = vld [vmem:[#allocation8 + $0xe8] sm:$0xf]
    %v1442 = vld [vmem:[#allocation8 + $0xf8] sm:$0xf]
    %v1459 = vunpack.c.l.b16 %v1427
    %v1460 = vunpack.c.l.b16 %v1428
    %v1461 = vunpack.c.l.b16 %v1429
    %v1462 = vunpack.c.l.b16 %v1430
    %v1463 = vunpack.c.l.b16 %v1431
    %v1464 = vunpack.c.l.b16 %v1432
    %v1465 = vunpack.c.l.b16 %v1433
    %v1466 = vunpack.c.l.b16 %v1434
    %v1467 = vunpack.c.l.b16 %v1435
    %v1468 = vunpack.c.l.b16 %v1436
    %v1469 = vunpack.c.l.b16 %v1437
    %v1470 = vunpack.c.l.b16 %v1438
    %v1471 = vunpack.c.l.b16 %v1439
    %v1472 = vunpack.c.l.b16 %v1440
    %v1473 = vunpack.c.l.b16 %v1441
    %v1474 = vunpack.c.l.b16 %v1442
    %v1475 = vpack.c.b16 %v1460, %v1459
    %v1476 = vpack.c.b16 %v1462, %v1461
    %v1477 = vpack.c.b16 %v1464, %v1463
    %v1478 = vpack.c.b16 %v1466, %v1465
    %v1479 = vpack.c.b16 %v1468, %v1467
    %v1480 = vpack.c.b16 %v1470, %v1469
    %v1481 = vpack.c.b16 %v1472, %v1471
    %v1482 = vpack.c.b16 %v1474, %v1473
    %1491 = vmatpush.bf16.msra.mxu0 %v1482
    %1492 = vmatpush.bf16.msra.mxu0 %v1481
    %1493 = vmatpush.bf16.msra.mxu0 %v1480
    %1494 = vmatpush.bf16.msra.mxu0 %v1479
    %1495 = vmatpush.bf16.msra.mxu0 %v1478
    %1496 = vmatpush.bf16.msra.mxu0 %v1477
    %1497 = vmatpush.bf16.msra.mxu0 %v1476
    %1498 = vmatpush.bf16.msra.mxu0 %v1475
    %1499 = vmatmul.bf16.gmra.mxu0 %v1226
    %v1500 = vpop.f32.mrf.mxu0
    %v1501 = vadd.f32 0.0, %v1500
    %v1502 = vpop.f32.mrf.mxu0
    %1503 = vdwg.mxu0
    %v1504 = vadd.f32 %v1426, %v1501
    %v1505 = vtanh.pop %v1504
    %v1506 = vld [vmem:[%s1229 + $0x18] sm:$0xff]
    %v1507 = vld [vmem:[#allocation8 + $0xc] sm:$0xf]
    %v1508 = vld [vmem:[#allocation8 + $0x1c] sm:$0xf]
    %v1509 = vld [vmem:[#allocation8 + $0x2c] sm:$0xf]
    %v1510 = vld [vmem:[#allocation8 + $0x3c] sm:$0xf]
    %v1511 = vld [vmem:[#allocation8 + $0x4c] sm:$0xf]
    %v1512 = vld [vmem:[#allocation8 + $0x5c] sm:$0xf]
    %v1513 = vld [vmem:[#allocation8 + $0x6c] sm:$0xf]
    %v1514 = vld [vmem:[#allocation8 + $0x7c] sm:$0xf]
    %v1515 = vld [vmem:[#allocation8 + $0x8c] sm:$0xf]
    %v1516 = vld [vmem:[#allocation8 + $0x9c] sm:$0xf]
    %v1517 = vld [vmem:[#allocation8 + $0xac] sm:$0xf]
    %v1518 = vld [vmem:[#allocation8 + $0xbc] sm:$0xf]
    %v1519 = vld [vmem:[#allocation8 + $0xcc] sm:$0xf]
    %v1520 = vld [vmem:[#allocation8 + $0xdc] sm:$0xf]
    %v1521 = vld [vmem:[#allocation8 + $0xec] sm:$0xf]
    %v1522 = vld [vmem:[#allocation8 + $0xfc] sm:$0xf]
    %v1539 = vunpack.c.l.b16 %v1507
    %v1540 = vunpack.c.l.b16 %v1508
    %v1541 = vunpack.c.l.b16 %v1509
    %v1542 = vunpack.c.l.b16 %v1510
    %v1543 = vunpack.c.l.b16 %v1511
    %v1544 = vunpack.c.l.b16 %v1512
    %v1545 = vunpack.c.l.b16 %v1513
    %v1546 = vunpack.c.l.b16 %v1514
    %v1547 = vunpack.c.l.b16 %v1515
    %v1548 = vunpack.c.l.b16 %v1516
    %v1549 = vunpack.c.l.b16 %v1517
    %v1550 = vunpack.c.l.b16 %v1518
    %v1551 = vunpack.c.l.b16 %v1519
    %v1552 = vunpack.c.l.b16 %v1520
    %v1553 = vunpack.c.l.b16 %v1521
    %v1554 = vunpack.c.l.b16 %v1522
    %v1555 = vpack.c.b16 %v1540, %v1539
    %v1556 = vpack.c.b16 %v1542, %v1541
    %v1557 = vpack.c.b16 %v1544, %v1543
    %v1558 = vpack.c.b16 %v1546, %v1545
    %v1559 = vpack.c.b16 %v1548, %v1547
    %v1560 = vpack.c.b16 %v1550, %v1549
    %v1561 = vpack.c.b16 %v1552, %v1551
    %v1562 = vpack.c.b16 %v1554, %v1553
    %1571 = vmatpush.bf16.msra.mxu0 %v1562
    %1572 = vmatpush.bf16.msra.mxu0 %v1561
    %1573 = vmatpush.bf16.msra.mxu0 %v1560
    %1574 = vmatpush.bf16.msra.mxu0 %v1559
    %1575 = vmatpush.bf16.msra.mxu0 %v1558
    %1576 = vmatpush.bf16.msra.mxu0 %v1557
    %1577 = vmatpush.bf16.msra.mxu0 %v1556
    %1578 = vmatpush.bf16.msra.mxu0 %v1555
    %1579 = vmatmul.bf16.gmra.mxu0 %v1226
    %v1580 = vpop.f32.mrf.mxu0
    %v1581 = vadd.f32 0.0, %v1580
    %v1582 = vpop.f32.mrf.mxu0
    %1583 = vdwg.mxu0
    %v1584 = vadd.f32 %v1506, %v1581
    %v1585 = vxor.u32 %v1584, 2147483648
    %v1586 = vmul.f32 %v1585, 1.442695
    %v1587 = vpow.pop %v1586
    %v1588 = vadd.f32 %v1587, 1.0
    %v1589 = vrcp.pop %v1588
    %v1590 = vmul.f32 %v1588, %v1589
    %v1591 = vsub.f32 1.0, %v1590
    %v1592 = vmul.f32 %v1589, %v1591
    %v1593 = vadd.f32 %v1589, %v1592
    %vm1594 = vweird.f32 %v1588
    %vm1595 = vweird.f32 %v1589
    %vm1596 = vmor %vm1594, %vm1595
    %v1597 = vsel %vm1596, %v1589, %v1593
    %v1598 = vand.u32 2147483647, %v1588
    %vm1599 = vcmp.eq.f32.partialorder %v1598, 8.507059e+37
    %v1600 = vand.u32 %v1588, 2147483648
    %v1601 = vor.u32 1.1754944e-38, %v1600
    %v1602 = vsel %vm1599, %v1601, %v1597
    %v1603 = vmul.f32 1.0, %v1602
    %v1604 = vld [vmem:[#allocation5] sm:$0xff]
    %v1605 = vmul.f32 %v1425, %v1604
    %v1606 = vmul.f32 %v1327, %v1505
    %v1607 = vadd.f32 %v1605, %v1606
    %v1608 = vtanh.pop %v1607
    %v1609 = vmul.f32 %v1603, %v1608
    %1610 = vst [vmem:[#allocation5] sm:$0xff] %v1607
    %1611 = vst [vmem:[#allocation4] sm:$0xff] %v1609
    %s1612 = scalar_lea.vmem [#allocation3], 16
    %1613 = vst [vmem:[%s1612] sm:$0xff] %v1609
    %v1614 = vld [vmem:[#allocation4] sm:$0xff]
    %v1615 = vpack.c.bf16 %v1614, %v1614
    %s1616 = smul.u32 3, 4
    %s1617 = smul.addr %s1616, 8
    %s1618 = scalar_lea.vmem [#allocation2], %s1617
    %v1619 = vld [vmem:[%s1618] sm:$0xff]
    %v1620 = vld [vmem:[#allocation8] sm:$0xf]
    %v1621 = vld [vmem:[#allocation8 + $0x10] sm:$0xf]
    %v1622 = vld [vmem:[#allocation8 + $0x20] sm:$0xf]
    %v1623 = vld [vmem:[#allocation8 + $0x30] sm:$0xf]
    %v1624 = vld [vmem:[#allocation8 + $0x40] sm:$0xf]
    %v1625 = vld [vmem:[#allocation8 + $0x50] sm:$0xf]
    %v1626 = vld [vmem:[#allocation8 + $0x60] sm:$0xf]
    %v1627 = vld [vmem:[#allocation8 + $0x70] sm:$0xf]
    %v1628 = vld [vmem:[#allocation8 + $0x80] sm:$0xf]
    %v1629 = vld [vmem:[#allocation8 + $0x90] sm:$0xf]
    %v1630 = vld [vmem:[#allocation8 + $0xa0] sm:$0xf]
    %v1631 = vld [vmem:[#allocation8 + $0xb0] sm:$0xf]
    %v1632 = vld [vmem:[#allocation8 + $0xc0] sm:$0xf]
    %v1633 = vld [vmem:[#allocation8 + $0xd0] sm:$0xf]
    %v1634 = vld [vmem:[#allocation8 + $0xe0] sm:$0xf]
    %v1635 = vld [vmem:[#allocation8 + $0xf0] sm:$0xf]
    %v1652 = vunpack.c.l.b16 %v1620
    %v1653 = vunpack.c.l.b16 %v1621
    %v1654 = vunpack.c.l.b16 %v1622
    %v1655 = vunpack.c.l.b16 %v1623
    %v1656 = vunpack.c.l.b16 %v1624
    %v1657 = vunpack.c.l.b16 %v1625
    %v1658 = vunpack.c.l.b16 %v1626
    %v1659 = vunpack.c.l.b16 %v1627
    %v1660 = vunpack.c.l.b16 %v1628
    %v1661 = vunpack.c.l.b16 %v1629
    %v1662 = vunpack.c.l.b16 %v1630
    %v1663 = vunpack.c.l.b16 %v1631
    %v1664 = vunpack.c.l.b16 %v1632
    %v1665 = vunpack.c.l.b16 %v1633
    %v1666 = vunpack.c.l.b16 %v1634
    %v1667 = vunpack.c.l.b16 %v1635
    %v1668 = vpack.c.b16 %v1653, %v1652
    %v1669 = vpack.c.b16 %v1655, %v1654
    %v1670 = vpack.c.b16 %v1657, %v1656
    %v1671 = vpack.c.b16 %v1659, %v1658
    %v1672 = vpack.c.b16 %v1661, %v1660
    %v1673 = vpack.c.b16 %v1663, %v1662
    %v1674 = vpack.c.b16 %v1665, %v1664
    %v1675 = vpack.c.b16 %v1667, %v1666
    %1684 = vmatpush.bf16.msra.mxu0 %v1675
    %1685 = vmatpush.bf16.msra.mxu0 %v1674
    %1686 = vmatpush.bf16.msra.mxu0 %v1673
    %1687 = vmatpush.bf16.msra.mxu0 %v1672
    %1688 = vmatpush.bf16.msra.mxu0 %v1671
    %1689 = vmatpush.bf16.msra.mxu0 %v1670
    %1690 = vmatpush.bf16.msra.mxu0 %v1669
    %1691 = vmatpush.bf16.msra.mxu0 %v1668
    %1692 = vmatmul.bf16.gmra.mxu0 %v1615
    %v1693 = vpop.f32.mrf.mxu0
    %v1694 = vadd.f32 0.0, %v1693
    %v1695 = vpop.f32.mrf.mxu0
    %1696 = vdwg.mxu0
    %v1697 = vadd.f32 %v1619, %v1694
    %v1698 = vxor.u32 %v1697, 2147483648
    %v1699 = vmul.f32 %v1698, 1.442695
    %v1700 = vpow.pop %v1699
    %v1701 = vadd.f32 %v1700, 1.0
    %v1702 = vrcp.pop %v1701
    %v1703 = vmul.f32 %v1701, %v1702
    %v1704 = vsub.f32 1.0, %v1703
    %v1705 = vmul.f32 %v1702, %v1704
    %v1706 = vadd.f32 %v1702, %v1705
    %vm1707 = vweird.f32 %v1701
    %vm1708 = vweird.f32 %v1702
    %vm1709 = vmor %vm1707, %vm1708
    %v1710 = vsel %vm1709, %v1702, %v1706
    %v1711 = vand.u32 2147483647, %v1701
    %vm1712 = vcmp.eq.f32.partialorder %v1711, 8.507059e+37
    %v1713 = vand.u32 %v1701, 2147483648
    %v1714 = vor.u32 1.1754944e-38, %v1713
    %v1715 = vsel %vm1712, %v1714, %v1710
    %v1716 = vmul.f32 1.0, %v1715
    %v1717 = vld [vmem:[%s1618 + $0x8] sm:$0xff]
    %v1718 = vld [vmem:[#allocation8 + $0x4] sm:$0xf]
    %v1719 = vld [vmem:[#allocation8 + $0x14] sm:$0xf]
    %v1720 = vld [vmem:[#allocation8 + $0x24] sm:$0xf]
    %v1721 = vld [vmem:[#allocation8 + $0x34] sm:$0xf]
    %v1722 = vld [vmem:[#allocation8 + $0x44] sm:$0xf]
    %v1723 = vld [vmem:[#allocation8 + $0x54] sm:$0xf]
    %v1724 = vld [vmem:[#allocation8 + $0x64] sm:$0xf]
    %v1725 = vld [vmem:[#allocation8 + $0x74] sm:$0xf]
    %v1726 = vld [vmem:[#allocation8 + $0x84] sm:$0xf]
    %v1727 = vld [vmem:[#allocation8 + $0x94] sm:$0xf]
    %v1728 = vld [vmem:[#allocation8 + $0xa4] sm:$0xf]
    %v1729 = vld [vmem:[#allocation8 + $0xb4] sm:$0xf]
    %v1730 = vld [vmem:[#allocation8 + $0xc4] sm:$0xf]
    %v1731 = vld [vmem:[#allocation8 + $0xd4] sm:$0xf]
    %v1732 = vld [vmem:[#allocation8 + $0xe4] sm:$0xf]
    %v1733 = vld [vmem:[#allocation8 + $0xf4] sm:$0xf]
    %v1750 = vunpack.c.l.b16 %v1718
    %v1751 = vunpack.c.l.b16 %v1719
    %v1752 = vunpack.c.l.b16 %v1720
    %v1753 = vunpack.c.l.b16 %v1721
    %v1754 = vunpack.c.l.b16 %v1722
    %v1755 = vunpack.c.l.b16 %v1723
    %v1756 = vunpack.c.l.b16 %v1724
    %v1757 = vunpack.c.l.b16 %v1725
    %v1758 = vunpack.c.l.b16 %v1726
    %v1759 = vunpack.c.l.b16 %v1727
    %v1760 = vunpack.c.l.b16 %v1728
    %v1761 = vunpack.c.l.b16 %v1729
    %v1762 = vunpack.c.l.b16 %v1730
    %v1763 = vunpack.c.l.b16 %v1731
    %v1764 = vunpack.c.l.b16 %v1732
    %v1765 = vunpack.c.l.b16 %v1733
    %v1766 = vpack.c.b16 %v1751, %v1750
    %v1767 = vpack.c.b16 %v1753, %v1752
    %v1768 = vpack.c.b16 %v1755, %v1754
    %v1769 = vpack.c.b16 %v1757, %v1756
    %v1770 = vpack.c.b16 %v1759, %v1758
    %v1771 = vpack.c.b16 %v1761, %v1760
    %v1772 = vpack.c.b16 %v1763, %v1762
    %v1773 = vpack.c.b16 %v1765, %v1764
    %1782 = vmatpush.bf16.msra.mxu0 %v1773
    %1783 = vmatpush.bf16.msra.mxu0 %v1772
    %1784 = vmatpush.bf16.msra.mxu0 %v1771
    %1785 = vmatpush.bf16.msra.mxu0 %v1770
    %1786 = vmatpush.bf16.msra.mxu0 %v1769
    %1787 = vmatpush.bf16.msra.mxu0 %v1768
    %1788 = vmatpush.bf16.msra.mxu0 %v1767
    %1789 = vmatpush.bf16.msra.mxu0 %v1766
    %1790 = vmatmul.bf16.gmra.mxu0 %v1615
    %v1791 = vpop.f32.mrf.mxu0
    %v1792 = vadd.f32 0.0, %v1791
    %v1793 = vpop.f32.mrf.mxu0
    %1794 = vdwg.mxu0
    %v1795 = vadd.f32 %v1717, %v1792
    %v1796 = vxor.u32 %v1795, 2147483648
    %v1797 = vmul.f32 %v1796, 1.442695
    %v1798 = vpow.pop %v1797
    %v1799 = vadd.f32 %v1798, 1.0
    %v1800 = vrcp.pop %v1799
    %v1801 = vmul.f32 %v1799, %v1800
    %v1802 = vsub.f32 1.0, %v1801
    %v1803 = vmul.f32 %v1800, %v1802
    %v1804 = vadd.f32 %v1800, %v1803
    %vm1805 = vweird.f32 %v1799
    %vm1806 = vweird.f32 %v1800
    %vm1807 = vmor %vm1805, %vm1806
    %v1808 = vsel %vm1807, %v1800, %v1804
    %v1809 = vand.u32 2147483647, %v1799
    %vm1810 = vcmp.eq.f32.partialorder %v1809, 8.507059e+37
    %v1811 = vand.u32 %v1799, 2147483648
    %v1812 = vor.u32 1.1754944e-38, %v1811
    %v1813 = vsel %vm1810, %v1812, %v1808
    %v1814 = vmul.f32 1.0, %v1813
    %v1815 = vld [vmem:[%s1618 + $0x10] sm:$0xff]
    %v1816 = vld [vmem:[#allocation8 + $0x8] sm:$0xf]
    %v1817 = vld [vmem:[#allocation8 + $0x18] sm:$0xf]
    %v1818 = vld [vmem:[#allocation8 + $0x28] sm:$0xf]
    %v1819 = vld [vmem:[#allocation8 + $0x38] sm:$0xf]
    %v1820 = vld [vmem:[#allocation8 + $0x48] sm:$0xf]
    %v1821 = vld [vmem:[#allocation8 + $0x58] sm:$0xf]
    %v1822 = vld [vmem:[#allocation8 + $0x68] sm:$0xf]
    %v1823 = vld [vmem:[#allocation8 + $0x78] sm:$0xf]
    %v1824 = vld [vmem:[#allocation8 + $0x88] sm:$0xf]
    %v1825 = vld [vmem:[#allocation8 + $0x98] sm:$0xf]
    %v1826 = vld [vmem:[#allocation8 + $0xa8] sm:$0xf]
    %v1827 = vld [vmem:[#allocation8 + $0xb8] sm:$0xf]
    %v1828 = vld [vmem:[#allocation8 + $0xc8] sm:$0xf]
    %v1829 = vld [vmem:[#allocation8 + $0xd8] sm:$0xf]
    %v1830 = vld [vmem:[#allocation8 + $0xe8] sm:$0xf]
    %v1831 = vld [vmem:[#allocation8 + $0xf8] sm:$0xf]
    %v1848 = vunpack.c.l.b16 %v1816
    %v1849 = vunpack.c.l.b16 %v1817
    %v1850 = vunpack.c.l.b16 %v1818
    %v1851 = vunpack.c.l.b16 %v1819
    %v1852 = vunpack.c.l.b16 %v1820
    %v1853 = vunpack.c.l.b16 %v1821
    %v1854 = vunpack.c.l.b16 %v1822
    %v1855 = vunpack.c.l.b16 %v1823
    %v1856 = vunpack.c.l.b16 %v1824
    %v1857 = vunpack.c.l.b16 %v1825
    %v1858 = vunpack.c.l.b16 %v1826
    %v1859 = vunpack.c.l.b16 %v1827
    %v1860 = vunpack.c.l.b16 %v1828
    %v1861 = vunpack.c.l.b16 %v1829
    %v1862 = vunpack.c.l.b16 %v1830
    %v1863 = vunpack.c.l.b16 %v1831
    %v1864 = vpack.c.b16 %v1849, %v1848
    %v1865 = vpack.c.b16 %v1851, %v1850
    %v1866 = vpack.c.b16 %v1853, %v1852
    %v1867 = vpack.c.b16 %v1855, %v1854
    %v1868 = vpack.c.b16 %v1857, %v1856
    %v1869 = vpack.c.b16 %v1859, %v1858
    %v1870 = vpack.c.b16 %v1861, %v1860
    %v1871 = vpack.c.b16 %v1863, %v1862
    %1880 = vmatpush.bf16.msra.mxu0 %v1871
    %1881 = vmatpush.bf16.msra.mxu0 %v1870
    %1882 = vmatpush.bf16.msra.mxu0 %v1869
    %1883 = vmatpush.bf16.msra.mxu0 %v1868
    %1884 = vmatpush.bf16.msra.mxu0 %v1867
    %1885 = vmatpush.bf16.msra.mxu0 %v1866
    %1886 = vmatpush.bf16.msra.mxu0 %v1865
    %1887 = vmatpush.bf16.msra.mxu0 %v1864
    %1888 = vmatmul.bf16.gmra.mxu0 %v1615
    %v1889 = vpop.f32.mrf.mxu0
    %v1890 = vadd.f32 0.0, %v1889
    %v1891 = vpop.f32.mrf.mxu0
    %1892 = vdwg.mxu0
    %v1893 = vadd.f32 %v1815, %v1890
    %v1894 = vtanh.pop %v1893
    %v1895 = vld [vmem:[%s1618 + $0x18] sm:$0xff]
    %v1896 = vld [vmem:[#allocation8 + $0xc] sm:$0xf]
    %v1897 = vld [vmem:[#allocation8 + $0x1c] sm:$0xf]
    %v1898 = vld [vmem:[#allocation8 + $0x2c] sm:$0xf]
    %v1899 = vld [vmem:[#allocation8 + $0x3c] sm:$0xf]
    %v1900 = vld [vmem:[#allocation8 + $0x4c] sm:$0xf]
    %v1901 = vld [vmem:[#allocation8 + $0x5c] sm:$0xf]
    %v1902 = vld [vmem:[#allocation8 + $0x6c] sm:$0xf]
    %v1903 = vld [vmem:[#allocation8 + $0x7c] sm:$0xf]
    %v1904 = vld [vmem:[#allocation8 + $0x8c] sm:$0xf]
    %v1905 = vld [vmem:[#allocation8 + $0x9c] sm:$0xf]
    %v1906 = vld [vmem:[#allocation8 + $0xac] sm:$0xf]
    %v1907 = vld [vmem:[#allocation8 + $0xbc] sm:$0xf]
    %v1908 = vld [vmem:[#allocation8 + $0xcc] sm:$0xf]
    %v1909 = vld [vmem:[#allocation8 + $0xdc] sm:$0xf]
    %v1910 = vld [vmem:[#allocation8 + $0xec] sm:$0xf]
    %v1911 = vld [vmem:[#allocation8 + $0xfc] sm:$0xf]
    %v1928 = vunpack.c.l.b16 %v1896
    %v1929 = vunpack.c.l.b16 %v1897
    %v1930 = vunpack.c.l.b16 %v1898
    %v1931 = vunpack.c.l.b16 %v1899
    %v1932 = vunpack.c.l.b16 %v1900
    %v1933 = vunpack.c.l.b16 %v1901
    %v1934 = vunpack.c.l.b16 %v1902
    %v1935 = vunpack.c.l.b16 %v1903
    %v1936 = vunpack.c.l.b16 %v1904
    %v1937 = vunpack.c.l.b16 %v1905
    %v1938 = vunpack.c.l.b16 %v1906
    %v1939 = vunpack.c.l.b16 %v1907
    %v1940 = vunpack.c.l.b16 %v1908
    %v1941 = vunpack.c.l.b16 %v1909
    %v1942 = vunpack.c.l.b16 %v1910
    %v1943 = vunpack.c.l.b16 %v1911
    %v1944 = vpack.c.b16 %v1929, %v1928
    %v1945 = vpack.c.b16 %v1931, %v1930
    %v1946 = vpack.c.b16 %v1933, %v1932
    %v1947 = vpack.c.b16 %v1935, %v1934
    %v1948 = vpack.c.b16 %v1937, %v1936
    %v1949 = vpack.c.b16 %v1939, %v1938
    %v1950 = vpack.c.b16 %v1941, %v1940
    %v1951 = vpack.c.b16 %v1943, %v1942
    %1960 = vmatpush.bf16.msra.mxu0 %v1951
    %1961 = vmatpush.bf16.msra.mxu0 %v1950
    %1962 = vmatpush.bf16.msra.mxu0 %v1949
    %1963 = vmatpush.bf16.msra.mxu0 %v1948
    %1964 = vmatpush.bf16.msra.mxu0 %v1947
    %1965 = vmatpush.bf16.msra.mxu0 %v1946
    %1966 = vmatpush.bf16.msra.mxu0 %v1945
    %1967 = vmatpush.bf16.msra.mxu0 %v1944
    %1968 = vmatmul.bf16.gmra.mxu0 %v1615
    %v1969 = vpop.f32.mrf.mxu0
    %v1970 = vadd.f32 0.0, %v1969
    %v1971 = vpop.f32.mrf.mxu0
    %1972 = vdwg.mxu0
    %v1973 = vadd.f32 %v1895, %v1970
    %v1974 = vxor.u32 %v1973, 2147483648
    %v1975 = vmul.f32 %v1974, 1.442695
    %v1976 = vpow.pop %v1975
    %v1977 = vadd.f32 %v1976, 1.0
    %v1978 = vrcp.pop %v1977
    %v1979 = vmul.f32 %v1977, %v1978
    %v1980 = vsub.f32 1.0, %v1979
    %v1981 = vmul.f32 %v1978, %v1980
    %v1982 = vadd.f32 %v1978, %v1981
    %vm1983 = vweird.f32 %v1977
    %vm1984 = vweird.f32 %v1978
    %vm1985 = vmor %vm1983, %vm1984
    %v1986 = vsel %vm1985, %v1978, %v1982
    %v1987 = vand.u32 2147483647, %v1977
    %vm1988 = vcmp.eq.f32.partialorder %v1987, 8.507059e+37
    %v1989 = vand.u32 %v1977, 2147483648
    %v1990 = vor.u32 1.1754944e-38, %v1989
    %v1991 = vsel %vm1988, %v1990, %v1986
    %v1992 = vmul.f32 1.0, %v1991
    %v1993 = vld [vmem:[#allocation5] sm:$0xff]
    %v1994 = vmul.f32 %v1814, %v1993
    %v1995 = vmul.f32 %v1716, %v1894
    %v1996 = vadd.f32 %v1994, %v1995
    %v1997 = vtanh.pop %v1996
    %v1998 = vmul.f32 %v1992, %v1997
    %1999 = vst [vmem:[#allocation5] sm:$0xff] %v1996
    %2000 = vst [vmem:[#allocation4] sm:$0xff] %v1998
    %s2001 = scalar_lea.vmem [#allocation3], 24
    %2002 = vst [vmem:[%s2001] sm:$0xff] %v1998
    %v2003 = vld [vmem:[#allocation4] sm:$0xff]
    %v2004 = vpack.c.bf16 %v2003, %v2003
    %s2005 = smul.u32 4, 4
    %s2006 = smul.addr %s2005, 8
    %s2007 = scalar_lea.vmem [#allocation2], %s2006
    %v2008 = vld [vmem:[%s2007] sm:$0xff]
    %v2009 = vld [vmem:[#allocation8] sm:$0xf]
    %v2010 = vld [vmem:[#allocation8 + $0x10] sm:$0xf]
    %v2011 = vld [vmem:[#allocation8 + $0x20] sm:$0xf]
    %v2012 = vld [vmem:[#allocation8 + $0x30] sm:$0xf]
    %v2013 = vld [vmem:[#allocation8 + $0x40] sm:$0xf]
    %v2014 = vld [vmem:[#allocation8 + $0x50] sm:$0xf]
    %v2015 = vld [vmem:[#allocation8 + $0x60] sm:$0xf]
    %v2016 = vld [vmem:[#allocation8 + $0x70] sm:$0xf]
    %v2017 = vld [vmem:[#allocation8 + $0x80] sm:$0xf]
    %v2018 = vld [vmem:[#allocation8 + $0x90] sm:$0xf]
    %v2019 = vld [vmem:[#allocation8 + $0xa0] sm:$0xf]
    %v2020 = vld [vmem:[#allocation8 + $0xb0] sm:$0xf]
    %v2021 = vld [vmem:[#allocation8 + $0xc0] sm:$0xf]
    %v2022 = vld [vmem:[#allocation8 + $0xd0] sm:$0xf]
    %v2023 = vld [vmem:[#allocation8 + $0xe0] sm:$0xf]
    %v2024 = vld [vmem:[#allocation8 + $0xf0] sm:$0xf]
    %v2041 = vunpack.c.l.b16 %v2009
    %v2042 = vunpack.c.l.b16 %v2010
    %v2043 = vunpack.c.l.b16 %v2011
    %v2044 = vunpack.c.l.b16 %v2012
    %v2045 = vunpack.c.l.b16 %v2013
    %v2046 = vunpack.c.l.b16 %v2014
    %v2047 = vunpack.c.l.b16 %v2015
    %v2048 = vunpack.c.l.b16 %v2016
    %v2049 = vunpack.c.l.b16 %v2017
    %v2050 = vunpack.c.l.b16 %v2018
    %v2051 = vunpack.c.l.b16 %v2019
    %v2052 = vunpack.c.l.b16 %v2020
    %v2053 = vunpack.c.l.b16 %v2021
    %v2054 = vunpack.c.l.b16 %v2022
    %v2055 = vunpack.c.l.b16 %v2023
    %v2056 = vunpack.c.l.b16 %v2024
    %v2057 = vpack.c.b16 %v2042, %v2041
    %v2058 = vpack.c.b16 %v2044, %v2043
    %v2059 = vpack.c.b16 %v2046, %v2045
    %v2060 = vpack.c.b16 %v2048, %v2047
    %v2061 = vpack.c.b16 %v2050, %v2049
    %v2062 = vpack.c.b16 %v2052, %v2051
    %v2063 = vpack.c.b16 %v2054, %v2053
    %v2064 = vpack.c.b16 %v2056, %v2055
    %2073 = vmatpush.bf16.msra.mxu0 %v2064
    %2074 = vmatpush.bf16.msra.mxu0 %v2063
    %2075 = vmatpush.bf16.msra.mxu0 %v2062
    %2076 = vmatpush.bf16.msra.mxu0 %v2061
    %2077 = vmatpush.bf16.msra.mxu0 %v2060
    %2078 = vmatpush.bf16.msra.mxu0 %v2059
    %2079 = vmatpush.bf16.msra.mxu0 %v2058
    %2080 = vmatpush.bf16.msra.mxu0 %v2057
    %2081 = vmatmul.bf16.gmra.mxu0 %v2004
    %v2082 = vpop.f32.mrf.mxu0
    %v2083 = vadd.f32 0.0, %v2082
    %v2084 = vpop.f32.mrf.mxu0
    %2085 = vdwg.mxu0
    %v2086 = vadd.f32 %v2008, %v2083
    %v2087 = vxor.u32 %v2086, 2147483648
    %v2088 = vmul.f32 %v2087, 1.442695
    %v2089 = vpow.pop %v2088
    %v2090 = vadd.f32 %v2089, 1.0
    %v2091 = vrcp.pop %v2090
    %v2092 = vmul.f32 %v2090, %v2091
    %v2093 = vsub.f32 1.0, %v2092
    %v2094 = vmul.f32 %v2091, %v2093
    %v2095 = vadd.f32 %v2091, %v2094
    %vm2096 = vweird.f32 %v2090
    %vm2097 = vweird.f32 %v2091
    %vm2098 = vmor %vm2096, %vm2097
    %v2099 = vsel %vm2098, %v2091, %v2095
    %v2100 = vand.u32 2147483647, %v2090
    %vm2101 = vcmp.eq.f32.partialorder %v2100, 8.507059e+37
    %v2102 = vand.u32 %v2090, 2147483648
    %v2103 = vor.u32 1.1754944e-38, %v2102
    %v2104 = vsel %vm2101, %v2103, %v2099
    %v2105 = vmul.f32 1.0, %v2104
    %v2106 = vld [vmem:[%s2007 + $0x8] sm:$0xff]
    %v2107 = vld [vmem:[#allocation8 + $0x4] sm:$0xf]
    %v2108 = vld [vmem:[#allocation8 + $0x14] sm:$0xf]
    %v2109 = vld [vmem:[#allocation8 + $0x24] sm:$0xf]
    %v2110 = vld [vmem:[#allocation8 + $0x34] sm:$0xf]
    %v2111 = vld [vmem:[#allocation8 + $0x44] sm:$0xf]
    %v2112 = vld [vmem:[#allocation8 + $0x54] sm:$0xf]
    %v2113 = vld [vmem:[#allocation8 + $0x64] sm:$0xf]
    %v2114 = vld [vmem:[#allocation8 + $0x74] sm:$0xf]
    %v2115 = vld [vmem:[#allocation8 + $0x84] sm:$0xf]
    %v2116 = vld [vmem:[#allocation8 + $0x94] sm:$0xf]
    %v2117 = vld [vmem:[#allocation8 + $0xa4] sm:$0xf]
    %v2118 = vld [vmem:[#allocation8 + $0xb4] sm:$0xf]
    %v2119 = vld [vmem:[#allocation8 + $0xc4] sm:$0xf]
    %v2120 = vld [vmem:[#allocation8 + $0xd4] sm:$0xf]
    %v2121 = vld [vmem:[#allocation8 + $0xe4] sm:$0xf]
    %v2122 = vld [vmem:[#allocation8 + $0xf4] sm:$0xf]
    %v2139 = vunpack.c.l.b16 %v2107
    %v2140 = vunpack.c.l.b16 %v2108
    %v2141 = vunpack.c.l.b16 %v2109
    %v2142 = vunpack.c.l.b16 %v2110
    %v2143 = vunpack.c.l.b16 %v2111
    %v2144 = vunpack.c.l.b16 %v2112
    %v2145 = vunpack.c.l.b16 %v2113
    %v2146 = vunpack.c.l.b16 %v2114
    %v2147 = vunpack.c.l.b16 %v2115
    %v2148 = vunpack.c.l.b16 %v2116
    %v2149 = vunpack.c.l.b16 %v2117
    %v2150 = vunpack.c.l.b16 %v2118
    %v2151 = vunpack.c.l.b16 %v2119
    %v2152 = vunpack.c.l.b16 %v2120
    %v2153 = vunpack.c.l.b16 %v2121
    %v2154 = vunpack.c.l.b16 %v2122
    %v2155 = vpack.c.b16 %v2140, %v2139
    %v2156 = vpack.c.b16 %v2142, %v2141
    %v2157 = vpack.c.b16 %v2144, %v2143
    %v2158 = vpack.c.b16 %v2146, %v2145
    %v2159 = vpack.c.b16 %v2148, %v2147
    %v2160 = vpack.c.b16 %v2150, %v2149
    %v2161 = vpack.c.b16 %v2152, %v2151
    %v2162 = vpack.c.b16 %v2154, %v2153
    %2171 = vmatpush.bf16.msra.mxu0 %v2162
    %2172 = vmatpush.bf16.msra.mxu0 %v2161
    %2173 = vmatpush.bf16.msra.mxu0 %v2160
    %2174 = vmatpush.bf16.msra.mxu0 %v2159
    %2175 = vmatpush.bf16.msra.mxu0 %v2158
    %2176 = vmatpush.bf16.msra.mxu0 %v2157
    %2177 = vmatpush.bf16.msra.mxu0 %v2156
    %2178 = vmatpush.bf16.msra.mxu0 %v2155
    %2179 = vmatmul.bf16.gmra.mxu0 %v2004
    %v2180 = vpop.f32.mrf.mxu0
    %v2181 = vadd.f32 0.0, %v2180
    %v2182 = vpop.f32.mrf.mxu0
    %2183 = vdwg.mxu0
    %v2184 = vadd.f32 %v2106, %v2181
    %v2185 = vxor.u32 %v2184, 2147483648
    %v2186 = vmul.f32 %v2185, 1.442695
    %v2187 = vpow.pop %v2186
    %v2188 = vadd.f32 %v2187, 1.0
    %v2189 = vrcp.pop %v2188
    %v2190 = vmul.f32 %v2188, %v2189
    %v2191 = vsub.f32 1.0, %v2190
    %v2192 = vmul.f32 %v2189, %v2191
    %v2193 = vadd.f32 %v2189, %v2192
    %vm2194 = vweird.f32 %v2188
    %vm2195 = vweird.f32 %v2189
    %vm2196 = vmor %vm2194, %vm2195
    %v2197 = vsel %vm2196, %v2189, %v2193
    %v2198 = vand.u32 2147483647, %v2188
    %vm2199 = vcmp.eq.f32.partialorder %v2198, 8.507059e+37
    %v2200 = vand.u32 %v2188, 2147483648
    %v2201 = vor.u32 1.1754944e-38, %v2200
    %v2202 = vsel %vm2199, %v2201, %v2197
    %v2203 = vmul.f32 1.0, %v2202
    %v2204 = vld [vmem:[%s2007 + $0x10] sm:$0xff]
    %v2205 = vld [vmem:[#allocation8 + $0x8] sm:$0xf]
    %v2206 = vld [vmem:[#allocation8 + $0x18] sm:$0xf]
    %v2207 = vld [vmem:[#allocation8 + $0x28] sm:$0xf]
    %v2208 = vld [vmem:[#allocation8 + $0x38] sm:$0xf]
    %v2209 = vld [vmem:[#allocation8 + $0x48] sm:$0xf]
    %v2210 = vld [vmem:[#allocation8 + $0x58] sm:$0xf]
    %v2211 = vld [vmem:[#allocation8 + $0x68] sm:$0xf]
    %v2212 = vld [vmem:[#allocation8 + $0x78] sm:$0xf]
    %v2213 = vld [vmem:[#allocation8 + $0x88] sm:$0xf]
    %v2214 = vld [vmem:[#allocation8 + $0x98] sm:$0xf]
    %v2215 = vld [vmem:[#allocation8 + $0xa8] sm:$0xf]
    %v2216 = vld [vmem:[#allocation8 + $0xb8] sm:$0xf]
    %v2217 = vld [vmem:[#allocation8 + $0xc8] sm:$0xf]
    %v2218 = vld [vmem:[#allocation8 + $0xd8] sm:$0xf]
    %v2219 = vld [vmem:[#allocation8 + $0xe8] sm:$0xf]
    %v2220 = vld [vmem:[#allocation8 + $0xf8] sm:$0xf]
    %v2237 = vunpack.c.l.b16 %v2205
    %v2238 = vunpack.c.l.b16 %v2206
    %v2239 = vunpack.c.l.b16 %v2207
    %v2240 = vunpack.c.l.b16 %v2208
    %v2241 = vunpack.c.l.b16 %v2209
    %v2242 = vunpack.c.l.b16 %v2210
    %v2243 = vunpack.c.l.b16 %v2211
    %v2244 = vunpack.c.l.b16 %v2212
    %v2245 = vunpack.c.l.b16 %v2213
    %v2246 = vunpack.c.l.b16 %v2214
    %v2247 = vunpack.c.l.b16 %v2215
    %v2248 = vunpack.c.l.b16 %v2216
    %v2249 = vunpack.c.l.b16 %v2217
    %v2250 = vunpack.c.l.b16 %v2218
    %v2251 = vunpack.c.l.b16 %v2219
    %v2252 = vunpack.c.l.b16 %v2220
    %v2253 = vpack.c.b16 %v2238, %v2237
    %v2254 = vpack.c.b16 %v2240, %v2239
    %v2255 = vpack.c.b16 %v2242, %v2241
    %v2256 = vpack.c.b16 %v2244, %v2243
    %v2257 = vpack.c.b16 %v2246, %v2245
    %v2258 = vpack.c.b16 %v2248, %v2247
    %v2259 = vpack.c.b16 %v2250, %v2249
    %v2260 = vpack.c.b16 %v2252, %v2251
    %2269 = vmatpush.bf16.msra.mxu0 %v2260
    %2270 = vmatpush.bf16.msra.mxu0 %v2259
    %2271 = vmatpush.bf16.msra.mxu0 %v2258
    %2272 = vmatpush.bf16.msra.mxu0 %v2257
    %2273 = vmatpush.bf16.msra.mxu0 %v2256
    %2274 = vmatpush.bf16.msra.mxu0 %v2255
    %2275 = vmatpush.bf16.msra.mxu0 %v2254
    %2276 = vmatpush.bf16.msra.mxu0 %v2253
    %2277 = vmatmul.bf16.gmra.mxu0 %v2004
    %v2278 = vpop.f32.mrf.mxu0
    %v2279 = vadd.f32 0.0, %v2278
    %v2280 = vpop.f32.mrf.mxu0
    %2281 = vdwg.mxu0
    %v2282 = vadd.f32 %v2204, %v2279
    %v2283 = vtanh.pop %v2282
    %v2284 = vld [vmem:[%s2007 + $0x18] sm:$0xff]
    %v2285 = vld [vmem:[#allocation8 + $0xc] sm:$0xf]
    %v2286 = vld [vmem:[#allocation8 + $0x1c] sm:$0xf]
    %v2287 = vld [vmem:[#allocation8 + $0x2c] sm:$0xf]
    %v2288 = vld [vmem:[#allocation8 + $0x3c] sm:$0xf]
    %v2289 = vld [vmem:[#allocation8 + $0x4c] sm:$0xf]
    %v2290 = vld [vmem:[#allocation8 + $0x5c] sm:$0xf]
    %v2291 = vld [vmem:[#allocation8 + $0x6c] sm:$0xf]
    %v2292 = vld [vmem:[#allocation8 + $0x7c] sm:$0xf]
    %v2293 = vld [vmem:[#allocation8 + $0x8c] sm:$0xf]
    %v2294 = vld [vmem:[#allocation8 + $0x9c] sm:$0xf]
    %v2295 = vld [vmem:[#allocation8 + $0xac] sm:$0xf]
    %v2296 = vld [vmem:[#allocation8 + $0xbc] sm:$0xf]
    %v2297 = vld [vmem:[#allocation8 + $0xcc] sm:$0xf]
    %v2298 = vld [vmem:[#allocation8 + $0xdc] sm:$0xf]
    %v2299 = vld [vmem:[#allocation8 + $0xec] sm:$0xf]
    %v2300 = vld [vmem:[#allocation8 + $0xfc] sm:$0xf]
    %v2317 = vunpack.c.l.b16 %v2285
    %v2318 = vunpack.c.l.b16 %v2286
    %v2319 = vunpack.c.l.b16 %v2287
    %v2320 = vunpack.c.l.b16 %v2288
    %v2321 = vunpack.c.l.b16 %v2289
    %v2322 = vunpack.c.l.b16 %v2290
    %v2323 = vunpack.c.l.b16 %v2291
    %v2324 = vunpack.c.l.b16 %v2292
    %v2325 = vunpack.c.l.b16 %v2293
    %v2326 = vunpack.c.l.b16 %v2294
    %v2327 = vunpack.c.l.b16 %v2295
    %v2328 = vunpack.c.l.b16 %v2296
    %v2329 = vunpack.c.l.b16 %v2297
    %v2330 = vunpack.c.l.b16 %v2298
    %v2331 = vunpack.c.l.b16 %v2299
    %v2332 = vunpack.c.l.b16 %v2300
    %v2333 = vpack.c.b16 %v2318, %v2317
    %v2334 = vpack.c.b16 %v2320, %v2319
    %v2335 = vpack.c.b16 %v2322, %v2321
    %v2336 = vpack.c.b16 %v2324, %v2323
    %v2337 = vpack.c.b16 %v2326, %v2325
    %v2338 = vpack.c.b16 %v2328, %v2327
    %v2339 = vpack.c.b16 %v2330, %v2329
    %v2340 = vpack.c.b16 %v2332, %v2331
    %2349 = vmatpush.bf16.msra.mxu0 %v2340
    %2350 = vmatpush.bf16.msra.mxu0 %v2339
    %2351 = vmatpush.bf16.msra.mxu0 %v2338
    %2352 = vmatpush.bf16.msra.mxu0 %v2337
    %2353 = vmatpush.bf16.msra.mxu0 %v2336
    %2354 = vmatpush.bf16.msra.mxu0 %v2335
    %2355 = vmatpush.bf16.msra.mxu0 %v2334
    %2356 = vmatpush.bf16.msra.mxu0 %v2333
    %2357 = vmatmul.bf16.gmra.mxu0 %v2004
    %v2358 = vpop.f32.mrf.mxu0
    %v2359 = vadd.f32 0.0, %v2358
    %v2360 = vpop.f32.mrf.mxu0
    %2361 = vdwg.mxu0
    %v2362 = vadd.f32 %v2284, %v2359
    %v2363 = vxor.u32 %v2362, 2147483648
    %v2364 = vmul.f32 %v2363, 1.442695
    %v2365 = vpow.pop %v2364
    %v2366 = vadd.f32 %v2365, 1.0
    %v2367 = vrcp.pop %v2366
    %v2368 = vmul.f32 %v2366, %v2367
    %v2369 = vsub.f32 1.0, %v2368
    %v2370 = vmul.f32 %v2367, %v2369
    %v2371 = vadd.f32 %v2367, %v2370
    %vm2372 = vweird.f32 %v2366
    %vm2373 = vweird.f32 %v2367
    %vm2374 = vmor %vm2372, %vm2373
    %v2375 = vsel %vm2374, %v2367, %v2371
    %v2376 = vand.u32 2147483647, %v2366
    %vm2377 = vcmp.eq.f32.partialorder %v2376, 8.507059e+37
    %v2378 = vand.u32 %v2366, 2147483648
    %v2379 = vor.u32 1.1754944e-38, %v2378
    %v2380 = vsel %vm2377, %v2379, %v2375
    %v2381 = vmul.f32 1.0, %v2380
    %v2382 = vld [vmem:[#allocation5] sm:$0xff]
    %v2383 = vmul.f32 %v2203, %v2382
    %v2384 = vmul.f32 %v2105, %v2283
    %v2385 = vadd.f32 %v2383, %v2384
    %v2386 = vtanh.pop %v2385
    %v2387 = vmul.f32 %v2381, %v2386
    %2388 = vst [vmem:[#allocation5] sm:$0xff] %v2385
    %2389 = vst [vmem:[#allocation4] sm:$0xff] %v2387
    %s2390 = scalar_lea.vmem [#allocation3], 32
    %2391 = vst [vmem:[%s2390] sm:$0xff] %v2387
    %v2392 = vld [vmem:[#allocation4] sm:$0xff]
    %v2393 = vpack.c.bf16 %v2392, %v2392
    %s2394 = smul.u32 5, 4
    %s2395 = smul.addr %s2394, 8
    %s2396 = scalar_lea.vmem [#allocation2], %s2395
    %v2397 = vld [vmem:[%s2396] sm:$0xff]
    %v2398 = vld [vmem:[#allocation8] sm:$0xf]
    %v2399 = vld [vmem:[#allocation8 + $0x10] sm:$0xf]
    %v2400 = vld [vmem:[#allocation8 + $0x20] sm:$0xf]
    %v2401 = vld [vmem:[#allocation8 + $0x30] sm:$0xf]
    %v2402 = vld [vmem:[#allocation8 + $0x40] sm:$0xf]
    %v2403 = vld [vmem:[#allocation8 + $0x50] sm:$0xf]
    %v2404 = vld [vmem:[#allocation8 + $0x60] sm:$0xf]
    %v2405 = vld [vmem:[#allocation8 + $0x70] sm:$0xf]
    %v2406 = vld [vmem:[#allocation8 + $0x80] sm:$0xf]
    %v2407 = vld [vmem:[#allocation8 + $0x90] sm:$0xf]
    %v2408 = vld [vmem:[#allocation8 + $0xa0] sm:$0xf]
    %v2409 = vld [vmem:[#allocation8 + $0xb0] sm:$0xf]
    %v2410 = vld [vmem:[#allocation8 + $0xc0] sm:$0xf]
    %v2411 = vld [vmem:[#allocation8 + $0xd0] sm:$0xf]
    %v2412 = vld [vmem:[#allocation8 + $0xe0] sm:$0xf]
    %v2413 = vld [vmem:[#allocation8 + $0xf0] sm:$0xf]
    %v2430 = vunpack.c.l.b16 %v2398
    %v2431 = vunpack.c.l.b16 %v2399
    %v2432 = vunpack.c.l.b16 %v2400
    %v2433 = vunpack.c.l.b16 %v2401
    %v2434 = vunpack.c.l.b16 %v2402
    %v2435 = vunpack.c.l.b16 %v2403
    %v2436 = vunpack.c.l.b16 %v2404
    %v2437 = vunpack.c.l.b16 %v2405
    %v2438 = vunpack.c.l.b16 %v2406
    %v2439 = vunpack.c.l.b16 %v2407
    %v2440 = vunpack.c.l.b16 %v2408
    %v2441 = vunpack.c.l.b16 %v2409
    %v2442 = vunpack.c.l.b16 %v2410
    %v2443 = vunpack.c.l.b16 %v2411
    %v2444 = vunpack.c.l.b16 %v2412
    %v2445 = vunpack.c.l.b16 %v2413
    %v2446 = vpack.c.b16 %v2431, %v2430
    %v2447 = vpack.c.b16 %v2433, %v2432
    %v2448 = vpack.c.b16 %v2435, %v2434
    %v2449 = vpack.c.b16 %v2437, %v2436
    %v2450 = vpack.c.b16 %v2439, %v2438
    %v2451 = vpack.c.b16 %v2441, %v2440
    %v2452 = vpack.c.b16 %v2443, %v2442
    %v2453 = vpack.c.b16 %v2445, %v2444
    %2462 = vmatpush.bf16.msra.mxu0 %v2453
    %2463 = vmatpush.bf16.msra.mxu0 %v2452
    %2464 = vmatpush.bf16.msra.mxu0 %v2451
    %2465 = vmatpush.bf16.msra.mxu0 %v2450
    %2466 = vmatpush.bf16.msra.mxu0 %v2449
    %2467 = vmatpush.bf16.msra.mxu0 %v2448
    %2468 = vmatpush.bf16.msra.mxu0 %v2447
    %2469 = vmatpush.bf16.msra.mxu0 %v2446
    %2470 = vmatmul.bf16.gmra.mxu0 %v2393
    %v2471 = vpop.f32.mrf.mxu0
    %v2472 = vadd.f32 0.0, %v2471
    %v2473 = vpop.f32.mrf.mxu0
    %2474 = vdwg.mxu0
    %v2475 = vadd.f32 %v2397, %v2472
    %v2476 = vxor.u32 %v2475, 2147483648
    %v2477 = vmul.f32 %v2476, 1.442695
    %v2478 = vpow.pop %v2477
    %v2479 = vadd.f32 %v2478, 1.0
    %v2480 = vrcp.pop %v2479
    %v2481 = vmul.f32 %v2479, %v2480
    %v2482 = vsub.f32 1.0, %v2481
    %v2483 = vmul.f32 %v2480, %v2482
    %v2484 = vadd.f32 %v2480, %v2483
    %vm2485 = vweird.f32 %v2479
    %vm2486 = vweird.f32 %v2480
    %vm2487 = vmor %vm2485, %vm2486
    %v2488 = vsel %vm2487, %v2480, %v2484
    %v2489 = vand.u32 2147483647, %v2479
    %vm2490 = vcmp.eq.f32.partialorder %v2489, 8.507059e+37
    %v2491 = vand.u32 %v2479, 2147483648
    %v2492 = vor.u32 1.1754944e-38, %v2491
    %v2493 = vsel %vm2490, %v2492, %v2488
    %v2494 = vmul.f32 1.0, %v2493
    %v2495 = vld [vmem:[%s2396 + $0x8] sm:$0xff]
    %v2496 = vld [vmem:[#allocation8 + $0x4] sm:$0xf]
    %v2497 = vld [vmem:[#allocation8 + $0x14] sm:$0xf]
    %v2498 = vld [vmem:[#allocation8 + $0x24] sm:$0xf]
    %v2499 = vld [vmem:[#allocation8 + $0x34] sm:$0xf]
    %v2500 = vld [vmem:[#allocation8 + $0x44] sm:$0xf]
    %v2501 = vld [vmem:[#allocation8 + $0x54] sm:$0xf]
    %v2502 = vld [vmem:[#allocation8 + $0x64] sm:$0xf]
    %v2503 = vld [vmem:[#allocation8 + $0x74] sm:$0xf]
    %v2504 = vld [vmem:[#allocation8 + $0x84] sm:$0xf]
    %v2505 = vld [vmem:[#allocation8 + $0x94] sm:$0xf]
    %v2506 = vld [vmem:[#allocation8 + $0xa4] sm:$0xf]
    %v2507 = vld [vmem:[#allocation8 + $0xb4] sm:$0xf]
    %v2508 = vld [vmem:[#allocation8 + $0xc4] sm:$0xf]
    %v2509 = vld [vmem:[#allocation8 + $0xd4] sm:$0xf]
    %v2510 = vld [vmem:[#allocation8 + $0xe4] sm:$0xf]
    %v2511 = vld [vmem:[#allocation8 + $0xf4] sm:$0xf]
    %v2528 = vunpack.c.l.b16 %v2496
    %v2529 = vunpack.c.l.b16 %v2497
    %v2530 = vunpack.c.l.b16 %v2498
    %v2531 = vunpack.c.l.b16 %v2499
    %v2532 = vunpack.c.l.b16 %v2500
    %v2533 = vunpack.c.l.b16 %v2501
    %v2534 = vunpack.c.l.b16 %v2502
    %v2535 = vunpack.c.l.b16 %v2503
    %v2536 = vunpack.c.l.b16 %v2504
    %v2537 = vunpack.c.l.b16 %v2505
    %v2538 = vunpack.c.l.b16 %v2506
    %v2539 = vunpack.c.l.b16 %v2507
    %v2540 = vunpack.c.l.b16 %v2508
    %v2541 = vunpack.c.l.b16 %v2509
    %v2542 = vunpack.c.l.b16 %v2510
    %v2543 = vunpack.c.l.b16 %v2511
    %v2544 = vpack.c.b16 %v2529, %v2528
    %v2545 = vpack.c.b16 %v2531, %v2530
    %v2546 = vpack.c.b16 %v2533, %v2532
    %v2547 = vpack.c.b16 %v2535, %v2534
    %v2548 = vpack.c.b16 %v2537, %v2536
    %v2549 = vpack.c.b16 %v2539, %v2538
    %v2550 = vpack.c.b16 %v2541, %v2540
    %v2551 = vpack.c.b16 %v2543, %v2542
    %2560 = vmatpush.bf16.msra.mxu0 %v2551
    %2561 = vmatpush.bf16.msra.mxu0 %v2550
    %2562 = vmatpush.bf16.msra.mxu0 %v2549
    %2563 = vmatpush.bf16.msra.mxu0 %v2548
    %2564 = vmatpush.bf16.msra.mxu0 %v2547
    %2565 = vmatpush.bf16.msra.mxu0 %v2546
    %2566 = vmatpush.bf16.msra.mxu0 %v2545
    %2567 = vmatpush.bf16.msra.mxu0 %v2544
    %2568 = vmatmul.bf16.gmra.mxu0 %v2393
    %v2569 = vpop.f32.mrf.mxu0
    %v2570 = vadd.f32 0.0, %v2569
    %v2571 = vpop.f32.mrf.mxu0
    %2572 = vdwg.mxu0
    %v2573 = vadd.f32 %v2495, %v2570
    %v2574 = vxor.u32 %v2573, 2147483648
    %v2575 = vmul.f32 %v2574, 1.442695
    %v2576 = vpow.pop %v2575
    %v2577 = vadd.f32 %v2576, 1.0
    %v2578 = vrcp.pop %v2577
    %v2579 = vmul.f32 %v2577, %v2578
    %v2580 = vsub.f32 1.0, %v2579
    %v2581 = vmul.f32 %v2578, %v2580
    %v2582 = vadd.f32 %v2578, %v2581
    %vm2583 = vweird.f32 %v2577
    %vm2584 = vweird.f32 %v2578
    %vm2585 = vmor %vm2583, %vm2584
    %v2586 = vsel %vm2585, %v2578, %v2582
    %v2587 = vand.u32 2147483647, %v2577
    %vm2588 = vcmp.eq.f32.partialorder %v2587, 8.507059e+37
    %v2589 = vand.u32 %v2577, 2147483648
    %v2590 = vor.u32 1.1754944e-38, %v2589
    %v2591 = vsel %vm2588, %v2590, %v2586
    %v2592 = vmul.f32 1.0, %v2591
    %v2593 = vld [vmem:[%s2396 + $0x10] sm:$0xff]
    %v2594 = vld [vmem:[#allocation8 + $0x8] sm:$0xf]
    %v2595 = vld [vmem:[#allocation8 + $0x18] sm:$0xf]
    %v2596 = vld [vmem:[#allocation8 + $0x28] sm:$0xf]
    %v2597 = vld [vmem:[#allocation8 + $0x38] sm:$0xf]
    %v2598 = vld [vmem:[#allocation8 + $0x48] sm:$0xf]
    %v2599 = vld [vmem:[#allocation8 + $0x58] sm:$0xf]
    %v2600 = vld [vmem:[#allocation8 + $0x68] sm:$0xf]
    %v2601 = vld [vmem:[#allocation8 + $0x78] sm:$0xf]
    %v2602 = vld [vmem:[#allocation8 + $0x88] sm:$0xf]
    %v2603 = vld [vmem:[#allocation8 + $0x98] sm:$0xf]
    %v2604 = vld [vmem:[#allocation8 + $0xa8] sm:$0xf]
    %v2605 = vld [vmem:[#allocation8 + $0xb8] sm:$0xf]
    %v2606 = vld [vmem:[#allocation8 + $0xc8] sm:$0xf]
    %v2607 = vld [vmem:[#allocation8 + $0xd8] sm:$0xf]
    %v2608 = vld [vmem:[#allocation8 + $0xe8] sm:$0xf]
    %v2609 = vld [vmem:[#allocation8 + $0xf8] sm:$0xf]
    %v2626 = vunpack.c.l.b16 %v2594
    %v2627 = vunpack.c.l.b16 %v2595
    %v2628 = vunpack.c.l.b16 %v2596
    %v2629 = vunpack.c.l.b16 %v2597
    %v2630 = vunpack.c.l.b16 %v2598
    %v2631 = vunpack.c.l.b16 %v2599
    %v2632 = vunpack.c.l.b16 %v2600
    %v2633 = vunpack.c.l.b16 %v2601
    %v2634 = vunpack.c.l.b16 %v2602
    %v2635 = vunpack.c.l.b16 %v2603
    %v2636 = vunpack.c.l.b16 %v2604
    %v2637 = vunpack.c.l.b16 %v2605
    %v2638 = vunpack.c.l.b16 %v2606
    %v2639 = vunpack.c.l.b16 %v2607
    %v2640 = vunpack.c.l.b16 %v2608
    %v2641 = vunpack.c.l.b16 %v2609
    %v2642 = vpack.c.b16 %v2627, %v2626
    %v2643 = vpack.c.b16 %v2629, %v2628
    %v2644 = vpack.c.b16 %v2631, %v2630
    %v2645 = vpack.c.b16 %v2633, %v2632
    %v2646 = vpack.c.b16 %v2635, %v2634
    %v2647 = vpack.c.b16 %v2637, %v2636
    %v2648 = vpack.c.b16 %v2639, %v2638
    %v2649 = vpack.c.b16 %v2641, %v2640
    %2658 = vmatpush.bf16.msra.mxu0 %v2649
    %2659 = vmatpush.bf16.msra.mxu0 %v2648
    %2660 = vmatpush.bf16.msra.mxu0 %v2647
    %2661 = vmatpush.bf16.msra.mxu0 %v2646
    %2662 = vmatpush.bf16.msra.mxu0 %v2645
    %2663 = vmatpush.bf16.msra.mxu0 %v2644
    %2664 = vmatpush.bf16.msra.mxu0 %v2643
    %2665 = vmatpush.bf16.msra.mxu0 %v2642
    %2666 = vmatmul.bf16.gmra.mxu0 %v2393
    %v2667 = vpop.f32.mrf.mxu0
    %v2668 = vadd.f32 0.0, %v2667
    %v2669 = vpop.f32.mrf.mxu0
    %2670 = vdwg.mxu0
    %v2671 = vadd.f32 %v2593, %v2668
    %v2672 = vtanh.pop %v2671
    %v2673 = vld [vmem:[%s2396 + $0x18] sm:$0xff]
    %v2674 = vld [vmem:[#allocation8 + $0xc] sm:$0xf]
    %v2675 = vld [vmem:[#allocation8 + $0x1c] sm:$0xf]
    %v2676 = vld [vmem:[#allocation8 + $0x2c] sm:$0xf]
    %v2677 = vld [vmem:[#allocation8 + $0x3c] sm:$0xf]
    %v2678 = vld [vmem:[#allocation8 + $0x4c] sm:$0xf]
    %v2679 = vld [vmem:[#allocation8 + $0x5c] sm:$0xf]
    %v2680 = vld [vmem:[#allocation8 + $0x6c] sm:$0xf]
    %v2681 = vld [vmem:[#allocation8 + $0x7c] sm:$0xf]
    %v2682 = vld [vmem:[#allocation8 + $0x8c] sm:$0xf]
    %v2683 = vld [vmem:[#allocation8 + $0x9c] sm:$0xf]
    %v2684 = vld [vmem:[#allocation8 + $0xac] sm:$0xf]
    %v2685 = vld [vmem:[#allocation8 + $0xbc] sm:$0xf]
    %v2686 = vld [vmem:[#allocation8 + $0xcc] sm:$0xf]
    %v2687 = vld [vmem:[#allocation8 + $0xdc] sm:$0xf]
    %v2688 = vld [vmem:[#allocation8 + $0xec] sm:$0xf]
    %v2689 = vld [vmem:[#allocation8 + $0xfc] sm:$0xf]
    %v2706 = vunpack.c.l.b16 %v2674
    %v2707 = vunpack.c.l.b16 %v2675
    %v2708 = vunpack.c.l.b16 %v2676
    %v2709 = vunpack.c.l.b16 %v2677
    %v2710 = vunpack.c.l.b16 %v2678
    %v2711 = vunpack.c.l.b16 %v2679
    %v2712 = vunpack.c.l.b16 %v2680
    %v2713 = vunpack.c.l.b16 %v2681
    %v2714 = vunpack.c.l.b16 %v2682
    %v2715 = vunpack.c.l.b16 %v2683
    %v2716 = vunpack.c.l.b16 %v2684
    %v2717 = vunpack.c.l.b16 %v2685
    %v2718 = vunpack.c.l.b16 %v2686
    %v2719 = vunpack.c.l.b16 %v2687
    %v2720 = vunpack.c.l.b16 %v2688
    %v2721 = vunpack.c.l.b16 %v2689
    %v2722 = vpack.c.b16 %v2707, %v2706
    %v2723 = vpack.c.b16 %v2709, %v2708
    %v2724 = vpack.c.b16 %v2711, %v2710
    %v2725 = vpack.c.b16 %v2713, %v2712
    %v2726 = vpack.c.b16 %v2715, %v2714
    %v2727 = vpack.c.b16 %v2717, %v2716
    %v2728 = vpack.c.b16 %v2719, %v2718
    %v2729 = vpack.c.b16 %v2721, %v2720
    %2738 = vmatpush.bf16.msra.mxu0 %v2729
    %2739 = vmatpush.bf16.msra.mxu0 %v2728
    %2740 = vmatpush.bf16.msra.mxu0 %v2727
    %2741 = vmatpush.bf16.msra.mxu0 %v2726
    %2742 = vmatpush.bf16.msra.mxu0 %v2725
    %2743 = vmatpush.bf16.msra.mxu0 %v2724
    %2744 = vmatpush.bf16.msra.mxu0 %v2723
    %2745 = vmatpush.bf16.msra.mxu0 %v2722
    %2746 = vmatmul.bf16.gmra.mxu0 %v2393
    %v2747 = vpop.f32.mrf.mxu0
    %v2748 = vadd.f32 0.0, %v2747
    %v2749 = vpop.f32.mrf.mxu0
    %2750 = vdwg.mxu0
    %v2751 = vadd.f32 %v2673, %v2748
    %v2752 = vxor.u32 %v2751, 2147483648
    %v2753 = vmul.f32 %v2752, 1.442695
    %v2754 = vpow.pop %v2753
    %v2755 = vadd.f32 %v2754, 1.0
    %v2756 = vrcp.pop %v2755
    %v2757 = vmul.f32 %v2755, %v2756
    %v2758 = vsub.f32 1.0, %v2757
    %v2759 = vmul.f32 %v2756, %v2758
    %v2760 = vadd.f32 %v2756, %v2759
    %vm2761 = vweird.f32 %v2755
    %vm2762 = vweird.f32 %v2756
    %vm2763 = vmor %vm2761, %vm2762
    %v2764 = vsel %vm2763, %v2756, %v2760
    %v2765 = vand.u32 2147483647, %v2755
    %vm2766 = vcmp.eq.f32.partialorder %v2765, 8.507059e+37
    %v2767 = vand.u32 %v2755, 2147483648
    %v2768 = vor.u32 1.1754944e-38, %v2767
    %v2769 = vsel %vm2766, %v2768, %v2764
    %v2770 = vmul.f32 1.0, %v2769
    %v2771 = vld [vmem:[#allocation5] sm:$0xff]
    %v2772 = vmul.f32 %v2592, %v2771
    %v2773 = vmul.f32 %v2494, %v2672
    %v2774 = vadd.f32 %v2772, %v2773
    %v2775 = vtanh.pop %v2774
    %v2776 = vmul.f32 %v2770, %v2775
    %2777 = vst [vmem:[#allocation5] sm:$0xff] %v2774
    %2778 = vst [vmem:[#allocation4] sm:$0xff] %v2776
    %s2779 = scalar_lea.vmem [#allocation3], 40
    %2780 = vst [vmem:[%s2779] sm:$0xff] %v2776
    %v2781 = vld [vmem:[#allocation4] sm:$0xff]
    %v2782 = vpack.c.bf16 %v2781, %v2781
    %s2783 = smul.u32 6, 4
    %s2784 = smul.addr %s2783, 8
    %s2785 = scalar_lea.vmem [#allocation2], %s2784
    %v2786 = vld [vmem:[%s2785] sm:$0xff]
    %v2787 = vld [vmem:[#allocation8] sm:$0xf]
    %v2788 = vld [vmem:[#allocation8 + $0x10] sm:$0xf]
    %v2789 = vld [vmem:[#allocation8 + $0x20] sm:$0xf]
    %v2790 = vld [vmem:[#allocation8 + $0x30] sm:$0xf]
    %v2791 = vld [vmem:[#allocation8 + $0x40] sm:$0xf]
    %v2792 = vld [vmem:[#allocation8 + $0x50] sm:$0xf]
    %v2793 = vld [vmem:[#allocation8 + $0x60] sm:$0xf]
    %v2794 = vld [vmem:[#allocation8 + $0x70] sm:$0xf]
    %v2795 = vld [vmem:[#allocation8 + $0x80] sm:$0xf]
    %v2796 = vld [vmem:[#allocation8 + $0x90] sm:$0xf]
    %v2797 = vld [vmem:[#allocation8 + $0xa0] sm:$0xf]
    %v2798 = vld [vmem:[#allocation8 + $0xb0] sm:$0xf]
    %v2799 = vld [vmem:[#allocation8 + $0xc0] sm:$0xf]
    %v2800 = vld [vmem:[#allocation8 + $0xd0] sm:$0xf]
    %v2801 = vld [vmem:[#allocation8 + $0xe0] sm:$0xf]
    %v2802 = vld [vmem:[#allocation8 + $0xf0] sm:$0xf]
    %v2819 = vunpack.c.l.b16 %v2787
    %v2820 = vunpack.c.l.b16 %v2788
    %v2821 = vunpack.c.l.b16 %v2789
    %v2822 = vunpack.c.l.b16 %v2790
    %v2823 = vunpack.c.l.b16 %v2791
    %v2824 = vunpack.c.l.b16 %v2792
    %v2825 = vunpack.c.l.b16 %v2793
    %v2826 = vunpack.c.l.b16 %v2794
    %v2827 = vunpack.c.l.b16 %v2795
    %v2828 = vunpack.c.l.b16 %v2796
    %v2829 = vunpack.c.l.b16 %v2797
    %v2830 = vunpack.c.l.b16 %v2798
    %v2831 = vunpack.c.l.b16 %v2799
    %v2832 = vunpack.c.l.b16 %v2800
    %v2833 = vunpack.c.l.b16 %v2801
    %v2834 = vunpack.c.l.b16 %v2802
    %v2835 = vpack.c.b16 %v2820, %v2819
    %v2836 = vpack.c.b16 %v2822, %v2821
    %v2837 = vpack.c.b16 %v2824, %v2823
    %v2838 = vpack.c.b16 %v2826, %v2825
    %v2839 = vpack.c.b16 %v2828, %v2827
    %v2840 = vpack.c.b16 %v2830, %v2829
    %v2841 = vpack.c.b16 %v2832, %v2831
    %v2842 = vpack.c.b16 %v2834, %v2833
    %2851 = vmatpush.bf16.msra.mxu0 %v2842
    %2852 = vmatpush.bf16.msra.mxu0 %v2841
    %2853 = vmatpush.bf16.msra.mxu0 %v2840
    %2854 = vmatpush.bf16.msra.mxu0 %v2839
    %2855 = vmatpush.bf16.msra.mxu0 %v2838
    %2856 = vmatpush.bf16.msra.mxu0 %v2837
    %2857 = vmatpush.bf16.msra.mxu0 %v2836
    %2858 = vmatpush.bf16.msra.mxu0 %v2835
    %2859 = vmatmul.bf16.gmra.mxu0 %v2782
    %v2860 = vpop.f32.mrf.mxu0
    %v2861 = vadd.f32 0.0, %v2860
    %v2862 = vpop.f32.mrf.mxu0
    %2863 = vdwg.mxu0
    %v2864 = vadd.f32 %v2786, %v2861
    %v2865 = vxor.u32 %v2864, 2147483648
    %v2866 = vmul.f32 %v2865, 1.442695
    %v2867 = vpow.pop %v2866
    %v2868 = vadd.f32 %v2867, 1.0
    %v2869 = vrcp.pop %v2868
    %v2870 = vmul.f32 %v2868, %v2869
    %v2871 = vsub.f32 1.0, %v2870
    %v2872 = vmul.f32 %v2869, %v2871
    %v2873 = vadd.f32 %v2869, %v2872
    %vm2874 = vweird.f32 %v2868
    %vm2875 = vweird.f32 %v2869
    %vm2876 = vmor %vm2874, %vm2875
    %v2877 = vsel %vm2876, %v2869, %v2873
    %v2878 = vand.u32 2147483647, %v2868
    %vm2879 = vcmp.eq.f32.partialorder %v2878, 8.507059e+37
    %v2880 = vand.u32 %v2868, 2147483648
    %v2881 = vor.u32 1.1754944e-38, %v2880
    %v2882 = vsel %vm2879, %v2881, %v2877
    %v2883 = vmul.f32 1.0, %v2882
    %v2884 = vld [vmem:[%s2785 + $0x8] sm:$0xff]
    %v2885 = vld [vmem:[#allocation8 + $0x4] sm:$0xf]
    %v2886 = vld [vmem:[#allocation8 + $0x14] sm:$0xf]
    %v2887 = vld [vmem:[#allocation8 + $0x24] sm:$0xf]
    %v2888 = vld [vmem:[#allocation8 + $0x34] sm:$0xf]
    %v2889 = vld [vmem:[#allocation8 + $0x44] sm:$0xf]
    %v2890 = vld [vmem:[#allocation8 + $0x54] sm:$0xf]
    %v2891 = vld [vmem:[#allocation8 + $0x64] sm:$0xf]
    %v2892 = vld [vmem:[#allocation8 + $0x74] sm:$0xf]
    %v2893 = vld [vmem:[#allocation8 + $0x84] sm:$0xf]
    %v2894 = vld [vmem:[#allocation8 + $0x94] sm:$0xf]
    %v2895 = vld [vmem:[#allocation8 + $0xa4] sm:$0xf]
    %v2896 = vld [vmem:[#allocation8 + $0xb4] sm:$0xf]
    %v2897 = vld [vmem:[#allocation8 + $0xc4] sm:$0xf]
    %v2898 = vld [vmem:[#allocation8 + $0xd4] sm:$0xf]
    %v2899 = vld [vmem:[#allocation8 + $0xe4] sm:$0xf]
    %v2900 = vld [vmem:[#allocation8 + $0xf4] sm:$0xf]
    %v2917 = vunpack.c.l.b16 %v2885
    %v2918 = vunpack.c.l.b16 %v2886
    %v2919 = vunpack.c.l.b16 %v2887
    %v2920 = vunpack.c.l.b16 %v2888
    %v2921 = vunpack.c.l.b16 %v2889
    %v2922 = vunpack.c.l.b16 %v2890
    %v2923 = vunpack.c.l.b16 %v2891
    %v2924 = vunpack.c.l.b16 %v2892
    %v2925 = vunpack.c.l.b16 %v2893
    %v2926 = vunpack.c.l.b16 %v2894
    %v2927 = vunpack.c.l.b16 %v2895
    %v2928 = vunpack.c.l.b16 %v2896
    %v2929 = vunpack.c.l.b16 %v2897
    %v2930 = vunpack.c.l.b16 %v2898
    %v2931 = vunpack.c.l.b16 %v2899
    %v2932 = vunpack.c.l.b16 %v2900
    %v2933 = vpack.c.b16 %v2918, %v2917
    %v2934 = vpack.c.b16 %v2920, %v2919
    %v2935 = vpack.c.b16 %v2922, %v2921
    %v2936 = vpack.c.b16 %v2924, %v2923
    %v2937 = vpack.c.b16 %v2926, %v2925
    %v2938 = vpack.c.b16 %v2928, %v2927
    %v2939 = vpack.c.b16 %v2930, %v2929
    %v2940 = vpack.c.b16 %v2932, %v2931
    %2949 = vmatpush.bf16.msra.mxu0 %v2940
    %2950 = vmatpush.bf16.msra.mxu0 %v2939
    %2951 = vmatpush.bf16.msra.mxu0 %v2938
    %2952 = vmatpush.bf16.msra.mxu0 %v2937
    %2953 = vmatpush.bf16.msra.mxu0 %v2936
    %2954 = vmatpush.bf16.msra.mxu0 %v2935
    %2955 = vmatpush.bf16.msra.mxu0 %v2934
    %2956 = vmatpush.bf16.msra.mxu0 %v2933
    %2957 = vmatmul.bf16.gmra.mxu0 %v2782
    %v2958 = vpop.f32.mrf.mxu0
    %v2959 = vadd.f32 0.0, %v2958
    %v2960 = vpop.f32.mrf.mxu0
    %2961 = vdwg.mxu0
    %v2962 = vadd.f32 %v2884, %v2959
    %v2963 = vxor.u32 %v2962, 2147483648
    %v2964 = vmul.f32 %v2963, 1.442695
    %v2965 = vpow.pop %v2964
    %v2966 = vadd.f32 %v2965, 1.0
    %v2967 = vrcp.pop %v2966
    %v2968 = vmul.f32 %v2966, %v2967
    %v2969 = vsub.f32 1.0, %v2968
    %v2970 = vmul.f32 %v2967, %v2969
    %v2971 = vadd.f32 %v2967, %v2970
    %vm2972 = vweird.f32 %v2966
    %vm2973 = vweird.f32 %v2967
    %vm2974 = vmor %vm2972, %vm2973
    %v2975 = vsel %vm2974, %v2967, %v2971
    %v2976 = vand.u32 2147483647, %v2966
    %vm2977 = vcmp.eq.f32.partialorder %v2976, 8.507059e+37
    %v2978 = vand.u32 %v2966, 2147483648
    %v2979 = vor.u32 1.1754944e-38, %v2978
    %v2980 = vsel %vm2977, %v2979, %v2975
    %v2981 = vmul.f32 1.0, %v2980
    %v2982 = vld [vmem:[%s2785 + $0x10] sm:$0xff]
    %v2983 = vld [vmem:[#allocation8 + $0x8] sm:$0xf]
    %v2984 = vld [vmem:[#allocation8 + $0x18] sm:$0xf]
    %v2985 = vld [vmem:[#allocation8 + $0x28] sm:$0xf]
    %v2986 = vld [vmem:[#allocation8 + $0x38] sm:$0xf]
    %v2987 = vld [vmem:[#allocation8 + $0x48] sm:$0xf]
    %v2988 = vld [vmem:[#allocation8 + $0x58] sm:$0xf]
    %v2989 = vld [vmem:[#allocation8 + $0x68] sm:$0xf]
    %v2990 = vld [vmem:[#allocation8 + $0x78] sm:$0xf]
    %v2991 = vld [vmem:[#allocation8 + $0x88] sm:$0xf]
    %v2992 = vld [vmem:[#allocation8 + $0x98] sm:$0xf]
    %v2993 = vld [vmem:[#allocation8 + $0xa8] sm:$0xf]
    %v2994 = vld [vmem:[#allocation8 + $0xb8] sm:$0xf]
    %v2995 = vld [vmem:[#allocation8 + $0xc8] sm:$0xf]
    %v2996 = vld [vmem:[#allocation8 + $0xd8] sm:$0xf]
    %v2997 = vld [vmem:[#allocation8 + $0xe8] sm:$0xf]
    %v2998 = vld [vmem:[#allocation8 + $0xf8] sm:$0xf]
    %v3015 = vunpack.c.l.b16 %v2983
    %v3016 = vunpack.c.l.b16 %v2984
    %v3017 = vunpack.c.l.b16 %v2985
    %v3018 = vunpack.c.l.b16 %v2986
    %v3019 = vunpack.c.l.b16 %v2987
    %v3020 = vunpack.c.l.b16 %v2988
    %v3021 = vunpack.c.l.b16 %v2989
    %v3022 = vunpack.c.l.b16 %v2990
    %v3023 = vunpack.c.l.b16 %v2991
    %v3024 = vunpack.c.l.b16 %v2992
    %v3025 = vunpack.c.l.b16 %v2993
    %v3026 = vunpack.c.l.b16 %v2994
    %v3027 = vunpack.c.l.b16 %v2995
    %v3028 = vunpack.c.l.b16 %v2996
    %v3029 = vunpack.c.l.b16 %v2997
    %v3030 = vunpack.c.l.b16 %v2998
    %v3031 = vpack.c.b16 %v3016, %v3015
    %v3032 = vpack.c.b16 %v3018, %v3017
    %v3033 = vpack.c.b16 %v3020, %v3019
    %v3034 = vpack.c.b16 %v3022, %v3021
    %v3035 = vpack.c.b16 %v3024, %v3023
    %v3036 = vpack.c.b16 %v3026, %v3025
    %v3037 = vpack.c.b16 %v3028, %v3027
    %v3038 = vpack.c.b16 %v3030, %v3029
    %3047 = vmatpush.bf16.msra.mxu0 %v3038
    %3048 = vmatpush.bf16.msra.mxu0 %v3037
    %3049 = vmatpush.bf16.msra.mxu0 %v3036
    %3050 = vmatpush.bf16.msra.mxu0 %v3035
    %3051 = vmatpush.bf16.msra.mxu0 %v3034
    %3052 = vmatpush.bf16.msra.mxu0 %v3033
    %3053 = vmatpush.bf16.msra.mxu0 %v3032
    %3054 = vmatpush.bf16.msra.mxu0 %v3031
    %3055 = vmatmul.bf16.gmra.mxu0 %v2782
    %v3056 = vpop.f32.mrf.mxu0
    %v3057 = vadd.f32 0.0, %v3056
    %v3058 = vpop.f32.mrf.mxu0
    %3059 = vdwg.mxu0
    %v3060 = vadd.f32 %v2982, %v3057
    %v3061 = vtanh.pop %v3060
    %v3062 = vld [vmem:[%s2785 + $0x18] sm:$0xff]
    %v3063 = vld [vmem:[#allocation8 + $0xc] sm:$0xf]
    %v3064 = vld [vmem:[#allocation8 + $0x1c] sm:$0xf]
    %v3065 = vld [vmem:[#allocation8 + $0x2c] sm:$0xf]
    %v3066 = vld [vmem:[#allocation8 + $0x3c] sm:$0xf]
    %v3067 = vld [vmem:[#allocation8 + $0x4c] sm:$0xf]
    %v3068 = vld [vmem:[#allocation8 + $0x5c] sm:$0xf]
    %v3069 = vld [vmem:[#allocation8 + $0x6c] sm:$0xf]
    %v3070 = vld [vmem:[#allocation8 + $0x7c] sm:$0xf]
    %v3071 = vld [vmem:[#allocation8 + $0x8c] sm:$0xf]
    %v3072 = vld [vmem:[#allocation8 + $0x9c] sm:$0xf]
    %v3073 = vld [vmem:[#allocation8 + $0xac] sm:$0xf]
    %v3074 = vld [vmem:[#allocation8 + $0xbc] sm:$0xf]
    %v3075 = vld [vmem:[#allocation8 + $0xcc] sm:$0xf]
    %v3076 = vld [vmem:[#allocation8 + $0xdc] sm:$0xf]
    %v3077 = vld [vmem:[#allocation8 + $0xec] sm:$0xf]
    %v3078 = vld [vmem:[#allocation8 + $0xfc] sm:$0xf]
    %v3095 = vunpack.c.l.b16 %v3063
    %v3096 = vunpack.c.l.b16 %v3064
    %v3097 = vunpack.c.l.b16 %v3065
    %v3098 = vunpack.c.l.b16 %v3066
    %v3099 = vunpack.c.l.b16 %v3067
    %v3100 = vunpack.c.l.b16 %v3068
    %v3101 = vunpack.c.l.b16 %v3069
    %v3102 = vunpack.c.l.b16 %v3070
    %v3103 = vunpack.c.l.b16 %v3071
    %v3104 = vunpack.c.l.b16 %v3072
    %v3105 = vunpack.c.l.b16 %v3073
    %v3106 = vunpack.c.l.b16 %v3074
    %v3107 = vunpack.c.l.b16 %v3075
    %v3108 = vunpack.c.l.b16 %v3076
    %v3109 = vunpack.c.l.b16 %v3077
    %v3110 = vunpack.c.l.b16 %v3078
    %v3111 = vpack.c.b16 %v3096, %v3095
    %v3112 = vpack.c.b16 %v3098, %v3097
    %v3113 = vpack.c.b16 %v3100, %v3099
    %v3114 = vpack.c.b16 %v3102, %v3101
    %v3115 = vpack.c.b16 %v3104, %v3103
    %v3116 = vpack.c.b16 %v3106, %v3105
    %v3117 = vpack.c.b16 %v3108, %v3107
    %v3118 = vpack.c.b16 %v3110, %v3109
    %3127 = vmatpush.bf16.msra.mxu0 %v3118
    %3128 = vmatpush.bf16.msra.mxu0 %v3117
    %3129 = vmatpush.bf16.msra.mxu0 %v3116
    %3130 = vmatpush.bf16.msra.mxu0 %v3115
    %3131 = vmatpush.bf16.msra.mxu0 %v3114
    %3132 = vmatpush.bf16.msra.mxu0 %v3113
    %3133 = vmatpush.bf16.msra.mxu0 %v3112
    %3134 = vmatpush.bf16.msra.mxu0 %v3111
    %3135 = vmatmul.bf16.gmra.mxu0 %v2782
    %v3136 = vpop.f32.mrf.mxu0
    %v3137 = vadd.f32 0.0, %v3136
    %v3138 = vpop.f32.mrf.mxu0
    %3139 = vdwg.mxu0
    %v3140 = vadd.f32 %v3062, %v3137
    %v3141 = vxor.u32 %v3140, 2147483648
    %v3142 = vmul.f32 %v3141, 1.442695
    %v3143 = vpow.pop %v3142
    %v3144 = vadd.f32 %v3143, 1.0
    %v3145 = vrcp.pop %v3144
    %v3146 = vmul.f32 %v3144, %v3145
    %v3147 = vsub.f32 1.0, %v3146
    %v3148 = vmul.f32 %v3145, %v3147
    %v3149 = vadd.f32 %v3145, %v3148
    %vm3150 = vweird.f32 %v3144
    %vm3151 = vweird.f32 %v3145
    %vm3152 = vmor %vm3150, %vm3151
    %v3153 = vsel %vm3152, %v3145, %v3149
    %v3154 = vand.u32 2147483647, %v3144
    %vm3155 = vcmp.eq.f32.partialorder %v3154, 8.507059e+37
    %v3156 = vand.u32 %v3144, 2147483648
    %v3157 = vor.u32 1.1754944e-38, %v3156
    %v3158 = vsel %vm3155, %v3157, %v3153
    %v3159 = vmul.f32 1.0, %v3158
    %v3160 = vld [vmem:[#allocation5] sm:$0xff]
    %v3161 = vmul.f32 %v2981, %v3160
    %v3162 = vmul.f32 %v2883, %v3061
    %v3163 = vadd.f32 %v3161, %v3162
    %v3164 = vtanh.pop %v3163
    %v3165 = vmul.f32 %v3159, %v3164
    %3166 = vst [vmem:[#allocation5] sm:$0xff] %v3163
    %3167 = vst [vmem:[#allocation4] sm:$0xff] %v3165
    %s3168 = scalar_lea.vmem [#allocation3], 48
    %3169 = vst [vmem:[%s3168] sm:$0xff] %v3165
    %v3170 = vld [vmem:[#allocation4] sm:$0xff]
    %v3171 = vpack.c.bf16 %v3170, %v3170
    %s3172 = smul.u32 7, 4
    %s3173 = smul.addr %s3172, 8
    %s3174 = scalar_lea.vmem [#allocation2], %s3173
    %v3175 = vld [vmem:[%s3174] sm:$0xff]
    %v3176 = vld [vmem:[#allocation8] sm:$0xf]
    %v3177 = vld [vmem:[#allocation8 + $0x10] sm:$0xf]
    %v3178 = vld [vmem:[#allocation8 + $0x20] sm:$0xf]
    %v3179 = vld [vmem:[#allocation8 + $0x30] sm:$0xf]
    %v3180 = vld [vmem:[#allocation8 + $0x40] sm:$0xf]
    %v3181 = vld [vmem:[#allocation8 + $0x50] sm:$0xf]
    %v3182 = vld [vmem:[#allocation8 + $0x60] sm:$0xf]
    %v3183 = vld [vmem:[#allocation8 + $0x70] sm:$0xf]
    %v3184 = vld [vmem:[#allocation8 + $0x80] sm:$0xf]
    %v3185 = vld [vmem:[#allocation8 + $0x90] sm:$0xf]
    %v3186 = vld [vmem:[#allocation8 + $0xa0] sm:$0xf]
    %v3187 = vld [vmem:[#allocation8 + $0xb0] sm:$0xf]
    %v3188 = vld [vmem:[#allocation8 + $0xc0] sm:$0xf]
    %v3189 = vld [vmem:[#allocation8 + $0xd0] sm:$0xf]
    %v3190 = vld [vmem:[#allocation8 + $0xe0] sm:$0xf]
    %v3191 = vld [vmem:[#allocation8 + $0xf0] sm:$0xf]
    %v3208 = vunpack.c.l.b16 %v3176
    %v3209 = vunpack.c.l.b16 %v3177
    %v3210 = vunpack.c.l.b16 %v3178
    %v3211 = vunpack.c.l.b16 %v3179
    %v3212 = vunpack.c.l.b16 %v3180
    %v3213 = vunpack.c.l.b16 %v3181
    %v3214 = vunpack.c.l.b16 %v3182
    %v3215 = vunpack.c.l.b16 %v3183
    %v3216 = vunpack.c.l.b16 %v3184
    %v3217 = vunpack.c.l.b16 %v3185
    %v3218 = vunpack.c.l.b16 %v3186
    %v3219 = vunpack.c.l.b16 %v3187
    %v3220 = vunpack.c.l.b16 %v3188
    %v3221 = vunpack.c.l.b16 %v3189
    %v3222 = vunpack.c.l.b16 %v3190
    %v3223 = vunpack.c.l.b16 %v3191
    %v3224 = vpack.c.b16 %v3209, %v3208
    %v3225 = vpack.c.b16 %v3211, %v3210
    %v3226 = vpack.c.b16 %v3213, %v3212
    %v3227 = vpack.c.b16 %v3215, %v3214
    %v3228 = vpack.c.b16 %v3217, %v3216
    %v3229 = vpack.c.b16 %v3219, %v3218
    %v3230 = vpack.c.b16 %v3221, %v3220
    %v3231 = vpack.c.b16 %v3223, %v3222
    %3240 = vmatpush.bf16.msra.mxu0 %v3231
    %3241 = vmatpush.bf16.msra.mxu0 %v3230
    %3242 = vmatpush.bf16.msra.mxu0 %v3229
    %3243 = vmatpush.bf16.msra.mxu0 %v3228
    %3244 = vmatpush.bf16.msra.mxu0 %v3227
    %3245 = vmatpush.bf16.msra.mxu0 %v3226
    %3246 = vmatpush.bf16.msra.mxu0 %v3225
    %3247 = vmatpush.bf16.msra.mxu0 %v3224
    %3248 = vmatmul.bf16.gmra.mxu0 %v3171
    %v3249 = vpop.f32.mrf.mxu0
    %v3250 = vadd.f32 0.0, %v3249
    %v3251 = vpop.f32.mrf.mxu0
    %3252 = vdwg.mxu0
    %v3253 = vadd.f32 %v3175, %v3250
    %v3254 = vxor.u32 %v3253, 2147483648
    %v3255 = vmul.f32 %v3254, 1.442695
    %v3256 = vpow.pop %v3255
    %v3257 = vadd.f32 %v3256, 1.0
    %v3258 = vrcp.pop %v3257
    %v3259 = vmul.f32 %v3257, %v3258
    %v3260 = vsub.f32 1.0, %v3259
    %v3261 = vmul.f32 %v3258, %v3260
    %v3262 = vadd.f32 %v3258, %v3261
    %vm3263 = vweird.f32 %v3257
    %vm3264 = vweird.f32 %v3258
    %vm3265 = vmor %vm3263, %vm3264
    %v3266 = vsel %vm3265, %v3258, %v3262
    %v3267 = vand.u32 2147483647, %v3257
    %vm3268 = vcmp.eq.f32.partialorder %v3267, 8.507059e+37
    %v3269 = vand.u32 %v3257, 2147483648
    %v3270 = vor.u32 1.1754944e-38, %v3269
    %v3271 = vsel %vm3268, %v3270, %v3266
    %v3272 = vmul.f32 1.0, %v3271
    %v3273 = vld [vmem:[%s3174 + $0x8] sm:$0xff]
    %v3274 = vld [vmem:[#allocation8 + $0x4] sm:$0xf]
    %v3275 = vld [vmem:[#allocation8 + $0x14] sm:$0xf]
    %v3276 = vld [vmem:[#allocation8 + $0x24] sm:$0xf]
    %v3277 = vld [vmem:[#allocation8 + $0x34] sm:$0xf]
    %v3278 = vld [vmem:[#allocation8 + $0x44] sm:$0xf]
    %v3279 = vld [vmem:[#allocation8 + $0x54] sm:$0xf]
    %v3280 = vld [vmem:[#allocation8 + $0x64] sm:$0xf]
    %v3281 = vld [vmem:[#allocation8 + $0x74] sm:$0xf]
    %v3282 = vld [vmem:[#allocation8 + $0x84] sm:$0xf]
    %v3283 = vld [vmem:[#allocation8 + $0x94] sm:$0xf]
    %v3284 = vld [vmem:[#allocation8 + $0xa4] sm:$0xf]
    %v3285 = vld [vmem:[#allocation8 + $0xb4] sm:$0xf]
    %v3286 = vld [vmem:[#allocation8 + $0xc4] sm:$0xf]
    %v3287 = vld [vmem:[#allocation8 + $0xd4] sm:$0xf]
    %v3288 = vld [vmem:[#allocation8 + $0xe4] sm:$0xf]
    %v3289 = vld [vmem:[#allocation8 + $0xf4] sm:$0xf]
    %v3306 = vunpack.c.l.b16 %v3274
    %v3307 = vunpack.c.l.b16 %v3275
    %v3308 = vunpack.c.l.b16 %v3276
    %v3309 = vunpack.c.l.b16 %v3277
    %v3310 = vunpack.c.l.b16 %v3278
    %v3311 = vunpack.c.l.b16 %v3279
    %v3312 = vunpack.c.l.b16 %v3280
    %v3313 = vunpack.c.l.b16 %v3281
    %v3314 = vunpack.c.l.b16 %v3282
    %v3315 = vunpack.c.l.b16 %v3283
    %v3316 = vunpack.c.l.b16 %v3284
    %v3317 = vunpack.c.l.b16 %v3285
    %v3318 = vunpack.c.l.b16 %v3286
    %v3319 = vunpack.c.l.b16 %v3287
    %v3320 = vunpack.c.l.b16 %v3288
    %v3321 = vunpack.c.l.b16 %v3289
    %v3322 = vpack.c.b16 %v3307, %v3306
    %v3323 = vpack.c.b16 %v3309, %v3308
    %v3324 = vpack.c.b16 %v3311, %v3310
    %v3325 = vpack.c.b16 %v3313, %v3312
    %v3326 = vpack.c.b16 %v3315, %v3314
    %v3327 = vpack.c.b16 %v3317, %v3316
    %v3328 = vpack.c.b16 %v3319, %v3318
    %v3329 = vpack.c.b16 %v3321, %v3320
    %3338 = vmatpush.bf16.msra.mxu0 %v3329
    %3339 = vmatpush.bf16.msra.mxu0 %v3328
    %3340 = vmatpush.bf16.msra.mxu0 %v3327
    %3341 = vmatpush.bf16.msra.mxu0 %v3326
    %3342 = vmatpush.bf16.msra.mxu0 %v3325
    %3343 = vmatpush.bf16.msra.mxu0 %v3324
    %3344 = vmatpush.bf16.msra.mxu0 %v3323
    %3345 = vmatpush.bf16.msra.mxu0 %v3322
    %3346 = vmatmul.bf16.gmra.mxu0 %v3171
    %v3347 = vpop.f32.mrf.mxu0
    %v3348 = vadd.f32 0.0, %v3347
    %v3349 = vpop.f32.mrf.mxu0
    %3350 = vdwg.mxu0
    %v3351 = vadd.f32 %v3273, %v3348
    %v3352 = vxor.u32 %v3351, 2147483648
    %v3353 = vmul.f32 %v3352, 1.442695
    %v3354 = vpow.pop %v3353
    %v3355 = vadd.f32 %v3354, 1.0
    %v3356 = vrcp.pop %v3355
    %v3357 = vmul.f32 %v3355, %v3356
    %v3358 = vsub.f32 1.0, %v3357
    %v3359 = vmul.f32 %v3356, %v3358
    %v3360 = vadd.f32 %v3356, %v3359
    %vm3361 = vweird.f32 %v3355
    %vm3362 = vweird.f32 %v3356
    %vm3363 = vmor %vm3361, %vm3362
    %v3364 = vsel %vm3363, %v3356, %v3360
    %v3365 = vand.u32 2147483647, %v3355
    %vm3366 = vcmp.eq.f32.partialorder %v3365, 8.507059e+37
    %v3367 = vand.u32 %v3355, 2147483648
    %v3368 = vor.u32 1.1754944e-38, %v3367
    %v3369 = vsel %vm3366, %v3368, %v3364
    %v3370 = vmul.f32 1.0, %v3369
    %v3371 = vld [vmem:[%s3174 + $0x10] sm:$0xff]
    %v3372 = vld [vmem:[#allocation8 + $0x8] sm:$0xf]
    %v3373 = vld [vmem:[#allocation8 + $0x18] sm:$0xf]
    %v3374 = vld [vmem:[#allocation8 + $0x28] sm:$0xf]
    %v3375 = vld [vmem:[#allocation8 + $0x38] sm:$0xf]
    %v3376 = vld [vmem:[#allocation8 + $0x48] sm:$0xf]
    %v3377 = vld [vmem:[#allocation8 + $0x58] sm:$0xf]
    %v3378 = vld [vmem:[#allocation8 + $0x68] sm:$0xf]
    %v3379 = vld [vmem:[#allocation8 + $0x78] sm:$0xf]
    %v3380 = vld [vmem:[#allocation8 + $0x88] sm:$0xf]
    %v3381 = vld [vmem:[#allocation8 + $0x98] sm:$0xf]
    %v3382 = vld [vmem:[#allocation8 + $0xa8] sm:$0xf]
    %v3383 = vld [vmem:[#allocation8 + $0xb8] sm:$0xf]
    %v3384 = vld [vmem:[#allocation8 + $0xc8] sm:$0xf]
    %v3385 = vld [vmem:[#allocation8 + $0xd8] sm:$0xf]
    %v3386 = vld [vmem:[#allocation8 + $0xe8] sm:$0xf]
    %v3387 = vld [vmem:[#allocation8 + $0xf8] sm:$0xf]
    %v3404 = vunpack.c.l.b16 %v3372
    %v3405 = vunpack.c.l.b16 %v3373
    %v3406 = vunpack.c.l.b16 %v3374
    %v3407 = vunpack.c.l.b16 %v3375
    %v3408 = vunpack.c.l.b16 %v3376
    %v3409 = vunpack.c.l.b16 %v3377
    %v3410 = vunpack.c.l.b16 %v3378
    %v3411 = vunpack.c.l.b16 %v3379
    %v3412 = vunpack.c.l.b16 %v3380
    %v3413 = vunpack.c.l.b16 %v3381
    %v3414 = vunpack.c.l.b16 %v3382
    %v3415 = vunpack.c.l.b16 %v3383
    %v3416 = vunpack.c.l.b16 %v3384
    %v3417 = vunpack.c.l.b16 %v3385
    %v3418 = vunpack.c.l.b16 %v3386
    %v3419 = vunpack.c.l.b16 %v3387
    %v3420 = vpack.c.b16 %v3405, %v3404
    %v3421 = vpack.c.b16 %v3407, %v3406
    %v3422 = vpack.c.b16 %v3409, %v3408
    %v3423 = vpack.c.b16 %v3411, %v3410
    %v3424 = vpack.c.b16 %v3413, %v3412
    %v3425 = vpack.c.b16 %v3415, %v3414
    %v3426 = vpack.c.b16 %v3417, %v3416
    %v3427 = vpack.c.b16 %v3419, %v3418
    %3436 = vmatpush.bf16.msra.mxu0 %v3427
    %3437 = vmatpush.bf16.msra.mxu0 %v3426
    %3438 = vmatpush.bf16.msra.mxu0 %v3425
    %3439 = vmatpush.bf16.msra.mxu0 %v3424
    %3440 = vmatpush.bf16.msra.mxu0 %v3423
    %3441 = vmatpush.bf16.msra.mxu0 %v3422
    %3442 = vmatpush.bf16.msra.mxu0 %v3421
    %3443 = vmatpush.bf16.msra.mxu0 %v3420
    %3444 = vmatmul.bf16.gmra.mxu0 %v3171
    %v3445 = vpop.f32.mrf.mxu0
    %v3446 = vadd.f32 0.0, %v3445
    %v3447 = vpop.f32.mrf.mxu0
    %3448 = vdwg.mxu0
    %v3449 = vadd.f32 %v3371, %v3446
    %v3450 = vtanh.pop %v3449
    %v3451 = vld [vmem:[%s3174 + $0x18] sm:$0xff]
    %v3452 = vld [vmem:[#allocation8 + $0xc] sm:$0xf]
    %v3453 = vld [vmem:[#allocation8 + $0x1c] sm:$0xf]
    %v3454 = vld [vmem:[#allocation8 + $0x2c] sm:$0xf]
    %v3455 = vld [vmem:[#allocation8 + $0x3c] sm:$0xf]
    %v3456 = vld [vmem:[#allocation8 + $0x4c] sm:$0xf]
    %v3457 = vld [vmem:[#allocation8 + $0x5c] sm:$0xf]
    %v3458 = vld [vmem:[#allocation8 + $0x6c] sm:$0xf]
    %v3459 = vld [vmem:[#allocation8 + $0x7c] sm:$0xf]
    %v3460 = vld [vmem:[#allocation8 + $0x8c] sm:$0xf]
    %v3461 = vld [vmem:[#allocation8 + $0x9c] sm:$0xf]
    %v3462 = vld [vmem:[#allocation8 + $0xac] sm:$0xf]
    %v3463 = vld [vmem:[#allocation8 + $0xbc] sm:$0xf]
    %v3464 = vld [vmem:[#allocation8 + $0xcc] sm:$0xf]
    %v3465 = vld [vmem:[#allocation8 + $0xdc] sm:$0xf]
    %v3466 = vld [vmem:[#allocation8 + $0xec] sm:$0xf]
    %v3467 = vld [vmem:[#allocation8 + $0xfc] sm:$0xf]
    %v3484 = vunpack.c.l.b16 %v3452
    %v3485 = vunpack.c.l.b16 %v3453
    %v3486 = vunpack.c.l.b16 %v3454
    %v3487 = vunpack.c.l.b16 %v3455
    %v3488 = vunpack.c.l.b16 %v3456
    %v3489 = vunpack.c.l.b16 %v3457
    %v3490 = vunpack.c.l.b16 %v3458
    %v3491 = vunpack.c.l.b16 %v3459
    %v3492 = vunpack.c.l.b16 %v3460
    %v3493 = vunpack.c.l.b16 %v3461
    %v3494 = vunpack.c.l.b16 %v3462
    %v3495 = vunpack.c.l.b16 %v3463
    %v3496 = vunpack.c.l.b16 %v3464
    %v3497 = vunpack.c.l.b16 %v3465
    %v3498 = vunpack.c.l.b16 %v3466
    %v3499 = vunpack.c.l.b16 %v3467
    %v3500 = vpack.c.b16 %v3485, %v3484
    %v3501 = vpack.c.b16 %v3487, %v3486
    %v3502 = vpack.c.b16 %v3489, %v3488
    %v3503 = vpack.c.b16 %v3491, %v3490
    %v3504 = vpack.c.b16 %v3493, %v3492
    %v3505 = vpack.c.b16 %v3495, %v3494
    %v3506 = vpack.c.b16 %v3497, %v3496
    %v3507 = vpack.c.b16 %v3499, %v3498
    %3516 = vmatpush.bf16.msra.mxu0 %v3507
    %3517 = vmatpush.bf16.msra.mxu0 %v3506
    %3518 = vmatpush.bf16.msra.mxu0 %v3505
    %3519 = vmatpush.bf16.msra.mxu0 %v3504
    %3520 = vmatpush.bf16.msra.mxu0 %v3503
    %3521 = vmatpush.bf16.msra.mxu0 %v3502
    %3522 = vmatpush.bf16.msra.mxu0 %v3501
    %3523 = vmatpush.bf16.msra.mxu0 %v3500
    %3524 = vmatmul.bf16.gmra.mxu0 %v3171
    %v3525 = vpop.f32.mrf.mxu0
    %v3526 = vadd.f32 0.0, %v3525
    %v3527 = vpop.f32.mrf.mxu0
    %3528 = vdwg.mxu0
    %v3529 = vadd.f32 %v3451, %v3526
    %v3530 = vxor.u32 %v3529, 2147483648
    %v3531 = vmul.f32 %v3530, 1.442695
    %v3532 = vpow.pop %v3531
    %v3533 = vadd.f32 %v3532, 1.0
    %v3534 = vrcp.pop %v3533
    %v3535 = vmul.f32 %v3533, %v3534
    %v3536 = vsub.f32 1.0, %v3535
    %v3537 = vmul.f32 %v3534, %v3536
    %v3538 = vadd.f32 %v3534, %v3537
    %vm3539 = vweird.f32 %v3533
    %vm3540 = vweird.f32 %v3534
    %vm3541 = vmor %vm3539, %vm3540
    %v3542 = vsel %vm3541, %v3534, %v3538
    %v3543 = vand.u32 2147483647, %v3533
    %vm3544 = vcmp.eq.f32.partialorder %v3543, 8.507059e+37
    %v3545 = vand.u32 %v3533, 2147483648
    %v3546 = vor.u32 1.1754944e-38, %v3545
    %v3547 = vsel %vm3544, %v3546, %v3542
    %v3548 = vmul.f32 1.0, %v3547
    %v3549 = vld [vmem:[#allocation5] sm:$0xff]
    %v3550 = vmul.f32 %v3370, %v3549
    %v3551 = vmul.f32 %v3272, %v3450
    %v3552 = vadd.f32 %v3550, %v3551
    %v3553 = vtanh.pop %v3552
    %v3554 = vmul.f32 %v3548, %v3553
    %3555 = vst [vmem:[#allocation5] sm:$0xff] %v3552
    %3556 = vst [vmem:[#allocation4] sm:$0xff] %v3554
    %s3557 = scalar_lea.vmem [#allocation3], 56
    %3558 = vst [vmem:[%s3557] sm:$0xff] %v3554
    %v3559 = vld [vmem:[#allocation3] sm:$0xff]
    %v3560 = vld [vmem:[#allocation3 + $0x8] sm:$0xff]
    %v3561 = vld [vmem:[#allocation3 + $0x10] sm:$0xff]
    %v3562 = vld [vmem:[#allocation3 + $0x18] sm:$0xff]
    %v3563 = vld [vmem:[#allocation3 + $0x20] sm:$0xff]
    %v3564 = vld [vmem:[#allocation3 + $0x28] sm:$0xff]
    %v3565 = vld [vmem:[#allocation3 + $0x30] sm:$0xff]
    %v3566 = vld [vmem:[#allocation3 + $0x38] sm:$0xff]
    %v3567 = vpack.c.bf16 %v3559, %v3559
    %v3568 = vpack.c.bf16 %v3560, %v3560
    %v3569 = vpack.c.bf16 %v3561, %v3561
    %v3570 = vpack.c.bf16 %v3562, %v3562
    %v3571 = vpack.c.bf16 %v3563, %v3563
    %v3572 = vpack.c.bf16 %v3564, %v3564
    %v3573 = vpack.c.bf16 %v3565, %v3565
    %v3574 = vpack.c.bf16 %v3566, %v3566
    %3575 = vst [vmem:[%s6] sm:$0xf] %v3567
    %3576 = vst [vmem:[%s6 + $0x4] sm:$0xf] %v3568
    %3577 = vst [vmem:[%s6 + $0x8] sm:$0xf] %v3569
    %3578 = vst [vmem:[%s6 + $0xc] sm:$0xf] %v3570
    %3579 = vst [vmem:[%s6 + $0x10] sm:$0xf] %v3571
    %3580 = vst [vmem:[%s6 + $0x14] sm:$0xf] %v3572
    %3581 = vst [vmem:[%s6 + $0x18] sm:$0xf] %v3573
    %3582 = vst [vmem:[%s6 + $0x1c] sm:$0xf] %v3574
    // Predicated region
    $region38: #{rnn_model_forward.4} parent=1 // pred_check
      %p3583 = pneg %p58
    $region39: #{rnn_model_forward.4} parent=1 // pred_check_branch
      %3585 = sbr.rel (%p3583) target = $region41
    $region40: #{rnn_model_forward.4} parent=1 // pred_region
      %v3586 = vld [vmem:[#allocation4] sm:$0xff]
      %3587 = vst [vmem:[%s7] sm:$0xff] %v3586
      %v3588 = vld [vmem:[#allocation5] sm:$0xff]
      %3589 = vst [vmem:[%s8] sm:$0xff] %v3588
    $region41: #{rnn_model_forward.4} parent=1 // pred_fallthru
      _
    // Predicated region
    $region42: #{rnn_model_forward.4} parent=1 // pred_check
      _
    $region43: #{rnn_model_forward.4} parent=1 // pred_check_branch
      %3591 = sbr.rel (0) target = $region45
    $region44: #{rnn_model_forward.4} parent=1 // pred_region
      _
    $region45: #{rnn_model_forward.4} parent=1 // pred_fallthru
      _
    // Predicated region
    $region46: #{rnn_model_forward.4} parent=1 // pred_check
      _
    $region47: #{rnn_model_forward.4} parent=1 // pred_check_branch
      %3593 = sbr.rel (0) target = $region49
    $region48: #{rnn_model_forward.4} parent=1 // pred_region
      _
    $region49: #{rnn_model_forward.4} parent=1 // pred_fallthru
      _
    // Predicated region
    $region50: #{rnn_model_forward.4} parent=1 // pred_check
      _
    $region51: #{rnn_model_forward.4} parent=1 // pred_check_branch
      %3595 = sbr.rel (0) target = $region53
    $region52: #{rnn_model_forward.4} parent=1 // pred_region
      _
    $region53: #{rnn_model_forward.4} parent=1 // pred_fallthru
      _
    // Predicated region
    $region54: #{rnn_model_forward.4} parent=1 // pred_check
      _
    $region55: #{rnn_model_forward.4} parent=1 // pred_check_branch
      %3597 = sbr.rel (0) target = $region57
    $region56: #{rnn_model_forward.4} parent=1 // pred_region
      _
    $region57: #{rnn_model_forward.4} parent=1 // pred_fallthru
      _
    // Predicated region
    $region58: #{rnn_model_forward.4} parent=1 // pred_check
      _
    $region59: #{rnn_model_forward.4} parent=1 // pred_check_branch
      %3599 = sbr.rel (0) target = $region61
    $region60: #{rnn_model_forward.4} parent=1 // pred_region
      _
    $region61: #{rnn_model_forward.4} parent=1 // pred_fallthru
      _
    // Predicated region
    $region62: #{rnn_model_forward.4} parent=1 // pred_check
      _
    $region63: #{rnn_model_forward.4} parent=1 // pred_check_branch
      %3601 = sbr.rel (0) target = $region65
    $region64: #{rnn_model_forward.4} parent=1 // pred_region
      _
    $region65: #{rnn_model_forward.4} parent=1 // pred_fallthru
      _
    %3602 = vsyncpa [#allocation7], 1
    %3603 = vsyncpa [#allocation9], 1

</llo_original>
